<compile_context>
chip_gen: v7x
topology: tpu7x:2x2x1
jax: 0.10.0
libtpu: 0.0.40
codegen_flags: <defaults>
</compile_context>

<pallas_src>
import functools

import jax
import jax.numpy as jnp
from jax.experimental import pallas as pl
from jax.experimental.pallas import tpu as pltpu


def _vmem_limit_bytes():
    """Per-generation scoped-VMEM cap: ~3/4 of physical, capped at 96 MiB
    (v5e/v6e: 128 MiB physical -> 96 MiB; v7x: 64 MiB -> 48 MiB)."""
    try:
        cap = int(pltpu.get_tpu_info().vmem_capacity_bytes)
        return int(min(cap * 3 // 4, 96 * 1024 * 1024))
    except Exception:
        return 48 * 1024 * 1024


def _pick_row_tile(ho, wo, cin, ctot, budget):
    """Largest divisor of `ho` whose per-step working set fits `budget` bytes."""
    fixed = 4 * (cin * cin + 17 * cin * ctot)                # weights (bf16, x2 buf)

    def est(rt):
        phase = 4 * (rt + 1) * (wo + 1) * cin * 2            # bf16 phase tiles
        outb = rt * wo * ctot * 4                            # f32 output tile
        inter = (rt + 1) * (wo + 1) * cin * 6 + rt * wo * ctot * 8
        return 2 * (phase + outb) + inter + fixed            # x2: double buffering

    for rt in sorted((d for d in range(1, ho + 1) if ho % d == 0), reverse=True):
        if est(rt) <= budget:
            return rt, ho // rt
    # TODO(synk): add width / output-channel grid tiling when a single output
    # row already overflows the VMEM budget.
    return 1, ho


# ----------------------------------------------------------------------------
# Fused kernel: [cv0 -> conv4x4/s2/p1]  ++  [maxpool2x2 -> 1x1 conv]
# ----------------------------------------------------------------------------

def _downsample_kernel(*refs, rt, wo, cin, coutc, coutm):
    """One (batch, output-row-tile) block.

    refs: p00, p01, p10, p11                      bf16 (rt+1, wo+1, cin) phases
          [w0 (cin,cin), b0 (1,cin), wt (16,cin,coutc), b1 (1,coutc)] if conv
          [wmp (cin,coutm), bmp (1,coutm)]                            if mpool
          o_ref (rt*wo, coutc+coutm) f32
    Phase (p, q) is the stride-2 phase of the zero-padded input; tap index is
    4*ky + kx with ky = 2a+p, kx = 2c+q.
    """
    p_refs = refs[:4]
    idx = 4
    if coutc:
        w0_ref, b0_ref, wt_ref, b1_ref = refs[idx:idx + 4]
        idx += 4
    if coutm:
        wmp_ref, bmp_ref = refs[idx:idx + 2]
        idx += 2
    o_ref = refs[idx]

    xs = [r[...] for r in p_refs]                 # bf16 phase tiles, loaded once
    parts = []

    if coutc:
        t = pl.program_id(1)
        nt = pl.num_programs(1)
        rows = jax.lax.broadcasted_iota(jnp.int32, (rt + 1, wo + 1, cin), 0)
        cols = jax.lax.broadcasted_iota(jnp.int32, (rt + 1, wo + 1, cin), 1)
        w0v = w0_ref[...]
        b0v = b0_ref[...]
        acc = jnp.zeros((rt * wo, coutc), jnp.float32)
        for k, (p, q) in enumerate(((0, 0), (0, 1), (1, 0), (1, 1))):
            # cv0 (1x1 conv) fused in: applied to this phase tile in VMEM.
            y = jnp.dot(xs[k].reshape((rt + 1) * (wo + 1), cin), w0v,
                        preferred_element_type=jnp.float32)
            y = y.reshape(rt + 1, wo + 1, cin)
            # cv0's bias must not reach the zero-padding halo (the reference
            # pads AFTER cv0): halo = row 0 (p=0, first row tile) / row rt
            # (p=1, last row tile), and col 0 (q=0) / col wo (q=1).
            bad_row = (jnp.where(t == 0, 0, -1) if p == 0
                       else jnp.where(t == nt - 1, rt, -1))
            bad_col = 0 if q == 0 else wo
            valid = (rows != bad_row) & (cols != bad_col)
            yb = jnp.where(valid, y + b0v, 0.0).astype(jnp.bfloat16)
            # 16 conv taps as shifted-window matmuls (f32 accumulation).
            # TODO(synk): stack the 4 windows per phase along K (K=4*cin) to
            # cut relayout copies and feed a wider MXU contraction.
            for a in (0, 1):
                for c in (0, 1):
                    tap = yb[a:a + rt, c:c + wo, :].reshape(rt * wo, cin)
                    acc = acc + jnp.dot(
                        tap, wt_ref[4 * (2 * a + p) + (2 * c + q)],
                        preferred_element_type=jnp.float32)
        parts.append(acc + b1_ref[...])

    if coutm:
        # MaxPool2d(2,2) windows are interior slices of the padded phases.
        pooled = jnp.maximum(
            jnp.maximum(xs[3][0:rt, 0:wo, :], xs[2][0:rt, 1:wo + 1, :]),
            jnp.maximum(xs[1][1:rt + 1, 0:wo, :], xs[0][1:rt + 1, 1:wo + 1, :]))
        mp = jnp.dot(pooled.reshape(rt * wo, cin), wmp_ref[...],
                     preferred_element_type=jnp.float32)
        parts.append(mp + bmp_ref[...])

    out = parts[0] if len(parts) == 1 else jnp.concatenate(parts, axis=-1)
    o_ref[...] = out.astype(o_ref.dtype)


# ----------------------------------------------------------------------------
# Module forward (matches Downsample.forward semantics, stride k = 2)
# ----------------------------------------------------------------------------

def downsample_forward(params, x, use_conv=True, use_mpool=True):
    """x: (B, Cin, H, W) NCHW, matching the PyTorch module interface."""
    if not use_conv and not use_mpool:
        return x                                   # both branches are Identity
    B, Cin, H, W = x.shape
    assert H % 2 == 0 and W % 2 == 0, "even spatial dims required (stride 2)"
    Ho, Wo = H // 2, W // 2
    coutc = params["cv1_w"].shape[0] if use_conv else 0
    coutm = params["mp_w"].shape[0] if use_mpool else 0
    ctot = coutc + coutm

    # Single NCHW->NHWC transpose; cast activations to bf16 once so the
    # memory-bound kernel DMAs half the bytes (all accumulation stays f32).
    # TODO(synk): at tiny channel counts (Cin < 64) a spatial-on-lanes layout
    # would use the 128 lanes better; channels-last is kept for realistic Cin.
    xh = jnp.transpose(x, (0, 2, 3, 1)).astype(jnp.bfloat16)

    # Stride-2 phase decomposition of the zero-padded input, built directly
    # from xh so XLA fuses slice+pad into the phase copies (one full-res copy
    # in HBM total, shared by both branches).
    # TODO(synk): extract the phases inside the kernel with strided pl.ds loads
    # to remove this remaining full-resolution HBM copy as well.
    phases = []
    for p in (0, 1):
        for q in (0, 1):
            ph = xh[:, (1 - p)::2, (1 - q)::2, :]                  # (B,Ho,Wo,C)
            ph = jnp.pad(ph, ((0, 0), (1 - p, p), (1 - q, q), (0, 0)))
            phases.append(ph)                                      # (B,Ho+1,Wo+1,C)

    # Output-row tiling: keeps the per-step working set within VMEM on every
    # generation (v7x: 64 MiB physical) and lengthens the grid for pipelining.
    vmem_limit = _vmem_limit_bytes()
    rt, nt = _pick_row_tile(Ho, Wo, Cin, ctot, budget=vmem_limit // 4)

    def tile_rows(ph):
        if nt == 1:
            return ph[:, None]
        return jnp.stack([ph[:, i * rt:i * rt + rt + 1] for i in range(nt)],
                         axis=1)                          # 1-row halo overlap

    phases = [tile_rows(ph) for ph in phases]             # (B,nt,rt+1,Wo+1,Cin)

    operands = list(phases)
    phase_spec = pl.BlockSpec((None, None, rt + 1, Wo + 1, Cin),
                              lambda b, t: (b, t, 0, 0, 0))
    in_specs = [phase_spec] * 4
    if use_conv:
        w0 = params["cv0_w"].reshape(Cin, Cin).T.astype(jnp.bfloat16)
        b0 = params["cv0_b"].astype(jnp.float32).reshape(1, Cin)
        wt = jnp.transpose(params["cv1_w"], (2, 3, 1, 0)).reshape(
            16, Cin, coutc).astype(jnp.bfloat16)
        b1 = params["cv1_b"].astype(jnp.float32).reshape(1, coutc)
        operands += [w0, b0, wt, b1]
        in_specs += [
            pl.BlockSpec((Cin, Cin), lambda b, t: (0, 0)),
            pl.BlockSpec((1, Cin), lambda b, t: (0, 0)),
            pl.BlockSpec((16, Cin, coutc), lambda b, t: (0, 0, 0)),
            pl.BlockSpec((1, coutc), lambda b, t: (0, 0)),
        ]
    if use_mpool:
        wmp = params["mp_w"].reshape(coutm, Cin).T.astype(jnp.bfloat16)
        bmp = params["mp_b"].astype(jnp.float32).reshape(1, coutm)
        operands += [wmp, bmp]
        in_specs += [
            pl.BlockSpec((Cin, coutm), lambda b, t: (0, 0)),
            pl.BlockSpec((1, coutm), lambda b, t: (0, 0)),
        ]

    out = pl.pallas_call(
        functools.partial(_downsample_kernel, rt=rt, wo=Wo, cin=Cin,
                          coutc=coutc, coutm=coutm),
        out_shape=jax.ShapeDtypeStruct((B, nt, rt * Wo, ctot), jnp.float32),
        grid=(B, nt),
        in_specs=in_specs,
        out_specs=pl.BlockSpec((None, None, rt * Wo, ctot),
                               lambda b, t: (b, t, 0, 0)),
        compiler_params=pltpu.CompilerParams(
            dimension_semantics=("parallel", "parallel"),
            vmem_limit_bytes=vmem_limit),
    )(*operands)

    y = out.reshape(B, Ho, Wo, ctot)                # (nt*rt, Wo) -> (Ho, Wo)
    return jnp.transpose(y, (0, 3, 1, 2))           # back to NCHW at the boundary


# ----------------------------------------------------------------------------
# Parameters + pure-XLA f32 reference (correctness check only)
# ----------------------------------------------------------------------------

def init_params(key, in_channels, out_channels, use_conv=True, use_mpool=True):
    keys = jax.random.split(key, 6)
    s = 0.1

    def nrm(k, shape):
        return s * jax.random.normal(k, shape, dtype=jnp.float32)

    params = {}
    if use_conv:
        cv_out = out_channels // 2 if use_mpool else out_channels
        params["cv0_w"] = nrm(keys[0], (in_channels, in_channels, 1, 1))
        params["cv0_b"] = nrm(keys[1], (in_channels,))
        params["cv1_w"] = nrm(keys[2], (cv_out, in_channels, 4, 4))
        params["cv1_b"] = nrm(keys[3], (cv_out,))
    if use_mpool:
        mp_out = out_channels // 2 if use_conv else out_channels
        params["mp_w"] = nrm(keys[4], (mp_out, in_channels, 1, 1))
        params["mp_b"] = nrm(keys[5], (mp_out,))
    return params


def reference_forward(params, x, use_conv=True, use_mpool=True):
    dn = ("NCHW", "OIHW", "NCHW")
    prec = jax.lax.Precision.HIGHEST
    if not use_conv and not use_mpool:
        return x
    outs = []
    if use_conv:
        y = jax.lax.conv_general_dilated(x, params["cv0_w"], (1, 1), "VALID",
                                         dimension_numbers=dn, precision=prec)
        y = y + params["cv0_b"][None, :, None, None]
        y = jax.lax.conv_general_dilated(y, params["cv1_w"], (2, 2),
                                         ((1, 1), (1, 1)),
                                         dimension_numbers=dn, precision=prec)
        y = y + params["cv1_b"][None, :, None, None]
        outs.append(y)
    if use_mpool:
        m = jax.lax.reduce_window(x, -jnp.inf, jax.lax.max,
                                  (1, 1, 2, 2), (1, 1, 2, 2), "VALID")
        m = jax.lax.conv_general_dilated(m, params["mp_w"], (1, 1), "VALID",
                                         dimension_numbers=dn, precision=prec)
        m = m + params["mp_b"][None, :, None, None]
        outs.append(m)
    return outs[0] if len(outs) == 1 else jnp.concatenate(outs, axis=1)


# ----------------------------------------------------------------------------

if __name__ == "__main__":
    B, IN_C, OUT_C, H, W = 2, 8, 16, 16, 16

    key = jax.random.PRNGKey(0)
    kx, kp = jax.random.split(key)
    x = jax.random.normal(kx, (B, IN_C, H, W), dtype=jnp.float32)
    params = init_params(kp, IN_C, OUT_C)

    fwd = jax.jit(downsample_forward)
    out = fwd(params, x)
    jax.block_until_ready(out)
    assert out.shape == (B, OUT_C, H // 2, W // 2), out.shape

    ref = reference_forward(params, x)
    max_err = float(jnp.max(jnp.abs(out - ref)))
    assert bool(jnp.allclose(out, ref, atol=2e-2, rtol=2e-2)), max_err
    print("KERNEL_OK")
</pallas_src>

<mosaic_0001>
module attributes {stable_mosaic.version = 11 : i64} {
  func.func @_downsample_kernel(%arg0: i32, %arg1: i32, %arg2: memref<1x1x9x9x8xbf16, #tpu.memory_space<vmem>>, %arg3: memref<1x1x9x9x8xbf16, #tpu.memory_space<vmem>>, %arg4: memref<1x1x9x9x8xbf16, #tpu.memory_space<vmem>>, %arg5: memref<1x1x9x9x8xbf16, #tpu.memory_space<vmem>>, %arg6: memref<8x8xbf16, #tpu.memory_space<vmem>>, %arg7: memref<1x8xf32, #tpu.memory_space<vmem>>, %arg8: memref<16x8x8xbf16, #tpu.memory_space<vmem>>, %arg9: memref<1x8xf32, #tpu.memory_space<vmem>>, %arg10: memref<8x8xbf16, #tpu.memory_space<vmem>>, %arg11: memref<1x8xf32, #tpu.memory_space<vmem>>, %arg12: memref<1x1x64x16xf32, #tpu.memory_space<vmem>>) attributes {dimension_semantics = [#tpu.dimension_semantics<parallel>, #tpu.dimension_semantics<parallel>], iteration_bounds = array<i64: 2, 1>, scalar_prefetch = 0 : i64, scratch_operands = 0 : i64, tpu.core_type = #tpu.core_type<tc>, window_params = [{transform_indices = @transform_0, window_bounds = array<i64: 1, 1, 9, 9, 8>}, {transform_indices = @transform_1, window_bounds = array<i64: 1, 1, 9, 9, 8>}, {transform_indices = @transform_2, window_bounds = array<i64: 1, 1, 9, 9, 8>}, {transform_indices = @transform_3, window_bounds = array<i64: 1, 1, 9, 9, 8>}, {pipeline_mode = #tpu.pipeline_mode<synchronous>, transform_indices = @transform_4, window_bounds = array<i64: 8, 8>}, {pipeline_mode = #tpu.pipeline_mode<synchronous>, transform_indices = @transform_5, window_bounds = array<i64: 1, 8>}, {pipeline_mode = #tpu.pipeline_mode<synchronous>, transform_indices = @transform_6, window_bounds = array<i64: 16, 8, 8>}, {pipeline_mode = #tpu.pipeline_mode<synchronous>, transform_indices = @transform_7, window_bounds = array<i64: 1, 8>}, {pipeline_mode = #tpu.pipeline_mode<synchronous>, transform_indices = @transform_8, window_bounds = array<i64: 8, 8>}, {pipeline_mode = #tpu.pipeline_mode<synchronous>, transform_indices = @transform_9, window_bounds = array<i64: 1, 8>}, {transform_indices = @transform_10, window_bounds = array<i64: 1, 1, 64, 16>}]} {
    %c0 = arith.constant 0 : index
    %c0_0 = arith.constant 0 : index
    %c0_1 = arith.constant 0 : index
    %c0_2 = arith.constant 0 : index
    %c0_3 = arith.constant 0 : index
    %0 = vector.load %arg2[%c0, %c0_0, %c0_1, %c0_2, %c0_3] : memref<1x1x9x9x8xbf16, #tpu.memory_space<vmem>>, vector<1x1x9x9x8xbf16>
    %1 = vector.shape_cast %0 : vector<1x1x9x9x8xbf16> to vector<9x9x8xbf16>
    %c0_4 = arith.constant 0 : index
    %c0_5 = arith.constant 0 : index
    %c0_6 = arith.constant 0 : index
    %c0_7 = arith.constant 0 : index
    %c0_8 = arith.constant 0 : index
    %2 = vector.load %arg3[%c0_4, %c0_5, %c0_6, %c0_7, %c0_8] : memref<1x1x9x9x8xbf16, #tpu.memory_space<vmem>>, vector<1x1x9x9x8xbf16>
    %3 = vector.shape_cast %2 : vector<1x1x9x9x8xbf16> to vector<9x9x8xbf16>
    %c0_9 = arith.constant 0 : index
    %c0_10 = arith.constant 0 : index
    %c0_11 = arith.constant 0 : index
    %c0_12 = arith.constant 0 : index
    %c0_13 = arith.constant 0 : index
    %4 = vector.load %arg4[%c0_9, %c0_10, %c0_11, %c0_12, %c0_13] : memref<1x1x9x9x8xbf16, #tpu.memory_space<vmem>>, vector<1x1x9x9x8xbf16>
    %5 = vector.shape_cast %4 : vector<1x1x9x9x8xbf16> to vector<9x9x8xbf16>
    %c0_14 = arith.constant 0 : index
    %c0_15 = arith.constant 0 : index
    %c0_16 = arith.constant 0 : index
    %c0_17 = arith.constant 0 : index
    %c0_18 = arith.constant 0 : index
    %6 = vector.load %arg5[%c0_14, %c0_15, %c0_16, %c0_17, %c0_18] : memref<1x1x9x9x8xbf16, #tpu.memory_space<vmem>>, vector<1x1x9x9x8xbf16>
    %7 = vector.shape_cast %6 : vector<1x1x9x9x8xbf16> to vector<9x9x8xbf16>
    %8 = tpu.iota {dimensions = array<i32: 0>} : vector<9x9x8xi32>
    %9 = tpu.iota {dimensions = array<i32: 1>} : vector<9x9x8xi32>
    %c0_19 = arith.constant 0 : index
    %c0_20 = arith.constant 0 : index
    %10 = vector.load %arg6[%c0_19, %c0_20] : memref<8x8xbf16, #tpu.memory_space<vmem>>, vector<8x8xbf16>
    %c0_21 = arith.constant 0 : index
    %c0_22 = arith.constant 0 : index
    %11 = vector.load %arg7[%c0_21, %c0_22] : memref<1x8xf32, #tpu.memory_space<vmem>>, vector<1x8xf32>
    %cst = arith.constant 0.000000e+00 : f32
    %12 = vector.broadcast %cst : f32 to vector<64x8xf32>
    %13 = vector.shape_cast %1 : vector<9x9x8xbf16> to vector<81x8xbf16>
    %cst_23 = arith.constant dense<0.000000e+00> : vector<81x8xf32>
    %14 = tpu.matmul %13, %10, %cst_23 {dimension_numbers = #tpu.dot_dimension_numbers<[1], [0], [0], [1], [0, 0, 1, 1], [], []>} : vector<81x8xbf16>, vector<8x8xbf16>, vector<81x8xf32> -> vector<81x8xf32>
    %15 = vector.shape_cast %14 : vector<81x8xf32> to vector<9x9x8xf32>
    %c0_i32 = arith.constant 0 : i32
    %16 = arith.cmpi eq, %arg1, %c0_i32 : i32
    %c0_i32_24 = arith.constant 0 : i32
    %c-1_i32 = arith.constant -1 : i32
    %17 = arith.select %16, %c0_i32_24, %c-1_i32 : i32
    %18 = vector.broadcast %17 : i32 to vector<9x9x8xi32>
    %19 = arith.cmpi ne, %8, %18 : vector<9x9x8xi32>
    %c0_i32_25 = arith.constant 0 : i32
    %20 = vector.broadcast %c0_i32_25 : i32 to vector<9x9x8xi32>
    %21 = arith.cmpi ne, %9, %20 : vector<9x9x8xi32>
    %22 = arith.andi %19, %21 : vector<9x9x8xi1>
    %23 = vector.shape_cast %11 : vector<1x8xf32> to vector<1x1x8xf32>
    %24 = vector.broadcast %23 : vector<1x1x8xf32> to vector<9x9x8xf32>
    %25 = arith.addf %15, %24 : vector<9x9x8xf32>
    %cst_26 = arith.constant 0.000000e+00 : f32
    %26 = vector.broadcast %cst_26 : f32 to vector<9x9x8xf32>
    %27 = arith.select %22, %25, %26 : vector<9x9x8xi1>, vector<9x9x8xf32>
    %28 = arith.truncf %27 : vector<9x9x8xf32> to vector<9x9x8xbf16>
    %29 = vector.extract_strided_slice %28 {offsets = [0, 0, 0], sizes = [8, 8, 8], strides = [1, 1, 1]} : vector<9x9x8xbf16> to vector<8x8x8xbf16>
    %30 = vector.shape_cast %29 : vector<8x8x8xbf16> to vector<64x8xbf16>
    %c0_27 = arith.constant 0 : index
    %c0_28 = arith.constant 0 : index
    %c0_29 = arith.constant 0 : index
    %31 = vector.load %arg8[%c0_27, %c0_28, %c0_29] : memref<16x8x8xbf16, #tpu.memory_space<vmem>>, vector<1x8x8xbf16>
    %32 = vector.shape_cast %31 : vector<1x8x8xbf16> to vector<8x8xbf16>
    %cst_30 = arith.constant dense<0.000000e+00> : vector<64x8xf32>
    %33 = tpu.matmul %30, %32, %cst_30 {dimension_numbers = #tpu.dot_dimension_numbers<[1], [0], [0], [1], [0, 0, 1, 1], [], []>} : vector<64x8xbf16>, vector<8x8xbf16>, vector<64x8xf32> -> vector<64x8xf32>
    %34 = arith.addf %12, %33 : vector<64x8xf32>
    %35 = vector.extract_strided_slice %28 {offsets = [0, 1, 0], sizes = [8, 8, 8], strides = [1, 1, 1]} : vector<9x9x8xbf16> to vector<8x8x8xbf16>
    %36 = vector.shape_cast %35 : vector<8x8x8xbf16> to vector<64x8xbf16>
    %c2 = arith.constant 2 : index
    %c0_31 = arith.constant 0 : index
    %c0_32 = arith.constant 0 : index
    %37 = vector.load %arg8[%c2, %c0_31, %c0_32] : memref<16x8x8xbf16, #tpu.memory_space<vmem>>, vector<1x8x8xbf16>
    %38 = vector.shape_cast %37 : vector<1x8x8xbf16> to vector<8x8xbf16>
    %cst_33 = arith.constant dense<0.000000e+00> : vector<64x8xf32>
    %39 = tpu.matmul %36, %38, %cst_33 {dimension_numbers = #tpu.dot_dimension_numbers<[1], [0], [0], [1], [0, 0, 1, 1], [], []>} : vector<64x8xbf16>, vector<8x8xbf16>, vector<64x8xf32> -> vector<64x8xf32>
    %40 = arith.addf %34, %39 : vector<64x8xf32>
    %41 = vector.extract_strided_slice %28 {offsets = [1, 0, 0], sizes = [8, 8, 8], strides = [1, 1, 1]} : vector<9x9x8xbf16> to vector<8x8x8xbf16>
    %42 = vector.shape_cast %41 : vector<8x8x8xbf16> to vector<64x8xbf16>
    %c8 = arith.constant 8 : index
    %c0_34 = arith.constant 0 : index
    %c0_35 = arith.constant 0 : index
    %43 = vector.load %arg8[%c8, %c0_34, %c0_35] : memref<16x8x8xbf16, #tpu.memory_space<vmem>>, vector<1x8x8xbf16>
    %44 = vector.shape_cast %43 : vector<1x8x8xbf16> to vector<8x8xbf16>
    %cst_36 = arith.constant dense<0.000000e+00> : vector<64x8xf32>
    %45 = tpu.matmul %42, %44, %cst_36 {dimension_numbers = #tpu.dot_dimension_numbers<[1], [0], [0], [1], [0, 0, 1, 1], [], []>} : vector<64x8xbf16>, vector<8x8xbf16>, vector<64x8xf32> -> vector<64x8xf32>
    %46 = arith.addf %40, %45 : vector<64x8xf32>
    %47 = vector.extract_strided_slice %28 {offsets = [1, 1, 0], sizes = [8, 8, 8], strides = [1, 1, 1]} : vector<9x9x8xbf16> to vector<8x8x8xbf16>
    %48 = vector.shape_cast %47 : vector<8x8x8xbf16> to vector<64x8xbf16>
    %c10 = arith.constant 10 : index
    %c0_37 = arith.constant 0 : index
    %c0_38 = arith.constant 0 : index
    %49 = vector.load %arg8[%c10, %c0_37, %c0_38] : memref<16x8x8xbf16, #tpu.memory_space<vmem>>, vector<1x8x8xbf16>
    %50 = vector.shape_cast %49 : vector<1x8x8xbf16> to vector<8x8xbf16>
    %cst_39 = arith.constant dense<0.000000e+00> : vector<64x8xf32>
    %51 = tpu.matmul %48, %50, %cst_39 {dimension_numbers = #tpu.dot_dimension_numbers<[1], [0], [0], [1], [0, 0, 1, 1], [], []>} : vector<64x8xbf16>, vector<8x8xbf16>, vector<64x8xf32> -> vector<64x8xf32>
    %52 = arith.addf %46, %51 : vector<64x8xf32>
    %53 = vector.shape_cast %3 : vector<9x9x8xbf16> to vector<81x8xbf16>
    %cst_40 = arith.constant dense<0.000000e+00> : vector<81x8xf32>
    %54 = tpu.matmul %53, %10, %cst_40 {dimension_numbers = #tpu.dot_dimension_numbers<[1], [0], [0], [1], [0, 0, 1, 1], [], []>} : vector<81x8xbf16>, vector<8x8xbf16>, vector<81x8xf32> -> vector<81x8xf32>
    %55 = vector.shape_cast %54 : vector<81x8xf32> to vector<9x9x8xf32>
    %c0_i32_41 = arith.constant 0 : i32
    %56 = arith.cmpi eq, %arg1, %c0_i32_41 : i32
    %c0_i32_42 = arith.constant 0 : i32
    %c-1_i32_43 = arith.constant -1 : i32
    %57 = arith.select %56, %c0_i32_42, %c-1_i32_43 : i32
    %58 = vector.broadcast %57 : i32 to vector<9x9x8xi32>
    %59 = arith.cmpi ne, %8, %58 : vector<9x9x8xi32>
    %c8_i32 = arith.constant 8 : i32
    %60 = vector.broadcast %c8_i32 : i32 to vector<9x9x8xi32>
    %61 = arith.cmpi ne, %9, %60 : vector<9x9x8xi32>
    %62 = arith.andi %59, %61 : vector<9x9x8xi1>
    %63 = vector.shape_cast %11 : vector<1x8xf32> to vector<1x1x8xf32>
    %64 = vector.broadcast %63 : vector<1x1x8xf32> to vector<9x9x8xf32>
    %65 = arith.addf %55, %64 : vector<9x9x8xf32>
    %cst_44 = arith.constant 0.000000e+00 : f32
    %66 = vector.broadcast %cst_44 : f32 to vector<9x9x8xf32>
    %67 = arith.select %62, %65, %66 : vector<9x9x8xi1>, vector<9x9x8xf32>
    %68 = arith.truncf %67 : vector<9x9x8xf32> to vector<9x9x8xbf16>
    %69 = vector.extract_strided_slice %68 {offsets = [0, 0, 0], sizes = [8, 8, 8], strides = [1, 1, 1]} : vector<9x9x8xbf16> to vector<8x8x8xbf16>
    %70 = vector.shape_cast %69 : vector<8x8x8xbf16> to vector<64x8xbf16>
    %c1 = arith.constant 1 : index
    %c0_45 = arith.constant 0 : index
    %c0_46 = arith.constant 0 : index
    %71 = vector.load %arg8[%c1, %c0_45, %c0_46] : memref<16x8x8xbf16, #tpu.memory_space<vmem>>, vector<1x8x8xbf16>
    %72 = vector.shape_cast %71 : vector<1x8x8xbf16> to vector<8x8xbf16>
    %cst_47 = arith.constant dense<0.000000e+00> : vector<64x8xf32>
    %73 = tpu.matmul %70, %72, %cst_47 {dimension_numbers = #tpu.dot_dimension_numbers<[1], [0], [0], [1], [0, 0, 1, 1], [], []>} : vector<64x8xbf16>, vector<8x8xbf16>, vector<64x8xf32> -> vector<64x8xf32>
    %74 = arith.addf %52, %73 : vector<64x8xf32>
    %75 = vector.extract_strided_slice %68 {offsets = [0, 1, 0], sizes = [8, 8, 8], strides = [1, 1, 1]} : vector<9x9x8xbf16> to vector<8x8x8xbf16>
    %76 = vector.shape_cast %75 : vector<8x8x8xbf16> to vector<64x8xbf16>
    %c3 = arith.constant 3 : index
    %c0_48 = arith.constant 0 : index
    %c0_49 = arith.constant 0 : index
    %77 = vector.load %arg8[%c3, %c0_48, %c0_49] : memref<16x8x8xbf16, #tpu.memory_space<vmem>>, vector<1x8x8xbf16>
    %78 = vector.shape_cast %77 : vector<1x8x8xbf16> to vector<8x8xbf16>
    %cst_50 = arith.constant dense<0.000000e+00> : vector<64x8xf32>
    %79 = tpu.matmul %76, %78, %cst_50 {dimension_numbers = #tpu.dot_dimension_numbers<[1], [0], [0], [1], [0, 0, 1, 1], [], []>} : vector<64x8xbf16>, vector<8x8xbf16>, vector<64x8xf32> -> vector<64x8xf32>
    %80 = arith.addf %74, %79 : vector<64x8xf32>
    %81 = vector.extract_strided_slice %68 {offsets = [1, 0, 0], sizes = [8, 8, 8], strides = [1, 1, 1]} : vector<9x9x8xbf16> to vector<8x8x8xbf16>
    %82 = vector.shape_cast %81 : vector<8x8x8xbf16> to vector<64x8xbf16>
    %c9 = arith.constant 9 : index
    %c0_51 = arith.constant 0 : index
    %c0_52 = arith.constant 0 : index
    %83 = vector.load %arg8[%c9, %c0_51, %c0_52] : memref<16x8x8xbf16, #tpu.memory_space<vmem>>, vector<1x8x8xbf16>
    %84 = vector.shape_cast %83 : vector<1x8x8xbf16> to vector<8x8xbf16>
    %cst_53 = arith.constant dense<0.000000e+00> : vector<64x8xf32>
    %85 = tpu.matmul %82, %84, %cst_53 {dimension_numbers = #tpu.dot_dimension_numbers<[1], [0], [0], [1], [0, 0, 1, 1], [], []>} : vector<64x8xbf16>, vector<8x8xbf16>, vector<64x8xf32> -> vector<64x8xf32>
    %86 = arith.addf %80, %85 : vector<64x8xf32>
    %87 = vector.extract_strided_slice %68 {offsets = [1, 1, 0], sizes = [8, 8, 8], strides = [1, 1, 1]} : vector<9x9x8xbf16> to vector<8x8x8xbf16>
    %88 = vector.shape_cast %87 : vector<8x8x8xbf16> to vector<64x8xbf16>
    %c11 = arith.constant 11 : index
    %c0_54 = arith.constant 0 : index
    %c0_55 = arith.constant 0 : index
    %89 = vector.load %arg8[%c11, %c0_54, %c0_55] : memref<16x8x8xbf16, #tpu.memory_space<vmem>>, vector<1x8x8xbf16>
    %90 = vector.shape_cast %89 : vector<1x8x8xbf16> to vector<8x8xbf16>
    %cst_56 = arith.constant dense<0.000000e+00> : vector<64x8xf32>
    %91 = tpu.matmul %88, %90, %cst_56 {dimension_numbers = #tpu.dot_dimension_numbers<[1], [0], [0], [1], [0, 0, 1, 1], [], []>} : vector<64x8xbf16>, vector<8x8xbf16>, vector<64x8xf32> -> vector<64x8xf32>
    %92 = arith.addf %86, %91 : vector<64x8xf32>
    %93 = vector.shape_cast %5 : vector<9x9x8xbf16> to vector<81x8xbf16>
    %cst_57 = arith.constant dense<0.000000e+00> : vector<81x8xf32>
    %94 = tpu.matmul %93, %10, %cst_57 {dimension_numbers = #tpu.dot_dimension_numbers<[1], [0], [0], [1], [0, 0, 1, 1], [], []>} : vector<81x8xbf16>, vector<8x8xbf16>, vector<81x8xf32> -> vector<81x8xf32>
    %95 = vector.shape_cast %94 : vector<81x8xf32> to vector<9x9x8xf32>
    %c0_i32_58 = arith.constant 0 : i32
    %96 = arith.cmpi eq, %arg1, %c0_i32_58 : i32
    %c8_i32_59 = arith.constant 8 : i32
    %c-1_i32_60 = arith.constant -1 : i32
    %97 = arith.select %96, %c8_i32_59, %c-1_i32_60 : i32
    %98 = vector.broadcast %97 : i32 to vector<9x9x8xi32>
    %99 = arith.cmpi ne, %8, %98 : vector<9x9x8xi32>
    %c0_i32_61 = arith.constant 0 : i32
    %100 = vector.broadcast %c0_i32_61 : i32 to vector<9x9x8xi32>
    %101 = arith.cmpi ne, %9, %100 : vector<9x9x8xi32>
    %102 = arith.andi %99, %101 : vector<9x9x8xi1>
    %103 = vector.shape_cast %11 : vector<1x8xf32> to vector<1x1x8xf32>
    %104 = vector.broadcast %103 : vector<1x1x8xf32> to vector<9x9x8xf32>
    %105 = arith.addf %95, %104 : vector<9x9x8xf32>
    %cst_62 = arith.constant 0.000000e+00 : f32
    %106 = vector.broadcast %cst_62 : f32 to vector<9x9x8xf32>
    %107 = arith.select %102, %105, %106 : vector<9x9x8xi1>, vector<9x9x8xf32>
    %108 = arith.truncf %107 : vector<9x9x8xf32> to vector<9x9x8xbf16>
    %109 = vector.extract_strided_slice %108 {offsets = [0, 0, 0], sizes = [8, 8, 8], strides = [1, 1, 1]} : vector<9x9x8xbf16> to vector<8x8x8xbf16>
    %110 = vector.shape_cast %109 : vector<8x8x8xbf16> to vector<64x8xbf16>
    %c4 = arith.constant 4 : index
    %c0_63 = arith.constant 0 : index
    %c0_64 = arith.constant 0 : index
    %111 = vector.load %arg8[%c4, %c0_63, %c0_64] : memref<16x8x8xbf16, #tpu.memory_space<vmem>>, vector<1x8x8xbf16>
    %112 = vector.shape_cast %111 : vector<1x8x8xbf16> to vector<8x8xbf16>
    %cst_65 = arith.constant dense<0.000000e+00> : vector<64x8xf32>
    %113 = tpu.matmul %110, %112, %cst_65 {dimension_numbers = #tpu.dot_dimension_numbers<[1], [0], [0], [1], [0, 0, 1, 1], [], []>} : vector<64x8xbf16>, vector<8x8xbf16>, vector<64x8xf32> -> vector<64x8xf32>
    %114 = arith.addf %92, %113 : vector<64x8xf32>
    %115 = vector.extract_strided_slice %108 {offsets = [0, 1, 0], sizes = [8, 8, 8], strides = [1, 1, 1]} : vector<9x9x8xbf16> to vector<8x8x8xbf16>
    %116 = vector.shape_cast %115 : vector<8x8x8xbf16> to vector<64x8xbf16>
    %c6 = arith.constant 6 : index
    %c0_66 = arith.constant 0 : index
    %c0_67 = arith.constant 0 : index
    %117 = vector.load %arg8[%c6, %c0_66, %c0_67] : memref<16x8x8xbf16, #tpu.memory_space<vmem>>, vector<1x8x8xbf16>
    %118 = vector.shape_cast %117 : vector<1x8x8xbf16> to vector<8x8xbf16>
    %cst_68 = arith.constant dense<0.000000e+00> : vector<64x8xf32>
    %119 = tpu.matmul %116, %118, %cst_68 {dimension_numbers = #tpu.dot_dimension_numbers<[1], [0], [0], [1], [0, 0, 1, 1], [], []>} : vector<64x8xbf16>, vector<8x8xbf16>, vector<64x8xf32> -> vector<64x8xf32>
    %120 = arith.addf %114, %119 : vector<64x8xf32>
    %121 = vector.extract_strided_slice %108 {offsets = [1, 0, 0], sizes = [8, 8, 8], strides = [1, 1, 1]} : vector<9x9x8xbf16> to vector<8x8x8xbf16>
    %122 = vector.shape_cast %121 : vector<8x8x8xbf16> to vector<64x8xbf16>
    %c12 = arith.constant 12 : index
    %c0_69 = arith.constant 0 : index
    %c0_70 = arith.constant 0 : index
    %123 = vector.load %arg8[%c12, %c0_69, %c0_70] : memref<16x8x8xbf16, #tpu.memory_space<vmem>>, vector<1x8x8xbf16>
    %124 = vector.shape_cast %123 : vector<1x8x8xbf16> to vector<8x8xbf16>
    %cst_71 = arith.constant dense<0.000000e+00> : vector<64x8xf32>
    %125 = tpu.matmul %122, %124, %cst_71 {dimension_numbers = #tpu.dot_dimension_numbers<[1], [0], [0], [1], [0, 0, 1, 1], [], []>} : vector<64x8xbf16>, vector<8x8xbf16>, vector<64x8xf32> -> vector<64x8xf32>
    %126 = arith.addf %120, %125 : vector<64x8xf32>
    %127 = vector.extract_strided_slice %108 {offsets = [1, 1, 0], sizes = [8, 8, 8], strides = [1, 1, 1]} : vector<9x9x8xbf16> to vector<8x8x8xbf16>
    %128 = vector.shape_cast %127 : vector<8x8x8xbf16> to vector<64x8xbf16>
    %c14 = arith.constant 14 : index
    %c0_72 = arith.constant 0 : index
    %c0_73 = arith.constant 0 : index
    %129 = vector.load %arg8[%c14, %c0_72, %c0_73] : memref<16x8x8xbf16, #tpu.memory_space<vmem>>, vector<1x8x8xbf16>
    %130 = vector.shape_cast %129 : vector<1x8x8xbf16> to vector<8x8xbf16>
    %cst_74 = arith.constant dense<0.000000e+00> : vector<64x8xf32>
    %131 = tpu.matmul %128, %130, %cst_74 {dimension_numbers = #tpu.dot_dimension_numbers<[1], [0], [0], [1], [0, 0, 1, 1], [], []>} : vector<64x8xbf16>, vector<8x8xbf16>, vector<64x8xf32> -> vector<64x8xf32>
    %132 = arith.addf %126, %131 : vector<64x8xf32>
    %133 = vector.shape_cast %7 : vector<9x9x8xbf16> to vector<81x8xbf16>
    %cst_75 = arith.constant dense<0.000000e+00> : vector<81x8xf32>
    %134 = tpu.matmul %133, %10, %cst_75 {dimension_numbers = #tpu.dot_dimension_numbers<[1], [0], [0], [1], [0, 0, 1, 1], [], []>} : vector<81x8xbf16>, vector<8x8xbf16>, vector<81x8xf32> -> vector<81x8xf32>
    %135 = vector.shape_cast %134 : vector<81x8xf32> to vector<9x9x8xf32>
    %c0_i32_76 = arith.constant 0 : i32
    %136 = arith.cmpi eq, %arg1, %c0_i32_76 : i32
    %c8_i32_77 = arith.constant 8 : i32
    %c-1_i32_78 = arith.constant -1 : i32
    %137 = arith.select %136, %c8_i32_77, %c-1_i32_78 : i32
    %138 = vector.broadcast %137 : i32 to vector<9x9x8xi32>
    %139 = arith.cmpi ne, %8, %138 : vector<9x9x8xi32>
    %c8_i32_79 = arith.constant 8 : i32
    %140 = vector.broadcast %c8_i32_79 : i32 to vector<9x9x8xi32>
    %141 = arith.cmpi ne, %9, %140 : vector<9x9x8xi32>
    %142 = arith.andi %139, %141 : vector<9x9x8xi1>
    %143 = vector.shape_cast %11 : vector<1x8xf32> to vector<1x1x8xf32>
    %144 = vector.broadcast %143 : vector<1x1x8xf32> to vector<9x9x8xf32>
    %145 = arith.addf %135, %144 : vector<9x9x8xf32>
    %cst_80 = arith.constant 0.000000e+00 : f32
    %146 = vector.broadcast %cst_80 : f32 to vector<9x9x8xf32>
    %147 = arith.select %142, %145, %146 : vector<9x9x8xi1>, vector<9x9x8xf32>
    %148 = arith.truncf %147 : vector<9x9x8xf32> to vector<9x9x8xbf16>
    %149 = vector.extract_strided_slice %148 {offsets = [0, 0, 0], sizes = [8, 8, 8], strides = [1, 1, 1]} : vector<9x9x8xbf16> to vector<8x8x8xbf16>
    %150 = vector.shape_cast %149 : vector<8x8x8xbf16> to vector<64x8xbf16>
    %c5 = arith.constant 5 : index
    %c0_81 = arith.constant 0 : index
    %c0_82 = arith.constant 0 : index
    %151 = vector.load %arg8[%c5, %c0_81, %c0_82] : memref<16x8x8xbf16, #tpu.memory_space<vmem>>, vector<1x8x8xbf16>
    %152 = vector.shape_cast %151 : vector<1x8x8xbf16> to vector<8x8xbf16>
    %cst_83 = arith.constant dense<0.000000e+00> : vector<64x8xf32>
    %153 = tpu.matmul %150, %152, %cst_83 {dimension_numbers = #tpu.dot_dimension_numbers<[1], [0], [0], [1], [0, 0, 1, 1], [], []>} : vector<64x8xbf16>, vector<8x8xbf16>, vector<64x8xf32> -> vector<64x8xf32>
    %154 = arith.addf %132, %153 : vector<64x8xf32>
    %155 = vector.extract_strided_slice %148 {offsets = [0, 1, 0], sizes = [8, 8, 8], strides = [1, 1, 1]} : vector<9x9x8xbf16> to vector<8x8x8xbf16>
    %156 = vector.shape_cast %155 : vector<8x8x8xbf16> to vector<64x8xbf16>
    %c7 = arith.constant 7 : index
    %c0_84 = arith.constant 0 : index
    %c0_85 = arith.constant 0 : index
    %157 = vector.load %arg8[%c7, %c0_84, %c0_85] : memref<16x8x8xbf16, #tpu.memory_space<vmem>>, vector<1x8x8xbf16>
    %158 = vector.shape_cast %157 : vector<1x8x8xbf16> to vector<8x8xbf16>
    %cst_86 = arith.constant dense<0.000000e+00> : vector<64x8xf32>
    %159 = tpu.matmul %156, %158, %cst_86 {dimension_numbers = #tpu.dot_dimension_numbers<[1], [0], [0], [1], [0, 0, 1, 1], [], []>} : vector<64x8xbf16>, vector<8x8xbf16>, vector<64x8xf32> -> vector<64x8xf32>
    %160 = arith.addf %154, %159 : vector<64x8xf32>
    %161 = vector.extract_strided_slice %148 {offsets = [1, 0, 0], sizes = [8, 8, 8], strides = [1, 1, 1]} : vector<9x9x8xbf16> to vector<8x8x8xbf16>
    %162 = vector.shape_cast %161 : vector<8x8x8xbf16> to vector<64x8xbf16>
    %c13 = arith.constant 13 : index
    %c0_87 = arith.constant 0 : index
    %c0_88 = arith.constant 0 : index
    %163 = vector.load %arg8[%c13, %c0_87, %c0_88] : memref<16x8x8xbf16, #tpu.memory_space<vmem>>, vector<1x8x8xbf16>
    %164 = vector.shape_cast %163 : vector<1x8x8xbf16> to vector<8x8xbf16>
    %cst_89 = arith.constant dense<0.000000e+00> : vector<64x8xf32>
    %165 = tpu.matmul %162, %164, %cst_89 {dimension_numbers = #tpu.dot_dimension_numbers<[1], [0], [0], [1], [0, 0, 1, 1], [], []>} : vector<64x8xbf16>, vector<8x8xbf16>, vector<64x8xf32> -> vector<64x8xf32>
    %166 = arith.addf %160, %165 : vector<64x8xf32>
    %167 = vector.extract_strided_slice %148 {offsets = [1, 1, 0], sizes = [8, 8, 8], strides = [1, 1, 1]} : vector<9x9x8xbf16> to vector<8x8x8xbf16>
    %168 = vector.shape_cast %167 : vector<8x8x8xbf16> to vector<64x8xbf16>
    %c15 = arith.constant 15 : index
    %c0_90 = arith.constant 0 : index
    %c0_91 = arith.constant 0 : index
    %169 = vector.load %arg8[%c15, %c0_90, %c0_91] : memref<16x8x8xbf16, #tpu.memory_space<vmem>>, vector<1x8x8xbf16>
    %170 = vector.shape_cast %169 : vector<1x8x8xbf16> to vector<8x8xbf16>
    %cst_92 = arith.constant dense<0.000000e+00> : vector<64x8xf32>
    %171 = tpu.matmul %168, %170, %cst_92 {dimension_numbers = #tpu.dot_dimension_numbers<[1], [0], [0], [1], [0, 0, 1, 1], [], []>} : vector<64x8xbf16>, vector<8x8xbf16>, vector<64x8xf32> -> vector<64x8xf32>
    %172 = arith.addf %166, %171 : vector<64x8xf32>
    %c0_93 = arith.constant 0 : index
    %c0_94 = arith.constant 0 : index
    %173 = vector.load %arg9[%c0_93, %c0_94] : memref<1x8xf32, #tpu.memory_space<vmem>>, vector<1x8xf32>
    %174 = vector.broadcast %173 : vector<1x8xf32> to vector<64x8xf32>
    %175 = arith.addf %172, %174 : vector<64x8xf32>
    %176 = vector.extract_strided_slice %7 {offsets = [0, 0, 0], sizes = [8, 8, 8], strides = [1, 1, 1]} : vector<9x9x8xbf16> to vector<8x8x8xbf16>
    %177 = vector.extract_strided_slice %5 {offsets = [0, 1, 0], sizes = [8, 8, 8], strides = [1, 1, 1]} : vector<9x9x8xbf16> to vector<8x8x8xbf16>
    %178 = arith.maximumf %176, %177 : vector<8x8x8xbf16>
    %179 = vector.extract_strided_slice %3 {offsets = [1, 0, 0], sizes = [8, 8, 8], strides = [1, 1, 1]} : vector<9x9x8xbf16> to vector<8x8x8xbf16>
    %180 = vector.extract_strided_slice %1 {offsets = [1, 1, 0], sizes = [8, 8, 8], strides = [1, 1, 1]} : vector<9x9x8xbf16> to vector<8x8x8xbf16>
    %181 = arith.maximumf %179, %180 : vector<8x8x8xbf16>
    %182 = arith.maximumf %178, %181 : vector<8x8x8xbf16>
    %183 = vector.shape_cast %182 : vector<8x8x8xbf16> to vector<64x8xbf16>
    %c0_95 = arith.constant 0 : index
    %c0_96 = arith.constant 0 : index
    %184 = vector.load %arg10[%c0_95, %c0_96] : memref<8x8xbf16, #tpu.memory_space<vmem>>, vector<8x8xbf16>
    %cst_97 = arith.constant dense<0.000000e+00> : vector<64x8xf32>
    %185 = tpu.matmul %183, %184, %cst_97 {dimension_numbers = #tpu.dot_dimension_numbers<[1], [0], [0], [1], [0, 0, 1, 1], [], []>} : vector<64x8xbf16>, vector<8x8xbf16>, vector<64x8xf32> -> vector<64x8xf32>
    %c0_98 = arith.constant 0 : index
    %c0_99 = arith.constant 0 : index
    %186 = vector.load %arg11[%c0_98, %c0_99] : memref<1x8xf32, #tpu.memory_space<vmem>>, vector<1x8xf32>
    %187 = vector.broadcast %186 : vector<1x8xf32> to vector<64x8xf32>
    %188 = arith.addf %185, %187 : vector<64x8xf32>
    %189 = tpu.concatenate %175, %188 in 1 : vector<64x8xf32>, vector<64x8xf32> -> vector<64x16xf32>
    %c0_100 = arith.constant 0 : index
    %c0_101 = arith.constant 0 : index
    %c0_102 = arith.constant 0 : index
    %c0_103 = arith.constant 0 : index
    %190 = vector.load %arg12[%c0_100, %c0_101, %c0_102, %c0_103] : memref<1x1x64x16xf32, #tpu.memory_space<vmem>>, vector<1x1x64x16xf32>
    %191 = vector.shape_cast %190 : vector<1x1x64x16xf32> to vector<64x16xf32>
    %192 = vector.shape_cast %189 : vector<64x16xf32> to vector<1x1x64x16xf32>
    tpu.vector_store %arg12[%c0_100, %c0_101, %c0_102, %c0_103], %192 {strides = array<i32>} : memref<1x1x64x16xf32, #tpu.memory_space<vmem>>, vector<1x1x64x16xf32>,
    return
  }
  func.func @transform_0(%arg0: i32, %arg1: i32) -> (i32, i32, i32, i32, i32) {
    %c0_i32 = arith.constant 0 : i32
    %c0_i32_0 = arith.constant 0 : i32
    %c0_i32_1 = arith.constant 0 : i32
    %c0_i32_2 = arith.constant 0 : i32
    return %arg0, %arg1, %c0_i32, %c0_i32_0, %c0_i32_1 : i32, i32, i32, i32, i32
  }
  func.func @transform_1(%arg0: i32, %arg1: i32) -> (i32, i32, i32, i32, i32) {
    %c0_i32 = arith.constant 0 : i32
    %c0_i32_0 = arith.constant 0 : i32
    %c0_i32_1 = arith.constant 0 : i32
    %c0_i32_2 = arith.constant 0 : i32
    return %arg0, %arg1, %c0_i32, %c0_i32_0, %c0_i32_1 : i32, i32, i32, i32, i32
  }
  func.func @transform_2(%arg0: i32, %arg1: i32) -> (i32, i32, i32, i32, i32) {
    %c0_i32 = arith.constant 0 : i32
    %c0_i32_0 = arith.constant 0 : i32
    %c0_i32_1 = arith.constant 0 : i32
    %c0_i32_2 = arith.constant 0 : i32
    return %arg0, %arg1, %c0_i32, %c0_i32_0, %c0_i32_1 : i32, i32, i32, i32, i32
  }
  func.func @transform_3(%arg0: i32, %arg1: i32) -> (i32, i32, i32, i32, i32) {
    %c0_i32 = arith.constant 0 : i32
    %c0_i32_0 = arith.constant 0 : i32
    %c0_i32_1 = arith.constant 0 : i32
    %c0_i32_2 = arith.constant 0 : i32
    return %arg0, %arg1, %c0_i32, %c0_i32_0, %c0_i32_1 : i32, i32, i32, i32, i32
  }
  func.func @transform_4(%arg0: i32, %arg1: i32) -> (i32, i32) {
    %c0_i32 = arith.constant 0 : i32
    %c0_i32_0 = arith.constant 0 : i32
    %c0_i32_1 = arith.constant 0 : i32
    return %c0_i32, %c0_i32_0 : i32, i32
  }
  func.func @transform_5(%arg0: i32, %arg1: i32) -> (i32, i32) {
    %c0_i32 = arith.constant 0 : i32
    %c0_i32_0 = arith.constant 0 : i32
    %c0_i32_1 = arith.constant 0 : i32
    return %c0_i32, %c0_i32_0 : i32, i32
  }
  func.func @transform_6(%arg0: i32, %arg1: i32) -> (i32, i32, i32) {
    %c0_i32 = arith.constant 0 : i32
    %c0_i32_0 = arith.constant 0 : i32
    %c0_i32_1 = arith.constant 0 : i32
    %c0_i32_2 = arith.constant 0 : i32
    return %c0_i32, %c0_i32_0, %c0_i32_1 : i32, i32, i32
  }
  func.func @transform_7(%arg0: i32, %arg1: i32) -> (i32, i32) {
    %c0_i32 = arith.constant 0 : i32
    %c0_i32_0 = arith.constant 0 : i32
    %c0_i32_1 = arith.constant 0 : i32
    return %c0_i32, %c0_i32_0 : i32, i32
  }
  func.func @transform_8(%arg0: i32, %arg1: i32) -> (i32, i32) {
    %c0_i32 = arith.constant 0 : i32
    %c0_i32_0 = arith.constant 0 : i32
    %c0_i32_1 = arith.constant 0 : i32
    return %c0_i32, %c0_i32_0 : i32, i32
  }
  func.func @transform_9(%arg0: i32, %arg1: i32) -> (i32, i32) {
    %c0_i32 = arith.constant 0 : i32
    %c0_i32_0 = arith.constant 0 : i32
    %c0_i32_1 = arith.constant 0 : i32
    return %c0_i32, %c0_i32_0 : i32, i32
  }
  func.func @transform_10(%arg0: i32, %arg1: i32) -> (i32, i32, i32, i32) {
    %c0_i32 = arith.constant 0 : i32
    %c0_i32_0 = arith.constant 0 : i32
    %c0_i32_1 = arith.constant 0 : i32
    return %arg0, %arg1, %c0_i32, %c0_i32_0 : i32, i32, i32, i32
  }
}

</mosaic_0001>

<llo_original>
// kernel: downsample_forward.1
$region0: #{downsample_forward.1}
  #allocation0 [shape = 'u32[]', space=smem, size = 0x4, offset = 0x4, fixed_abs, tag = 'smem constant byte address 0x4 - core index']
  #allocation1 [shape = 'u32[144,128]{1,0:T(1,128)}', space=vmem, size = 0x12000, scoped, tag = 'internal scratch']
  %s0 = inlined_call_operand.vmem [shape: bf16[2,1,9,9,8], index: 0, kind: input, shape index: {}]
  %s1 = inlined_call_operand.vmem [shape: bf16[2,1,9,9,8], index: 1, kind: input, shape index: {}]
  %s2 = inlined_call_operand.vmem [shape: bf16[2,1,9,9,8], index: 2, kind: input, shape index: {}]
  %s3 = inlined_call_operand.vmem [shape: bf16[2,1,9,9,8], index: 3, kind: input, shape index: {}]
  %s4 = inlined_call_operand.vmem [shape: bf16[8,8], index: 4, kind: input, shape index: {}]
  %s5 = inlined_call_operand.vmem [shape: f32[1,8], index: 5, kind: input, shape index: {}]
  %s6 = inlined_call_operand.vmem [shape: bf16[16,8,8], index: 6, kind: input, shape index: {}]
  %s7 = inlined_call_operand.vmem [shape: f32[1,8], index: 7, kind: input, shape index: {}]
  %s8 = inlined_call_operand.vmem [shape: bf16[8,8], index: 8, kind: input, shape index: {}]
  %s9 = inlined_call_operand.vmem [shape: f32[1,8], index: 9, kind: input, shape index: {}]
  %s10 = inlined_call_operand.hbm [shape: f32[2,1,64,16], index: 10, kind: output, shape index: {}]
  %s11 = sld [smem:[#allocation0]]
  $region73: #{downsample_forward.1} parent=0
    _
  %s13 = ssub.s32 1, %s11
  %s14 = scalar_select 0, %s13, %s11
  $region1: #{downsample_forward.1} parent=0
    #allocation2 [shape = 'u8[65536]{0}', space=vmem, size = 0x10000, scoped, tag = 'output window, operand 0']
    #allocation3 [shape = 's32[2]{0}', space=sflag, size = 0x8, scoped, tag = 'scoped memory for downsample_forward.1']
    %15 = vsyncpa [#allocation3], 0
    %s16 = scalar_lea.sflag [#allocation3], 1
    %17 = vsyncpa %s16, 0
    loop: start=0, step=1, limit=4
    $region2: #{downsample_forward.1} parent=1 // loop_pre_header
      _
    $region3: #{downsample_forward.1} parent=1 // loop_header
      %s19 = sphi 0, %s23
      %p20 = scmp.ge.s32.totalorder %s19, 4
      %s26 = sphi 0, %s38
      %s27 = sphi 0, %s34
      %s28 = sphi 0, %s26
      %s29 = sphi 0, %s27
      %s30 = sphi 0, %s28
      %s31 = sphi 0, %s29
      %s43 = sphi 0, %s45
      %s46 = sphi 0, %s43
      %s47 = sphi 0, %s46
      %s63 = sphi 0, %s47
      %s71 = sphi 0, %s73
      %s74 = sphi 0, %s71
      %s75 = sphi 0, %s74
      %s91 = sphi 0, %s75
      %s99 = sphi 0, %s101
      %s102 = sphi 0, %s99
      %s103 = sphi 0, %s102
      %s119 = sphi 0, %s103
      %s127 = sphi 0, %s129
      %s130 = sphi 0, %s127
      %s131 = sphi 0, %s130
      %s147 = sphi 0, %s131
      %s151 = sphi 0, %s151
      %s153 = sphi 0, %s151
      %s154 = sphi 0, %s153
      %s168 = sphi 0, %s154
      %s172 = sphi 0, %s172
      %s174 = sphi 0, %s172
      %s175 = sphi 0, %s174
      %s189 = sphi 0, %s175
      %s193 = sphi 0, %s193
      %s195 = sphi 0, %s193
      %s196 = sphi 0, %s195
      %s210 = sphi 0, %s196
      %s214 = sphi 0, %s214
      %s216 = sphi 0, %s214
      %s217 = sphi 0, %s216
      %s231 = sphi 0, %s217
      %s235 = sphi 0, %s235
      %s237 = sphi 0, %s235
      %s238 = sphi 0, %s237
      %s252 = sphi 0, %s238
      %s256 = sphi 0, %s256
      %s258 = sphi 0, %s256
      %s259 = sphi 0, %s258
      %s273 = sphi 0, %s259
      %s281 = sphi 0, %s283
      %s284 = sphi 0, %s281
      %s285 = sphi 0, %s284
      %s301 = sphi 0, %s285
    $region4: #{downsample_forward.1} parent=1 // loop_header_branch
      %22 = sbr.rel (%p20) target = $region8
    $region5: #{downsample_forward.1} parent=1 // loop_body
      %s24 = ssub.s32 %s19, 1
      %s25 = ssub.s32 %s19, 2
      %s32 = sadd.s32 1, %s27
      %p33 = scmp.ge.s32.totalorder %s32, 1
      %s34 = scalar_select %p33, 0, %s32
      %s35 = sadd.s32 1, %s26
      %s36 = scalar_select %p33, %s35, %s26
      %p37 = scmp.ge.s32.totalorder %s36, 2
      %s38 = scalar_select %p37, 0, %s36
      %s39 = ssub.s32 %s26, %s38
      %s40 = ssub.s32 %s27, %s34
      %s41 = sor.u32 %s39, %s40
      %p42 = scmp.eq.s32.totalorder %s41, 0
      %s44 = sadd.s32 %s43, 1
      %s45 = scalar_select %p42, %s43, %s44
      %p48 = pneg %p42
      %p49 = scmp.eq.s32.totalorder %s19, 1
      %p50 = por %p48, %p49
      %p51 = scmp.ne.s32.totalorder %s43, %s46
      %p52 = scmp.eq.s32.totalorder %s19, 0
      %p53 = por %p51, %p52
      %p54 = scmp.ne.s32.totalorder %s43, %s46
      %p55 = scmp.eq.s32.totalorder %s24, 1
      %p56 = por %p54, %p55
      %p57 = scmp.ne.s32.totalorder %s46, %s47
      %p58 = scmp.eq.s32.totalorder %s24, 0
      %p59 = por %p57, %p58
      %p60 = scmp.ne.s32.totalorder %s46, %s47
      %p61 = scmp.eq.s32.totalorder %s25, 1
      %p62 = por %p60, %p61
      %p64 = scmp.ne.s32.totalorder %s47, %s63
      %p65 = scmp.eq.s32.totalorder %s25, 0
      %p66 = por %p64, %p65
      %s67 = ssub.s32 %s26, %s38
      %s68 = ssub.s32 %s27, %s34
      %s69 = sor.u32 %s67, %s68
      %p70 = scmp.eq.s32.totalorder %s69, 0
      %s72 = sadd.s32 %s71, 1
      %s73 = scalar_select %p70, %s71, %s72
      %p76 = pneg %p70
      %p77 = scmp.eq.s32.totalorder %s19, 1
      %p78 = por %p76, %p77
      %p79 = scmp.ne.s32.totalorder %s71, %s74
      %p80 = scmp.eq.s32.totalorder %s19, 0
      %p81 = por %p79, %p80
      %p82 = scmp.ne.s32.totalorder %s71, %s74
      %p83 = scmp.eq.s32.totalorder %s24, 1
      %p84 = por %p82, %p83
      %p85 = scmp.ne.s32.totalorder %s74, %s75
      %p86 = scmp.eq.s32.totalorder %s24, 0
      %p87 = por %p85, %p86
      %p88 = scmp.ne.s32.totalorder %s74, %s75
      %p89 = scmp.eq.s32.totalorder %s25, 1
      %p90 = por %p88, %p89
      %p92 = scmp.ne.s32.totalorder %s75, %s91
      %p93 = scmp.eq.s32.totalorder %s25, 0
      %p94 = por %p92, %p93
      %s95 = ssub.s32 %s26, %s38
      %s96 = ssub.s32 %s27, %s34
      %s97 = sor.u32 %s95, %s96
      %p98 = scmp.eq.s32.totalorder %s97, 0
      %s100 = sadd.s32 %s99, 1
      %s101 = scalar_select %p98, %s99, %s100
      %p104 = pneg %p98
      %p105 = scmp.eq.s32.totalorder %s19, 1
      %p106 = por %p104, %p105
      %p107 = scmp.ne.s32.totalorder %s99, %s102
      %p108 = scmp.eq.s32.totalorder %s19, 0
      %p109 = por %p107, %p108
      %p110 = scmp.ne.s32.totalorder %s99, %s102
      %p111 = scmp.eq.s32.totalorder %s24, 1
      %p112 = por %p110, %p111
      %p113 = scmp.ne.s32.totalorder %s102, %s103
      %p114 = scmp.eq.s32.totalorder %s24, 0
      %p115 = por %p113, %p114
      %p116 = scmp.ne.s32.totalorder %s102, %s103
      %p117 = scmp.eq.s32.totalorder %s25, 1
      %p118 = por %p116, %p117
      %p120 = scmp.ne.s32.totalorder %s103, %s119
      %p121 = scmp.eq.s32.totalorder %s25, 0
      %p122 = por %p120, %p121
      %s123 = ssub.s32 %s26, %s38
      %s124 = ssub.s32 %s27, %s34
      %s125 = sor.u32 %s123, %s124
      %p126 = scmp.eq.s32.totalorder %s125, 0
      %s128 = sadd.s32 %s127, 1
      %s129 = scalar_select %p126, %s127, %s128
      %p132 = pneg %p126
      %p133 = scmp.eq.s32.totalorder %s19, 1
      %p134 = por %p132, %p133
      %p135 = scmp.ne.s32.totalorder %s127, %s130
      %p136 = scmp.eq.s32.totalorder %s19, 0
      %p137 = por %p135, %p136
      %p138 = scmp.ne.s32.totalorder %s127, %s130
      %p139 = scmp.eq.s32.totalorder %s24, 1
      %p140 = por %p138, %p139
      %p141 = scmp.ne.s32.totalorder %s130, %s131
      %p142 = scmp.eq.s32.totalorder %s24, 0
      %p143 = por %p141, %p142
      %p144 = scmp.ne.s32.totalorder %s130, %s131
      %p145 = scmp.eq.s32.totalorder %s25, 1
      %p146 = por %p144, %p145
      %p148 = scmp.ne.s32.totalorder %s131, %s147
      %p149 = scmp.eq.s32.totalorder %s25, 0
      %p150 = por %p148, %p149
      %s152 = sadd.s32 %s151, 1
      %p155 = scmp.eq.s32.totalorder %s19, 1
      %p156 = scmp.ne.s32.totalorder %s151, %s153
      %p157 = scmp.eq.s32.totalorder %s19, 0
      %p158 = por %p156, %p157
      %p159 = scmp.ne.s32.totalorder %s151, %s153
      %p160 = scmp.eq.s32.totalorder %s24, 1
      %p161 = por %p159, %p160
      %p162 = scmp.ne.s32.totalorder %s153, %s154
      %p163 = scmp.eq.s32.totalorder %s24, 0
      %p164 = por %p162, %p163
      %p165 = scmp.ne.s32.totalorder %s153, %s154
      %p166 = scmp.eq.s32.totalorder %s25, 1
      %p167 = por %p165, %p166
      %p169 = scmp.ne.s32.totalorder %s154, %s168
      %p170 = scmp.eq.s32.totalorder %s25, 0
      %p171 = por %p169, %p170
      %s173 = sadd.s32 %s172, 1
      %p176 = scmp.eq.s32.totalorder %s19, 1
      %p177 = scmp.ne.s32.totalorder %s172, %s174
      %p178 = scmp.eq.s32.totalorder %s19, 0
      %p179 = por %p177, %p178
      %p180 = scmp.ne.s32.totalorder %s172, %s174
      %p181 = scmp.eq.s32.totalorder %s24, 1
      %p182 = por %p180, %p181
      %p183 = scmp.ne.s32.totalorder %s174, %s175
      %p184 = scmp.eq.s32.totalorder %s24, 0
      %p185 = por %p183, %p184
      %p186 = scmp.ne.s32.totalorder %s174, %s175
      %p187 = scmp.eq.s32.totalorder %s25, 1
      %p188 = por %p186, %p187
      %p190 = scmp.ne.s32.totalorder %s175, %s189
      %p191 = scmp.eq.s32.totalorder %s25, 0
      %p192 = por %p190, %p191
      %s194 = sadd.s32 %s193, 1
      %p197 = scmp.eq.s32.totalorder %s19, 1
      %p198 = scmp.ne.s32.totalorder %s193, %s195
      %p199 = scmp.eq.s32.totalorder %s19, 0
      %p200 = por %p198, %p199
      %p201 = scmp.ne.s32.totalorder %s193, %s195
      %p202 = scmp.eq.s32.totalorder %s24, 1
      %p203 = por %p201, %p202
      %p204 = scmp.ne.s32.totalorder %s195, %s196
      %p205 = scmp.eq.s32.totalorder %s24, 0
      %p206 = por %p204, %p205
      %p207 = scmp.ne.s32.totalorder %s195, %s196
      %p208 = scmp.eq.s32.totalorder %s25, 1
      %p209 = por %p207, %p208
      %p211 = scmp.ne.s32.totalorder %s196, %s210
      %p212 = scmp.eq.s32.totalorder %s25, 0
      %p213 = por %p211, %p212
      %s215 = sadd.s32 %s214, 1
      %p218 = scmp.eq.s32.totalorder %s19, 1
      %p219 = scmp.ne.s32.totalorder %s214, %s216
      %p220 = scmp.eq.s32.totalorder %s19, 0
      %p221 = por %p219, %p220
      %p222 = scmp.ne.s32.totalorder %s214, %s216
      %p223 = scmp.eq.s32.totalorder %s24, 1
      %p224 = por %p222, %p223
      %p225 = scmp.ne.s32.totalorder %s216, %s217
      %p226 = scmp.eq.s32.totalorder %s24, 0
      %p227 = por %p225, %p226
      %p228 = scmp.ne.s32.totalorder %s216, %s217
      %p229 = scmp.eq.s32.totalorder %s25, 1
      %p230 = por %p228, %p229
      %p232 = scmp.ne.s32.totalorder %s217, %s231
      %p233 = scmp.eq.s32.totalorder %s25, 0
      %p234 = por %p232, %p233
      %s236 = sadd.s32 %s235, 1
      %p239 = scmp.eq.s32.totalorder %s19, 1
      %p240 = scmp.ne.s32.totalorder %s235, %s237
      %p241 = scmp.eq.s32.totalorder %s19, 0
      %p242 = por %p240, %p241
      %p243 = scmp.ne.s32.totalorder %s235, %s237
      %p244 = scmp.eq.s32.totalorder %s24, 1
      %p245 = por %p243, %p244
      %p246 = scmp.ne.s32.totalorder %s237, %s238
      %p247 = scmp.eq.s32.totalorder %s24, 0
      %p248 = por %p246, %p247
      %p249 = scmp.ne.s32.totalorder %s237, %s238
      %p250 = scmp.eq.s32.totalorder %s25, 1
      %p251 = por %p249, %p250
      %p253 = scmp.ne.s32.totalorder %s238, %s252
      %p254 = scmp.eq.s32.totalorder %s25, 0
      %p255 = por %p253, %p254
      %s257 = sadd.s32 %s256, 1
      %p260 = scmp.eq.s32.totalorder %s19, 1
      %p261 = scmp.ne.s32.totalorder %s256, %s258
      %p262 = scmp.eq.s32.totalorder %s19, 0
      %p263 = por %p261, %p262
      %p264 = scmp.ne.s32.totalorder %s256, %s258
      %p265 = scmp.eq.s32.totalorder %s24, 1
      %p266 = por %p264, %p265
      %p267 = scmp.ne.s32.totalorder %s258, %s259
      %p268 = scmp.eq.s32.totalorder %s24, 0
      %p269 = por %p267, %p268
      %p270 = scmp.ne.s32.totalorder %s258, %s259
      %p271 = scmp.eq.s32.totalorder %s25, 1
      %p272 = por %p270, %p271
      %p274 = scmp.ne.s32.totalorder %s259, %s273
      %p275 = scmp.eq.s32.totalorder %s25, 0
      %p276 = por %p274, %p275
      %s277 = ssub.s32 %s26, %s38
      %s278 = ssub.s32 %s27, %s34
      %s279 = sor.u32 %s277, %s278
      %p280 = scmp.eq.s32.totalorder %s279, 0
      %s282 = sadd.s32 %s281, 1
      %s283 = scalar_select %p280, %s281, %s282
      %p286 = pneg %p280
      %p287 = scmp.eq.s32.totalorder %s19, 1
      %p288 = por %p286, %p287
      %p289 = scmp.ne.s32.totalorder %s281, %s284
      %p290 = scmp.eq.s32.totalorder %s19, 0
      %p291 = por %p289, %p290
      %p292 = scmp.ne.s32.totalorder %s281, %s284
      %p293 = scmp.eq.s32.totalorder %s24, 1
      %p294 = por %p292, %p293
      %p295 = scmp.ne.s32.totalorder %s284, %s285
      %p296 = scmp.eq.s32.totalorder %s24, 0
      %p297 = por %p295, %p296
      %p298 = scmp.ne.s32.totalorder %s284, %s285
      %p299 = scmp.eq.s32.totalorder %s25, 1
      %p300 = por %p298, %p299
      %p302 = scmp.ne.s32.totalorder %s285, %s301
      %p303 = scmp.eq.s32.totalorder %s25, 0
      %p304 = por %p302, %p303
      %p305 = scmp.le.s32.totalorder 1, %s19
      %p306 = scmp.lt.s32.totalorder %s19, 3
      %p307 = pnand %p305, %p306
      %p308 = pneg %p307
      // Predicated region
      $region9: #{downsample_forward.1} parent=5 // pred_check
        _
      $region10: #{downsample_forward.1} parent=5 // pred_check_branch
        %310 = sbr.rel (%p307) target = $region12
      $region11: #{downsample_forward.1} parent=5 // pred_region
        %s311 = ssub.s32 %s19, 1
        // Predicated region
        $region13: #{downsample_forward.1} parent=11 // pred_check
          %p312 = pneg %p164
        $region14: #{downsample_forward.1} parent=11 // pred_check_branch
          %314 = sbr.rel (%p312) target = $region16
        $region15: #{downsample_forward.1} parent=11 // pred_region
          _
        $region16: #{downsample_forward.1} parent=11 // pred_fallthru
          _
        // Predicated region
        $region17: #{downsample_forward.1} parent=11 // pred_check
          %p315 = pneg %p185
        $region18: #{downsample_forward.1} parent=11 // pred_check_branch
          %317 = sbr.rel (%p315) target = $region20
        $region19: #{downsample_forward.1} parent=11 // pred_region
          _
        $region20: #{downsample_forward.1} parent=11 // pred_fallthru
          _
        // Predicated region
        $region21: #{downsample_forward.1} parent=11 // pred_check
          %p318 = pneg %p206
        $region22: #{downsample_forward.1} parent=11 // pred_check_branch
          %320 = sbr.rel (%p318) target = $region24
        $region23: #{downsample_forward.1} parent=11 // pred_region
          _
        $region24: #{downsample_forward.1} parent=11 // pred_fallthru
          _
        // Predicated region
        $region25: #{downsample_forward.1} parent=11 // pred_check
          %p321 = pneg %p227
        $region26: #{downsample_forward.1} parent=11 // pred_check_branch
          %323 = sbr.rel (%p321) target = $region28
        $region27: #{downsample_forward.1} parent=11 // pred_region
          _
        $region28: #{downsample_forward.1} parent=11 // pred_fallthru
          _
        // Predicated region
        $region29: #{downsample_forward.1} parent=11 // pred_check
          %p324 = pneg %p248
        $region30: #{downsample_forward.1} parent=11 // pred_check_branch
          %326 = sbr.rel (%p324) target = $region32
        $region31: #{downsample_forward.1} parent=11 // pred_region
          _
        $region32: #{downsample_forward.1} parent=11 // pred_fallthru
          _
        // Predicated region
        $region33: #{downsample_forward.1} parent=11 // pred_check
          %p327 = pneg %p269
        $region34: #{downsample_forward.1} parent=11 // pred_check_branch
          %329 = sbr.rel (%p327) target = $region36
        $region35: #{downsample_forward.1} parent=11 // pred_region
          _
        $region36: #{downsample_forward.1} parent=11 // pred_fallthru
          _
      $region12: #{downsample_forward.1} parent=5 // pred_fallthru
        _
      %p330 = scmp.lt.s32.totalorder %s19, 2
      // Predicated region
      $region37: #{downsample_forward.1} parent=5 // pred_check
        %p331 = pneg %p330
      $region38: #{downsample_forward.1} parent=5 // pred_check_branch
        %333 = sbr.rel (%p331) target = $region40
      $region39: #{downsample_forward.1} parent=5 // pred_region
        // Predicated region
        $region41: #{downsample_forward.1} parent=39 // pred_check
          %p334 = pneg %p53
        $region42: #{downsample_forward.1} parent=39 // pred_check_branch
          %336 = sbr.rel (%p334) target = $region44
        $region43: #{downsample_forward.1} parent=39 // pred_region
          %p337 = scmp.lt.s32.totalorder %s26, 1
          %s338 = scalar_select %p337, %s26, 1
          %p339 = scmp.lt.s32.totalorder %s27, 0
          %s340 = scalar_select %p339, %s27, 0
          %s341 = smul.addr %s340, 18
          %s342 = smul.addr %s338, 18
          %s343 = sadd.s32 %s341, %s342
          %s344 = smul.addr %s343, 4
          %s345 = scalar_lea.vmem %s0, %s344
        $region44: #{downsample_forward.1} parent=39 // pred_fallthru
          _
        // Predicated region
        $region45: #{downsample_forward.1} parent=39 // pred_check
          %p346 = pneg %p81
        $region46: #{downsample_forward.1} parent=39 // pred_check_branch
          %348 = sbr.rel (%p346) target = $region48
        $region47: #{downsample_forward.1} parent=39 // pred_region
          %p349 = scmp.lt.s32.totalorder %s26, 1
          %s350 = scalar_select %p349, %s26, 1
          %p351 = scmp.lt.s32.totalorder %s27, 0
          %s352 = scalar_select %p351, %s27, 0
          %s353 = smul.addr %s352, 18
          %s354 = smul.addr %s350, 18
          %s355 = sadd.s32 %s353, %s354
          %s356 = smul.addr %s355, 4
          %s357 = scalar_lea.vmem %s1, %s356
        $region48: #{downsample_forward.1} parent=39 // pred_fallthru
          _
        // Predicated region
        $region49: #{downsample_forward.1} parent=39 // pred_check
          %p358 = pneg %p109
        $region50: #{downsample_forward.1} parent=39 // pred_check_branch
          %360 = sbr.rel (%p358) target = $region52
        $region51: #{downsample_forward.1} parent=39 // pred_region
          %p361 = scmp.lt.s32.totalorder %s26, 1
          %s362 = scalar_select %p361, %s26, 1
          %p363 = scmp.lt.s32.totalorder %s27, 0
          %s364 = scalar_select %p363, %s27, 0
          %s365 = smul.addr %s364, 18
          %s366 = smul.addr %s362, 18
          %s367 = sadd.s32 %s365, %s366
          %s368 = smul.addr %s367, 4
          %s369 = scalar_lea.vmem %s2, %s368
        $region52: #{downsample_forward.1} parent=39 // pred_fallthru
          _
        // Predicated region
        $region53: #{downsample_forward.1} parent=39 // pred_check
          %p370 = pneg %p137
        $region54: #{downsample_forward.1} parent=39 // pred_check_branch
          %372 = sbr.rel (%p370) target = $region56
        $region55: #{downsample_forward.1} parent=39 // pred_region
          %p373 = scmp.lt.s32.totalorder %s26, 1
          %s374 = scalar_select %p373, %s26, 1
          %p375 = scmp.lt.s32.totalorder %s27, 0
          %s376 = scalar_select %p375, %s27, 0
          %s377 = smul.addr %s376, 18
          %s378 = smul.addr %s374, 18
          %s379 = sadd.s32 %s377, %s378
          %s380 = smul.addr %s379, 4
          %s381 = scalar_lea.vmem %s3, %s380
        $region56: #{downsample_forward.1} parent=39 // pred_fallthru
          _
      $region40: #{downsample_forward.1} parent=5 // pred_fallthru
        _
      %p382 = scmp.le.s32.totalorder 1, %s19
      %p383 = scmp.lt.s32.totalorder %s19, 3
      %p384 = pnand %p382, %p383
      %p385 = pneg %p384
      // Predicated region
      $region57: #{downsample_forward.1} parent=5 // pred_check
        _
      $region58: #{downsample_forward.1} parent=5 // pred_check_branch
        %387 = sbr.rel (%p384) target = $region60
      $region59: #{downsample_forward.1} parent=5 // pred_region
        %s388 = ssub.s32 %s19, 1
        %p389 = scmp.lt.s32.totalorder %s28, 1
        %s390 = scalar_select %p389, %s28, 1
        %p391 = scmp.lt.s32.totalorder %s29, 0
        %s392 = scalar_select %p391, %s29, 0
        %s393 = smul.addr %s392, 18
        %s394 = smul.addr %s390, 18
        %s395 = sadd.s32 %s393, %s394
        %s396 = smul.addr %s395, 4
        %s397 = scalar_lea.vmem %s0, %s396
        %p398 = pneg %p59
        %p399 = pneg %p56
        %p400 = scmp.lt.s32.totalorder %s28, 1
        %s401 = scalar_select %p400, %s28, 1
        %p402 = scmp.lt.s32.totalorder %s29, 0
        %s403 = scalar_select %p402, %s29, 0
        %s404 = smul.addr %s403, 18
        %s405 = smul.addr %s401, 18
        %s406 = sadd.s32 %s404, %s405
        %s407 = smul.addr %s406, 4
        %s408 = scalar_lea.vmem %s1, %s407
        %p409 = pneg %p87
        %p410 = pneg %p84
        %p411 = scmp.lt.s32.totalorder %s28, 1
        %s412 = scalar_select %p411, %s28, 1
        %p413 = scmp.lt.s32.totalorder %s29, 0
        %s414 = scalar_select %p413, %s29, 0
        %s415 = smul.addr %s414, 18
        %s416 = smul.addr %s412, 18
        %s417 = sadd.s32 %s415, %s416
        %s418 = smul.addr %s417, 4
        %s419 = scalar_lea.vmem %s2, %s418
        %p420 = pneg %p115
        %p421 = pneg %p112
        %p422 = scmp.lt.s32.totalorder %s28, 1
        %s423 = scalar_select %p422, %s28, 1
        %p424 = scmp.lt.s32.totalorder %s29, 0
        %s425 = scalar_select %p424, %s29, 0
        %s426 = smul.addr %s425, 18
        %s427 = smul.addr %s423, 18
        %s428 = sadd.s32 %s426, %s427
        %s429 = smul.addr %s428, 4
        %s430 = scalar_lea.vmem %s3, %s429
        %p431 = pneg %p143
        %p432 = pneg %p140
        %p433 = pneg %p164
        %p434 = pneg %p161
        %p435 = pneg %p185
        %p436 = pneg %p182
        %p437 = pneg %p206
        %p438 = pneg %p203
        %p439 = pneg %p227
        %p440 = pneg %p224
        %p441 = pneg %p248
        %p442 = pneg %p245
        %p443 = pneg %p269
        %p444 = pneg %p266
        %p445 = pneg %p297
        %p446 = pneg %p294
        %s447 = sand.u32 %s284, 1
        %s448 = scalar_lea.sflag [#allocation3], %s447
        %s449 = sand.u32 %s284, 1
        %s450 = smul.addr %s449, 64
        %s451 = scalar_lea.vmem [#allocation2], %s450
        %p452 = scmp.lt.s32.totalorder %s28, 1
        %s453 = scalar_select %p452, %s28, 1
        %p454 = scmp.lt.s32.totalorder %s29, 0
        %s455 = scalar_select %p454, %s29, 0
        %s456 = smul.addr %s455, 18
        %s457 = smul.addr %s453, 18
        %s458 = sadd.s32 %s456, %s457
        %s459 = smul.addr %s458, 4
        %s460 = scalar_lea.vmem %s0, %s459
        %p461 = scmp.lt.s32.totalorder %s28, 1
        %s462 = scalar_select %p461, %s28, 1
        %p463 = scmp.lt.s32.totalorder %s29, 0
        %s464 = scalar_select %p463, %s29, 0
        %s465 = smul.addr %s464, 18
        %s466 = smul.addr %s462, 18
        %s467 = sadd.s32 %s465, %s466
        %s468 = smul.addr %s467, 4
        %s469 = scalar_lea.vmem %s1, %s468
        %p470 = scmp.lt.s32.totalorder %s28, 1
        %s471 = scalar_select %p470, %s28, 1
        %p472 = scmp.lt.s32.totalorder %s29, 0
        %s473 = scalar_select %p472, %s29, 0
        %s474 = smul.addr %s473, 18
        %s475 = smul.addr %s471, 18
        %s476 = sadd.s32 %s474, %s475
        %s477 = smul.addr %s476, 4
        %s478 = scalar_lea.vmem %s2, %s477
        %p479 = scmp.lt.s32.totalorder %s28, 1
        %s480 = scalar_select %p479, %s28, 1
        %p481 = scmp.lt.s32.totalorder %s29, 0
        %s482 = scalar_select %p481, %s29, 0
        %s483 = smul.addr %s482, 18
        %s484 = smul.addr %s480, 18
        %s485 = sadd.s32 %s483, %s484
        %s486 = smul.addr %s485, 4
        %s487 = scalar_lea.vmem %s3, %s486
        %v489 = vld [vmem:[%s460] sm:$0xf]
        %v490 = vld [vmem:[%s460 + $0x4] sm:$0x1]
        %v491 = vld [vmem:[%s460 + $0x8] sm:$0xf]
        %v492 = vld [vmem:[%s460 + $0xc] sm:$0x1]
        %v493 = vld [vmem:[%s460 + $0x10] sm:$0xf]
        %v494 = vld [vmem:[%s460 + $0x14] sm:$0x1]
        %v495 = vld [vmem:[%s460 + $0x18] sm:$0xf]
        %v496 = vld [vmem:[%s460 + $0x1c] sm:$0x1]
        %v497 = vld [vmem:[%s460 + $0x20] sm:$0xf]
        %v498 = vld [vmem:[%s460 + $0x24] sm:$0x1]
        %v499 = vld [vmem:[%s460 + $0x28] sm:$0xf]
        %v500 = vld [vmem:[%s460 + $0x2c] sm:$0x1]
        %v501 = vld [vmem:[%s460 + $0x30] sm:$0xf]
        %v502 = vld [vmem:[%s460 + $0x34] sm:$0x1]
        %v503 = vld [vmem:[%s460 + $0x38] sm:$0xf]
        %v504 = vld [vmem:[%s460 + $0x3c] sm:$0x1]
        %v505 = vld [vmem:[%s460 + $0x40] sm:$0xf]
        %v506 = vld [vmem:[%s460 + $0x44] sm:$0x1]
        %v507 = vld [vmem:[%s469] sm:$0xf]
        %v508 = vld [vmem:[%s469 + $0x4] sm:$0x1]
        %v509 = vld [vmem:[%s469 + $0x8] sm:$0xf]
        %v510 = vld [vmem:[%s469 + $0xc] sm:$0x1]
        %v511 = vld [vmem:[%s469 + $0x10] sm:$0xf]
        %v512 = vld [vmem:[%s469 + $0x14] sm:$0x1]
        %v513 = vld [vmem:[%s469 + $0x18] sm:$0xf]
        %v514 = vld [vmem:[%s469 + $0x1c] sm:$0x1]
        %v515 = vld [vmem:[%s469 + $0x20] sm:$0xf]
        %v516 = vld [vmem:[%s469 + $0x24] sm:$0x1]
        %v517 = vld [vmem:[%s469 + $0x28] sm:$0xf]
        %v518 = vld [vmem:[%s469 + $0x2c] sm:$0x1]
        %v519 = vld [vmem:[%s469 + $0x30] sm:$0xf]
        %v520 = vld [vmem:[%s469 + $0x34] sm:$0x1]
        %v521 = vld [vmem:[%s469 + $0x38] sm:$0xf]
        %v522 = vld [vmem:[%s469 + $0x3c] sm:$0x1]
        %v523 = vld [vmem:[%s469 + $0x40] sm:$0xf]
        %v524 = vld [vmem:[%s469 + $0x44] sm:$0x1]
        %v525 = vld [vmem:[%s478] sm:$0xf]
        %v526 = vld [vmem:[%s478 + $0x4] sm:$0x1]
        %v527 = vld [vmem:[%s478 + $0x8] sm:$0xf]
        %v528 = vld [vmem:[%s478 + $0xc] sm:$0x1]
        %v529 = vld [vmem:[%s478 + $0x10] sm:$0xf]
        %v530 = vld [vmem:[%s478 + $0x14] sm:$0x1]
        %v531 = vld [vmem:[%s478 + $0x18] sm:$0xf]
        %v532 = vld [vmem:[%s478 + $0x1c] sm:$0x1]
        %v533 = vld [vmem:[%s478 + $0x20] sm:$0xf]
        %v534 = vld [vmem:[%s478 + $0x24] sm:$0x1]
        %v535 = vld [vmem:[%s478 + $0x28] sm:$0xf]
        %v536 = vld [vmem:[%s478 + $0x2c] sm:$0x1]
        %v537 = vld [vmem:[%s478 + $0x30] sm:$0xf]
        %v538 = vld [vmem:[%s478 + $0x34] sm:$0x1]
        %v539 = vld [vmem:[%s478 + $0x38] sm:$0xf]
        %v540 = vld [vmem:[%s478 + $0x3c] sm:$0x1]
        %v541 = vld [vmem:[%s478 + $0x40] sm:$0xf]
        %v542 = vld [vmem:[%s478 + $0x44] sm:$0x1]
        %v543 = vld [vmem:[%s487] sm:$0xf]
        %v544 = vld [vmem:[%s487 + $0x4] sm:$0x1]
        %v545 = vld [vmem:[%s487 + $0x8] sm:$0xf]
        %v546 = vld [vmem:[%s487 + $0xc] sm:$0x1]
        %v547 = vld [vmem:[%s487 + $0x10] sm:$0xf]
        %v548 = vld [vmem:[%s487 + $0x14] sm:$0x1]
        %v549 = vld [vmem:[%s487 + $0x18] sm:$0xf]
        %v550 = vld [vmem:[%s487 + $0x1c] sm:$0x1]
        %v551 = vld [vmem:[%s487 + $0x20] sm:$0xf]
        %v552 = vld [vmem:[%s487 + $0x24] sm:$0x1]
        %v553 = vld [vmem:[%s487 + $0x28] sm:$0xf]
        %v554 = vld [vmem:[%s487 + $0x2c] sm:$0x1]
        %v555 = vld [vmem:[%s487 + $0x30] sm:$0xf]
        %v556 = vld [vmem:[%s487 + $0x34] sm:$0x1]
        %v557 = vld [vmem:[%s487 + $0x38] sm:$0xf]
        %v558 = vld [vmem:[%s487 + $0x3c] sm:$0x1]
        %v559 = vld [vmem:[%s487 + $0x40] sm:$0xf]
        %v560 = vld [vmem:[%s487 + $0x44] sm:$0x1]
        %v561 = vlaneseq
        %v562 = vshrl.u32 %v561, 7
        %v563 = vadd.s32 %v562, 8
        %v564 = vld [vmem:[%s4] sm:$0xf]
        %v565 = vld [vmem:[%s5] sm:$0x1]
        %v585 = vunpack.c.l.s4 1966171168
        %v586 = vunpack.c.0.s8 %v585
        %v587 = vlaneseq
        %v588 = vshrl.u32 %v587, 7
        %v589 = vsub.s32 %v586, %v588
        %v590 = vrot.slane %v489, %v589
        %v591 = vcombine.high %v590, %v590
        %v593 = vunpack.c.l.s4 1966171168
        %v594 = vunpack.c.0.s8 %v593
        %v595 = vlaneseq
        %v596 = vshrl.u32 %v595, 7
        %v597 = vsub.s32 %v594, %v596
        %v598 = vrot.slane %v590, %v597
        %v600 = vunpack.c.l.s4 1966171168
        %v601 = vunpack.c.0.s8 %v600
        %v602 = vlaneseq
        %v603 = vshrl.u32 %v602, 7
        %v604 = vsub.s32 %v601, %v603
        %v605 = vrot.slane %v591, %v604
        %v606 = vcombine.high %v598, %v598
        %v607 = vcombine.high %v605, %v605
        %v609 = vunpack.c.l.s4 1966171168
        %v610 = vunpack.c.0.s8 %v609
        %v611 = vlaneseq
        %v612 = vshrl.u32 %v611, 7
        %v613 = vsub.s32 %v610, %v612
        %v614 = vrot.slane %v490, %v613
        %v616 = vunpack.c.l.s4 1966171168
        %v617 = vunpack.c.0.s8 %v616
        %v618 = vlaneseq
        %v619 = vshrl.u32 %v618, 7
        %v620 = vsub.s32 %v617, %v619
        %v621 = vrot.slane %v614, %v620
        %v623 = vunpack.c.l.s4 1966171168
        %v624 = vunpack.c.0.s8 %v623
        %v625 = vlaneseq
        %v626 = vshrl.u32 %v625, 7
        %v627 = vsub.s32 %v624, %v626
        %v628 = vrot.slane %v491, %v627
        %v629 = vcombine.high %v628, %v628
        %v631 = vunpack.c.l.s4 1966171168
        %v632 = vunpack.c.0.s8 %v631
        %v633 = vlaneseq
        %v634 = vshrl.u32 %v633, 7
        %v635 = vsub.s32 %v632, %v634
        %v636 = vrot.slane %v628, %v635
        %v638 = vunpack.c.l.s4 1966171168
        %v639 = vunpack.c.0.s8 %v638
        %v640 = vlaneseq
        %v641 = vshrl.u32 %v640, 7
        %v642 = vsub.s32 %v639, %v641
        %v643 = vrot.slane %v629, %v642
        %v644 = vcombine.high %v636, %v636
        %v645 = vcombine.high %v643, %v643
        %v647 = vunpack.c.l.s4 1966171168
        %v648 = vunpack.c.0.s8 %v647
        %v649 = vlaneseq
        %v650 = vshrl.u32 %v649, 7
        %v651 = vsub.s32 %v648, %v650
        %v652 = vrot.slane %v492, %v651
        %v654 = vunpack.c.l.s4 1966171168
        %v655 = vunpack.c.0.s8 %v654
        %v656 = vlaneseq
        %v657 = vshrl.u32 %v656, 7
        %v658 = vsub.s32 %v655, %v657
        %v659 = vrot.slane %v652, %v658
        %v661 = vunpack.c.l.s4 1966171168
        %v662 = vunpack.c.0.s8 %v661
        %v663 = vlaneseq
        %v664 = vshrl.u32 %v663, 7
        %v665 = vsub.s32 %v662, %v664
        %v666 = vrot.slane %v493, %v665
        %v667 = vcombine.high %v666, %v666
        %v669 = vunpack.c.l.s4 1966171168
        %v670 = vunpack.c.0.s8 %v669
        %v671 = vlaneseq
        %v672 = vshrl.u32 %v671, 7
        %v673 = vsub.s32 %v670, %v672
        %v674 = vrot.slane %v666, %v673
        %v676 = vunpack.c.l.s4 1966171168
        %v677 = vunpack.c.0.s8 %v676
        %v678 = vlaneseq
        %v679 = vshrl.u32 %v678, 7
        %v680 = vsub.s32 %v677, %v679
        %v681 = vrot.slane %v667, %v680
        %v682 = vcombine.high %v674, %v674
        %v683 = vcombine.high %v681, %v681
        %v685 = vunpack.c.l.s4 1966171168
        %v686 = vunpack.c.0.s8 %v685
        %v687 = vlaneseq
        %v688 = vshrl.u32 %v687, 7
        %v689 = vsub.s32 %v686, %v688
        %v690 = vrot.slane %v494, %v689
        %v692 = vunpack.c.l.s4 1966171168
        %v693 = vunpack.c.0.s8 %v692
        %v694 = vlaneseq
        %v695 = vshrl.u32 %v694, 7
        %v696 = vsub.s32 %v693, %v695
        %v697 = vrot.slane %v690, %v696
        %v699 = vunpack.c.l.s4 1966171168
        %v700 = vunpack.c.0.s8 %v699
        %v701 = vlaneseq
        %v702 = vshrl.u32 %v701, 7
        %v703 = vsub.s32 %v700, %v702
        %v704 = vrot.slane %v495, %v703
        %v705 = vcombine.high %v704, %v704
        %v707 = vunpack.c.l.s4 1966171168
        %v708 = vunpack.c.0.s8 %v707
        %v709 = vlaneseq
        %v710 = vshrl.u32 %v709, 7
        %v711 = vsub.s32 %v708, %v710
        %v712 = vrot.slane %v704, %v711
        %v714 = vunpack.c.l.s4 1966171168
        %v715 = vunpack.c.0.s8 %v714
        %v716 = vlaneseq
        %v717 = vshrl.u32 %v716, 7
        %v718 = vsub.s32 %v715, %v717
        %v719 = vrot.slane %v705, %v718
        %v720 = vcombine.high %v712, %v712
        %v721 = vcombine.high %v719, %v719
        %v723 = vunpack.c.l.s4 1966171168
        %v724 = vunpack.c.0.s8 %v723
        %v725 = vlaneseq
        %v726 = vshrl.u32 %v725, 7
        %v727 = vsub.s32 %v724, %v726
        %v728 = vrot.slane %v496, %v727
        %v730 = vunpack.c.l.s4 1966171168
        %v731 = vunpack.c.0.s8 %v730
        %v732 = vlaneseq
        %v733 = vshrl.u32 %v732, 7
        %v734 = vsub.s32 %v731, %v733
        %v735 = vrot.slane %v728, %v734
        %v737 = vunpack.c.l.s4 1966171168
        %v738 = vunpack.c.0.s8 %v737
        %v739 = vlaneseq
        %v740 = vshrl.u32 %v739, 7
        %v741 = vsub.s32 %v738, %v740
        %v742 = vrot.slane %v497, %v741
        %v743 = vcombine.high %v742, %v742
        %v745 = vunpack.c.l.s4 1966171168
        %v746 = vunpack.c.0.s8 %v745
        %v747 = vlaneseq
        %v748 = vshrl.u32 %v747, 7
        %v749 = vsub.s32 %v746, %v748
        %v750 = vrot.slane %v742, %v749
        %v752 = vunpack.c.l.s4 1966171168
        %v753 = vunpack.c.0.s8 %v752
        %v754 = vlaneseq
        %v755 = vshrl.u32 %v754, 7
        %v756 = vsub.s32 %v753, %v755
        %v757 = vrot.slane %v743, %v756
        %v758 = vcombine.high %v750, %v750
        %v759 = vcombine.high %v757, %v757
        %v761 = vunpack.c.l.s4 1966171168
        %v762 = vunpack.c.0.s8 %v761
        %v763 = vlaneseq
        %v764 = vshrl.u32 %v763, 7
        %v765 = vsub.s32 %v762, %v764
        %v766 = vrot.slane %v498, %v765
        %v768 = vunpack.c.l.s4 1966171168
        %v769 = vunpack.c.0.s8 %v768
        %v770 = vlaneseq
        %v771 = vshrl.u32 %v770, 7
        %v772 = vsub.s32 %v769, %v771
        %v773 = vrot.slane %v766, %v772
        %v775 = vunpack.c.l.s4 1966171168
        %v776 = vunpack.c.0.s8 %v775
        %v777 = vlaneseq
        %v778 = vshrl.u32 %v777, 7
        %v779 = vsub.s32 %v776, %v778
        %v780 = vrot.slane %v499, %v779
        %v781 = vcombine.high %v780, %v780
        %v783 = vunpack.c.l.s4 1966171168
        %v784 = vunpack.c.0.s8 %v783
        %v785 = vlaneseq
        %v786 = vshrl.u32 %v785, 7
        %v787 = vsub.s32 %v784, %v786
        %v788 = vrot.slane %v780, %v787
        %v790 = vunpack.c.l.s4 1966171168
        %v791 = vunpack.c.0.s8 %v790
        %v792 = vlaneseq
        %v793 = vshrl.u32 %v792, 7
        %v794 = vsub.s32 %v791, %v793
        %v795 = vrot.slane %v781, %v794
        %v796 = vcombine.high %v788, %v788
        %v797 = vcombine.high %v795, %v795
        %v799 = vunpack.c.l.s4 1966171168
        %v800 = vunpack.c.0.s8 %v799
        %v801 = vlaneseq
        %v802 = vshrl.u32 %v801, 7
        %v803 = vsub.s32 %v800, %v802
        %v804 = vrot.slane %v500, %v803
        %v806 = vunpack.c.l.s4 1966171168
        %v807 = vunpack.c.0.s8 %v806
        %v808 = vlaneseq
        %v809 = vshrl.u32 %v808, 7
        %v810 = vsub.s32 %v807, %v809
        %v811 = vrot.slane %v804, %v810
        %v813 = vunpack.c.l.s4 1966171168
        %v814 = vunpack.c.0.s8 %v813
        %v815 = vlaneseq
        %v816 = vshrl.u32 %v815, 7
        %v817 = vsub.s32 %v814, %v816
        %v818 = vrot.slane %v501, %v817
        %v819 = vcombine.high %v818, %v818
        %v821 = vunpack.c.l.s4 1966171168
        %v822 = vunpack.c.0.s8 %v821
        %v823 = vlaneseq
        %v824 = vshrl.u32 %v823, 7
        %v825 = vsub.s32 %v822, %v824
        %v826 = vrot.slane %v818, %v825
        %v828 = vunpack.c.l.s4 1966171168
        %v829 = vunpack.c.0.s8 %v828
        %v830 = vlaneseq
        %v831 = vshrl.u32 %v830, 7
        %v832 = vsub.s32 %v829, %v831
        %v833 = vrot.slane %v819, %v832
        %v834 = vcombine.high %v826, %v826
        %v835 = vcombine.high %v833, %v833
        %v837 = vunpack.c.l.s4 1966171168
        %v838 = vunpack.c.0.s8 %v837
        %v839 = vlaneseq
        %v840 = vshrl.u32 %v839, 7
        %v841 = vsub.s32 %v838, %v840
        %v842 = vrot.slane %v502, %v841
        %v844 = vunpack.c.l.s4 1966171168
        %v845 = vunpack.c.0.s8 %v844
        %v846 = vlaneseq
        %v847 = vshrl.u32 %v846, 7
        %v848 = vsub.s32 %v845, %v847
        %v849 = vrot.slane %v842, %v848
        %v851 = vunpack.c.l.s4 1966171168
        %v852 = vunpack.c.0.s8 %v851
        %v853 = vlaneseq
        %v854 = vshrl.u32 %v853, 7
        %v855 = vsub.s32 %v852, %v854
        %v856 = vrot.slane %v503, %v855
        %v857 = vcombine.high %v856, %v856
        %v859 = vunpack.c.l.s4 1966171168
        %v860 = vunpack.c.0.s8 %v859
        %v861 = vlaneseq
        %v862 = vshrl.u32 %v861, 7
        %v863 = vsub.s32 %v860, %v862
        %v864 = vrot.slane %v856, %v863
        %v866 = vunpack.c.l.s4 1966171168
        %v867 = vunpack.c.0.s8 %v866
        %v868 = vlaneseq
        %v869 = vshrl.u32 %v868, 7
        %v870 = vsub.s32 %v867, %v869
        %v871 = vrot.slane %v857, %v870
        %v872 = vcombine.high %v864, %v864
        %v873 = vcombine.high %v871, %v871
        %v875 = vunpack.c.l.s4 1966171168
        %v876 = vunpack.c.0.s8 %v875
        %v877 = vlaneseq
        %v878 = vshrl.u32 %v877, 7
        %v879 = vsub.s32 %v876, %v878
        %v880 = vrot.slane %v504, %v879
        %v882 = vunpack.c.l.s4 1966171168
        %v883 = vunpack.c.0.s8 %v882
        %v884 = vlaneseq
        %v885 = vshrl.u32 %v884, 7
        %v886 = vsub.s32 %v883, %v885
        %v887 = vrot.slane %v880, %v886
        %v889 = vunpack.c.l.s4 1966171168
        %v890 = vunpack.c.0.s8 %v889
        %v891 = vlaneseq
        %v892 = vshrl.u32 %v891, 7
        %v893 = vsub.s32 %v890, %v892
        %v894 = vrot.slane %v505, %v893
        %v895 = vcombine.high %v894, %v894
        %v897 = vunpack.c.l.s4 1966171168
        %v898 = vunpack.c.0.s8 %v897
        %v899 = vlaneseq
        %v900 = vshrl.u32 %v899, 7
        %v901 = vsub.s32 %v898, %v900
        %v902 = vrot.slane %v894, %v901
        %v904 = vunpack.c.l.s4 1966171168
        %v905 = vunpack.c.0.s8 %v904
        %v906 = vlaneseq
        %v907 = vshrl.u32 %v906, 7
        %v908 = vsub.s32 %v905, %v907
        %v909 = vrot.slane %v895, %v908
        %v910 = vcombine.high %v902, %v902
        %v911 = vcombine.high %v909, %v909
        %v913 = vunpack.c.l.s4 1966171168
        %v914 = vunpack.c.0.s8 %v913
        %v915 = vlaneseq
        %v916 = vshrl.u32 %v915, 7
        %v917 = vsub.s32 %v914, %v916
        %v918 = vrot.slane %v506, %v917
        %v920 = vunpack.c.l.s4 1966171168
        %v921 = vunpack.c.0.s8 %v920
        %v922 = vlaneseq
        %v923 = vshrl.u32 %v922, 7
        %v924 = vsub.s32 %v921, %v923
        %v925 = vrot.slane %v918, %v924
        %v926 = vunpack.i.l.s16 %v598
        %v927 = vunpack.i.h.s16 %v598
        %v928 = vunpack.i.l.s16 %v605
        %v929 = vunpack.i.h.s16 %v605
        %v930 = vunpack.i.l.s16 %v606
        %v931 = vunpack.i.h.s16 %v606
        %v932 = vunpack.i.l.s16 %v607
        %v933 = vunpack.i.h.s16 %v607
        %v934 = vunpack.i.l.s16 %v621
        %v935 = vunpack.i.l.s16 %v636
        %v936 = vunpack.i.h.s16 %v636
        %v937 = vunpack.i.l.s16 %v643
        %v938 = vunpack.i.h.s16 %v643
        %v939 = vunpack.i.l.s16 %v644
        %v940 = vunpack.i.h.s16 %v644
        %v941 = vunpack.i.l.s16 %v645
        %v942 = vunpack.i.h.s16 %v645
        %v943 = vunpack.i.l.s16 %v659
        %v944 = vunpack.i.l.s16 %v674
        %v945 = vunpack.i.h.s16 %v674
        %v946 = vunpack.i.l.s16 %v681
        %v947 = vunpack.i.h.s16 %v681
        %v948 = vunpack.i.l.s16 %v682
        %v949 = vunpack.i.h.s16 %v682
        %v950 = vunpack.i.l.s16 %v683
        %v951 = vunpack.i.h.s16 %v683
        %v952 = vunpack.i.l.s16 %v697
        %v953 = vunpack.i.l.s16 %v712
        %v954 = vunpack.i.h.s16 %v712
        %v955 = vunpack.i.l.s16 %v719
        %v956 = vunpack.i.h.s16 %v719
        %v957 = vunpack.i.l.s16 %v720
        %v958 = vunpack.i.h.s16 %v720
        %v959 = vunpack.i.l.s16 %v721
        %v960 = vunpack.i.h.s16 %v721
        %v961 = vunpack.i.l.s16 %v735
        %v962 = vunpack.i.l.s16 %v750
        %v963 = vunpack.i.h.s16 %v750
        %v964 = vunpack.i.l.s16 %v757
        %v965 = vunpack.i.h.s16 %v757
        %v966 = vunpack.i.l.s16 %v758
        %v967 = vunpack.i.h.s16 %v758
        %v968 = vunpack.i.l.s16 %v759
        %v969 = vunpack.i.h.s16 %v759
        %v970 = vunpack.i.l.s16 %v773
        %v971 = vunpack.i.l.s16 %v788
        %v972 = vunpack.i.h.s16 %v788
        %v973 = vunpack.i.l.s16 %v795
        %v974 = vunpack.i.h.s16 %v795
        %v975 = vunpack.i.l.s16 %v796
        %v976 = vunpack.i.h.s16 %v796
        %v977 = vunpack.i.l.s16 %v797
        %v978 = vunpack.i.h.s16 %v797
        %v979 = vunpack.i.l.s16 %v811
        %v980 = vunpack.i.l.s16 %v826
        %v981 = vunpack.i.h.s16 %v826
        %v982 = vunpack.i.l.s16 %v833
        %v983 = vunpack.i.h.s16 %v833
        %v984 = vunpack.i.l.s16 %v834
        %v985 = vunpack.i.h.s16 %v834
        %v986 = vunpack.i.l.s16 %v835
        %v987 = vunpack.i.h.s16 %v835
        %v988 = vunpack.i.l.s16 %v849
        %v989 = vunpack.i.l.s16 %v864
        %v990 = vunpack.i.h.s16 %v864
        %v991 = vunpack.i.l.s16 %v871
        %v992 = vunpack.i.h.s16 %v871
        %v993 = vunpack.i.l.s16 %v872
        %v994 = vunpack.i.h.s16 %v872
        %v995 = vunpack.i.l.s16 %v873
        %v996 = vunpack.i.h.s16 %v873
        %v997 = vunpack.i.l.s16 %v887
        %v998 = vunpack.i.l.s16 %v902
        %v999 = vunpack.i.h.s16 %v902
        %v1000 = vunpack.i.l.s16 %v909
        %v1001 = vunpack.i.h.s16 %v909
        %v1002 = vunpack.i.l.s16 %v910
        %v1003 = vunpack.i.h.s16 %v910
        %v1004 = vunpack.i.l.s16 %v911
        %v1005 = vunpack.i.h.s16 %v911
        %v1006 = vunpack.i.l.s16 %v925
        %v1007 = vpack.i.b16 %v927, %v926
        %v1008 = vpack.i.b16 %v929, %v928
        %v1009 = vpack.i.b16 %v931, %v930
        %v1010 = vpack.i.b16 %v933, %v932
        %v1011 = vpack.i.b16 %v935, %v934
        %v1012 = vpack.i.b16 %v937, %v936
        %v1013 = vpack.i.b16 %v939, %v938
        %v1014 = vpack.i.b16 %v941, %v940
        %v1015 = vpack.i.b16 %v943, %v942
        %v1016 = vpack.i.b16 %v945, %v944
        %v1017 = vpack.i.b16 %v947, %v946
        %v1018 = vpack.i.b16 %v949, %v948
        %v1019 = vpack.i.b16 %v951, %v950
        %v1020 = vpack.i.b16 %v953, %v952
        %v1021 = vpack.i.b16 %v955, %v954
        %v1022 = vpack.i.b16 %v957, %v956
        %v1023 = vpack.i.b16 %v959, %v958
        %v1024 = vpack.i.b16 %v961, %v960
        %v1025 = vpack.i.b16 %v963, %v962
        %v1026 = vpack.i.b16 %v965, %v964
        %v1027 = vpack.i.b16 %v967, %v966
        %v1028 = vpack.i.b16 %v969, %v968
        %v1029 = vpack.i.b16 %v971, %v970
        %v1030 = vpack.i.b16 %v973, %v972
        %v1031 = vpack.i.b16 %v975, %v974
        %v1032 = vpack.i.b16 %v977, %v976
        %v1033 = vpack.i.b16 %v979, %v978
        %v1034 = vpack.i.b16 %v981, %v980
        %v1035 = vpack.i.b16 %v983, %v982
        %v1036 = vpack.i.b16 %v985, %v984
        %v1037 = vpack.i.b16 %v987, %v986
        %v1038 = vpack.i.b16 %v989, %v988
        %v1039 = vpack.i.b16 %v991, %v990
        %v1040 = vpack.i.b16 %v993, %v992
        %v1041 = vpack.i.b16 %v995, %v994
        %v1042 = vpack.i.b16 %v997, %v996
        %v1043 = vpack.i.b16 %v999, %v998
        %v1044 = vpack.i.b16 %v1001, %v1000
        %v1045 = vpack.i.b16 %v1003, %v1002
        %v1046 = vpack.i.b16 %v1005, %v1004
        %v1048 = vcombine.low %v1007, %v1008
        %v1049 = vcombine.low %v1009, %v1010
        %v1050 = vcombine.low %v1011, %v1012
        %v1051 = vcombine.low %v1013, %v1014
        %v1053 = vunpack.c.l.s4 1966171168
        %v1054 = vunpack.c.0.s8 %v1053
        %v1055 = vlaneseq
        %v1056 = vshrl.u32 %v1055, 7
        %v1057 = vsub.s32 %v1054, %v1056
        %v1058 = vrot.slane %v1048, %v1057
        %v1060 = vunpack.c.l.s4 1966171168
        %v1061 = vunpack.c.0.s8 %v1060
        %v1062 = vlaneseq
        %v1063 = vshrl.u32 %v1062, 7
        %v1064 = vsub.s32 %v1061, %v1063
        %v1065 = vrot.slane %v1049, %v1064
        %v1067 = vunpack.c.l.s4 1966171168
        %v1068 = vunpack.c.0.s8 %v1067
        %v1069 = vlaneseq
        %v1070 = vshrl.u32 %v1069, 7
        %v1071 = vsub.s32 %v1068, %v1070
        %v1072 = vrot.slane %v1050, %v1071
        %v1074 = vunpack.c.l.s4 1966171168
        %v1075 = vunpack.c.0.s8 %v1074
        %v1076 = vlaneseq
        %v1077 = vshrl.u32 %v1076, 7
        %v1078 = vsub.s32 %v1075, %v1077
        %v1079 = vrot.slane %v1051, %v1078
        %v1080 = vcombine.low %v1058, %v1065
        %v1081 = vcombine.low %v1072, %v1079
        %v1083 = vunpack.c.l.s4 1966171168
        %v1084 = vunpack.c.0.s8 %v1083
        %v1085 = vlaneseq
        %v1086 = vshrl.u32 %v1085, 7
        %v1087 = vsub.s32 %v1084, %v1086
        %v1088 = vrot.slane %v1080, %v1087
        %v1090 = vunpack.c.l.s4 1966171168
        %v1091 = vunpack.c.0.s8 %v1090
        %v1092 = vlaneseq
        %v1093 = vshrl.u32 %v1092, 7
        %v1094 = vsub.s32 %v1091, %v1093
        %v1095 = vrot.slane %v1081, %v1094
        %v1096 = vcombine.low %v1088, %v1095
        %v1097 = vcombine.low %v1015, %v1016
        %v1098 = vcombine.low %v1017, %v1018
        %v1099 = vcombine.low %v1019, %v1020
        %v1100 = vcombine.low %v1021, %v1022
        %v1102 = vunpack.c.l.s4 1966171168
        %v1103 = vunpack.c.0.s8 %v1102
        %v1104 = vlaneseq
        %v1105 = vshrl.u32 %v1104, 7
        %v1106 = vsub.s32 %v1103, %v1105
        %v1107 = vrot.slane %v1097, %v1106
        %v1109 = vunpack.c.l.s4 1966171168
        %v1110 = vunpack.c.0.s8 %v1109
        %v1111 = vlaneseq
        %v1112 = vshrl.u32 %v1111, 7
        %v1113 = vsub.s32 %v1110, %v1112
        %v1114 = vrot.slane %v1098, %v1113
        %v1116 = vunpack.c.l.s4 1966171168
        %v1117 = vunpack.c.0.s8 %v1116
        %v1118 = vlaneseq
        %v1119 = vshrl.u32 %v1118, 7
        %v1120 = vsub.s32 %v1117, %v1119
        %v1121 = vrot.slane %v1099, %v1120
        %v1123 = vunpack.c.l.s4 1966171168
        %v1124 = vunpack.c.0.s8 %v1123
        %v1125 = vlaneseq
        %v1126 = vshrl.u32 %v1125, 7
        %v1127 = vsub.s32 %v1124, %v1126
        %v1128 = vrot.slane %v1100, %v1127
        %v1129 = vcombine.low %v1107, %v1114
        %v1130 = vcombine.low %v1121, %v1128
        %v1132 = vunpack.c.l.s4 1966171168
        %v1133 = vunpack.c.0.s8 %v1132
        %v1134 = vlaneseq
        %v1135 = vshrl.u32 %v1134, 7
        %v1136 = vsub.s32 %v1133, %v1135
        %v1137 = vrot.slane %v1129, %v1136
        %v1139 = vunpack.c.l.s4 1966171168
        %v1140 = vunpack.c.0.s8 %v1139
        %v1141 = vlaneseq
        %v1142 = vshrl.u32 %v1141, 7
        %v1143 = vsub.s32 %v1140, %v1142
        %v1144 = vrot.slane %v1130, %v1143
        %v1145 = vcombine.low %v1137, %v1144
        %v1146 = vcombine.low %v1023, %v1024
        %v1147 = vcombine.low %v1025, %v1026
        %v1148 = vcombine.low %v1027, %v1028
        %v1149 = vcombine.low %v1029, %v1030
        %v1151 = vunpack.c.l.s4 1966171168
        %v1152 = vunpack.c.0.s8 %v1151
        %v1153 = vlaneseq
        %v1154 = vshrl.u32 %v1153, 7
        %v1155 = vsub.s32 %v1152, %v1154
        %v1156 = vrot.slane %v1146, %v1155
        %v1158 = vunpack.c.l.s4 1966171168
        %v1159 = vunpack.c.0.s8 %v1158
        %v1160 = vlaneseq
        %v1161 = vshrl.u32 %v1160, 7
        %v1162 = vsub.s32 %v1159, %v1161
        %v1163 = vrot.slane %v1147, %v1162
        %v1165 = vunpack.c.l.s4 1966171168
        %v1166 = vunpack.c.0.s8 %v1165
        %v1167 = vlaneseq
        %v1168 = vshrl.u32 %v1167, 7
        %v1169 = vsub.s32 %v1166, %v1168
        %v1170 = vrot.slane %v1148, %v1169
        %v1172 = vunpack.c.l.s4 1966171168
        %v1173 = vunpack.c.0.s8 %v1172
        %v1174 = vlaneseq
        %v1175 = vshrl.u32 %v1174, 7
        %v1176 = vsub.s32 %v1173, %v1175
        %v1177 = vrot.slane %v1149, %v1176
        %v1178 = vcombine.low %v1156, %v1163
        %v1179 = vcombine.low %v1170, %v1177
        %v1181 = vunpack.c.l.s4 1966171168
        %v1182 = vunpack.c.0.s8 %v1181
        %v1183 = vlaneseq
        %v1184 = vshrl.u32 %v1183, 7
        %v1185 = vsub.s32 %v1182, %v1184
        %v1186 = vrot.slane %v1178, %v1185
        %v1188 = vunpack.c.l.s4 1966171168
        %v1189 = vunpack.c.0.s8 %v1188
        %v1190 = vlaneseq
        %v1191 = vshrl.u32 %v1190, 7
        %v1192 = vsub.s32 %v1189, %v1191
        %v1193 = vrot.slane %v1179, %v1192
        %v1194 = vcombine.low %v1186, %v1193
        %v1195 = vcombine.low %v1031, %v1032
        %v1196 = vcombine.low %v1033, %v1034
        %v1197 = vcombine.low %v1035, %v1036
        %v1198 = vcombine.low %v1037, %v1038
        %v1200 = vunpack.c.l.s4 1966171168
        %v1201 = vunpack.c.0.s8 %v1200
        %v1202 = vlaneseq
        %v1203 = vshrl.u32 %v1202, 7
        %v1204 = vsub.s32 %v1201, %v1203
        %v1205 = vrot.slane %v1195, %v1204
        %v1207 = vunpack.c.l.s4 1966171168
        %v1208 = vunpack.c.0.s8 %v1207
        %v1209 = vlaneseq
        %v1210 = vshrl.u32 %v1209, 7
        %v1211 = vsub.s32 %v1208, %v1210
        %v1212 = vrot.slane %v1196, %v1211
        %v1214 = vunpack.c.l.s4 1966171168
        %v1215 = vunpack.c.0.s8 %v1214
        %v1216 = vlaneseq
        %v1217 = vshrl.u32 %v1216, 7
        %v1218 = vsub.s32 %v1215, %v1217
        %v1219 = vrot.slane %v1197, %v1218
        %v1221 = vunpack.c.l.s4 1966171168
        %v1222 = vunpack.c.0.s8 %v1221
        %v1223 = vlaneseq
        %v1224 = vshrl.u32 %v1223, 7
        %v1225 = vsub.s32 %v1222, %v1224
        %v1226 = vrot.slane %v1198, %v1225
        %v1227 = vcombine.low %v1205, %v1212
        %v1228 = vcombine.low %v1219, %v1226
        %v1230 = vunpack.c.l.s4 1966171168
        %v1231 = vunpack.c.0.s8 %v1230
        %v1232 = vlaneseq
        %v1233 = vshrl.u32 %v1232, 7
        %v1234 = vsub.s32 %v1231, %v1233
        %v1235 = vrot.slane %v1227, %v1234
        %v1237 = vunpack.c.l.s4 1966171168
        %v1238 = vunpack.c.0.s8 %v1237
        %v1239 = vlaneseq
        %v1240 = vshrl.u32 %v1239, 7
        %v1241 = vsub.s32 %v1238, %v1240
        %v1242 = vrot.slane %v1228, %v1241
        %v1243 = vcombine.low %v1235, %v1242
        %v1244 = vcombine.low %v1039, %v1040
        %v1245 = vcombine.low %v1041, %v1042
        %v1246 = vcombine.low %v1043, %v1044
        %v1247 = vcombine.low %v1045, %v1046
        %v1249 = vunpack.c.l.s4 1966171168
        %v1250 = vunpack.c.0.s8 %v1249
        %v1251 = vlaneseq
        %v1252 = vshrl.u32 %v1251, 7
        %v1253 = vsub.s32 %v1250, %v1252
        %v1254 = vrot.slane %v1244, %v1253
        %v1256 = vunpack.c.l.s4 1966171168
        %v1257 = vunpack.c.0.s8 %v1256
        %v1258 = vlaneseq
        %v1259 = vshrl.u32 %v1258, 7
        %v1260 = vsub.s32 %v1257, %v1259
        %v1261 = vrot.slane %v1245, %v1260
        %v1263 = vunpack.c.l.s4 1966171168
        %v1264 = vunpack.c.0.s8 %v1263
        %v1265 = vlaneseq
        %v1266 = vshrl.u32 %v1265, 7
        %v1267 = vsub.s32 %v1264, %v1266
        %v1268 = vrot.slane %v1246, %v1267
        %v1270 = vunpack.c.l.s4 1966171168
        %v1271 = vunpack.c.0.s8 %v1270
        %v1272 = vlaneseq
        %v1273 = vshrl.u32 %v1272, 7
        %v1274 = vsub.s32 %v1271, %v1273
        %v1275 = vrot.slane %v1247, %v1274
        %v1276 = vcombine.low %v1254, %v1261
        %v1277 = vcombine.low %v1268, %v1275
        %v1279 = vunpack.c.l.s4 1966171168
        %v1280 = vunpack.c.0.s8 %v1279
        %v1281 = vlaneseq
        %v1282 = vshrl.u32 %v1281, 7
        %v1283 = vsub.s32 %v1280, %v1282
        %v1284 = vrot.slane %v1276, %v1283
        %v1286 = vunpack.c.l.s4 1966171168
        %v1287 = vunpack.c.0.s8 %v1286
        %v1288 = vlaneseq
        %v1289 = vshrl.u32 %v1288, 7
        %v1290 = vsub.s32 %v1287, %v1289
        %v1291 = vrot.slane %v1277, %v1290
        %v1292 = vcombine.low %v1284, %v1291
        %v1294 = vunpack.c.l.s4 1966171168
        %v1295 = vunpack.c.0.s8 %v1294
        %v1296 = vlaneseq
        %v1297 = vshrl.u32 %v1296, 7
        %v1298 = vsub.s32 %v1295, %v1297
        %v1299 = vrot.slane %v1006, %v1298
        %v1301 = vunpack.c.l.s4 1966171168
        %v1302 = vunpack.c.0.s8 %v1301
        %v1303 = vlaneseq
        %v1304 = vshrl.u32 %v1303, 7
        %v1305 = vsub.s32 %v1302, %v1304
        %v1306 = vrot.slane %v1299, %v1305
        %vm1307 = vcmask 64512
        %v1309 = vsel %vm1307, %v1096, 0
        %v1312 = vsel %vm1307, %v1145, 0
        %v1315 = vsel %vm1307, %v1194, 0
        %v1318 = vsel %vm1307, %v1243, 0
        %v1321 = vsel %vm1307, %v1292, 0
        %v1324 = vsel %vm1307, %v1306, 0
        %vm1326 = vcmask 1043456
        %v1328 = vsel %vm1326, %v564, 0
        %1330 = vmatprep.subr.bf16.mxu0 0
        %1331 = vmatpush1.bf16.msra.mxu0 %v1328
        %1332 = vmatprep.subr.bf16.mxu0 0
        %1333 = vmatpush1.bf16.msra.mxu0 0
        %1334 = vmatprep.subr.bf16.mxu0 0
        %1335 = vmatpush1.bf16.msra.mxu0 0
        %1336 = vmatprep.subr.bf16.mxu0 0
        %1337 = vmatpush1.bf16.msra.mxu0 0
        %1338 = vmatprep.subr.bf16.mxu0 0
        %1339 = vmatpush1.bf16.msra.mxu0 0
        %1340 = vmatprep.subr.bf16.mxu0 0
        %1341 = vmatpush1.bf16.msra.mxu0 0
        %1342 = vmatprep.subr.bf16.mxu0 0
        %1343 = vmatpush1.bf16.msra.mxu0 0
        %1344 = vmatprep.subr.bf16.mxu0 0
        %1345 = vmatpush1.bf16.msra.mxu0 0
        %1346 = vmatprep.subr.bf16.mxu0 0
        %1347 = vmatpush1.bf16.msra.mxu0 0
        %1348 = vmatprep.subr.bf16.mxu0 0
        %1349 = vmatpush1.bf16.msra.mxu0 0
        %1350 = vmatprep.subr.bf16.mxu0 0
        %1351 = vmatpush1.bf16.msra.mxu0 0
        %1352 = vmatprep.subr.bf16.mxu0 0
        %1353 = vmatpush1.bf16.msra.mxu0 0
        %1354 = vmatprep.subr.bf16.mxu0 0
        %1355 = vmatpush1.bf16.msra.mxu0 0
        %1356 = vmatprep.subr.bf16.mxu0 0
        %1357 = vmatpush1.bf16.msra.mxu0 0
        %1358 = vmatprep.subr.bf16.mxu0 0
        %1359 = vmatpush1.bf16.msra.mxu0 0
        %1360 = vmatprep.subr.bf16.mxu0 0
        %1361 = vmatpush1.bf16.msra.mxu0 0
        %1362 = vmatprep.mubr.bf16.mxu0 0
        %1363 = vmatmul.mubr.bf16.gmra.mrb[0].mxu0 %v1309
        %v1364 = vpop.f32.mrb[0].mxu0
        %v1365 = vadd.f32 0.0, %v1364
        %v1366 = vpop.f32.mrb[0].mxu0
        %v1367 = vpop.f32.mrb[0].mxu0
        %v1368 = vadd.f32 0.0, %v1367
        %v1369 = vpop.f32.mrb[0].mxu0
        %1370 = vmatprep.mubr.bf16.mxu0 0
        %1371 = vmatmul.mubr.bf16.gmra.mrb[0].mxu0 %v1312
        %v1372 = vpop.f32.mrb[0].mxu0
        %v1373 = vadd.f32 0.0, %v1372
        %v1374 = vpop.f32.mrb[0].mxu0
        %v1375 = vpop.f32.mrb[0].mxu0
        %v1376 = vadd.f32 0.0, %v1375
        %v1377 = vpop.f32.mrb[0].mxu0
        %1378 = vmatprep.mubr.bf16.mxu0 0
        %1379 = vmatmul.mubr.bf16.gmra.mrb[0].mxu0 %v1315
        %v1380 = vpop.f32.mrb[0].mxu0
        %v1381 = vadd.f32 0.0, %v1380
        %v1382 = vpop.f32.mrb[0].mxu0
        %v1383 = vpop.f32.mrb[0].mxu0
        %v1384 = vadd.f32 0.0, %v1383
        %v1385 = vpop.f32.mrb[0].mxu0
        %1386 = vmatprep.mubr.bf16.mxu0 0
        %1387 = vmatmul.mubr.bf16.gmra.mrb[0].mxu0 %v1318
        %v1388 = vpop.f32.mrb[0].mxu0
        %v1389 = vadd.f32 0.0, %v1388
        %v1390 = vpop.f32.mrb[0].mxu0
        %v1391 = vpop.f32.mrb[0].mxu0
        %v1392 = vadd.f32 0.0, %v1391
        %v1393 = vpop.f32.mrb[0].mxu0
        %1394 = vmatprep.mubr.bf16.mxu0 0
        %1395 = vmatmul.mubr.bf16.gmra.mrb[0].mxu0 %v1321
        %v1396 = vpop.f32.mrb[0].mxu0
        %v1397 = vadd.f32 0.0, %v1396
        %v1398 = vpop.f32.mrb[0].mxu0
        %v1399 = vpop.f32.mrb[0].mxu0
        %v1400 = vadd.f32 0.0, %v1399
        %v1401 = vpop.f32.mrb[0].mxu0
        %1402 = vmatprep.mubr.bf16.mxu0 0
        %1403 = vmatmul.mubr.bf16.gmra.mrb[0].mxu0 %v1324
        %v1404 = vpop.f32.mrb[0].mxu0
        %v1405 = vadd.f32 0.0, %v1404
        %v1406 = vpop.f32.mrb[0].mxu0
        %v1407 = vpop.f32.mrb[0].mxu0
        %v1408 = vpop.f32.mrb[0].mxu0
        %1409 = vdwg.mxu0
        %v1421 = vcombine.high %v1365, %v1365
        %v1423 = vunpack.c.l.s4 1966171168
        %v1424 = vunpack.c.0.s8 %v1423
        %v1425 = vlaneseq
        %v1426 = vshrl.u32 %v1425, 7
        %v1427 = vsub.s32 %v1424, %v1426
        %v1428 = vrot.slane %v1365, %v1427
        %v1430 = vunpack.c.l.s4 1966171168
        %v1431 = vunpack.c.0.s8 %v1430
        %v1432 = vlaneseq
        %v1433 = vshrl.u32 %v1432, 7
        %v1434 = vsub.s32 %v1431, %v1433
        %v1435 = vrot.slane %v1421, %v1434
        %v1436 = vcombine.high %v1428, %v1428
        %v1437 = vcombine.high %v1435, %v1435
        %v1439 = vunpack.c.l.s4 1966171168
        %v1440 = vunpack.c.0.s8 %v1439
        %v1441 = vlaneseq
        %v1442 = vshrl.u32 %v1441, 7
        %v1443 = vsub.s32 %v1440, %v1442
        %v1444 = vrot.slane %v1428, %v1443
        %v1446 = vunpack.c.l.s4 1966171168
        %v1447 = vunpack.c.0.s8 %v1446
        %v1448 = vlaneseq
        %v1449 = vshrl.u32 %v1448, 7
        %v1450 = vsub.s32 %v1447, %v1449
        %v1451 = vrot.slane %v1435, %v1450
        %v1453 = vunpack.c.l.s4 1966171168
        %v1454 = vunpack.c.0.s8 %v1453
        %v1455 = vlaneseq
        %v1456 = vshrl.u32 %v1455, 7
        %v1457 = vsub.s32 %v1454, %v1456
        %v1458 = vrot.slane %v1436, %v1457
        %v1460 = vunpack.c.l.s4 1966171168
        %v1461 = vunpack.c.0.s8 %v1460
        %v1462 = vlaneseq
        %v1463 = vshrl.u32 %v1462, 7
        %v1464 = vsub.s32 %v1461, %v1463
        %v1465 = vrot.slane %v1437, %v1464
        %v1466 = vcombine.high %v1444, %v1444
        %v1467 = vcombine.high %v1451, %v1451
        %v1468 = vcombine.high %v1458, %v1458
        %v1469 = vcombine.high %v1465, %v1465
        %v1470 = vcombine.high %v1368, %v1368
        %v1472 = vunpack.c.l.s4 1966171168
        %v1473 = vunpack.c.0.s8 %v1472
        %v1474 = vlaneseq
        %v1475 = vshrl.u32 %v1474, 7
        %v1476 = vsub.s32 %v1473, %v1475
        %v1477 = vrot.slane %v1368, %v1476
        %v1479 = vunpack.c.l.s4 1966171168
        %v1480 = vunpack.c.0.s8 %v1479
        %v1481 = vlaneseq
        %v1482 = vshrl.u32 %v1481, 7
        %v1483 = vsub.s32 %v1480, %v1482
        %v1484 = vrot.slane %v1470, %v1483
        %v1485 = vcombine.high %v1477, %v1477
        %v1486 = vcombine.high %v1484, %v1484
        %v1488 = vunpack.c.l.s4 1966171168
        %v1489 = vunpack.c.0.s8 %v1488
        %v1490 = vlaneseq
        %v1491 = vshrl.u32 %v1490, 7
        %v1492 = vsub.s32 %v1489, %v1491
        %v1493 = vrot.slane %v1477, %v1492
        %v1495 = vunpack.c.l.s4 1966171168
        %v1496 = vunpack.c.0.s8 %v1495
        %v1497 = vlaneseq
        %v1498 = vshrl.u32 %v1497, 7
        %v1499 = vsub.s32 %v1496, %v1498
        %v1500 = vrot.slane %v1484, %v1499
        %v1502 = vunpack.c.l.s4 1966171168
        %v1503 = vunpack.c.0.s8 %v1502
        %v1504 = vlaneseq
        %v1505 = vshrl.u32 %v1504, 7
        %v1506 = vsub.s32 %v1503, %v1505
        %v1507 = vrot.slane %v1485, %v1506
        %v1509 = vunpack.c.l.s4 1966171168
        %v1510 = vunpack.c.0.s8 %v1509
        %v1511 = vlaneseq
        %v1512 = vshrl.u32 %v1511, 7
        %v1513 = vsub.s32 %v1510, %v1512
        %v1514 = vrot.slane %v1486, %v1513
        %v1515 = vcombine.high %v1493, %v1493
        %v1516 = vcombine.high %v1500, %v1500
        %v1517 = vcombine.high %v1507, %v1507
        %v1518 = vcombine.high %v1514, %v1514
        %v1519 = vcombine.high %v1373, %v1373
        %v1521 = vunpack.c.l.s4 1966171168
        %v1522 = vunpack.c.0.s8 %v1521
        %v1523 = vlaneseq
        %v1524 = vshrl.u32 %v1523, 7
        %v1525 = vsub.s32 %v1522, %v1524
        %v1526 = vrot.slane %v1373, %v1525
        %v1528 = vunpack.c.l.s4 1966171168
        %v1529 = vunpack.c.0.s8 %v1528
        %v1530 = vlaneseq
        %v1531 = vshrl.u32 %v1530, 7
        %v1532 = vsub.s32 %v1529, %v1531
        %v1533 = vrot.slane %v1519, %v1532
        %v1534 = vcombine.high %v1526, %v1526
        %v1535 = vcombine.high %v1533, %v1533
        %v1537 = vunpack.c.l.s4 1966171168
        %v1538 = vunpack.c.0.s8 %v1537
        %v1539 = vlaneseq
        %v1540 = vshrl.u32 %v1539, 7
        %v1541 = vsub.s32 %v1538, %v1540
        %v1542 = vrot.slane %v1526, %v1541
        %v1544 = vunpack.c.l.s4 1966171168
        %v1545 = vunpack.c.0.s8 %v1544
        %v1546 = vlaneseq
        %v1547 = vshrl.u32 %v1546, 7
        %v1548 = vsub.s32 %v1545, %v1547
        %v1549 = vrot.slane %v1533, %v1548
        %v1551 = vunpack.c.l.s4 1966171168
        %v1552 = vunpack.c.0.s8 %v1551
        %v1553 = vlaneseq
        %v1554 = vshrl.u32 %v1553, 7
        %v1555 = vsub.s32 %v1552, %v1554
        %v1556 = vrot.slane %v1534, %v1555
        %v1558 = vunpack.c.l.s4 1966171168
        %v1559 = vunpack.c.0.s8 %v1558
        %v1560 = vlaneseq
        %v1561 = vshrl.u32 %v1560, 7
        %v1562 = vsub.s32 %v1559, %v1561
        %v1563 = vrot.slane %v1535, %v1562
        %v1564 = vcombine.high %v1542, %v1542
        %v1565 = vcombine.high %v1549, %v1549
        %v1566 = vcombine.high %v1556, %v1556
        %v1567 = vcombine.high %v1563, %v1563
        %v1568 = vcombine.high %v1376, %v1376
        %v1570 = vunpack.c.l.s4 1966171168
        %v1571 = vunpack.c.0.s8 %v1570
        %v1572 = vlaneseq
        %v1573 = vshrl.u32 %v1572, 7
        %v1574 = vsub.s32 %v1571, %v1573
        %v1575 = vrot.slane %v1376, %v1574
        %v1577 = vunpack.c.l.s4 1966171168
        %v1578 = vunpack.c.0.s8 %v1577
        %v1579 = vlaneseq
        %v1580 = vshrl.u32 %v1579, 7
        %v1581 = vsub.s32 %v1578, %v1580
        %v1582 = vrot.slane %v1568, %v1581
        %v1583 = vcombine.high %v1575, %v1575
        %v1584 = vcombine.high %v1582, %v1582
        %v1586 = vunpack.c.l.s4 1966171168
        %v1587 = vunpack.c.0.s8 %v1586
        %v1588 = vlaneseq
        %v1589 = vshrl.u32 %v1588, 7
        %v1590 = vsub.s32 %v1587, %v1589
        %v1591 = vrot.slane %v1575, %v1590
        %v1593 = vunpack.c.l.s4 1966171168
        %v1594 = vunpack.c.0.s8 %v1593
        %v1595 = vlaneseq
        %v1596 = vshrl.u32 %v1595, 7
        %v1597 = vsub.s32 %v1594, %v1596
        %v1598 = vrot.slane %v1582, %v1597
        %v1600 = vunpack.c.l.s4 1966171168
        %v1601 = vunpack.c.0.s8 %v1600
        %v1602 = vlaneseq
        %v1603 = vshrl.u32 %v1602, 7
        %v1604 = vsub.s32 %v1601, %v1603
        %v1605 = vrot.slane %v1583, %v1604
        %v1607 = vunpack.c.l.s4 1966171168
        %v1608 = vunpack.c.0.s8 %v1607
        %v1609 = vlaneseq
        %v1610 = vshrl.u32 %v1609, 7
        %v1611 = vsub.s32 %v1608, %v1610
        %v1612 = vrot.slane %v1584, %v1611
        %v1613 = vcombine.high %v1591, %v1591
        %v1614 = vcombine.high %v1598, %v1598
        %v1615 = vcombine.high %v1605, %v1605
        %v1616 = vcombine.high %v1612, %v1612
        %v1617 = vcombine.high %v1381, %v1381
        %v1619 = vunpack.c.l.s4 1966171168
        %v1620 = vunpack.c.0.s8 %v1619
        %v1621 = vlaneseq
        %v1622 = vshrl.u32 %v1621, 7
        %v1623 = vsub.s32 %v1620, %v1622
        %v1624 = vrot.slane %v1381, %v1623
        %v1626 = vunpack.c.l.s4 1966171168
        %v1627 = vunpack.c.0.s8 %v1626
        %v1628 = vlaneseq
        %v1629 = vshrl.u32 %v1628, 7
        %v1630 = vsub.s32 %v1627, %v1629
        %v1631 = vrot.slane %v1617, %v1630
        %v1632 = vcombine.high %v1624, %v1624
        %v1633 = vcombine.high %v1631, %v1631
        %v1635 = vunpack.c.l.s4 1966171168
        %v1636 = vunpack.c.0.s8 %v1635
        %v1637 = vlaneseq
        %v1638 = vshrl.u32 %v1637, 7
        %v1639 = vsub.s32 %v1636, %v1638
        %v1640 = vrot.slane %v1624, %v1639
        %v1642 = vunpack.c.l.s4 1966171168
        %v1643 = vunpack.c.0.s8 %v1642
        %v1644 = vlaneseq
        %v1645 = vshrl.u32 %v1644, 7
        %v1646 = vsub.s32 %v1643, %v1645
        %v1647 = vrot.slane %v1631, %v1646
        %v1649 = vunpack.c.l.s4 1966171168
        %v1650 = vunpack.c.0.s8 %v1649
        %v1651 = vlaneseq
        %v1652 = vshrl.u32 %v1651, 7
        %v1653 = vsub.s32 %v1650, %v1652
        %v1654 = vrot.slane %v1632, %v1653
        %v1656 = vunpack.c.l.s4 1966171168
        %v1657 = vunpack.c.0.s8 %v1656
        %v1658 = vlaneseq
        %v1659 = vshrl.u32 %v1658, 7
        %v1660 = vsub.s32 %v1657, %v1659
        %v1661 = vrot.slane %v1633, %v1660
        %v1662 = vcombine.high %v1640, %v1640
        %v1663 = vcombine.high %v1647, %v1647
        %v1664 = vcombine.high %v1654, %v1654
        %v1665 = vcombine.high %v1661, %v1661
        %v1666 = vcombine.high %v1384, %v1384
        %v1668 = vunpack.c.l.s4 1966171168
        %v1669 = vunpack.c.0.s8 %v1668
        %v1670 = vlaneseq
        %v1671 = vshrl.u32 %v1670, 7
        %v1672 = vsub.s32 %v1669, %v1671
        %v1673 = vrot.slane %v1384, %v1672
        %v1675 = vunpack.c.l.s4 1966171168
        %v1676 = vunpack.c.0.s8 %v1675
        %v1677 = vlaneseq
        %v1678 = vshrl.u32 %v1677, 7
        %v1679 = vsub.s32 %v1676, %v1678
        %v1680 = vrot.slane %v1666, %v1679
        %v1681 = vcombine.high %v1673, %v1673
        %v1682 = vcombine.high %v1680, %v1680
        %v1684 = vunpack.c.l.s4 1966171168
        %v1685 = vunpack.c.0.s8 %v1684
        %v1686 = vlaneseq
        %v1687 = vshrl.u32 %v1686, 7
        %v1688 = vsub.s32 %v1685, %v1687
        %v1689 = vrot.slane %v1673, %v1688
        %v1691 = vunpack.c.l.s4 1966171168
        %v1692 = vunpack.c.0.s8 %v1691
        %v1693 = vlaneseq
        %v1694 = vshrl.u32 %v1693, 7
        %v1695 = vsub.s32 %v1692, %v1694
        %v1696 = vrot.slane %v1680, %v1695
        %v1698 = vunpack.c.l.s4 1966171168
        %v1699 = vunpack.c.0.s8 %v1698
        %v1700 = vlaneseq
        %v1701 = vshrl.u32 %v1700, 7
        %v1702 = vsub.s32 %v1699, %v1701
        %v1703 = vrot.slane %v1681, %v1702
        %v1705 = vunpack.c.l.s4 1966171168
        %v1706 = vunpack.c.0.s8 %v1705
        %v1707 = vlaneseq
        %v1708 = vshrl.u32 %v1707, 7
        %v1709 = vsub.s32 %v1706, %v1708
        %v1710 = vrot.slane %v1682, %v1709
        %v1711 = vcombine.high %v1689, %v1689
        %v1712 = vcombine.high %v1696, %v1696
        %v1713 = vcombine.high %v1703, %v1703
        %v1714 = vcombine.high %v1710, %v1710
        %v1715 = vcombine.high %v1389, %v1389
        %v1717 = vunpack.c.l.s4 1966171168
        %v1718 = vunpack.c.0.s8 %v1717
        %v1719 = vlaneseq
        %v1720 = vshrl.u32 %v1719, 7
        %v1721 = vsub.s32 %v1718, %v1720
        %v1722 = vrot.slane %v1389, %v1721
        %v1724 = vunpack.c.l.s4 1966171168
        %v1725 = vunpack.c.0.s8 %v1724
        %v1726 = vlaneseq
        %v1727 = vshrl.u32 %v1726, 7
        %v1728 = vsub.s32 %v1725, %v1727
        %v1729 = vrot.slane %v1715, %v1728
        %v1730 = vcombine.high %v1722, %v1722
        %v1731 = vcombine.high %v1729, %v1729
        %v1733 = vunpack.c.l.s4 1966171168
        %v1734 = vunpack.c.0.s8 %v1733
        %v1735 = vlaneseq
        %v1736 = vshrl.u32 %v1735, 7
        %v1737 = vsub.s32 %v1734, %v1736
        %v1738 = vrot.slane %v1722, %v1737
        %v1740 = vunpack.c.l.s4 1966171168
        %v1741 = vunpack.c.0.s8 %v1740
        %v1742 = vlaneseq
        %v1743 = vshrl.u32 %v1742, 7
        %v1744 = vsub.s32 %v1741, %v1743
        %v1745 = vrot.slane %v1729, %v1744
        %v1747 = vunpack.c.l.s4 1966171168
        %v1748 = vunpack.c.0.s8 %v1747
        %v1749 = vlaneseq
        %v1750 = vshrl.u32 %v1749, 7
        %v1751 = vsub.s32 %v1748, %v1750
        %v1752 = vrot.slane %v1730, %v1751
        %v1754 = vunpack.c.l.s4 1966171168
        %v1755 = vunpack.c.0.s8 %v1754
        %v1756 = vlaneseq
        %v1757 = vshrl.u32 %v1756, 7
        %v1758 = vsub.s32 %v1755, %v1757
        %v1759 = vrot.slane %v1731, %v1758
        %v1760 = vcombine.high %v1738, %v1738
        %v1761 = vcombine.high %v1745, %v1745
        %v1762 = vcombine.high %v1752, %v1752
        %v1763 = vcombine.high %v1759, %v1759
        %v1764 = vcombine.high %v1392, %v1392
        %v1766 = vunpack.c.l.s4 1966171168
        %v1767 = vunpack.c.0.s8 %v1766
        %v1768 = vlaneseq
        %v1769 = vshrl.u32 %v1768, 7
        %v1770 = vsub.s32 %v1767, %v1769
        %v1771 = vrot.slane %v1392, %v1770
        %v1773 = vunpack.c.l.s4 1966171168
        %v1774 = vunpack.c.0.s8 %v1773
        %v1775 = vlaneseq
        %v1776 = vshrl.u32 %v1775, 7
        %v1777 = vsub.s32 %v1774, %v1776
        %v1778 = vrot.slane %v1764, %v1777
        %v1779 = vcombine.high %v1771, %v1771
        %v1780 = vcombine.high %v1778, %v1778
        %v1782 = vunpack.c.l.s4 1966171168
        %v1783 = vunpack.c.0.s8 %v1782
        %v1784 = vlaneseq
        %v1785 = vshrl.u32 %v1784, 7
        %v1786 = vsub.s32 %v1783, %v1785
        %v1787 = vrot.slane %v1771, %v1786
        %v1789 = vunpack.c.l.s4 1966171168
        %v1790 = vunpack.c.0.s8 %v1789
        %v1791 = vlaneseq
        %v1792 = vshrl.u32 %v1791, 7
        %v1793 = vsub.s32 %v1790, %v1792
        %v1794 = vrot.slane %v1778, %v1793
        %v1796 = vunpack.c.l.s4 1966171168
        %v1797 = vunpack.c.0.s8 %v1796
        %v1798 = vlaneseq
        %v1799 = vshrl.u32 %v1798, 7
        %v1800 = vsub.s32 %v1797, %v1799
        %v1801 = vrot.slane %v1779, %v1800
        %v1803 = vunpack.c.l.s4 1966171168
        %v1804 = vunpack.c.0.s8 %v1803
        %v1805 = vlaneseq
        %v1806 = vshrl.u32 %v1805, 7
        %v1807 = vsub.s32 %v1804, %v1806
        %v1808 = vrot.slane %v1780, %v1807
        %v1809 = vcombine.high %v1787, %v1787
        %v1810 = vcombine.high %v1794, %v1794
        %v1811 = vcombine.high %v1801, %v1801
        %v1812 = vcombine.high %v1808, %v1808
        %v1813 = vcombine.high %v1397, %v1397
        %v1815 = vunpack.c.l.s4 1966171168
        %v1816 = vunpack.c.0.s8 %v1815
        %v1817 = vlaneseq
        %v1818 = vshrl.u32 %v1817, 7
        %v1819 = vsub.s32 %v1816, %v1818
        %v1820 = vrot.slane %v1397, %v1819
        %v1822 = vunpack.c.l.s4 1966171168
        %v1823 = vunpack.c.0.s8 %v1822
        %v1824 = vlaneseq
        %v1825 = vshrl.u32 %v1824, 7
        %v1826 = vsub.s32 %v1823, %v1825
        %v1827 = vrot.slane %v1813, %v1826
        %v1828 = vcombine.high %v1820, %v1820
        %v1829 = vcombine.high %v1827, %v1827
        %v1831 = vunpack.c.l.s4 1966171168
        %v1832 = vunpack.c.0.s8 %v1831
        %v1833 = vlaneseq
        %v1834 = vshrl.u32 %v1833, 7
        %v1835 = vsub.s32 %v1832, %v1834
        %v1836 = vrot.slane %v1820, %v1835
        %v1838 = vunpack.c.l.s4 1966171168
        %v1839 = vunpack.c.0.s8 %v1838
        %v1840 = vlaneseq
        %v1841 = vshrl.u32 %v1840, 7
        %v1842 = vsub.s32 %v1839, %v1841
        %v1843 = vrot.slane %v1827, %v1842
        %v1845 = vunpack.c.l.s4 1966171168
        %v1846 = vunpack.c.0.s8 %v1845
        %v1847 = vlaneseq
        %v1848 = vshrl.u32 %v1847, 7
        %v1849 = vsub.s32 %v1846, %v1848
        %v1850 = vrot.slane %v1828, %v1849
        %v1852 = vunpack.c.l.s4 1966171168
        %v1853 = vunpack.c.0.s8 %v1852
        %v1854 = vlaneseq
        %v1855 = vshrl.u32 %v1854, 7
        %v1856 = vsub.s32 %v1853, %v1855
        %v1857 = vrot.slane %v1829, %v1856
        %v1858 = vcombine.high %v1836, %v1836
        %v1859 = vcombine.high %v1843, %v1843
        %v1860 = vcombine.high %v1850, %v1850
        %v1861 = vcombine.high %v1857, %v1857
        %v1862 = vcombine.high %v1400, %v1400
        %v1864 = vunpack.c.l.s4 1966171168
        %v1865 = vunpack.c.0.s8 %v1864
        %v1866 = vlaneseq
        %v1867 = vshrl.u32 %v1866, 7
        %v1868 = vsub.s32 %v1865, %v1867
        %v1869 = vrot.slane %v1400, %v1868
        %v1871 = vunpack.c.l.s4 1966171168
        %v1872 = vunpack.c.0.s8 %v1871
        %v1873 = vlaneseq
        %v1874 = vshrl.u32 %v1873, 7
        %v1875 = vsub.s32 %v1872, %v1874
        %v1876 = vrot.slane %v1862, %v1875
        %v1877 = vcombine.high %v1869, %v1869
        %v1878 = vcombine.high %v1876, %v1876
        %v1880 = vunpack.c.l.s4 1966171168
        %v1881 = vunpack.c.0.s8 %v1880
        %v1882 = vlaneseq
        %v1883 = vshrl.u32 %v1882, 7
        %v1884 = vsub.s32 %v1881, %v1883
        %v1885 = vrot.slane %v1869, %v1884
        %v1887 = vunpack.c.l.s4 1966171168
        %v1888 = vunpack.c.0.s8 %v1887
        %v1889 = vlaneseq
        %v1890 = vshrl.u32 %v1889, 7
        %v1891 = vsub.s32 %v1888, %v1890
        %v1892 = vrot.slane %v1876, %v1891
        %v1894 = vunpack.c.l.s4 1966171168
        %v1895 = vunpack.c.0.s8 %v1894
        %v1896 = vlaneseq
        %v1897 = vshrl.u32 %v1896, 7
        %v1898 = vsub.s32 %v1895, %v1897
        %v1899 = vrot.slane %v1877, %v1898
        %v1901 = vunpack.c.l.s4 1966171168
        %v1902 = vunpack.c.0.s8 %v1901
        %v1903 = vlaneseq
        %v1904 = vshrl.u32 %v1903, 7
        %v1905 = vsub.s32 %v1902, %v1904
        %v1906 = vrot.slane %v1878, %v1905
        %v1907 = vcombine.high %v1885, %v1885
        %v1908 = vcombine.high %v1892, %v1892
        %v1909 = vcombine.high %v1899, %v1899
        %v1910 = vcombine.high %v1906, %v1906
        %v1912 = vunpack.c.l.s4 1966171168
        %v1913 = vunpack.c.0.s8 %v1912
        %v1914 = vlaneseq
        %v1915 = vshrl.u32 %v1914, 7
        %v1916 = vsub.s32 %v1913, %v1915
        %v1917 = vrot.slane %v1405, %v1916
        %v1919 = vunpack.c.l.s4 1966171168
        %v1920 = vunpack.c.0.s8 %v1919
        %v1921 = vlaneseq
        %v1922 = vshrl.u32 %v1921, 7
        %v1923 = vsub.s32 %v1920, %v1922
        %v1924 = vrot.slane %v1917, %v1923
        %p2006 = scmp.eq.s32.totalorder %s29, 0
        %s2007 = scalar_select %p2006, 0, 4294967295
        %v2008 = vstv %s2007
        %vm2009 = vcmp.ne.s32.totalorder %v2008, 0
        %vm2010 = vcmp.ne.s32.totalorder %v2008, 1
        %vm2011 = vcmp.ne.s32.totalorder %v2008, 2
        %vm2012 = vcmp.ne.s32.totalorder %v2008, 3
        %vm2013 = vcmp.ne.s32.totalorder %v2008, 4
        %vm2014 = vcmp.ne.s32.totalorder %v2008, 5
        %vm2015 = vcmp.ne.s32.totalorder %v2008, 6
        %vm2016 = vcmp.ne.s32.totalorder %v2008, 7
        %vm2017 = vcmp.ne.s32.totalorder %v2008, 8
        %vm2018 = vcmp.ne.s32.totalorder %v562, 0
        %vm2019 = vcmp.ne.s32.totalorder %v563, 0
        %vm2020 = vmand %vm2009, %vm2018
        %vm2021 = vmand %vm2009, %vm2019
        %vm2022 = vmand %vm2010, %vm2018
        %vm2023 = vmand %vm2010, %vm2019
        %vm2024 = vmand %vm2011, %vm2018
        %vm2025 = vmand %vm2011, %vm2019
        %vm2026 = vmand %vm2012, %vm2018
        %vm2027 = vmand %vm2012, %vm2019
        %vm2028 = vmand %vm2013, %vm2018
        %vm2029 = vmand %vm2013, %vm2019
        %vm2030 = vmand %vm2014, %vm2018
        %vm2031 = vmand %vm2014, %vm2019
        %vm2032 = vmand %vm2015, %vm2018
        %vm2033 = vmand %vm2015, %vm2019
        %vm2034 = vmand %vm2016, %vm2018
        %vm2035 = vmand %vm2016, %vm2019
        %vm2036 = vmand %vm2017, %vm2018
        %vm2037 = vmand %vm2017, %vm2019
        %v2039 = vlaneseq
        %v2040 = vshrl.u32 %v2039, 7
        %v2041 = vsub.s32 0, %v2040
        %v2042 = vrot.slane %v565, %v2041
        %v2043 = vcombine.high %v2042, %v2042
        %v2045 = vunpack.c.l.s4 1966171168
        %v2046 = vunpack.c.0.s8 %v2045
        %v2047 = vlaneseq
        %v2048 = vshrl.u32 %v2047, 7
        %v2049 = vsub.s32 %v2046, %v2048
        %v2050 = vrot.slane %v2042, %v2049
        %v2052 = vunpack.c.l.s4 1966171168
        %v2053 = vunpack.c.0.s8 %v2052
        %v2054 = vlaneseq
        %v2055 = vshrl.u32 %v2054, 7
        %v2056 = vsub.s32 %v2053, %v2055
        %v2057 = vrot.slane %v2043, %v2056
        %v2058 = vcombine.high %v2050, %v2050
        %v2059 = vcombine.high %v2057, %v2057
        %v2061 = vunpack.c.l.s4 1966171168
        %v2062 = vunpack.c.0.s8 %v2061
        %v2063 = vlaneseq
        %v2064 = vshrl.u32 %v2063, 7
        %v2065 = vsub.s32 %v2062, %v2064
        %v2066 = vrot.slane %v2050, %v2065
        %v2068 = vunpack.c.l.s4 1966171168
        %v2069 = vunpack.c.0.s8 %v2068
        %v2070 = vlaneseq
        %v2071 = vshrl.u32 %v2070, 7
        %v2072 = vsub.s32 %v2069, %v2071
        %v2073 = vrot.slane %v2057, %v2072
        %v2075 = vunpack.c.l.s4 1966171168
        %v2076 = vunpack.c.0.s8 %v2075
        %v2077 = vlaneseq
        %v2078 = vshrl.u32 %v2077, 7
        %v2079 = vsub.s32 %v2076, %v2078
        %v2080 = vrot.slane %v2058, %v2079
        %v2082 = vunpack.c.l.s4 1966171168
        %v2083 = vunpack.c.0.s8 %v2082
        %v2084 = vlaneseq
        %v2085 = vshrl.u32 %v2084, 7
        %v2086 = vsub.s32 %v2083, %v2085
        %v2087 = vrot.slane %v2059, %v2086
        %v2088 = vcombine.high %v2066, %v2066
        %v2089 = vcombine.high %v2073, %v2073
        %v2090 = vcombine.high %v2080, %v2080
        %v2091 = vcombine.high %v2087, %v2087
        %v2100 = vadd.f32 %v1444, %v2066
        %v2101 = vadd.f32 %v1458, %v2080
        %v2102 = vadd.f32 %v1466, %v2088
        %v2103 = vadd.f32 %v1468, %v2090
        %v2104 = vadd.f32 %v1451, %v2073
        %v2105 = vadd.f32 %v1465, %v2087
        %v2106 = vadd.f32 %v1467, %v2089
        %v2107 = vadd.f32 %v1469, %v2091
        %v2108 = vadd.f32 %v1493, %v2066
        %v2109 = vadd.f32 %v1507, %v2066
        %v2110 = vadd.f32 %v1515, %v2080
        %v2111 = vadd.f32 %v1517, %v2088
        %v2112 = vadd.f32 %v1500, %v2090
        %v2113 = vadd.f32 %v1514, %v2073
        %v2114 = vadd.f32 %v1516, %v2087
        %v2115 = vadd.f32 %v1518, %v2089
        %v2116 = vadd.f32 %v1542, %v2091
        %v2117 = vadd.f32 %v1556, %v2066
        %v2118 = vadd.f32 %v1564, %v2066
        %v2119 = vadd.f32 %v1566, %v2080
        %v2120 = vadd.f32 %v1549, %v2088
        %v2121 = vadd.f32 %v1563, %v2090
        %v2122 = vadd.f32 %v1565, %v2073
        %v2123 = vadd.f32 %v1567, %v2087
        %v2124 = vadd.f32 %v1591, %v2089
        %v2125 = vadd.f32 %v1605, %v2091
        %v2126 = vadd.f32 %v1613, %v2066
        %v2127 = vadd.f32 %v1615, %v2066
        %v2128 = vadd.f32 %v1598, %v2080
        %v2129 = vadd.f32 %v1612, %v2088
        %v2130 = vadd.f32 %v1614, %v2090
        %v2131 = vadd.f32 %v1616, %v2073
        %v2132 = vadd.f32 %v1640, %v2087
        %v2133 = vadd.f32 %v1654, %v2089
        %v2134 = vadd.f32 %v1662, %v2091
        %v2135 = vadd.f32 %v1664, %v2066
        %v2136 = vadd.f32 %v1647, %v2066
        %v2137 = vadd.f32 %v1661, %v2080
        %v2138 = vadd.f32 %v1663, %v2088
        %v2139 = vadd.f32 %v1665, %v2090
        %v2140 = vadd.f32 %v1689, %v2073
        %v2141 = vadd.f32 %v1703, %v2087
        %v2142 = vadd.f32 %v1711, %v2089
        %v2143 = vadd.f32 %v1713, %v2091
        %v2144 = vadd.f32 %v1696, %v2066
        %v2145 = vadd.f32 %v1710, %v2066
        %v2146 = vadd.f32 %v1712, %v2080
        %v2147 = vadd.f32 %v1714, %v2088
        %v2148 = vadd.f32 %v1738, %v2090
        %v2149 = vadd.f32 %v1752, %v2073
        %v2150 = vadd.f32 %v1760, %v2087
        %v2151 = vadd.f32 %v1762, %v2089
        %v2152 = vadd.f32 %v1745, %v2091
        %v2153 = vadd.f32 %v1759, %v2066
        %v2154 = vadd.f32 %v1761, %v2066
        %v2155 = vadd.f32 %v1763, %v2080
        %v2156 = vadd.f32 %v1787, %v2088
        %v2157 = vadd.f32 %v1801, %v2090
        %v2158 = vadd.f32 %v1809, %v2073
        %v2159 = vadd.f32 %v1811, %v2087
        %v2160 = vadd.f32 %v1794, %v2089
        %v2161 = vadd.f32 %v1808, %v2091
        %v2162 = vadd.f32 %v1810, %v2066
        %v2163 = vadd.f32 %v1812, %v2066
        %v2164 = vadd.f32 %v1836, %v2080
        %v2165 = vadd.f32 %v1850, %v2088
        %v2166 = vadd.f32 %v1858, %v2090
        %v2167 = vadd.f32 %v1860, %v2073
        %v2168 = vadd.f32 %v1843, %v2087
        %v2169 = vadd.f32 %v1857, %v2089
        %v2170 = vadd.f32 %v1859, %v2091
        %v2171 = vadd.f32 %v1861, %v2066
        %v2172 = vadd.f32 %v1885, %v2066
        %v2173 = vadd.f32 %v1899, %v2080
        %v2174 = vadd.f32 %v1907, %v2088
        %v2175 = vadd.f32 %v1909, %v2090
        %v2176 = vadd.f32 %v1892, %v2073
        %v2177 = vadd.f32 %v1906, %v2087
        %v2178 = vadd.f32 %v1908, %v2089
        %v2179 = vadd.f32 %v1910, %v2091
        %v2180 = vadd.f32 %v1924, %v2066
        %v2262 = vcombine.low %v2100, %v2101
        %v2263 = vcombine.low %v2102, %v2103
        %v2264 = vcombine.low %v2104, %v2105
        %v2265 = vcombine.low %v2106, %v2107
        %v2267 = vunpack.c.l.s4 1966171168
        %v2268 = vunpack.c.0.s8 %v2267
        %v2269 = vlaneseq
        %v2270 = vshrl.u32 %v2269, 7
        %v2271 = vsub.s32 %v2268, %v2270
        %v2272 = vrot.slane %v2262, %v2271
        %v2274 = vunpack.c.l.s4 1966171168
        %v2275 = vunpack.c.0.s8 %v2274
        %v2276 = vlaneseq
        %v2277 = vshrl.u32 %v2276, 7
        %v2278 = vsub.s32 %v2275, %v2277
        %v2279 = vrot.slane %v2263, %v2278
        %v2281 = vunpack.c.l.s4 1966171168
        %v2282 = vunpack.c.0.s8 %v2281
        %v2283 = vlaneseq
        %v2284 = vshrl.u32 %v2283, 7
        %v2285 = vsub.s32 %v2282, %v2284
        %v2286 = vrot.slane %v2264, %v2285
        %v2288 = vunpack.c.l.s4 1966171168
        %v2289 = vunpack.c.0.s8 %v2288
        %v2290 = vlaneseq
        %v2291 = vshrl.u32 %v2290, 7
        %v2292 = vsub.s32 %v2289, %v2291
        %v2293 = vrot.slane %v2265, %v2292
        %v2294 = vcombine.low %v2272, %v2279
        %v2295 = vcombine.low %v2286, %v2293
        %v2297 = vunpack.c.l.s4 1966171168
        %v2298 = vunpack.c.0.s8 %v2297
        %v2299 = vlaneseq
        %v2300 = vshrl.u32 %v2299, 7
        %v2301 = vsub.s32 %v2298, %v2300
        %v2302 = vrot.slane %v2294, %v2301
        %v2304 = vunpack.c.l.s4 1966171168
        %v2305 = vunpack.c.0.s8 %v2304
        %v2306 = vlaneseq
        %v2307 = vshrl.u32 %v2306, 7
        %v2308 = vsub.s32 %v2305, %v2307
        %v2309 = vrot.slane %v2295, %v2308
        %v2310 = vcombine.low %v2302, %v2309
        %v2312 = vunpack.c.l.s4 1966171168
        %v2313 = vunpack.c.0.s8 %v2312
        %v2314 = vlaneseq
        %v2315 = vshrl.u32 %v2314, 7
        %v2316 = vsub.s32 %v2313, %v2315
        %v2317 = vrot.slane %v2108, %v2316
        %v2319 = vunpack.c.l.s4 1966171168
        %v2320 = vunpack.c.0.s8 %v2319
        %v2321 = vlaneseq
        %v2322 = vshrl.u32 %v2321, 7
        %v2323 = vsub.s32 %v2320, %v2322
        %v2324 = vrot.slane %v2317, %v2323
        %v2325 = vcombine.low %v2109, %v2110
        %v2326 = vcombine.low %v2111, %v2112
        %v2327 = vcombine.low %v2113, %v2114
        %v2328 = vcombine.low %v2115, %v2116
        %v2330 = vunpack.c.l.s4 1966171168
        %v2331 = vunpack.c.0.s8 %v2330
        %v2332 = vlaneseq
        %v2333 = vshrl.u32 %v2332, 7
        %v2334 = vsub.s32 %v2331, %v2333
        %v2335 = vrot.slane %v2325, %v2334
        %v2337 = vunpack.c.l.s4 1966171168
        %v2338 = vunpack.c.0.s8 %v2337
        %v2339 = vlaneseq
        %v2340 = vshrl.u32 %v2339, 7
        %v2341 = vsub.s32 %v2338, %v2340
        %v2342 = vrot.slane %v2326, %v2341
        %v2344 = vunpack.c.l.s4 1966171168
        %v2345 = vunpack.c.0.s8 %v2344
        %v2346 = vlaneseq
        %v2347 = vshrl.u32 %v2346, 7
        %v2348 = vsub.s32 %v2345, %v2347
        %v2349 = vrot.slane %v2327, %v2348
        %v2351 = vunpack.c.l.s4 1966171168
        %v2352 = vunpack.c.0.s8 %v2351
        %v2353 = vlaneseq
        %v2354 = vshrl.u32 %v2353, 7
        %v2355 = vsub.s32 %v2352, %v2354
        %v2356 = vrot.slane %v2328, %v2355
        %v2357 = vcombine.low %v2335, %v2342
        %v2358 = vcombine.low %v2349, %v2356
        %v2360 = vunpack.c.l.s4 1966171168
        %v2361 = vunpack.c.0.s8 %v2360
        %v2362 = vlaneseq
        %v2363 = vshrl.u32 %v2362, 7
        %v2364 = vsub.s32 %v2361, %v2363
        %v2365 = vrot.slane %v2357, %v2364
        %v2367 = vunpack.c.l.s4 1966171168
        %v2368 = vunpack.c.0.s8 %v2367
        %v2369 = vlaneseq
        %v2370 = vshrl.u32 %v2369, 7
        %v2371 = vsub.s32 %v2368, %v2370
        %v2372 = vrot.slane %v2358, %v2371
        %v2373 = vcombine.low %v2365, %v2372
        %v2375 = vunpack.c.l.s4 1966171168
        %v2376 = vunpack.c.0.s8 %v2375
        %v2377 = vlaneseq
        %v2378 = vshrl.u32 %v2377, 7
        %v2379 = vsub.s32 %v2376, %v2378
        %v2380 = vrot.slane %v2117, %v2379
        %v2382 = vunpack.c.l.s4 1966171168
        %v2383 = vunpack.c.0.s8 %v2382
        %v2384 = vlaneseq
        %v2385 = vshrl.u32 %v2384, 7
        %v2386 = vsub.s32 %v2383, %v2385
        %v2387 = vrot.slane %v2380, %v2386
        %v2388 = vcombine.low %v2118, %v2119
        %v2389 = vcombine.low %v2120, %v2121
        %v2390 = vcombine.low %v2122, %v2123
        %v2391 = vcombine.low %v2124, %v2125
        %v2393 = vunpack.c.l.s4 1966171168
        %v2394 = vunpack.c.0.s8 %v2393
        %v2395 = vlaneseq
        %v2396 = vshrl.u32 %v2395, 7
        %v2397 = vsub.s32 %v2394, %v2396
        %v2398 = vrot.slane %v2388, %v2397
        %v2400 = vunpack.c.l.s4 1966171168
        %v2401 = vunpack.c.0.s8 %v2400
        %v2402 = vlaneseq
        %v2403 = vshrl.u32 %v2402, 7
        %v2404 = vsub.s32 %v2401, %v2403
        %v2405 = vrot.slane %v2389, %v2404
        %v2407 = vunpack.c.l.s4 1966171168
        %v2408 = vunpack.c.0.s8 %v2407
        %v2409 = vlaneseq
        %v2410 = vshrl.u32 %v2409, 7
        %v2411 = vsub.s32 %v2408, %v2410
        %v2412 = vrot.slane %v2390, %v2411
        %v2414 = vunpack.c.l.s4 1966171168
        %v2415 = vunpack.c.0.s8 %v2414
        %v2416 = vlaneseq
        %v2417 = vshrl.u32 %v2416, 7
        %v2418 = vsub.s32 %v2415, %v2417
        %v2419 = vrot.slane %v2391, %v2418
        %v2420 = vcombine.low %v2398, %v2405
        %v2421 = vcombine.low %v2412, %v2419
        %v2423 = vunpack.c.l.s4 1966171168
        %v2424 = vunpack.c.0.s8 %v2423
        %v2425 = vlaneseq
        %v2426 = vshrl.u32 %v2425, 7
        %v2427 = vsub.s32 %v2424, %v2426
        %v2428 = vrot.slane %v2420, %v2427
        %v2430 = vunpack.c.l.s4 1966171168
        %v2431 = vunpack.c.0.s8 %v2430
        %v2432 = vlaneseq
        %v2433 = vshrl.u32 %v2432, 7
        %v2434 = vsub.s32 %v2431, %v2433
        %v2435 = vrot.slane %v2421, %v2434
        %v2436 = vcombine.low %v2428, %v2435
        %v2438 = vunpack.c.l.s4 1966171168
        %v2439 = vunpack.c.0.s8 %v2438
        %v2440 = vlaneseq
        %v2441 = vshrl.u32 %v2440, 7
        %v2442 = vsub.s32 %v2439, %v2441
        %v2443 = vrot.slane %v2126, %v2442
        %v2445 = vunpack.c.l.s4 1966171168
        %v2446 = vunpack.c.0.s8 %v2445
        %v2447 = vlaneseq
        %v2448 = vshrl.u32 %v2447, 7
        %v2449 = vsub.s32 %v2446, %v2448
        %v2450 = vrot.slane %v2443, %v2449
        %v2451 = vcombine.low %v2127, %v2128
        %v2452 = vcombine.low %v2129, %v2130
        %v2453 = vcombine.low %v2131, %v2132
        %v2454 = vcombine.low %v2133, %v2134
        %v2456 = vunpack.c.l.s4 1966171168
        %v2457 = vunpack.c.0.s8 %v2456
        %v2458 = vlaneseq
        %v2459 = vshrl.u32 %v2458, 7
        %v2460 = vsub.s32 %v2457, %v2459
        %v2461 = vrot.slane %v2451, %v2460
        %v2463 = vunpack.c.l.s4 1966171168
        %v2464 = vunpack.c.0.s8 %v2463
        %v2465 = vlaneseq
        %v2466 = vshrl.u32 %v2465, 7
        %v2467 = vsub.s32 %v2464, %v2466
        %v2468 = vrot.slane %v2452, %v2467
        %v2470 = vunpack.c.l.s4 1966171168
        %v2471 = vunpack.c.0.s8 %v2470
        %v2472 = vlaneseq
        %v2473 = vshrl.u32 %v2472, 7
        %v2474 = vsub.s32 %v2471, %v2473
        %v2475 = vrot.slane %v2453, %v2474
        %v2477 = vunpack.c.l.s4 1966171168
        %v2478 = vunpack.c.0.s8 %v2477
        %v2479 = vlaneseq
        %v2480 = vshrl.u32 %v2479, 7
        %v2481 = vsub.s32 %v2478, %v2480
        %v2482 = vrot.slane %v2454, %v2481
        %v2483 = vcombine.low %v2461, %v2468
        %v2484 = vcombine.low %v2475, %v2482
        %v2486 = vunpack.c.l.s4 1966171168
        %v2487 = vunpack.c.0.s8 %v2486
        %v2488 = vlaneseq
        %v2489 = vshrl.u32 %v2488, 7
        %v2490 = vsub.s32 %v2487, %v2489
        %v2491 = vrot.slane %v2483, %v2490
        %v2493 = vunpack.c.l.s4 1966171168
        %v2494 = vunpack.c.0.s8 %v2493
        %v2495 = vlaneseq
        %v2496 = vshrl.u32 %v2495, 7
        %v2497 = vsub.s32 %v2494, %v2496
        %v2498 = vrot.slane %v2484, %v2497
        %v2499 = vcombine.low %v2491, %v2498
        %v2501 = vunpack.c.l.s4 1966171168
        %v2502 = vunpack.c.0.s8 %v2501
        %v2503 = vlaneseq
        %v2504 = vshrl.u32 %v2503, 7
        %v2505 = vsub.s32 %v2502, %v2504
        %v2506 = vrot.slane %v2135, %v2505
        %v2508 = vunpack.c.l.s4 1966171168
        %v2509 = vunpack.c.0.s8 %v2508
        %v2510 = vlaneseq
        %v2511 = vshrl.u32 %v2510, 7
        %v2512 = vsub.s32 %v2509, %v2511
        %v2513 = vrot.slane %v2506, %v2512
        %v2514 = vcombine.low %v2136, %v2137
        %v2515 = vcombine.low %v2138, %v2139
        %v2516 = vcombine.low %v2140, %v2141
        %v2517 = vcombine.low %v2142, %v2143
        %v2519 = vunpack.c.l.s4 1966171168
        %v2520 = vunpack.c.0.s8 %v2519
        %v2521 = vlaneseq
        %v2522 = vshrl.u32 %v2521, 7
        %v2523 = vsub.s32 %v2520, %v2522
        %v2524 = vrot.slane %v2514, %v2523
        %v2526 = vunpack.c.l.s4 1966171168
        %v2527 = vunpack.c.0.s8 %v2526
        %v2528 = vlaneseq
        %v2529 = vshrl.u32 %v2528, 7
        %v2530 = vsub.s32 %v2527, %v2529
        %v2531 = vrot.slane %v2515, %v2530
        %v2533 = vunpack.c.l.s4 1966171168
        %v2534 = vunpack.c.0.s8 %v2533
        %v2535 = vlaneseq
        %v2536 = vshrl.u32 %v2535, 7
        %v2537 = vsub.s32 %v2534, %v2536
        %v2538 = vrot.slane %v2516, %v2537
        %v2540 = vunpack.c.l.s4 1966171168
        %v2541 = vunpack.c.0.s8 %v2540
        %v2542 = vlaneseq
        %v2543 = vshrl.u32 %v2542, 7
        %v2544 = vsub.s32 %v2541, %v2543
        %v2545 = vrot.slane %v2517, %v2544
        %v2546 = vcombine.low %v2524, %v2531
        %v2547 = vcombine.low %v2538, %v2545
        %v2549 = vunpack.c.l.s4 1966171168
        %v2550 = vunpack.c.0.s8 %v2549
        %v2551 = vlaneseq
        %v2552 = vshrl.u32 %v2551, 7
        %v2553 = vsub.s32 %v2550, %v2552
        %v2554 = vrot.slane %v2546, %v2553
        %v2556 = vunpack.c.l.s4 1966171168
        %v2557 = vunpack.c.0.s8 %v2556
        %v2558 = vlaneseq
        %v2559 = vshrl.u32 %v2558, 7
        %v2560 = vsub.s32 %v2557, %v2559
        %v2561 = vrot.slane %v2547, %v2560
        %v2562 = vcombine.low %v2554, %v2561
        %v2564 = vunpack.c.l.s4 1966171168
        %v2565 = vunpack.c.0.s8 %v2564
        %v2566 = vlaneseq
        %v2567 = vshrl.u32 %v2566, 7
        %v2568 = vsub.s32 %v2565, %v2567
        %v2569 = vrot.slane %v2144, %v2568
        %v2571 = vunpack.c.l.s4 1966171168
        %v2572 = vunpack.c.0.s8 %v2571
        %v2573 = vlaneseq
        %v2574 = vshrl.u32 %v2573, 7
        %v2575 = vsub.s32 %v2572, %v2574
        %v2576 = vrot.slane %v2569, %v2575
        %v2577 = vcombine.low %v2145, %v2146
        %v2578 = vcombine.low %v2147, %v2148
        %v2579 = vcombine.low %v2149, %v2150
        %v2580 = vcombine.low %v2151, %v2152
        %v2582 = vunpack.c.l.s4 1966171168
        %v2583 = vunpack.c.0.s8 %v2582
        %v2584 = vlaneseq
        %v2585 = vshrl.u32 %v2584, 7
        %v2586 = vsub.s32 %v2583, %v2585
        %v2587 = vrot.slane %v2577, %v2586
        %v2589 = vunpack.c.l.s4 1966171168
        %v2590 = vunpack.c.0.s8 %v2589
        %v2591 = vlaneseq
        %v2592 = vshrl.u32 %v2591, 7
        %v2593 = vsub.s32 %v2590, %v2592
        %v2594 = vrot.slane %v2578, %v2593
        %v2596 = vunpack.c.l.s4 1966171168
        %v2597 = vunpack.c.0.s8 %v2596
        %v2598 = vlaneseq
        %v2599 = vshrl.u32 %v2598, 7
        %v2600 = vsub.s32 %v2597, %v2599
        %v2601 = vrot.slane %v2579, %v2600
        %v2603 = vunpack.c.l.s4 1966171168
        %v2604 = vunpack.c.0.s8 %v2603
        %v2605 = vlaneseq
        %v2606 = vshrl.u32 %v2605, 7
        %v2607 = vsub.s32 %v2604, %v2606
        %v2608 = vrot.slane %v2580, %v2607
        %v2609 = vcombine.low %v2587, %v2594
        %v2610 = vcombine.low %v2601, %v2608
        %v2612 = vunpack.c.l.s4 1966171168
        %v2613 = vunpack.c.0.s8 %v2612
        %v2614 = vlaneseq
        %v2615 = vshrl.u32 %v2614, 7
        %v2616 = vsub.s32 %v2613, %v2615
        %v2617 = vrot.slane %v2609, %v2616
        %v2619 = vunpack.c.l.s4 1966171168
        %v2620 = vunpack.c.0.s8 %v2619
        %v2621 = vlaneseq
        %v2622 = vshrl.u32 %v2621, 7
        %v2623 = vsub.s32 %v2620, %v2622
        %v2624 = vrot.slane %v2610, %v2623
        %v2625 = vcombine.low %v2617, %v2624
        %v2627 = vunpack.c.l.s4 1966171168
        %v2628 = vunpack.c.0.s8 %v2627
        %v2629 = vlaneseq
        %v2630 = vshrl.u32 %v2629, 7
        %v2631 = vsub.s32 %v2628, %v2630
        %v2632 = vrot.slane %v2153, %v2631
        %v2634 = vunpack.c.l.s4 1966171168
        %v2635 = vunpack.c.0.s8 %v2634
        %v2636 = vlaneseq
        %v2637 = vshrl.u32 %v2636, 7
        %v2638 = vsub.s32 %v2635, %v2637
        %v2639 = vrot.slane %v2632, %v2638
        %v2640 = vcombine.low %v2154, %v2155
        %v2641 = vcombine.low %v2156, %v2157
        %v2642 = vcombine.low %v2158, %v2159
        %v2643 = vcombine.low %v2160, %v2161
        %v2645 = vunpack.c.l.s4 1966171168
        %v2646 = vunpack.c.0.s8 %v2645
        %v2647 = vlaneseq
        %v2648 = vshrl.u32 %v2647, 7
        %v2649 = vsub.s32 %v2646, %v2648
        %v2650 = vrot.slane %v2640, %v2649
        %v2652 = vunpack.c.l.s4 1966171168
        %v2653 = vunpack.c.0.s8 %v2652
        %v2654 = vlaneseq
        %v2655 = vshrl.u32 %v2654, 7
        %v2656 = vsub.s32 %v2653, %v2655
        %v2657 = vrot.slane %v2641, %v2656
        %v2659 = vunpack.c.l.s4 1966171168
        %v2660 = vunpack.c.0.s8 %v2659
        %v2661 = vlaneseq
        %v2662 = vshrl.u32 %v2661, 7
        %v2663 = vsub.s32 %v2660, %v2662
        %v2664 = vrot.slane %v2642, %v2663
        %v2666 = vunpack.c.l.s4 1966171168
        %v2667 = vunpack.c.0.s8 %v2666
        %v2668 = vlaneseq
        %v2669 = vshrl.u32 %v2668, 7
        %v2670 = vsub.s32 %v2667, %v2669
        %v2671 = vrot.slane %v2643, %v2670
        %v2672 = vcombine.low %v2650, %v2657
        %v2673 = vcombine.low %v2664, %v2671
        %v2675 = vunpack.c.l.s4 1966171168
        %v2676 = vunpack.c.0.s8 %v2675
        %v2677 = vlaneseq
        %v2678 = vshrl.u32 %v2677, 7
        %v2679 = vsub.s32 %v2676, %v2678
        %v2680 = vrot.slane %v2672, %v2679
        %v2682 = vunpack.c.l.s4 1966171168
        %v2683 = vunpack.c.0.s8 %v2682
        %v2684 = vlaneseq
        %v2685 = vshrl.u32 %v2684, 7
        %v2686 = vsub.s32 %v2683, %v2685
        %v2687 = vrot.slane %v2673, %v2686
        %v2688 = vcombine.low %v2680, %v2687
        %v2690 = vunpack.c.l.s4 1966171168
        %v2691 = vunpack.c.0.s8 %v2690
        %v2692 = vlaneseq
        %v2693 = vshrl.u32 %v2692, 7
        %v2694 = vsub.s32 %v2691, %v2693
        %v2695 = vrot.slane %v2162, %v2694
        %v2697 = vunpack.c.l.s4 1966171168
        %v2698 = vunpack.c.0.s8 %v2697
        %v2699 = vlaneseq
        %v2700 = vshrl.u32 %v2699, 7
        %v2701 = vsub.s32 %v2698, %v2700
        %v2702 = vrot.slane %v2695, %v2701
        %v2703 = vcombine.low %v2163, %v2164
        %v2704 = vcombine.low %v2165, %v2166
        %v2705 = vcombine.low %v2167, %v2168
        %v2706 = vcombine.low %v2169, %v2170
        %v2708 = vunpack.c.l.s4 1966171168
        %v2709 = vunpack.c.0.s8 %v2708
        %v2710 = vlaneseq
        %v2711 = vshrl.u32 %v2710, 7
        %v2712 = vsub.s32 %v2709, %v2711
        %v2713 = vrot.slane %v2703, %v2712
        %v2715 = vunpack.c.l.s4 1966171168
        %v2716 = vunpack.c.0.s8 %v2715
        %v2717 = vlaneseq
        %v2718 = vshrl.u32 %v2717, 7
        %v2719 = vsub.s32 %v2716, %v2718
        %v2720 = vrot.slane %v2704, %v2719
        %v2722 = vunpack.c.l.s4 1966171168
        %v2723 = vunpack.c.0.s8 %v2722
        %v2724 = vlaneseq
        %v2725 = vshrl.u32 %v2724, 7
        %v2726 = vsub.s32 %v2723, %v2725
        %v2727 = vrot.slane %v2705, %v2726
        %v2729 = vunpack.c.l.s4 1966171168
        %v2730 = vunpack.c.0.s8 %v2729
        %v2731 = vlaneseq
        %v2732 = vshrl.u32 %v2731, 7
        %v2733 = vsub.s32 %v2730, %v2732
        %v2734 = vrot.slane %v2706, %v2733
        %v2735 = vcombine.low %v2713, %v2720
        %v2736 = vcombine.low %v2727, %v2734
        %v2738 = vunpack.c.l.s4 1966171168
        %v2739 = vunpack.c.0.s8 %v2738
        %v2740 = vlaneseq
        %v2741 = vshrl.u32 %v2740, 7
        %v2742 = vsub.s32 %v2739, %v2741
        %v2743 = vrot.slane %v2735, %v2742
        %v2745 = vunpack.c.l.s4 1966171168
        %v2746 = vunpack.c.0.s8 %v2745
        %v2747 = vlaneseq
        %v2748 = vshrl.u32 %v2747, 7
        %v2749 = vsub.s32 %v2746, %v2748
        %v2750 = vrot.slane %v2736, %v2749
        %v2751 = vcombine.low %v2743, %v2750
        %v2753 = vunpack.c.l.s4 1966171168
        %v2754 = vunpack.c.0.s8 %v2753
        %v2755 = vlaneseq
        %v2756 = vshrl.u32 %v2755, 7
        %v2757 = vsub.s32 %v2754, %v2756
        %v2758 = vrot.slane %v2171, %v2757
        %v2760 = vunpack.c.l.s4 1966171168
        %v2761 = vunpack.c.0.s8 %v2760
        %v2762 = vlaneseq
        %v2763 = vshrl.u32 %v2762, 7
        %v2764 = vsub.s32 %v2761, %v2763
        %v2765 = vrot.slane %v2758, %v2764
        %v2766 = vcombine.low %v2172, %v2173
        %v2767 = vcombine.low %v2174, %v2175
        %v2768 = vcombine.low %v2176, %v2177
        %v2769 = vcombine.low %v2178, %v2179
        %v2771 = vunpack.c.l.s4 1966171168
        %v2772 = vunpack.c.0.s8 %v2771
        %v2773 = vlaneseq
        %v2774 = vshrl.u32 %v2773, 7
        %v2775 = vsub.s32 %v2772, %v2774
        %v2776 = vrot.slane %v2766, %v2775
        %v2778 = vunpack.c.l.s4 1966171168
        %v2779 = vunpack.c.0.s8 %v2778
        %v2780 = vlaneseq
        %v2781 = vshrl.u32 %v2780, 7
        %v2782 = vsub.s32 %v2779, %v2781
        %v2783 = vrot.slane %v2767, %v2782
        %v2785 = vunpack.c.l.s4 1966171168
        %v2786 = vunpack.c.0.s8 %v2785
        %v2787 = vlaneseq
        %v2788 = vshrl.u32 %v2787, 7
        %v2789 = vsub.s32 %v2786, %v2788
        %v2790 = vrot.slane %v2768, %v2789
        %v2792 = vunpack.c.l.s4 1966171168
        %v2793 = vunpack.c.0.s8 %v2792
        %v2794 = vlaneseq
        %v2795 = vshrl.u32 %v2794, 7
        %v2796 = vsub.s32 %v2793, %v2795
        %v2797 = vrot.slane %v2769, %v2796
        %v2798 = vcombine.low %v2776, %v2783
        %v2799 = vcombine.low %v2790, %v2797
        %v2801 = vunpack.c.l.s4 1966171168
        %v2802 = vunpack.c.0.s8 %v2801
        %v2803 = vlaneseq
        %v2804 = vshrl.u32 %v2803, 7
        %v2805 = vsub.s32 %v2802, %v2804
        %v2806 = vrot.slane %v2798, %v2805
        %v2808 = vunpack.c.l.s4 1966171168
        %v2809 = vunpack.c.0.s8 %v2808
        %v2810 = vlaneseq
        %v2811 = vshrl.u32 %v2810, 7
        %v2812 = vsub.s32 %v2809, %v2811
        %v2813 = vrot.slane %v2799, %v2812
        %v2814 = vcombine.low %v2806, %v2813
        %v2816 = vunpack.c.l.s4 1966171168
        %v2817 = vunpack.c.0.s8 %v2816
        %v2818 = vlaneseq
        %v2819 = vshrl.u32 %v2818, 7
        %v2820 = vsub.s32 %v2817, %v2819
        %v2821 = vrot.slane %v2180, %v2820
        %v2823 = vunpack.c.l.s4 1966171168
        %v2824 = vunpack.c.0.s8 %v2823
        %v2825 = vlaneseq
        %v2826 = vshrl.u32 %v2825, 7
        %v2827 = vsub.s32 %v2824, %v2826
        %v2828 = vrot.slane %v2821, %v2827
        %v2847 = vsel %vm2020, %v2310, 0.0
        %v2848 = vsel %vm2021, %v2324, 0.0
        %v2849 = vsel %vm2022, %v2373, 0.0
        %v2850 = vsel %vm2023, %v2387, 0.0
        %v2851 = vsel %vm2024, %v2436, 0.0
        %v2852 = vsel %vm2025, %v2450, 0.0
        %v2853 = vsel %vm2026, %v2499, 0.0
        %v2854 = vsel %vm2027, %v2513, 0.0
        %v2855 = vsel %vm2028, %v2562, 0.0
        %v2856 = vsel %vm2029, %v2576, 0.0
        %v2857 = vsel %vm2030, %v2625, 0.0
        %v2858 = vsel %vm2031, %v2639, 0.0
        %v2859 = vsel %vm2032, %v2688, 0.0
        %v2860 = vsel %vm2033, %v2702, 0.0
        %v2861 = vsel %vm2034, %v2751, 0.0
        %v2862 = vsel %vm2035, %v2765, 0.0
        %v2863 = vsel %vm2036, %v2814, 0.0
        %v2864 = vsel %vm2037, %v2828, 0.0
        %v2865 = vpack.c.bf16 %v2848, %v2847
        %v2866 = vpack.c.bf16 %v2850, %v2849
        %v2867 = vpack.c.bf16 %v2852, %v2851
        %v2868 = vpack.c.bf16 %v2854, %v2853
        %v2869 = vpack.c.bf16 %v2856, %v2855
        %v2870 = vpack.c.bf16 %v2858, %v2857
        %v2871 = vpack.c.bf16 %v2860, %v2859
        %v2872 = vpack.c.bf16 %v2862, %v2861
        %v2873 = vpack.c.bf16 %v2864, %v2863
        %v2874 = vld [vmem:[%s6] sm:$0xf]
        %v2883 = vunpack.c.l.b16 %v2865
        %v2884 = vunpack.c.h.b16 %v2865
        %v2885 = vunpack.c.l.b16 %v2866
        %v2886 = vunpack.c.h.b16 %v2866
        %v2887 = vunpack.c.l.b16 %v2867
        %v2888 = vunpack.c.h.b16 %v2867
        %v2889 = vunpack.c.l.b16 %v2868
        %v2890 = vunpack.c.h.b16 %v2868
        %v2891 = vunpack.c.l.b16 %v2869
        %v2892 = vunpack.c.h.b16 %v2869
        %v2893 = vunpack.c.l.b16 %v2870
        %v2894 = vunpack.c.h.b16 %v2870
        %v2895 = vunpack.c.l.b16 %v2871
        %v2896 = vunpack.c.h.b16 %v2871
        %v2897 = vunpack.c.l.b16 %v2872
        %v2898 = vunpack.c.h.b16 %v2872
        %v2899 = vpack.c.b16 %v2883, %v2883
        %v2900 = vpack.c.b16 %v2884, %v2884
        %v2901 = vpack.c.b16 %v2885, %v2885
        %v2902 = vpack.c.b16 %v2886, %v2886
        %v2903 = vpack.c.b16 %v2887, %v2887
        %v2904 = vpack.c.b16 %v2888, %v2888
        %v2905 = vpack.c.b16 %v2889, %v2889
        %v2906 = vpack.c.b16 %v2890, %v2890
        %v2907 = vpack.c.b16 %v2891, %v2891
        %v2908 = vpack.c.b16 %v2892, %v2892
        %v2909 = vpack.c.b16 %v2893, %v2893
        %v2910 = vpack.c.b16 %v2894, %v2894
        %v2911 = vpack.c.b16 %v2895, %v2895
        %v2912 = vpack.c.b16 %v2896, %v2896
        %v2913 = vpack.c.b16 %v2897, %v2897
        %v2914 = vpack.c.b16 %v2898, %v2898
        %vm2915 = vsmask.f32 3328
        %vm2916 = vsmask.f32 7440
        %vm2917 = vmor %vm2915, %vm2916
        %v2919 = vshrl.u32 %v2899, 16
        %v2921 = vrot.slane %v2919, 4
        %v2922 = vshll.u32 %v2899, 16
        %v2924 = vrot.slane %v2922, 5
        %v2925 = vor.u32 %v2921, %v2924
        %v2926 = vrot.slane %v2925, 4
        %v2928 = vshll.u32 %v2900, 16
        %v2930 = vrot.slane %v2928, 5
        %v2931 = vsel %vm2917, %v2926, %v2930
        %v2933 = vshrl.u32 %v2901, 16
        %v2935 = vrot.slane %v2933, 4
        %v2936 = vshll.u32 %v2901, 16
        %v2938 = vrot.slane %v2936, 5
        %v2939 = vor.u32 %v2935, %v2938
        %v2940 = vrot.slane %v2939, 4
        %v2942 = vshll.u32 %v2902, 16
        %v2944 = vrot.slane %v2942, 5
        %v2945 = vsel %vm2917, %v2940, %v2944
        %v2947 = vshrl.u32 %v2903, 16
        %v2949 = vrot.slane %v2947, 4
        %v2950 = vshll.u32 %v2903, 16
        %v2952 = vrot.slane %v2950, 5
        %v2953 = vor.u32 %v2949, %v2952
        %v2954 = vrot.slane %v2953, 4
        %v2956 = vshll.u32 %v2904, 16
        %v2958 = vrot.slane %v2956, 5
        %v2959 = vsel %vm2917, %v2954, %v2958
        %v2961 = vshrl.u32 %v2905, 16
        %v2963 = vrot.slane %v2961, 4
        %v2964 = vshll.u32 %v2905, 16
        %v2966 = vrot.slane %v2964, 5
        %v2967 = vor.u32 %v2963, %v2966
        %v2968 = vrot.slane %v2967, 4
        %v2970 = vshll.u32 %v2906, 16
        %v2972 = vrot.slane %v2970, 5
        %v2973 = vsel %vm2917, %v2968, %v2972
        %v2975 = vshrl.u32 %v2907, 16
        %v2977 = vrot.slane %v2975, 4
        %v2978 = vshll.u32 %v2907, 16
        %v2980 = vrot.slane %v2978, 5
        %v2981 = vor.u32 %v2977, %v2980
        %v2982 = vrot.slane %v2981, 4
        %v2984 = vshll.u32 %v2908, 16
        %v2986 = vrot.slane %v2984, 5
        %v2987 = vsel %vm2917, %v2982, %v2986
        %v2989 = vshrl.u32 %v2909, 16
        %v2991 = vrot.slane %v2989, 4
        %v2992 = vshll.u32 %v2909, 16
        %v2994 = vrot.slane %v2992, 5
        %v2995 = vor.u32 %v2991, %v2994
        %v2996 = vrot.slane %v2995, 4
        %v2998 = vshll.u32 %v2910, 16
        %v3000 = vrot.slane %v2998, 5
        %v3001 = vsel %vm2917, %v2996, %v3000
        %v3003 = vshrl.u32 %v2911, 16
        %v3005 = vrot.slane %v3003, 4
        %v3006 = vshll.u32 %v2911, 16
        %v3008 = vrot.slane %v3006, 5
        %v3009 = vor.u32 %v3005, %v3008
        %v3010 = vrot.slane %v3009, 4
        %v3012 = vshll.u32 %v2912, 16
        %v3014 = vrot.slane %v3012, 5
        %v3015 = vsel %vm2917, %v3010, %v3014
        %v3017 = vshrl.u32 %v2913, 16
        %v3019 = vrot.slane %v3017, 4
        %v3020 = vshll.u32 %v2913, 16
        %v3022 = vrot.slane %v3020, 5
        %v3023 = vor.u32 %v3019, %v3022
        %v3024 = vrot.slane %v3023, 4
        %v3026 = vshll.u32 %v2914, 16
        %v3028 = vrot.slane %v3026, 5
        %v3029 = vsel %vm2917, %v3024, %v3028
        %s3030 = scalar_lea.vmem %s6, 8
        %v3031 = vld [vmem:[%s3030] sm:$0xf]
        %v3032 = vunpack.c.l.b16 %v2931
        %v3033 = vunpack.c.l.b16 %v2945
        %v3034 = vunpack.c.l.b16 %v2959
        %v3035 = vunpack.c.l.b16 %v2973
        %v3036 = vunpack.c.l.b16 %v2987
        %v3037 = vunpack.c.l.b16 %v3001
        %v3038 = vunpack.c.l.b16 %v3015
        %v3039 = vunpack.c.l.b16 %v3029
        %v3040 = vpack.c.b16 %v3033, %v3032
        %v3041 = vpack.c.b16 %v3035, %v3034
        %v3042 = vpack.c.b16 %v3037, %v3036
        %v3043 = vpack.c.b16 %v3039, %v3038
        %v3045 = vsel %vm1307, %v3040, 0
        %v3048 = vsel %vm1307, %v3041, 0
        %v3051 = vsel %vm1307, %v3042, 0
        %v3054 = vsel %vm1307, %v3043, 0
        %v3057 = vsel %vm1326, %v3031, 0
        %3059 = vmatprep.subr.bf16.mxu0 0
        %3060 = vmatpush1.bf16.msra.mxu0 %v3057
        %3061 = vmatprep.subr.bf16.mxu0 0
        %3062 = vmatpush1.bf16.msra.mxu0 0
        %3063 = vmatprep.subr.bf16.mxu0 0
        %3064 = vmatpush1.bf16.msra.mxu0 0
        %3065 = vmatprep.subr.bf16.mxu0 0
        %3066 = vmatpush1.bf16.msra.mxu0 0
        %3067 = vmatprep.subr.bf16.mxu0 0
        %3068 = vmatpush1.bf16.msra.mxu0 0
        %3069 = vmatprep.subr.bf16.mxu0 0
        %3070 = vmatpush1.bf16.msra.mxu0 0
        %3071 = vmatprep.subr.bf16.mxu0 0
        %3072 = vmatpush1.bf16.msra.mxu0 0
        %3073 = vmatprep.subr.bf16.mxu0 0
        %3074 = vmatpush1.bf16.msra.mxu0 0
        %3075 = vmatprep.subr.bf16.mxu0 0
        %3076 = vmatpush1.bf16.msra.mxu0 0
        %3077 = vmatprep.subr.bf16.mxu0 0
        %3078 = vmatpush1.bf16.msra.mxu0 0
        %3079 = vmatprep.subr.bf16.mxu0 0
        %3080 = vmatpush1.bf16.msra.mxu0 0
        %3081 = vmatprep.subr.bf16.mxu0 0
        %3082 = vmatpush1.bf16.msra.mxu0 0
        %3083 = vmatprep.subr.bf16.mxu0 0
        %3084 = vmatpush1.bf16.msra.mxu0 0
        %3085 = vmatprep.subr.bf16.mxu0 0
        %3086 = vmatpush1.bf16.msra.mxu0 0
        %3087 = vmatprep.subr.bf16.mxu0 0
        %3088 = vmatpush1.bf16.msra.mxu0 0
        %3089 = vmatprep.subr.bf16.mxu0 0
        %3090 = vmatpush1.bf16.msra.mxu0 0
        %3091 = vmatprep.mubr.bf16.mxu0 0
        %3092 = vmatmul.mubr.bf16.gmra.mrb[0].mxu0 %v3045
        %v3093 = vpop.f32.mrb[0].mxu0
        %v3094 = vadd.f32 0.0, %v3093
        %v3095 = vpop.f32.mrb[0].mxu0
        %v3096 = vpop.f32.mrb[0].mxu0
        %v3097 = vadd.f32 0.0, %v3096
        %v3098 = vpop.f32.mrb[0].mxu0
        %3099 = vmatprep.mubr.bf16.mxu0 0
        %3100 = vmatmul.mubr.bf16.gmra.mrb[0].mxu0 %v3048
        %v3101 = vpop.f32.mrb[0].mxu0
        %v3102 = vadd.f32 0.0, %v3101
        %v3103 = vpop.f32.mrb[0].mxu0
        %v3104 = vpop.f32.mrb[0].mxu0
        %v3105 = vadd.f32 0.0, %v3104
        %v3106 = vpop.f32.mrb[0].mxu0
        %3107 = vmatprep.mubr.bf16.mxu0 0
        %3108 = vmatmul.mubr.bf16.gmra.mrb[0].mxu0 %v3051
        %v3109 = vpop.f32.mrb[0].mxu0
        %v3110 = vadd.f32 0.0, %v3109
        %v3111 = vpop.f32.mrb[0].mxu0
        %v3112 = vpop.f32.mrb[0].mxu0
        %v3113 = vadd.f32 0.0, %v3112
        %v3114 = vpop.f32.mrb[0].mxu0
        %3115 = vmatprep.mubr.bf16.mxu0 0
        %3116 = vmatmul.mubr.bf16.gmra.mrb[0].mxu0 %v3054
        %v3117 = vpop.f32.mrb[0].mxu0
        %v3118 = vadd.f32 0.0, %v3117
        %v3119 = vpop.f32.mrb[0].mxu0
        %v3120 = vpop.f32.mrb[0].mxu0
        %v3121 = vadd.f32 0.0, %v3120
        %v3122 = vpop.f32.mrb[0].mxu0
        %3123 = vdwg.mxu0
        %v3124 = vpack.c.b16 %v2885, %v2883
        %v3125 = vpack.c.b16 %v2889, %v2887
        %v3126 = vpack.c.b16 %v2893, %v2891
        %v3127 = vpack.c.b16 %v2897, %v2895
        %v3129 = vsel %vm1307, %v3124, 0
        %v3132 = vsel %vm1307, %v3125, 0
        %v3135 = vsel %vm1307, %v3126, 0
        %v3138 = vsel %vm1307, %v3127, 0
        %v3141 = vsel %vm1326, %v2874, 0
        %3143 = vmatprep.subr.bf16.mxu0 0
        %3144 = vmatpush1.bf16.msra.mxu0 %v3141
        %3145 = vmatprep.subr.bf16.mxu0 0
        %3146 = vmatpush1.bf16.msra.mxu0 0
        %3147 = vmatprep.subr.bf16.mxu0 0
        %3148 = vmatpush1.bf16.msra.mxu0 0
        %3149 = vmatprep.subr.bf16.mxu0 0
        %3150 = vmatpush1.bf16.msra.mxu0 0
        %3151 = vmatprep.subr.bf16.mxu0 0
        %3152 = vmatpush1.bf16.msra.mxu0 0
        %3153 = vmatprep.subr.bf16.mxu0 0
        %3154 = vmatpush1.bf16.msra.mxu0 0
        %3155 = vmatprep.subr.bf16.mxu0 0
        %3156 = vmatpush1.bf16.msra.mxu0 0
        %3157 = vmatprep.subr.bf16.mxu0 0
        %3158 = vmatpush1.bf16.msra.mxu0 0
        %3159 = vmatprep.subr.bf16.mxu0 0
        %3160 = vmatpush1.bf16.msra.mxu0 0
        %3161 = vmatprep.subr.bf16.mxu0 0
        %3162 = vmatpush1.bf16.msra.mxu0 0
        %3163 = vmatprep.subr.bf16.mxu0 0
        %3164 = vmatpush1.bf16.msra.mxu0 0
        %3165 = vmatprep.subr.bf16.mxu0 0
        %3166 = vmatpush1.bf16.msra.mxu0 0
        %3167 = vmatprep.subr.bf16.mxu0 0
        %3168 = vmatpush1.bf16.msra.mxu0 0
        %3169 = vmatprep.subr.bf16.mxu0 0
        %3170 = vmatpush1.bf16.msra.mxu0 0
        %3171 = vmatprep.subr.bf16.mxu0 0
        %3172 = vmatpush1.bf16.msra.mxu0 0
        %3173 = vmatprep.subr.bf16.mxu0 0
        %3174 = vmatpush1.bf16.msra.mxu0 0
        %3175 = vmatprep.mubr.bf16.mxu0 0
        %3176 = vmatmul.mubr.bf16.gmra.mrb[0].mxu0 %v3129
        %v3177 = vpop.f32.mrb[0].mxu0
        %v3178 = vadd.f32 %v3094, %v3177
        %v3179 = vpop.f32.mrb[0].mxu0
        %v3180 = vpop.f32.mrb[0].mxu0
        %v3181 = vadd.f32 %v3097, %v3180
        %v3182 = vpop.f32.mrb[0].mxu0
        %3183 = vmatprep.mubr.bf16.mxu0 0
        %3184 = vmatmul.mubr.bf16.gmra.mrb[0].mxu0 %v3132
        %v3185 = vpop.f32.mrb[0].mxu0
        %v3186 = vadd.f32 %v3102, %v3185
        %v3187 = vpop.f32.mrb[0].mxu0
        %v3188 = vpop.f32.mrb[0].mxu0
        %v3189 = vadd.f32 %v3105, %v3188
        %v3190 = vpop.f32.mrb[0].mxu0
        %3191 = vmatprep.mubr.bf16.mxu0 0
        %3192 = vmatmul.mubr.bf16.gmra.mrb[0].mxu0 %v3135
        %v3193 = vpop.f32.mrb[0].mxu0
        %v3194 = vadd.f32 %v3110, %v3193
        %v3195 = vpop.f32.mrb[0].mxu0
        %v3196 = vpop.f32.mrb[0].mxu0
        %v3197 = vadd.f32 %v3113, %v3196
        %v3198 = vpop.f32.mrb[0].mxu0
        %3199 = vmatprep.mubr.bf16.mxu0 0
        %3200 = vmatmul.mubr.bf16.gmra.mrb[0].mxu0 %v3138
        %v3201 = vpop.f32.mrb[0].mxu0
        %v3202 = vadd.f32 %v3118, %v3201
        %v3203 = vpop.f32.mrb[0].mxu0
        %v3204 = vpop.f32.mrb[0].mxu0
        %v3205 = vadd.f32 %v3121, %v3204
        %v3206 = vpop.f32.mrb[0].mxu0
        %3207 = vdwg.mxu0
        %s3208 = scalar_lea.vmem %s6, 32
        %v3209 = vld [vmem:[%s3208] sm:$0xf]
        %v3211 = vunpack.c.l.b16 %v2873
        %v3212 = vpack.c.b16 %v2887, %v2885
        %v3213 = vpack.c.b16 %v2891, %v2889
        %v3214 = vpack.c.b16 %v2895, %v2893
        %v3215 = vpack.c.b16 %v3211, %v2897
        %v3217 = vsel %vm1307, %v3212, 0
        %v3220 = vsel %vm1307, %v3213, 0
        %v3223 = vsel %vm1307, %v3214, 0
        %v3226 = vsel %vm1307, %v3215, 0
        %v3229 = vsel %vm1326, %v3209, 0
        %3231 = vmatprep.subr.bf16.mxu0 0
        %3232 = vmatpush1.bf16.msra.mxu0 %v3229
        %3233 = vmatprep.subr.bf16.mxu0 0
        %3234 = vmatpush1.bf16.msra.mxu0 0
        %3235 = vmatprep.subr.bf16.mxu0 0
        %3236 = vmatpush1.bf16.msra.mxu0 0
        %3237 = vmatprep.subr.bf16.mxu0 0
        %3238 = vmatpush1.bf16.msra.mxu0 0
        %3239 = vmatprep.subr.bf16.mxu0 0
        %3240 = vmatpush1.bf16.msra.mxu0 0
        %3241 = vmatprep.subr.bf16.mxu0 0
        %3242 = vmatpush1.bf16.msra.mxu0 0
        %3243 = vmatprep.subr.bf16.mxu0 0
        %3244 = vmatpush1.bf16.msra.mxu0 0
        %3245 = vmatprep.subr.bf16.mxu0 0
        %3246 = vmatpush1.bf16.msra.mxu0 0
        %3247 = vmatprep.subr.bf16.mxu0 0
        %3248 = vmatpush1.bf16.msra.mxu0 0
        %3249 = vmatprep.subr.bf16.mxu0 0
        %3250 = vmatpush1.bf16.msra.mxu0 0
        %3251 = vmatprep.subr.bf16.mxu0 0
        %3252 = vmatpush1.bf16.msra.mxu0 0
        %3253 = vmatprep.subr.bf16.mxu0 0
        %3254 = vmatpush1.bf16.msra.mxu0 0
        %3255 = vmatprep.subr.bf16.mxu0 0
        %3256 = vmatpush1.bf16.msra.mxu0 0
        %3257 = vmatprep.subr.bf16.mxu0 0
        %3258 = vmatpush1.bf16.msra.mxu0 0
        %3259 = vmatprep.subr.bf16.mxu0 0
        %3260 = vmatpush1.bf16.msra.mxu0 0
        %3261 = vmatprep.subr.bf16.mxu0 0
        %3262 = vmatpush1.bf16.msra.mxu0 0
        %3263 = vmatprep.mubr.bf16.mxu0 0
        %3264 = vmatmul.mubr.bf16.gmra.mrb[0].mxu0 %v3217
        %v3265 = vpop.f32.mrb[0].mxu0
        %v3266 = vadd.f32 0.0, %v3265
        %v3267 = vpop.f32.mrb[0].mxu0
        %v3268 = vpop.f32.mrb[0].mxu0
        %v3269 = vadd.f32 0.0, %v3268
        %v3270 = vpop.f32.mrb[0].mxu0
        %3271 = vmatprep.mubr.bf16.mxu0 0
        %3272 = vmatmul.mubr.bf16.gmra.mrb[0].mxu0 %v3220
        %v3273 = vpop.f32.mrb[0].mxu0
        %v3274 = vadd.f32 0.0, %v3273
        %v3275 = vpop.f32.mrb[0].mxu0
        %v3276 = vpop.f32.mrb[0].mxu0
        %v3277 = vadd.f32 0.0, %v3276
        %v3278 = vpop.f32.mrb[0].mxu0
        %3279 = vmatprep.mubr.bf16.mxu0 0
        %3280 = vmatmul.mubr.bf16.gmra.mrb[0].mxu0 %v3223
        %v3281 = vpop.f32.mrb[0].mxu0
        %v3282 = vadd.f32 0.0, %v3281
        %v3283 = vpop.f32.mrb[0].mxu0
        %v3284 = vpop.f32.mrb[0].mxu0
        %v3285 = vadd.f32 0.0, %v3284
        %v3286 = vpop.f32.mrb[0].mxu0
        %3287 = vmatprep.mubr.bf16.mxu0 0
        %3288 = vmatmul.mubr.bf16.gmra.mrb[0].mxu0 %v3226
        %v3289 = vpop.f32.mrb[0].mxu0
        %v3290 = vadd.f32 0.0, %v3289
        %v3291 = vpop.f32.mrb[0].mxu0
        %v3292 = vpop.f32.mrb[0].mxu0
        %v3293 = vadd.f32 0.0, %v3292
        %v3294 = vpop.f32.mrb[0].mxu0
        %3295 = vdwg.mxu0
        %v3296 = vadd.f32 %v3178, %v3266
        %v3297 = vadd.f32 %v3181, %v3269
        %v3298 = vadd.f32 %v3186, %v3274
        %v3299 = vadd.f32 %v3189, %v3277
        %v3300 = vadd.f32 %v3194, %v3282
        %v3301 = vadd.f32 %v3197, %v3285
        %v3302 = vadd.f32 %v3202, %v3290
        %v3303 = vadd.f32 %v3205, %v3293
        %v3304 = vunpack.c.h.b16 %v2873
        %v3305 = vpack.c.b16 %v3211, %v3211
        %v3306 = vpack.c.b16 %v3304, %v3304
        %v3308 = vshrl.u32 %v3305, 16
        %v3310 = vrot.slane %v3308, 4
        %v3311 = vshll.u32 %v3305, 16
        %v3313 = vrot.slane %v3311, 5
        %v3314 = vor.u32 %v3310, %v3313
        %v3315 = vrot.slane %v3314, 4
        %v3317 = vshll.u32 %v3306, 16
        %v3319 = vrot.slane %v3317, 5
        %v3320 = vsel %vm2917, %v3315, %v3319
        %s3321 = scalar_lea.vmem %s6, 40
        %v3322 = vld [vmem:[%s3321] sm:$0xf]
        %v3323 = vunpack.c.l.b16 %v3320
        %v3324 = vpack.c.b16 %v3034, %v3033
        %v3325 = vpack.c.b16 %v3036, %v3035
        %v3326 = vpack.c.b16 %v3038, %v3037
        %v3327 = vpack.c.b16 %v3323, %v3039
        %v3329 = vsel %vm1307, %v3324, 0
        %v3332 = vsel %vm1307, %v3325, 0
        %v3335 = vsel %vm1307, %v3326, 0
        %v3338 = vsel %vm1307, %v3327, 0
        %v3341 = vsel %vm1326, %v3322, 0
        %3343 = vmatprep.subr.bf16.mxu0 0
        %3344 = vmatpush1.bf16.msra.mxu0 %v3341
        %3345 = vmatprep.subr.bf16.mxu0 0
        %3346 = vmatpush1.bf16.msra.mxu0 0
        %3347 = vmatprep.subr.bf16.mxu0 0
        %3348 = vmatpush1.bf16.msra.mxu0 0
        %3349 = vmatprep.subr.bf16.mxu0 0
        %3350 = vmatpush1.bf16.msra.mxu0 0
        %3351 = vmatprep.subr.bf16.mxu0 0
        %3352 = vmatpush1.bf16.msra.mxu0 0
        %3353 = vmatprep.subr.bf16.mxu0 0
        %3354 = vmatpush1.bf16.msra.mxu0 0
        %3355 = vmatprep.subr.bf16.mxu0 0
        %3356 = vmatpush1.bf16.msra.mxu0 0
        %3357 = vmatprep.subr.bf16.mxu0 0
        %3358 = vmatpush1.bf16.msra.mxu0 0
        %3359 = vmatprep.subr.bf16.mxu0 0
        %3360 = vmatpush1.bf16.msra.mxu0 0
        %3361 = vmatprep.subr.bf16.mxu0 0
        %3362 = vmatpush1.bf16.msra.mxu0 0
        %3363 = vmatprep.subr.bf16.mxu0 0
        %3364 = vmatpush1.bf16.msra.mxu0 0
        %3365 = vmatprep.subr.bf16.mxu0 0
        %3366 = vmatpush1.bf16.msra.mxu0 0
        %3367 = vmatprep.subr.bf16.mxu0 0
        %3368 = vmatpush1.bf16.msra.mxu0 0
        %3369 = vmatprep.subr.bf16.mxu0 0
        %3370 = vmatpush1.bf16.msra.mxu0 0
        %3371 = vmatprep.subr.bf16.mxu0 0
        %3372 = vmatpush1.bf16.msra.mxu0 0
        %3373 = vmatprep.subr.bf16.mxu0 0
        %3374 = vmatpush1.bf16.msra.mxu0 0
        %3375 = vmatprep.mubr.bf16.mxu0 0
        %3376 = vmatmul.mubr.bf16.gmra.mrb[0].mxu0 %v3329
        %v3377 = vpop.f32.mrb[0].mxu0
        %v3378 = vadd.f32 0.0, %v3377
        %v3379 = vpop.f32.mrb[0].mxu0
        %v3380 = vpop.f32.mrb[0].mxu0
        %v3381 = vadd.f32 0.0, %v3380
        %v3382 = vpop.f32.mrb[0].mxu0
        %3383 = vmatprep.mubr.bf16.mxu0 0
        %3384 = vmatmul.mubr.bf16.gmra.mrb[0].mxu0 %v3332
        %v3385 = vpop.f32.mrb[0].mxu0
        %v3386 = vadd.f32 0.0, %v3385
        %v3387 = vpop.f32.mrb[0].mxu0
        %v3388 = vpop.f32.mrb[0].mxu0
        %v3389 = vadd.f32 0.0, %v3388
        %v3390 = vpop.f32.mrb[0].mxu0
        %3391 = vmatprep.mubr.bf16.mxu0 0
        %3392 = vmatmul.mubr.bf16.gmra.mrb[0].mxu0 %v3335
        %v3393 = vpop.f32.mrb[0].mxu0
        %v3394 = vadd.f32 0.0, %v3393
        %v3395 = vpop.f32.mrb[0].mxu0
        %v3396 = vpop.f32.mrb[0].mxu0
        %v3397 = vadd.f32 0.0, %v3396
        %v3398 = vpop.f32.mrb[0].mxu0
        %3399 = vmatprep.mubr.bf16.mxu0 0
        %3400 = vmatmul.mubr.bf16.gmra.mrb[0].mxu0 %v3338
        %v3401 = vpop.f32.mrb[0].mxu0
        %v3402 = vadd.f32 0.0, %v3401
        %v3403 = vpop.f32.mrb[0].mxu0
        %v3404 = vpop.f32.mrb[0].mxu0
        %v3405 = vadd.f32 0.0, %v3404
        %v3406 = vpop.f32.mrb[0].mxu0
        %3407 = vdwg.mxu0
        %v3408 = vadd.f32 %v3296, %v3378
        %v3409 = vadd.f32 %v3297, %v3381
        %v3410 = vadd.f32 %v3298, %v3386
        %v3411 = vadd.f32 %v3299, %v3389
        %v3412 = vadd.f32 %v3300, %v3394
        %v3413 = vadd.f32 %v3301, %v3397
        %v3414 = vadd.f32 %v3302, %v3402
        %v3415 = vadd.f32 %v3303, %v3405
        %v3435 = vunpack.c.l.s4 1966171168
        %v3436 = vunpack.c.0.s8 %v3435
        %v3437 = vlaneseq
        %v3438 = vshrl.u32 %v3437, 7
        %v3439 = vsub.s32 %v3436, %v3438
        %v3440 = vrot.slane %v507, %v3439
        %v3441 = vcombine.high %v3440, %v3440
        %v3443 = vunpack.c.l.s4 1966171168
        %v3444 = vunpack.c.0.s8 %v3443
        %v3445 = vlaneseq
        %v3446 = vshrl.u32 %v3445, 7
        %v3447 = vsub.s32 %v3444, %v3446
        %v3448 = vrot.slane %v3440, %v3447
        %v3450 = vunpack.c.l.s4 1966171168
        %v3451 = vunpack.c.0.s8 %v3450
        %v3452 = vlaneseq
        %v3453 = vshrl.u32 %v3452, 7
        %v3454 = vsub.s32 %v3451, %v3453
        %v3455 = vrot.slane %v3441, %v3454
        %v3456 = vcombine.high %v3448, %v3448
        %v3457 = vcombine.high %v3455, %v3455
        %v3459 = vunpack.c.l.s4 1966171168
        %v3460 = vunpack.c.0.s8 %v3459
        %v3461 = vlaneseq
        %v3462 = vshrl.u32 %v3461, 7
        %v3463 = vsub.s32 %v3460, %v3462
        %v3464 = vrot.slane %v508, %v3463
        %v3466 = vunpack.c.l.s4 1966171168
        %v3467 = vunpack.c.0.s8 %v3466
        %v3468 = vlaneseq
        %v3469 = vshrl.u32 %v3468, 7
        %v3470 = vsub.s32 %v3467, %v3469
        %v3471 = vrot.slane %v3464, %v3470
        %v3473 = vunpack.c.l.s4 1966171168
        %v3474 = vunpack.c.0.s8 %v3473
        %v3475 = vlaneseq
        %v3476 = vshrl.u32 %v3475, 7
        %v3477 = vsub.s32 %v3474, %v3476
        %v3478 = vrot.slane %v509, %v3477
        %v3479 = vcombine.high %v3478, %v3478
        %v3481 = vunpack.c.l.s4 1966171168
        %v3482 = vunpack.c.0.s8 %v3481
        %v3483 = vlaneseq
        %v3484 = vshrl.u32 %v3483, 7
        %v3485 = vsub.s32 %v3482, %v3484
        %v3486 = vrot.slane %v3478, %v3485
        %v3488 = vunpack.c.l.s4 1966171168
        %v3489 = vunpack.c.0.s8 %v3488
        %v3490 = vlaneseq
        %v3491 = vshrl.u32 %v3490, 7
        %v3492 = vsub.s32 %v3489, %v3491
        %v3493 = vrot.slane %v3479, %v3492
        %v3494 = vcombine.high %v3486, %v3486
        %v3495 = vcombine.high %v3493, %v3493
        %v3497 = vunpack.c.l.s4 1966171168
        %v3498 = vunpack.c.0.s8 %v3497
        %v3499 = vlaneseq
        %v3500 = vshrl.u32 %v3499, 7
        %v3501 = vsub.s32 %v3498, %v3500
        %v3502 = vrot.slane %v510, %v3501
        %v3504 = vunpack.c.l.s4 1966171168
        %v3505 = vunpack.c.0.s8 %v3504
        %v3506 = vlaneseq
        %v3507 = vshrl.u32 %v3506, 7
        %v3508 = vsub.s32 %v3505, %v3507
        %v3509 = vrot.slane %v3502, %v3508
        %v3511 = vunpack.c.l.s4 1966171168
        %v3512 = vunpack.c.0.s8 %v3511
        %v3513 = vlaneseq
        %v3514 = vshrl.u32 %v3513, 7
        %v3515 = vsub.s32 %v3512, %v3514
        %v3516 = vrot.slane %v511, %v3515
        %v3517 = vcombine.high %v3516, %v3516
        %v3519 = vunpack.c.l.s4 1966171168
        %v3520 = vunpack.c.0.s8 %v3519
        %v3521 = vlaneseq
        %v3522 = vshrl.u32 %v3521, 7
        %v3523 = vsub.s32 %v3520, %v3522
        %v3524 = vrot.slane %v3516, %v3523
        %v3526 = vunpack.c.l.s4 1966171168
        %v3527 = vunpack.c.0.s8 %v3526
        %v3528 = vlaneseq
        %v3529 = vshrl.u32 %v3528, 7
        %v3530 = vsub.s32 %v3527, %v3529
        %v3531 = vrot.slane %v3517, %v3530
        %v3532 = vcombine.high %v3524, %v3524
        %v3533 = vcombine.high %v3531, %v3531
        %v3535 = vunpack.c.l.s4 1966171168
        %v3536 = vunpack.c.0.s8 %v3535
        %v3537 = vlaneseq
        %v3538 = vshrl.u32 %v3537, 7
        %v3539 = vsub.s32 %v3536, %v3538
        %v3540 = vrot.slane %v512, %v3539
        %v3542 = vunpack.c.l.s4 1966171168
        %v3543 = vunpack.c.0.s8 %v3542
        %v3544 = vlaneseq
        %v3545 = vshrl.u32 %v3544, 7
        %v3546 = vsub.s32 %v3543, %v3545
        %v3547 = vrot.slane %v3540, %v3546
        %v3549 = vunpack.c.l.s4 1966171168
        %v3550 = vunpack.c.0.s8 %v3549
        %v3551 = vlaneseq
        %v3552 = vshrl.u32 %v3551, 7
        %v3553 = vsub.s32 %v3550, %v3552
        %v3554 = vrot.slane %v513, %v3553
        %v3555 = vcombine.high %v3554, %v3554
        %v3557 = vunpack.c.l.s4 1966171168
        %v3558 = vunpack.c.0.s8 %v3557
        %v3559 = vlaneseq
        %v3560 = vshrl.u32 %v3559, 7
        %v3561 = vsub.s32 %v3558, %v3560
        %v3562 = vrot.slane %v3554, %v3561
        %v3564 = vunpack.c.l.s4 1966171168
        %v3565 = vunpack.c.0.s8 %v3564
        %v3566 = vlaneseq
        %v3567 = vshrl.u32 %v3566, 7
        %v3568 = vsub.s32 %v3565, %v3567
        %v3569 = vrot.slane %v3555, %v3568
        %v3570 = vcombine.high %v3562, %v3562
        %v3571 = vcombine.high %v3569, %v3569
        %v3573 = vunpack.c.l.s4 1966171168
        %v3574 = vunpack.c.0.s8 %v3573
        %v3575 = vlaneseq
        %v3576 = vshrl.u32 %v3575, 7
        %v3577 = vsub.s32 %v3574, %v3576
        %v3578 = vrot.slane %v514, %v3577
        %v3580 = vunpack.c.l.s4 1966171168
        %v3581 = vunpack.c.0.s8 %v3580
        %v3582 = vlaneseq
        %v3583 = vshrl.u32 %v3582, 7
        %v3584 = vsub.s32 %v3581, %v3583
        %v3585 = vrot.slane %v3578, %v3584
        %v3587 = vunpack.c.l.s4 1966171168
        %v3588 = vunpack.c.0.s8 %v3587
        %v3589 = vlaneseq
        %v3590 = vshrl.u32 %v3589, 7
        %v3591 = vsub.s32 %v3588, %v3590
        %v3592 = vrot.slane %v515, %v3591
        %v3593 = vcombine.high %v3592, %v3592
        %v3595 = vunpack.c.l.s4 1966171168
        %v3596 = vunpack.c.0.s8 %v3595
        %v3597 = vlaneseq
        %v3598 = vshrl.u32 %v3597, 7
        %v3599 = vsub.s32 %v3596, %v3598
        %v3600 = vrot.slane %v3592, %v3599
        %v3602 = vunpack.c.l.s4 1966171168
        %v3603 = vunpack.c.0.s8 %v3602
        %v3604 = vlaneseq
        %v3605 = vshrl.u32 %v3604, 7
        %v3606 = vsub.s32 %v3603, %v3605
        %v3607 = vrot.slane %v3593, %v3606
        %v3608 = vcombine.high %v3600, %v3600
        %v3609 = vcombine.high %v3607, %v3607
        %v3611 = vunpack.c.l.s4 1966171168
        %v3612 = vunpack.c.0.s8 %v3611
        %v3613 = vlaneseq
        %v3614 = vshrl.u32 %v3613, 7
        %v3615 = vsub.s32 %v3612, %v3614
        %v3616 = vrot.slane %v516, %v3615
        %v3618 = vunpack.c.l.s4 1966171168
        %v3619 = vunpack.c.0.s8 %v3618
        %v3620 = vlaneseq
        %v3621 = vshrl.u32 %v3620, 7
        %v3622 = vsub.s32 %v3619, %v3621
        %v3623 = vrot.slane %v3616, %v3622
        %v3625 = vunpack.c.l.s4 1966171168
        %v3626 = vunpack.c.0.s8 %v3625
        %v3627 = vlaneseq
        %v3628 = vshrl.u32 %v3627, 7
        %v3629 = vsub.s32 %v3626, %v3628
        %v3630 = vrot.slane %v517, %v3629
        %v3631 = vcombine.high %v3630, %v3630
        %v3633 = vunpack.c.l.s4 1966171168
        %v3634 = vunpack.c.0.s8 %v3633
        %v3635 = vlaneseq
        %v3636 = vshrl.u32 %v3635, 7
        %v3637 = vsub.s32 %v3634, %v3636
        %v3638 = vrot.slane %v3630, %v3637
        %v3640 = vunpack.c.l.s4 1966171168
        %v3641 = vunpack.c.0.s8 %v3640
        %v3642 = vlaneseq
        %v3643 = vshrl.u32 %v3642, 7
        %v3644 = vsub.s32 %v3641, %v3643
        %v3645 = vrot.slane %v3631, %v3644
        %v3646 = vcombine.high %v3638, %v3638
        %v3647 = vcombine.high %v3645, %v3645
        %v3649 = vunpack.c.l.s4 1966171168
        %v3650 = vunpack.c.0.s8 %v3649
        %v3651 = vlaneseq
        %v3652 = vshrl.u32 %v3651, 7
        %v3653 = vsub.s32 %v3650, %v3652
        %v3654 = vrot.slane %v518, %v3653
        %v3656 = vunpack.c.l.s4 1966171168
        %v3657 = vunpack.c.0.s8 %v3656
        %v3658 = vlaneseq
        %v3659 = vshrl.u32 %v3658, 7
        %v3660 = vsub.s32 %v3657, %v3659
        %v3661 = vrot.slane %v3654, %v3660
        %v3663 = vunpack.c.l.s4 1966171168
        %v3664 = vunpack.c.0.s8 %v3663
        %v3665 = vlaneseq
        %v3666 = vshrl.u32 %v3665, 7
        %v3667 = vsub.s32 %v3664, %v3666
        %v3668 = vrot.slane %v519, %v3667
        %v3669 = vcombine.high %v3668, %v3668
        %v3671 = vunpack.c.l.s4 1966171168
        %v3672 = vunpack.c.0.s8 %v3671
        %v3673 = vlaneseq
        %v3674 = vshrl.u32 %v3673, 7
        %v3675 = vsub.s32 %v3672, %v3674
        %v3676 = vrot.slane %v3668, %v3675
        %v3678 = vunpack.c.l.s4 1966171168
        %v3679 = vunpack.c.0.s8 %v3678
        %v3680 = vlaneseq
        %v3681 = vshrl.u32 %v3680, 7
        %v3682 = vsub.s32 %v3679, %v3681
        %v3683 = vrot.slane %v3669, %v3682
        %v3684 = vcombine.high %v3676, %v3676
        %v3685 = vcombine.high %v3683, %v3683
        %v3687 = vunpack.c.l.s4 1966171168
        %v3688 = vunpack.c.0.s8 %v3687
        %v3689 = vlaneseq
        %v3690 = vshrl.u32 %v3689, 7
        %v3691 = vsub.s32 %v3688, %v3690
        %v3692 = vrot.slane %v520, %v3691
        %v3694 = vunpack.c.l.s4 1966171168
        %v3695 = vunpack.c.0.s8 %v3694
        %v3696 = vlaneseq
        %v3697 = vshrl.u32 %v3696, 7
        %v3698 = vsub.s32 %v3695, %v3697
        %v3699 = vrot.slane %v3692, %v3698
        %v3701 = vunpack.c.l.s4 1966171168
        %v3702 = vunpack.c.0.s8 %v3701
        %v3703 = vlaneseq
        %v3704 = vshrl.u32 %v3703, 7
        %v3705 = vsub.s32 %v3702, %v3704
        %v3706 = vrot.slane %v521, %v3705
        %v3707 = vcombine.high %v3706, %v3706
        %v3709 = vunpack.c.l.s4 1966171168
        %v3710 = vunpack.c.0.s8 %v3709
        %v3711 = vlaneseq
        %v3712 = vshrl.u32 %v3711, 7
        %v3713 = vsub.s32 %v3710, %v3712
        %v3714 = vrot.slane %v3706, %v3713
        %v3716 = vunpack.c.l.s4 1966171168
        %v3717 = vunpack.c.0.s8 %v3716
        %v3718 = vlaneseq
        %v3719 = vshrl.u32 %v3718, 7
        %v3720 = vsub.s32 %v3717, %v3719
        %v3721 = vrot.slane %v3707, %v3720
        %v3722 = vcombine.high %v3714, %v3714
        %v3723 = vcombine.high %v3721, %v3721
        %v3725 = vunpack.c.l.s4 1966171168
        %v3726 = vunpack.c.0.s8 %v3725
        %v3727 = vlaneseq
        %v3728 = vshrl.u32 %v3727, 7
        %v3729 = vsub.s32 %v3726, %v3728
        %v3730 = vrot.slane %v522, %v3729
        %v3732 = vunpack.c.l.s4 1966171168
        %v3733 = vunpack.c.0.s8 %v3732
        %v3734 = vlaneseq
        %v3735 = vshrl.u32 %v3734, 7
        %v3736 = vsub.s32 %v3733, %v3735
        %v3737 = vrot.slane %v3730, %v3736
        %v3739 = vunpack.c.l.s4 1966171168
        %v3740 = vunpack.c.0.s8 %v3739
        %v3741 = vlaneseq
        %v3742 = vshrl.u32 %v3741, 7
        %v3743 = vsub.s32 %v3740, %v3742
        %v3744 = vrot.slane %v523, %v3743
        %v3745 = vcombine.high %v3744, %v3744
        %v3747 = vunpack.c.l.s4 1966171168
        %v3748 = vunpack.c.0.s8 %v3747
        %v3749 = vlaneseq
        %v3750 = vshrl.u32 %v3749, 7
        %v3751 = vsub.s32 %v3748, %v3750
        %v3752 = vrot.slane %v3744, %v3751
        %v3754 = vunpack.c.l.s4 1966171168
        %v3755 = vunpack.c.0.s8 %v3754
        %v3756 = vlaneseq
        %v3757 = vshrl.u32 %v3756, 7
        %v3758 = vsub.s32 %v3755, %v3757
        %v3759 = vrot.slane %v3745, %v3758
        %v3760 = vcombine.high %v3752, %v3752
        %v3761 = vcombine.high %v3759, %v3759
        %v3763 = vunpack.c.l.s4 1966171168
        %v3764 = vunpack.c.0.s8 %v3763
        %v3765 = vlaneseq
        %v3766 = vshrl.u32 %v3765, 7
        %v3767 = vsub.s32 %v3764, %v3766
        %v3768 = vrot.slane %v524, %v3767
        %v3770 = vunpack.c.l.s4 1966171168
        %v3771 = vunpack.c.0.s8 %v3770
        %v3772 = vlaneseq
        %v3773 = vshrl.u32 %v3772, 7
        %v3774 = vsub.s32 %v3771, %v3773
        %v3775 = vrot.slane %v3768, %v3774
        %v3776 = vunpack.i.l.s16 %v3448
        %v3777 = vunpack.i.h.s16 %v3448
        %v3778 = vunpack.i.l.s16 %v3455
        %v3779 = vunpack.i.h.s16 %v3455
        %v3780 = vunpack.i.l.s16 %v3456
        %v3781 = vunpack.i.h.s16 %v3456
        %v3782 = vunpack.i.l.s16 %v3457
        %v3783 = vunpack.i.h.s16 %v3457
        %v3784 = vunpack.i.l.s16 %v3471
        %v3785 = vunpack.i.l.s16 %v3486
        %v3786 = vunpack.i.h.s16 %v3486
        %v3787 = vunpack.i.l.s16 %v3493
        %v3788 = vunpack.i.h.s16 %v3493
        %v3789 = vunpack.i.l.s16 %v3494
        %v3790 = vunpack.i.h.s16 %v3494
        %v3791 = vunpack.i.l.s16 %v3495
        %v3792 = vunpack.i.h.s16 %v3495
        %v3793 = vunpack.i.l.s16 %v3509
        %v3794 = vunpack.i.l.s16 %v3524
        %v3795 = vunpack.i.h.s16 %v3524
        %v3796 = vunpack.i.l.s16 %v3531
        %v3797 = vunpack.i.h.s16 %v3531
        %v3798 = vunpack.i.l.s16 %v3532
        %v3799 = vunpack.i.h.s16 %v3532
        %v3800 = vunpack.i.l.s16 %v3533
        %v3801 = vunpack.i.h.s16 %v3533
        %v3802 = vunpack.i.l.s16 %v3547
        %v3803 = vunpack.i.l.s16 %v3562
        %v3804 = vunpack.i.h.s16 %v3562
        %v3805 = vunpack.i.l.s16 %v3569
        %v3806 = vunpack.i.h.s16 %v3569
        %v3807 = vunpack.i.l.s16 %v3570
        %v3808 = vunpack.i.h.s16 %v3570
        %v3809 = vunpack.i.l.s16 %v3571
        %v3810 = vunpack.i.h.s16 %v3571
        %v3811 = vunpack.i.l.s16 %v3585
        %v3812 = vunpack.i.l.s16 %v3600
        %v3813 = vunpack.i.h.s16 %v3600
        %v3814 = vunpack.i.l.s16 %v3607
        %v3815 = vunpack.i.h.s16 %v3607
        %v3816 = vunpack.i.l.s16 %v3608
        %v3817 = vunpack.i.h.s16 %v3608
        %v3818 = vunpack.i.l.s16 %v3609
        %v3819 = vunpack.i.h.s16 %v3609
        %v3820 = vunpack.i.l.s16 %v3623
        %v3821 = vunpack.i.l.s16 %v3638
        %v3822 = vunpack.i.h.s16 %v3638
        %v3823 = vunpack.i.l.s16 %v3645
        %v3824 = vunpack.i.h.s16 %v3645
        %v3825 = vunpack.i.l.s16 %v3646
        %v3826 = vunpack.i.h.s16 %v3646
        %v3827 = vunpack.i.l.s16 %v3647
        %v3828 = vunpack.i.h.s16 %v3647
        %v3829 = vunpack.i.l.s16 %v3661
        %v3830 = vunpack.i.l.s16 %v3676
        %v3831 = vunpack.i.h.s16 %v3676
        %v3832 = vunpack.i.l.s16 %v3683
        %v3833 = vunpack.i.h.s16 %v3683
        %v3834 = vunpack.i.l.s16 %v3684
        %v3835 = vunpack.i.h.s16 %v3684
        %v3836 = vunpack.i.l.s16 %v3685
        %v3837 = vunpack.i.h.s16 %v3685
        %v3838 = vunpack.i.l.s16 %v3699
        %v3839 = vunpack.i.l.s16 %v3714
        %v3840 = vunpack.i.h.s16 %v3714
        %v3841 = vunpack.i.l.s16 %v3721
        %v3842 = vunpack.i.h.s16 %v3721
        %v3843 = vunpack.i.l.s16 %v3722
        %v3844 = vunpack.i.h.s16 %v3722
        %v3845 = vunpack.i.l.s16 %v3723
        %v3846 = vunpack.i.h.s16 %v3723
        %v3847 = vunpack.i.l.s16 %v3737
        %v3848 = vunpack.i.l.s16 %v3752
        %v3849 = vunpack.i.h.s16 %v3752
        %v3850 = vunpack.i.l.s16 %v3759
        %v3851 = vunpack.i.h.s16 %v3759
        %v3852 = vunpack.i.l.s16 %v3760
        %v3853 = vunpack.i.h.s16 %v3760
        %v3854 = vunpack.i.l.s16 %v3761
        %v3855 = vunpack.i.h.s16 %v3761
        %v3856 = vunpack.i.l.s16 %v3775
        %v3857 = vpack.i.b16 %v3777, %v3776
        %v3858 = vpack.i.b16 %v3779, %v3778
        %v3859 = vpack.i.b16 %v3781, %v3780
        %v3860 = vpack.i.b16 %v3783, %v3782
        %v3861 = vpack.i.b16 %v3785, %v3784
        %v3862 = vpack.i.b16 %v3787, %v3786
        %v3863 = vpack.i.b16 %v3789, %v3788
        %v3864 = vpack.i.b16 %v3791, %v3790
        %v3865 = vpack.i.b16 %v3793, %v3792
        %v3866 = vpack.i.b16 %v3795, %v3794
        %v3867 = vpack.i.b16 %v3797, %v3796
        %v3868 = vpack.i.b16 %v3799, %v3798
        %v3869 = vpack.i.b16 %v3801, %v3800
        %v3870 = vpack.i.b16 %v3803, %v3802
        %v3871 = vpack.i.b16 %v3805, %v3804
        %v3872 = vpack.i.b16 %v3807, %v3806
        %v3873 = vpack.i.b16 %v3809, %v3808
        %v3874 = vpack.i.b16 %v3811, %v3810
        %v3875 = vpack.i.b16 %v3813, %v3812
        %v3876 = vpack.i.b16 %v3815, %v3814
        %v3877 = vpack.i.b16 %v3817, %v3816
        %v3878 = vpack.i.b16 %v3819, %v3818
        %v3879 = vpack.i.b16 %v3821, %v3820
        %v3880 = vpack.i.b16 %v3823, %v3822
        %v3881 = vpack.i.b16 %v3825, %v3824
        %v3882 = vpack.i.b16 %v3827, %v3826
        %v3883 = vpack.i.b16 %v3829, %v3828
        %v3884 = vpack.i.b16 %v3831, %v3830
        %v3885 = vpack.i.b16 %v3833, %v3832
        %v3886 = vpack.i.b16 %v3835, %v3834
        %v3887 = vpack.i.b16 %v3837, %v3836
        %v3888 = vpack.i.b16 %v3839, %v3838
        %v3889 = vpack.i.b16 %v3841, %v3840
        %v3890 = vpack.i.b16 %v3843, %v3842
        %v3891 = vpack.i.b16 %v3845, %v3844
        %v3892 = vpack.i.b16 %v3847, %v3846
        %v3893 = vpack.i.b16 %v3849, %v3848
        %v3894 = vpack.i.b16 %v3851, %v3850
        %v3895 = vpack.i.b16 %v3853, %v3852
        %v3896 = vpack.i.b16 %v3855, %v3854
        %v3898 = vcombine.low %v3857, %v3858
        %v3899 = vcombine.low %v3859, %v3860
        %v3900 = vcombine.low %v3861, %v3862
        %v3901 = vcombine.low %v3863, %v3864
        %v3903 = vunpack.c.l.s4 1966171168
        %v3904 = vunpack.c.0.s8 %v3903
        %v3905 = vlaneseq
        %v3906 = vshrl.u32 %v3905, 7
        %v3907 = vsub.s32 %v3904, %v3906
        %v3908 = vrot.slane %v3898, %v3907
        %v3910 = vunpack.c.l.s4 1966171168
        %v3911 = vunpack.c.0.s8 %v3910
        %v3912 = vlaneseq
        %v3913 = vshrl.u32 %v3912, 7
        %v3914 = vsub.s32 %v3911, %v3913
        %v3915 = vrot.slane %v3899, %v3914
        %v3917 = vunpack.c.l.s4 1966171168
        %v3918 = vunpack.c.0.s8 %v3917
        %v3919 = vlaneseq
        %v3920 = vshrl.u32 %v3919, 7
        %v3921 = vsub.s32 %v3918, %v3920
        %v3922 = vrot.slane %v3900, %v3921
        %v3924 = vunpack.c.l.s4 1966171168
        %v3925 = vunpack.c.0.s8 %v3924
        %v3926 = vlaneseq
        %v3927 = vshrl.u32 %v3926, 7
        %v3928 = vsub.s32 %v3925, %v3927
        %v3929 = vrot.slane %v3901, %v3928
        %v3930 = vcombine.low %v3908, %v3915
        %v3931 = vcombine.low %v3922, %v3929
        %v3933 = vunpack.c.l.s4 1966171168
        %v3934 = vunpack.c.0.s8 %v3933
        %v3935 = vlaneseq
        %v3936 = vshrl.u32 %v3935, 7
        %v3937 = vsub.s32 %v3934, %v3936
        %v3938 = vrot.slane %v3930, %v3937
        %v3940 = vunpack.c.l.s4 1966171168
        %v3941 = vunpack.c.0.s8 %v3940
        %v3942 = vlaneseq
        %v3943 = vshrl.u32 %v3942, 7
        %v3944 = vsub.s32 %v3941, %v3943
        %v3945 = vrot.slane %v3931, %v3944
        %v3946 = vcombine.low %v3938, %v3945
        %v3947 = vcombine.low %v3865, %v3866
        %v3948 = vcombine.low %v3867, %v3868
        %v3949 = vcombine.low %v3869, %v3870
        %v3950 = vcombine.low %v3871, %v3872
        %v3952 = vunpack.c.l.s4 1966171168
        %v3953 = vunpack.c.0.s8 %v3952
        %v3954 = vlaneseq
        %v3955 = vshrl.u32 %v3954, 7
        %v3956 = vsub.s32 %v3953, %v3955
        %v3957 = vrot.slane %v3947, %v3956
        %v3959 = vunpack.c.l.s4 1966171168
        %v3960 = vunpack.c.0.s8 %v3959
        %v3961 = vlaneseq
        %v3962 = vshrl.u32 %v3961, 7
        %v3963 = vsub.s32 %v3960, %v3962
        %v3964 = vrot.slane %v3948, %v3963
        %v3966 = vunpack.c.l.s4 1966171168
        %v3967 = vunpack.c.0.s8 %v3966
        %v3968 = vlaneseq
        %v3969 = vshrl.u32 %v3968, 7
        %v3970 = vsub.s32 %v3967, %v3969
        %v3971 = vrot.slane %v3949, %v3970
        %v3973 = vunpack.c.l.s4 1966171168
        %v3974 = vunpack.c.0.s8 %v3973
        %v3975 = vlaneseq
        %v3976 = vshrl.u32 %v3975, 7
        %v3977 = vsub.s32 %v3974, %v3976
        %v3978 = vrot.slane %v3950, %v3977
        %v3979 = vcombine.low %v3957, %v3964
        %v3980 = vcombine.low %v3971, %v3978
        %v3982 = vunpack.c.l.s4 1966171168
        %v3983 = vunpack.c.0.s8 %v3982
        %v3984 = vlaneseq
        %v3985 = vshrl.u32 %v3984, 7
        %v3986 = vsub.s32 %v3983, %v3985
        %v3987 = vrot.slane %v3979, %v3986
        %v3989 = vunpack.c.l.s4 1966171168
        %v3990 = vunpack.c.0.s8 %v3989
        %v3991 = vlaneseq
        %v3992 = vshrl.u32 %v3991, 7
        %v3993 = vsub.s32 %v3990, %v3992
        %v3994 = vrot.slane %v3980, %v3993
        %v3995 = vcombine.low %v3987, %v3994
        %v3996 = vcombine.low %v3873, %v3874
        %v3997 = vcombine.low %v3875, %v3876
        %v3998 = vcombine.low %v3877, %v3878
        %v3999 = vcombine.low %v3879, %v3880
        %v4001 = vunpack.c.l.s4 1966171168
        %v4002 = vunpack.c.0.s8 %v4001
        %v4003 = vlaneseq
        %v4004 = vshrl.u32 %v4003, 7
        %v4005 = vsub.s32 %v4002, %v4004
        %v4006 = vrot.slane %v3996, %v4005
        %v4008 = vunpack.c.l.s4 1966171168
        %v4009 = vunpack.c.0.s8 %v4008
        %v4010 = vlaneseq
        %v4011 = vshrl.u32 %v4010, 7
        %v4012 = vsub.s32 %v4009, %v4011
        %v4013 = vrot.slane %v3997, %v4012
        %v4015 = vunpack.c.l.s4 1966171168
        %v4016 = vunpack.c.0.s8 %v4015
        %v4017 = vlaneseq
        %v4018 = vshrl.u32 %v4017, 7
        %v4019 = vsub.s32 %v4016, %v4018
        %v4020 = vrot.slane %v3998, %v4019
        %v4022 = vunpack.c.l.s4 1966171168
        %v4023 = vunpack.c.0.s8 %v4022
        %v4024 = vlaneseq
        %v4025 = vshrl.u32 %v4024, 7
        %v4026 = vsub.s32 %v4023, %v4025
        %v4027 = vrot.slane %v3999, %v4026
        %v4028 = vcombine.low %v4006, %v4013
        %v4029 = vcombine.low %v4020, %v4027
        %v4031 = vunpack.c.l.s4 1966171168
        %v4032 = vunpack.c.0.s8 %v4031
        %v4033 = vlaneseq
        %v4034 = vshrl.u32 %v4033, 7
        %v4035 = vsub.s32 %v4032, %v4034
        %v4036 = vrot.slane %v4028, %v4035
        %v4038 = vunpack.c.l.s4 1966171168
        %v4039 = vunpack.c.0.s8 %v4038
        %v4040 = vlaneseq
        %v4041 = vshrl.u32 %v4040, 7
        %v4042 = vsub.s32 %v4039, %v4041
        %v4043 = vrot.slane %v4029, %v4042
        %v4044 = vcombine.low %v4036, %v4043
        %v4045 = vcombine.low %v3881, %v3882
        %v4046 = vcombine.low %v3883, %v3884
        %v4047 = vcombine.low %v3885, %v3886
        %v4048 = vcombine.low %v3887, %v3888
        %v4050 = vunpack.c.l.s4 1966171168
        %v4051 = vunpack.c.0.s8 %v4050
        %v4052 = vlaneseq
        %v4053 = vshrl.u32 %v4052, 7
        %v4054 = vsub.s32 %v4051, %v4053
        %v4055 = vrot.slane %v4045, %v4054
        %v4057 = vunpack.c.l.s4 1966171168
        %v4058 = vunpack.c.0.s8 %v4057
        %v4059 = vlaneseq
        %v4060 = vshrl.u32 %v4059, 7
        %v4061 = vsub.s32 %v4058, %v4060
        %v4062 = vrot.slane %v4046, %v4061
        %v4064 = vunpack.c.l.s4 1966171168
        %v4065 = vunpack.c.0.s8 %v4064
        %v4066 = vlaneseq
        %v4067 = vshrl.u32 %v4066, 7
        %v4068 = vsub.s32 %v4065, %v4067
        %v4069 = vrot.slane %v4047, %v4068
        %v4071 = vunpack.c.l.s4 1966171168
        %v4072 = vunpack.c.0.s8 %v4071
        %v4073 = vlaneseq
        %v4074 = vshrl.u32 %v4073, 7
        %v4075 = vsub.s32 %v4072, %v4074
        %v4076 = vrot.slane %v4048, %v4075
        %v4077 = vcombine.low %v4055, %v4062
        %v4078 = vcombine.low %v4069, %v4076
        %v4080 = vunpack.c.l.s4 1966171168
        %v4081 = vunpack.c.0.s8 %v4080
        %v4082 = vlaneseq
        %v4083 = vshrl.u32 %v4082, 7
        %v4084 = vsub.s32 %v4081, %v4083
        %v4085 = vrot.slane %v4077, %v4084
        %v4087 = vunpack.c.l.s4 1966171168
        %v4088 = vunpack.c.0.s8 %v4087
        %v4089 = vlaneseq
        %v4090 = vshrl.u32 %v4089, 7
        %v4091 = vsub.s32 %v4088, %v4090
        %v4092 = vrot.slane %v4078, %v4091
        %v4093 = vcombine.low %v4085, %v4092
        %v4094 = vcombine.low %v3889, %v3890
        %v4095 = vcombine.low %v3891, %v3892
        %v4096 = vcombine.low %v3893, %v3894
        %v4097 = vcombine.low %v3895, %v3896
        %v4099 = vunpack.c.l.s4 1966171168
        %v4100 = vunpack.c.0.s8 %v4099
        %v4101 = vlaneseq
        %v4102 = vshrl.u32 %v4101, 7
        %v4103 = vsub.s32 %v4100, %v4102
        %v4104 = vrot.slane %v4094, %v4103
        %v4106 = vunpack.c.l.s4 1966171168
        %v4107 = vunpack.c.0.s8 %v4106
        %v4108 = vlaneseq
        %v4109 = vshrl.u32 %v4108, 7
        %v4110 = vsub.s32 %v4107, %v4109
        %v4111 = vrot.slane %v4095, %v4110
        %v4113 = vunpack.c.l.s4 1966171168
        %v4114 = vunpack.c.0.s8 %v4113
        %v4115 = vlaneseq
        %v4116 = vshrl.u32 %v4115, 7
        %v4117 = vsub.s32 %v4114, %v4116
        %v4118 = vrot.slane %v4096, %v4117
        %v4120 = vunpack.c.l.s4 1966171168
        %v4121 = vunpack.c.0.s8 %v4120
        %v4122 = vlaneseq
        %v4123 = vshrl.u32 %v4122, 7
        %v4124 = vsub.s32 %v4121, %v4123
        %v4125 = vrot.slane %v4097, %v4124
        %v4126 = vcombine.low %v4104, %v4111
        %v4127 = vcombine.low %v4118, %v4125
        %v4129 = vunpack.c.l.s4 1966171168
        %v4130 = vunpack.c.0.s8 %v4129
        %v4131 = vlaneseq
        %v4132 = vshrl.u32 %v4131, 7
        %v4133 = vsub.s32 %v4130, %v4132
        %v4134 = vrot.slane %v4126, %v4133
        %v4136 = vunpack.c.l.s4 1966171168
        %v4137 = vunpack.c.0.s8 %v4136
        %v4138 = vlaneseq
        %v4139 = vshrl.u32 %v4138, 7
        %v4140 = vsub.s32 %v4137, %v4139
        %v4141 = vrot.slane %v4127, %v4140
        %v4142 = vcombine.low %v4134, %v4141
        %v4144 = vunpack.c.l.s4 1966171168
        %v4145 = vunpack.c.0.s8 %v4144
        %v4146 = vlaneseq
        %v4147 = vshrl.u32 %v4146, 7
        %v4148 = vsub.s32 %v4145, %v4147
        %v4149 = vrot.slane %v3856, %v4148
        %v4151 = vunpack.c.l.s4 1966171168
        %v4152 = vunpack.c.0.s8 %v4151
        %v4153 = vlaneseq
        %v4154 = vshrl.u32 %v4153, 7
        %v4155 = vsub.s32 %v4152, %v4154
        %v4156 = vrot.slane %v4149, %v4155
        %v4158 = vsel %vm1307, %v3946, 0
        %v4161 = vsel %vm1307, %v3995, 0
        %v4164 = vsel %vm1307, %v4044, 0
        %v4167 = vsel %vm1307, %v4093, 0
        %v4170 = vsel %vm1307, %v4142, 0
        %v4173 = vsel %vm1307, %v4156, 0
        %4175 = vmatprep.subr.bf16.mxu0 0
        %4176 = vmatpush1.bf16.msra.mxu0 %v1328
        %4177 = vmatprep.subr.bf16.mxu0 0
        %4178 = vmatpush1.bf16.msra.mxu0 0
        %4179 = vmatprep.subr.bf16.mxu0 0
        %4180 = vmatpush1.bf16.msra.mxu0 0
        %4181 = vmatprep.subr.bf16.mxu0 0
        %4182 = vmatpush1.bf16.msra.mxu0 0
        %4183 = vmatprep.subr.bf16.mxu0 0
        %4184 = vmatpush1.bf16.msra.mxu0 0
        %4185 = vmatprep.subr.bf16.mxu0 0
        %4186 = vmatpush1.bf16.msra.mxu0 0
        %4187 = vmatprep.subr.bf16.mxu0 0
        %4188 = vmatpush1.bf16.msra.mxu0 0
        %4189 = vmatprep.subr.bf16.mxu0 0
        %4190 = vmatpush1.bf16.msra.mxu0 0
        %4191 = vmatprep.subr.bf16.mxu0 0
        %4192 = vmatpush1.bf16.msra.mxu0 0
        %4193 = vmatprep.subr.bf16.mxu0 0
        %4194 = vmatpush1.bf16.msra.mxu0 0
        %4195 = vmatprep.subr.bf16.mxu0 0
        %4196 = vmatpush1.bf16.msra.mxu0 0
        %4197 = vmatprep.subr.bf16.mxu0 0
        %4198 = vmatpush1.bf16.msra.mxu0 0
        %4199 = vmatprep.subr.bf16.mxu0 0
        %4200 = vmatpush1.bf16.msra.mxu0 0
        %4201 = vmatprep.subr.bf16.mxu0 0
        %4202 = vmatpush1.bf16.msra.mxu0 0
        %4203 = vmatprep.subr.bf16.mxu0 0
        %4204 = vmatpush1.bf16.msra.mxu0 0
        %4205 = vmatprep.subr.bf16.mxu0 0
        %4206 = vmatpush1.bf16.msra.mxu0 0
        %4207 = vmatprep.mubr.bf16.mxu0 0
        %4208 = vmatmul.mubr.bf16.gmra.mrb[0].mxu0 %v4158
        %v4209 = vpop.f32.mrb[0].mxu0
        %v4210 = vadd.f32 0.0, %v4209
        %v4211 = vpop.f32.mrb[0].mxu0
        %v4212 = vpop.f32.mrb[0].mxu0
        %v4213 = vadd.f32 0.0, %v4212
        %v4214 = vpop.f32.mrb[0].mxu0
        %4215 = vmatprep.mubr.bf16.mxu0 0
        %4216 = vmatmul.mubr.bf16.gmra.mrb[0].mxu0 %v4161
        %v4217 = vpop.f32.mrb[0].mxu0
        %v4218 = vadd.f32 0.0, %v4217
        %v4219 = vpop.f32.mrb[0].mxu0
        %v4220 = vpop.f32.mrb[0].mxu0
        %v4221 = vadd.f32 0.0, %v4220
        %v4222 = vpop.f32.mrb[0].mxu0
        %4223 = vmatprep.mubr.bf16.mxu0 0
        %4224 = vmatmul.mubr.bf16.gmra.mrb[0].mxu0 %v4164
        %v4225 = vpop.f32.mrb[0].mxu0
        %v4226 = vadd.f32 0.0, %v4225
        %v4227 = vpop.f32.mrb[0].mxu0
        %v4228 = vpop.f32.mrb[0].mxu0
        %v4229 = vadd.f32 0.0, %v4228
        %v4230 = vpop.f32.mrb[0].mxu0
        %4231 = vmatprep.mubr.bf16.mxu0 0
        %4232 = vmatmul.mubr.bf16.gmra.mrb[0].mxu0 %v4167
        %v4233 = vpop.f32.mrb[0].mxu0
        %v4234 = vadd.f32 0.0, %v4233
        %v4235 = vpop.f32.mrb[0].mxu0
        %v4236 = vpop.f32.mrb[0].mxu0
        %v4237 = vadd.f32 0.0, %v4236
        %v4238 = vpop.f32.mrb[0].mxu0
        %4239 = vmatprep.mubr.bf16.mxu0 0
        %4240 = vmatmul.mubr.bf16.gmra.mrb[0].mxu0 %v4170
        %v4241 = vpop.f32.mrb[0].mxu0
        %v4242 = vadd.f32 0.0, %v4241
        %v4243 = vpop.f32.mrb[0].mxu0
        %v4244 = vpop.f32.mrb[0].mxu0
        %v4245 = vadd.f32 0.0, %v4244
        %v4246 = vpop.f32.mrb[0].mxu0
        %4247 = vmatprep.mubr.bf16.mxu0 0
        %4248 = vmatmul.mubr.bf16.gmra.mrb[0].mxu0 %v4173
        %v4249 = vpop.f32.mrb[0].mxu0
        %v4250 = vadd.f32 0.0, %v4249
        %v4251 = vpop.f32.mrb[0].mxu0
        %v4252 = vpop.f32.mrb[0].mxu0
        %v4253 = vpop.f32.mrb[0].mxu0
        %4254 = vdwg.mxu0
        %v4266 = vcombine.high %v4210, %v4210
        %v4268 = vunpack.c.l.s4 1966171168
        %v4269 = vunpack.c.0.s8 %v4268
        %v4270 = vlaneseq
        %v4271 = vshrl.u32 %v4270, 7
        %v4272 = vsub.s32 %v4269, %v4271
        %v4273 = vrot.slane %v4210, %v4272
        %v4275 = vunpack.c.l.s4 1966171168
        %v4276 = vunpack.c.0.s8 %v4275
        %v4277 = vlaneseq
        %v4278 = vshrl.u32 %v4277, 7
        %v4279 = vsub.s32 %v4276, %v4278
        %v4280 = vrot.slane %v4266, %v4279
        %v4281 = vcombine.high %v4273, %v4273
        %v4282 = vcombine.high %v4280, %v4280
        %v4284 = vunpack.c.l.s4 1966171168
        %v4285 = vunpack.c.0.s8 %v4284
        %v4286 = vlaneseq
        %v4287 = vshrl.u32 %v4286, 7
        %v4288 = vsub.s32 %v4285, %v4287
        %v4289 = vrot.slane %v4273, %v4288
        %v4291 = vunpack.c.l.s4 1966171168
        %v4292 = vunpack.c.0.s8 %v4291
        %v4293 = vlaneseq
        %v4294 = vshrl.u32 %v4293, 7
        %v4295 = vsub.s32 %v4292, %v4294
        %v4296 = vrot.slane %v4280, %v4295
        %v4298 = vunpack.c.l.s4 1966171168
        %v4299 = vunpack.c.0.s8 %v4298
        %v4300 = vlaneseq
        %v4301 = vshrl.u32 %v4300, 7
        %v4302 = vsub.s32 %v4299, %v4301
        %v4303 = vrot.slane %v4281, %v4302
        %v4305 = vunpack.c.l.s4 1966171168
        %v4306 = vunpack.c.0.s8 %v4305
        %v4307 = vlaneseq
        %v4308 = vshrl.u32 %v4307, 7
        %v4309 = vsub.s32 %v4306, %v4308
        %v4310 = vrot.slane %v4282, %v4309
        %v4311 = vcombine.high %v4289, %v4289
        %v4312 = vcombine.high %v4296, %v4296
        %v4313 = vcombine.high %v4303, %v4303
        %v4314 = vcombine.high %v4310, %v4310
        %v4315 = vcombine.high %v4213, %v4213
        %v4317 = vunpack.c.l.s4 1966171168
        %v4318 = vunpack.c.0.s8 %v4317
        %v4319 = vlaneseq
        %v4320 = vshrl.u32 %v4319, 7
        %v4321 = vsub.s32 %v4318, %v4320
        %v4322 = vrot.slane %v4213, %v4321
        %v4324 = vunpack.c.l.s4 1966171168
        %v4325 = vunpack.c.0.s8 %v4324
        %v4326 = vlaneseq
        %v4327 = vshrl.u32 %v4326, 7
        %v4328 = vsub.s32 %v4325, %v4327
        %v4329 = vrot.slane %v4315, %v4328
        %v4330 = vcombine.high %v4322, %v4322
        %v4331 = vcombine.high %v4329, %v4329
        %v4333 = vunpack.c.l.s4 1966171168
        %v4334 = vunpack.c.0.s8 %v4333
        %v4335 = vlaneseq
        %v4336 = vshrl.u32 %v4335, 7
        %v4337 = vsub.s32 %v4334, %v4336
        %v4338 = vrot.slane %v4322, %v4337
        %v4340 = vunpack.c.l.s4 1966171168
        %v4341 = vunpack.c.0.s8 %v4340
        %v4342 = vlaneseq
        %v4343 = vshrl.u32 %v4342, 7
        %v4344 = vsub.s32 %v4341, %v4343
        %v4345 = vrot.slane %v4329, %v4344
        %v4347 = vunpack.c.l.s4 1966171168
        %v4348 = vunpack.c.0.s8 %v4347
        %v4349 = vlaneseq
        %v4350 = vshrl.u32 %v4349, 7
        %v4351 = vsub.s32 %v4348, %v4350
        %v4352 = vrot.slane %v4330, %v4351
        %v4354 = vunpack.c.l.s4 1966171168
        %v4355 = vunpack.c.0.s8 %v4354
        %v4356 = vlaneseq
        %v4357 = vshrl.u32 %v4356, 7
        %v4358 = vsub.s32 %v4355, %v4357
        %v4359 = vrot.slane %v4331, %v4358
        %v4360 = vcombine.high %v4338, %v4338
        %v4361 = vcombine.high %v4345, %v4345
        %v4362 = vcombine.high %v4352, %v4352
        %v4363 = vcombine.high %v4359, %v4359
        %v4364 = vcombine.high %v4218, %v4218
        %v4366 = vunpack.c.l.s4 1966171168
        %v4367 = vunpack.c.0.s8 %v4366
        %v4368 = vlaneseq
        %v4369 = vshrl.u32 %v4368, 7
        %v4370 = vsub.s32 %v4367, %v4369
        %v4371 = vrot.slane %v4218, %v4370
        %v4373 = vunpack.c.l.s4 1966171168
        %v4374 = vunpack.c.0.s8 %v4373
        %v4375 = vlaneseq
        %v4376 = vshrl.u32 %v4375, 7
        %v4377 = vsub.s32 %v4374, %v4376
        %v4378 = vrot.slane %v4364, %v4377
        %v4379 = vcombine.high %v4371, %v4371
        %v4380 = vcombine.high %v4378, %v4378
        %v4382 = vunpack.c.l.s4 1966171168
        %v4383 = vunpack.c.0.s8 %v4382
        %v4384 = vlaneseq
        %v4385 = vshrl.u32 %v4384, 7
        %v4386 = vsub.s32 %v4383, %v4385
        %v4387 = vrot.slane %v4371, %v4386
        %v4389 = vunpack.c.l.s4 1966171168
        %v4390 = vunpack.c.0.s8 %v4389
        %v4391 = vlaneseq
        %v4392 = vshrl.u32 %v4391, 7
        %v4393 = vsub.s32 %v4390, %v4392
        %v4394 = vrot.slane %v4378, %v4393
        %v4396 = vunpack.c.l.s4 1966171168
        %v4397 = vunpack.c.0.s8 %v4396
        %v4398 = vlaneseq
        %v4399 = vshrl.u32 %v4398, 7
        %v4400 = vsub.s32 %v4397, %v4399
        %v4401 = vrot.slane %v4379, %v4400
        %v4403 = vunpack.c.l.s4 1966171168
        %v4404 = vunpack.c.0.s8 %v4403
        %v4405 = vlaneseq
        %v4406 = vshrl.u32 %v4405, 7
        %v4407 = vsub.s32 %v4404, %v4406
        %v4408 = vrot.slane %v4380, %v4407
        %v4409 = vcombine.high %v4387, %v4387
        %v4410 = vcombine.high %v4394, %v4394
        %v4411 = vcombine.high %v4401, %v4401
        %v4412 = vcombine.high %v4408, %v4408
        %v4413 = vcombine.high %v4221, %v4221
        %v4415 = vunpack.c.l.s4 1966171168
        %v4416 = vunpack.c.0.s8 %v4415
        %v4417 = vlaneseq
        %v4418 = vshrl.u32 %v4417, 7
        %v4419 = vsub.s32 %v4416, %v4418
        %v4420 = vrot.slane %v4221, %v4419
        %v4422 = vunpack.c.l.s4 1966171168
        %v4423 = vunpack.c.0.s8 %v4422
        %v4424 = vlaneseq
        %v4425 = vshrl.u32 %v4424, 7
        %v4426 = vsub.s32 %v4423, %v4425
        %v4427 = vrot.slane %v4413, %v4426
        %v4428 = vcombine.high %v4420, %v4420
        %v4429 = vcombine.high %v4427, %v4427
        %v4431 = vunpack.c.l.s4 1966171168
        %v4432 = vunpack.c.0.s8 %v4431
        %v4433 = vlaneseq
        %v4434 = vshrl.u32 %v4433, 7
        %v4435 = vsub.s32 %v4432, %v4434
        %v4436 = vrot.slane %v4420, %v4435
        %v4438 = vunpack.c.l.s4 1966171168
        %v4439 = vunpack.c.0.s8 %v4438
        %v4440 = vlaneseq
        %v4441 = vshrl.u32 %v4440, 7
        %v4442 = vsub.s32 %v4439, %v4441
        %v4443 = vrot.slane %v4427, %v4442
        %v4445 = vunpack.c.l.s4 1966171168
        %v4446 = vunpack.c.0.s8 %v4445
        %v4447 = vlaneseq
        %v4448 = vshrl.u32 %v4447, 7
        %v4449 = vsub.s32 %v4446, %v4448
        %v4450 = vrot.slane %v4428, %v4449
        %v4452 = vunpack.c.l.s4 1966171168
        %v4453 = vunpack.c.0.s8 %v4452
        %v4454 = vlaneseq
        %v4455 = vshrl.u32 %v4454, 7
        %v4456 = vsub.s32 %v4453, %v4455
        %v4457 = vrot.slane %v4429, %v4456
        %v4458 = vcombine.high %v4436, %v4436
        %v4459 = vcombine.high %v4443, %v4443
        %v4460 = vcombine.high %v4450, %v4450
        %v4461 = vcombine.high %v4457, %v4457
        %v4462 = vcombine.high %v4226, %v4226
        %v4464 = vunpack.c.l.s4 1966171168
        %v4465 = vunpack.c.0.s8 %v4464
        %v4466 = vlaneseq
        %v4467 = vshrl.u32 %v4466, 7
        %v4468 = vsub.s32 %v4465, %v4467
        %v4469 = vrot.slane %v4226, %v4468
        %v4471 = vunpack.c.l.s4 1966171168
        %v4472 = vunpack.c.0.s8 %v4471
        %v4473 = vlaneseq
        %v4474 = vshrl.u32 %v4473, 7
        %v4475 = vsub.s32 %v4472, %v4474
        %v4476 = vrot.slane %v4462, %v4475
        %v4477 = vcombine.high %v4469, %v4469
        %v4478 = vcombine.high %v4476, %v4476
        %v4480 = vunpack.c.l.s4 1966171168
        %v4481 = vunpack.c.0.s8 %v4480
        %v4482 = vlaneseq
        %v4483 = vshrl.u32 %v4482, 7
        %v4484 = vsub.s32 %v4481, %v4483
        %v4485 = vrot.slane %v4469, %v4484
        %v4487 = vunpack.c.l.s4 1966171168
        %v4488 = vunpack.c.0.s8 %v4487
        %v4489 = vlaneseq
        %v4490 = vshrl.u32 %v4489, 7
        %v4491 = vsub.s32 %v4488, %v4490
        %v4492 = vrot.slane %v4476, %v4491
        %v4494 = vunpack.c.l.s4 1966171168
        %v4495 = vunpack.c.0.s8 %v4494
        %v4496 = vlaneseq
        %v4497 = vshrl.u32 %v4496, 7
        %v4498 = vsub.s32 %v4495, %v4497
        %v4499 = vrot.slane %v4477, %v4498
        %v4501 = vunpack.c.l.s4 1966171168
        %v4502 = vunpack.c.0.s8 %v4501
        %v4503 = vlaneseq
        %v4504 = vshrl.u32 %v4503, 7
        %v4505 = vsub.s32 %v4502, %v4504
        %v4506 = vrot.slane %v4478, %v4505
        %v4507 = vcombine.high %v4485, %v4485
        %v4508 = vcombine.high %v4492, %v4492
        %v4509 = vcombine.high %v4499, %v4499
        %v4510 = vcombine.high %v4506, %v4506
        %v4511 = vcombine.high %v4229, %v4229
        %v4513 = vunpack.c.l.s4 1966171168
        %v4514 = vunpack.c.0.s8 %v4513
        %v4515 = vlaneseq
        %v4516 = vshrl.u32 %v4515, 7
        %v4517 = vsub.s32 %v4514, %v4516
        %v4518 = vrot.slane %v4229, %v4517
        %v4520 = vunpack.c.l.s4 1966171168
        %v4521 = vunpack.c.0.s8 %v4520
        %v4522 = vlaneseq
        %v4523 = vshrl.u32 %v4522, 7
        %v4524 = vsub.s32 %v4521, %v4523
        %v4525 = vrot.slane %v4511, %v4524
        %v4526 = vcombine.high %v4518, %v4518
        %v4527 = vcombine.high %v4525, %v4525
        %v4529 = vunpack.c.l.s4 1966171168
        %v4530 = vunpack.c.0.s8 %v4529
        %v4531 = vlaneseq
        %v4532 = vshrl.u32 %v4531, 7
        %v4533 = vsub.s32 %v4530, %v4532
        %v4534 = vrot.slane %v4518, %v4533
        %v4536 = vunpack.c.l.s4 1966171168
        %v4537 = vunpack.c.0.s8 %v4536
        %v4538 = vlaneseq
        %v4539 = vshrl.u32 %v4538, 7
        %v4540 = vsub.s32 %v4537, %v4539
        %v4541 = vrot.slane %v4525, %v4540
        %v4543 = vunpack.c.l.s4 1966171168
        %v4544 = vunpack.c.0.s8 %v4543
        %v4545 = vlaneseq
        %v4546 = vshrl.u32 %v4545, 7
        %v4547 = vsub.s32 %v4544, %v4546
        %v4548 = vrot.slane %v4526, %v4547
        %v4550 = vunpack.c.l.s4 1966171168
        %v4551 = vunpack.c.0.s8 %v4550
        %v4552 = vlaneseq
        %v4553 = vshrl.u32 %v4552, 7
        %v4554 = vsub.s32 %v4551, %v4553
        %v4555 = vrot.slane %v4527, %v4554
        %v4556 = vcombine.high %v4534, %v4534
        %v4557 = vcombine.high %v4541, %v4541
        %v4558 = vcombine.high %v4548, %v4548
        %v4559 = vcombine.high %v4555, %v4555
        %v4560 = vcombine.high %v4234, %v4234
        %v4562 = vunpack.c.l.s4 1966171168
        %v4563 = vunpack.c.0.s8 %v4562
        %v4564 = vlaneseq
        %v4565 = vshrl.u32 %v4564, 7
        %v4566 = vsub.s32 %v4563, %v4565
        %v4567 = vrot.slane %v4234, %v4566
        %v4569 = vunpack.c.l.s4 1966171168
        %v4570 = vunpack.c.0.s8 %v4569
        %v4571 = vlaneseq
        %v4572 = vshrl.u32 %v4571, 7
        %v4573 = vsub.s32 %v4570, %v4572
        %v4574 = vrot.slane %v4560, %v4573
        %v4575 = vcombine.high %v4567, %v4567
        %v4576 = vcombine.high %v4574, %v4574
        %v4578 = vunpack.c.l.s4 1966171168
        %v4579 = vunpack.c.0.s8 %v4578
        %v4580 = vlaneseq
        %v4581 = vshrl.u32 %v4580, 7
        %v4582 = vsub.s32 %v4579, %v4581
        %v4583 = vrot.slane %v4567, %v4582
        %v4585 = vunpack.c.l.s4 1966171168
        %v4586 = vunpack.c.0.s8 %v4585
        %v4587 = vlaneseq
        %v4588 = vshrl.u32 %v4587, 7
        %v4589 = vsub.s32 %v4586, %v4588
        %v4590 = vrot.slane %v4574, %v4589
        %v4592 = vunpack.c.l.s4 1966171168
        %v4593 = vunpack.c.0.s8 %v4592
        %v4594 = vlaneseq
        %v4595 = vshrl.u32 %v4594, 7
        %v4596 = vsub.s32 %v4593, %v4595
        %v4597 = vrot.slane %v4575, %v4596
        %v4599 = vunpack.c.l.s4 1966171168
        %v4600 = vunpack.c.0.s8 %v4599
        %v4601 = vlaneseq
        %v4602 = vshrl.u32 %v4601, 7
        %v4603 = vsub.s32 %v4600, %v4602
        %v4604 = vrot.slane %v4576, %v4603
        %v4605 = vcombine.high %v4583, %v4583
        %v4606 = vcombine.high %v4590, %v4590
        %v4607 = vcombine.high %v4597, %v4597
        %v4608 = vcombine.high %v4604, %v4604
        %v4609 = vcombine.high %v4237, %v4237
        %v4611 = vunpack.c.l.s4 1966171168
        %v4612 = vunpack.c.0.s8 %v4611
        %v4613 = vlaneseq
        %v4614 = vshrl.u32 %v4613, 7
        %v4615 = vsub.s32 %v4612, %v4614
        %v4616 = vrot.slane %v4237, %v4615
        %v4618 = vunpack.c.l.s4 1966171168
        %v4619 = vunpack.c.0.s8 %v4618
        %v4620 = vlaneseq
        %v4621 = vshrl.u32 %v4620, 7
        %v4622 = vsub.s32 %v4619, %v4621
        %v4623 = vrot.slane %v4609, %v4622
        %v4624 = vcombine.high %v4616, %v4616
        %v4625 = vcombine.high %v4623, %v4623
        %v4627 = vunpack.c.l.s4 1966171168
        %v4628 = vunpack.c.0.s8 %v4627
        %v4629 = vlaneseq
        %v4630 = vshrl.u32 %v4629, 7
        %v4631 = vsub.s32 %v4628, %v4630
        %v4632 = vrot.slane %v4616, %v4631
        %v4634 = vunpack.c.l.s4 1966171168
        %v4635 = vunpack.c.0.s8 %v4634
        %v4636 = vlaneseq
        %v4637 = vshrl.u32 %v4636, 7
        %v4638 = vsub.s32 %v4635, %v4637
        %v4639 = vrot.slane %v4623, %v4638
        %v4641 = vunpack.c.l.s4 1966171168
        %v4642 = vunpack.c.0.s8 %v4641
        %v4643 = vlaneseq
        %v4644 = vshrl.u32 %v4643, 7
        %v4645 = vsub.s32 %v4642, %v4644
        %v4646 = vrot.slane %v4624, %v4645
        %v4648 = vunpack.c.l.s4 1966171168
        %v4649 = vunpack.c.0.s8 %v4648
        %v4650 = vlaneseq
        %v4651 = vshrl.u32 %v4650, 7
        %v4652 = vsub.s32 %v4649, %v4651
        %v4653 = vrot.slane %v4625, %v4652
        %v4654 = vcombine.high %v4632, %v4632
        %v4655 = vcombine.high %v4639, %v4639
        %v4656 = vcombine.high %v4646, %v4646
        %v4657 = vcombine.high %v4653, %v4653
        %v4658 = vcombine.high %v4242, %v4242
        %v4660 = vunpack.c.l.s4 1966171168
        %v4661 = vunpack.c.0.s8 %v4660
        %v4662 = vlaneseq
        %v4663 = vshrl.u32 %v4662, 7
        %v4664 = vsub.s32 %v4661, %v4663
        %v4665 = vrot.slane %v4242, %v4664
        %v4667 = vunpack.c.l.s4 1966171168
        %v4668 = vunpack.c.0.s8 %v4667
        %v4669 = vlaneseq
        %v4670 = vshrl.u32 %v4669, 7
        %v4671 = vsub.s32 %v4668, %v4670
        %v4672 = vrot.slane %v4658, %v4671
        %v4673 = vcombine.high %v4665, %v4665
        %v4674 = vcombine.high %v4672, %v4672
        %v4676 = vunpack.c.l.s4 1966171168
        %v4677 = vunpack.c.0.s8 %v4676
        %v4678 = vlaneseq
        %v4679 = vshrl.u32 %v4678, 7
        %v4680 = vsub.s32 %v4677, %v4679
        %v4681 = vrot.slane %v4665, %v4680
        %v4683 = vunpack.c.l.s4 1966171168
        %v4684 = vunpack.c.0.s8 %v4683
        %v4685 = vlaneseq
        %v4686 = vshrl.u32 %v4685, 7
        %v4687 = vsub.s32 %v4684, %v4686
        %v4688 = vrot.slane %v4672, %v4687
        %v4690 = vunpack.c.l.s4 1966171168
        %v4691 = vunpack.c.0.s8 %v4690
        %v4692 = vlaneseq
        %v4693 = vshrl.u32 %v4692, 7
        %v4694 = vsub.s32 %v4691, %v4693
        %v4695 = vrot.slane %v4673, %v4694
        %v4697 = vunpack.c.l.s4 1966171168
        %v4698 = vunpack.c.0.s8 %v4697
        %v4699 = vlaneseq
        %v4700 = vshrl.u32 %v4699, 7
        %v4701 = vsub.s32 %v4698, %v4700
        %v4702 = vrot.slane %v4674, %v4701
        %v4703 = vcombine.high %v4681, %v4681
        %v4704 = vcombine.high %v4688, %v4688
        %v4705 = vcombine.high %v4695, %v4695
        %v4706 = vcombine.high %v4702, %v4702
        %v4707 = vcombine.high %v4245, %v4245
        %v4709 = vunpack.c.l.s4 1966171168
        %v4710 = vunpack.c.0.s8 %v4709
        %v4711 = vlaneseq
        %v4712 = vshrl.u32 %v4711, 7
        %v4713 = vsub.s32 %v4710, %v4712
        %v4714 = vrot.slane %v4245, %v4713
        %v4716 = vunpack.c.l.s4 1966171168
        %v4717 = vunpack.c.0.s8 %v4716
        %v4718 = vlaneseq
        %v4719 = vshrl.u32 %v4718, 7
        %v4720 = vsub.s32 %v4717, %v4719
        %v4721 = vrot.slane %v4707, %v4720
        %v4722 = vcombine.high %v4714, %v4714
        %v4723 = vcombine.high %v4721, %v4721
        %v4725 = vunpack.c.l.s4 1966171168
        %v4726 = vunpack.c.0.s8 %v4725
        %v4727 = vlaneseq
        %v4728 = vshrl.u32 %v4727, 7
        %v4729 = vsub.s32 %v4726, %v4728
        %v4730 = vrot.slane %v4714, %v4729
        %v4732 = vunpack.c.l.s4 1966171168
        %v4733 = vunpack.c.0.s8 %v4732
        %v4734 = vlaneseq
        %v4735 = vshrl.u32 %v4734, 7
        %v4736 = vsub.s32 %v4733, %v4735
        %v4737 = vrot.slane %v4721, %v4736
        %v4739 = vunpack.c.l.s4 1966171168
        %v4740 = vunpack.c.0.s8 %v4739
        %v4741 = vlaneseq
        %v4742 = vshrl.u32 %v4741, 7
        %v4743 = vsub.s32 %v4740, %v4742
        %v4744 = vrot.slane %v4722, %v4743
        %v4746 = vunpack.c.l.s4 1966171168
        %v4747 = vunpack.c.0.s8 %v4746
        %v4748 = vlaneseq
        %v4749 = vshrl.u32 %v4748, 7
        %v4750 = vsub.s32 %v4747, %v4749
        %v4751 = vrot.slane %v4723, %v4750
        %v4752 = vcombine.high %v4730, %v4730
        %v4753 = vcombine.high %v4737, %v4737
        %v4754 = vcombine.high %v4744, %v4744
        %v4755 = vcombine.high %v4751, %v4751
        %v4757 = vunpack.c.l.s4 1966171168
        %v4758 = vunpack.c.0.s8 %v4757
        %v4759 = vlaneseq
        %v4760 = vshrl.u32 %v4759, 7
        %v4761 = vsub.s32 %v4758, %v4760
        %v4762 = vrot.slane %v4250, %v4761
        %v4764 = vunpack.c.l.s4 1966171168
        %v4765 = vunpack.c.0.s8 %v4764
        %v4766 = vlaneseq
        %v4767 = vshrl.u32 %v4766, 7
        %v4768 = vsub.s32 %v4765, %v4767
        %v4769 = vrot.slane %v4762, %v4768
        %vm4851 = vcmp.ne.s32.totalorder %v562, 8
        %vm4852 = vcmp.ne.s32.totalorder %v563, 8
        %vm4853 = vmand %vm2009, %vm4851
        %vm4854 = vmand %vm2009, %vm4852
        %vm4855 = vmand %vm2010, %vm4851
        %vm4856 = vmand %vm2010, %vm4852
        %vm4857 = vmand %vm2011, %vm4851
        %vm4858 = vmand %vm2011, %vm4852
        %vm4859 = vmand %vm2012, %vm4851
        %vm4860 = vmand %vm2012, %vm4852
        %vm4861 = vmand %vm2013, %vm4851
        %vm4862 = vmand %vm2013, %vm4852
        %vm4863 = vmand %vm2014, %vm4851
        %vm4864 = vmand %vm2014, %vm4852
        %vm4865 = vmand %vm2015, %vm4851
        %vm4866 = vmand %vm2015, %vm4852
        %vm4867 = vmand %vm2016, %vm4851
        %vm4868 = vmand %vm2016, %vm4852
        %vm4869 = vmand %vm2017, %vm4851
        %vm4870 = vmand %vm2017, %vm4852
        %v4871 = vadd.f32 %v4289, %v2066
        %v4872 = vadd.f32 %v4303, %v2080
        %v4873 = vadd.f32 %v4311, %v2088
        %v4874 = vadd.f32 %v4313, %v2090
        %v4875 = vadd.f32 %v4296, %v2073
        %v4876 = vadd.f32 %v4310, %v2087
        %v4877 = vadd.f32 %v4312, %v2089
        %v4878 = vadd.f32 %v4314, %v2091
        %v4879 = vadd.f32 %v4338, %v2066
        %v4880 = vadd.f32 %v4352, %v2066
        %v4881 = vadd.f32 %v4360, %v2080
        %v4882 = vadd.f32 %v4362, %v2088
        %v4883 = vadd.f32 %v4345, %v2090
        %v4884 = vadd.f32 %v4359, %v2073
        %v4885 = vadd.f32 %v4361, %v2087
        %v4886 = vadd.f32 %v4363, %v2089
        %v4887 = vadd.f32 %v4387, %v2091
        %v4888 = vadd.f32 %v4401, %v2066
        %v4889 = vadd.f32 %v4409, %v2066
        %v4890 = vadd.f32 %v4411, %v2080
        %v4891 = vadd.f32 %v4394, %v2088
        %v4892 = vadd.f32 %v4408, %v2090
        %v4893 = vadd.f32 %v4410, %v2073
        %v4894 = vadd.f32 %v4412, %v2087
        %v4895 = vadd.f32 %v4436, %v2089
        %v4896 = vadd.f32 %v4450, %v2091
        %v4897 = vadd.f32 %v4458, %v2066
        %v4898 = vadd.f32 %v4460, %v2066
        %v4899 = vadd.f32 %v4443, %v2080
        %v4900 = vadd.f32 %v4457, %v2088
        %v4901 = vadd.f32 %v4459, %v2090
        %v4902 = vadd.f32 %v4461, %v2073
        %v4903 = vadd.f32 %v4485, %v2087
        %v4904 = vadd.f32 %v4499, %v2089
        %v4905 = vadd.f32 %v4507, %v2091
        %v4906 = vadd.f32 %v4509, %v2066
        %v4907 = vadd.f32 %v4492, %v2066
        %v4908 = vadd.f32 %v4506, %v2080
        %v4909 = vadd.f32 %v4508, %v2088
        %v4910 = vadd.f32 %v4510, %v2090
        %v4911 = vadd.f32 %v4534, %v2073
        %v4912 = vadd.f32 %v4548, %v2087
        %v4913 = vadd.f32 %v4556, %v2089
        %v4914 = vadd.f32 %v4558, %v2091
        %v4915 = vadd.f32 %v4541, %v2066
        %v4916 = vadd.f32 %v4555, %v2066
        %v4917 = vadd.f32 %v4557, %v2080
        %v4918 = vadd.f32 %v4559, %v2088
        %v4919 = vadd.f32 %v4583, %v2090
        %v4920 = vadd.f32 %v4597, %v2073
        %v4921 = vadd.f32 %v4605, %v2087
        %v4922 = vadd.f32 %v4607, %v2089
        %v4923 = vadd.f32 %v4590, %v2091
        %v4924 = vadd.f32 %v4604, %v2066
        %v4925 = vadd.f32 %v4606, %v2066
        %v4926 = vadd.f32 %v4608, %v2080
        %v4927 = vadd.f32 %v4632, %v2088
        %v4928 = vadd.f32 %v4646, %v2090
        %v4929 = vadd.f32 %v4654, %v2073
        %v4930 = vadd.f32 %v4656, %v2087
        %v4931 = vadd.f32 %v4639, %v2089
        %v4932 = vadd.f32 %v4653, %v2091
        %v4933 = vadd.f32 %v4655, %v2066
        %v4934 = vadd.f32 %v4657, %v2066
        %v4935 = vadd.f32 %v4681, %v2080
        %v4936 = vadd.f32 %v4695, %v2088
        %v4937 = vadd.f32 %v4703, %v2090
        %v4938 = vadd.f32 %v4705, %v2073
        %v4939 = vadd.f32 %v4688, %v2087
        %v4940 = vadd.f32 %v4702, %v2089
        %v4941 = vadd.f32 %v4704, %v2091
        %v4942 = vadd.f32 %v4706, %v2066
        %v4943 = vadd.f32 %v4730, %v2066
        %v4944 = vadd.f32 %v4744, %v2080
        %v4945 = vadd.f32 %v4752, %v2088
        %v4946 = vadd.f32 %v4754, %v2090
        %v4947 = vadd.f32 %v4737, %v2073
        %v4948 = vadd.f32 %v4751, %v2087
        %v4949 = vadd.f32 %v4753, %v2089
        %v4950 = vadd.f32 %v4755, %v2091
        %v4951 = vadd.f32 %v4769, %v2066
        %v5033 = vcombine.low %v4871, %v4872
        %v5034 = vcombine.low %v4873, %v4874
        %v5035 = vcombine.low %v4875, %v4876
        %v5036 = vcombine.low %v4877, %v4878
        %v5038 = vunpack.c.l.s4 1966171168
        %v5039 = vunpack.c.0.s8 %v5038
        %v5040 = vlaneseq
        %v5041 = vshrl.u32 %v5040, 7
        %v5042 = vsub.s32 %v5039, %v5041
        %v5043 = vrot.slane %v5033, %v5042
        %v5045 = vunpack.c.l.s4 1966171168
        %v5046 = vunpack.c.0.s8 %v5045
        %v5047 = vlaneseq
        %v5048 = vshrl.u32 %v5047, 7
        %v5049 = vsub.s32 %v5046, %v5048
        %v5050 = vrot.slane %v5034, %v5049
        %v5052 = vunpack.c.l.s4 1966171168
        %v5053 = vunpack.c.0.s8 %v5052
        %v5054 = vlaneseq
        %v5055 = vshrl.u32 %v5054, 7
        %v5056 = vsub.s32 %v5053, %v5055
        %v5057 = vrot.slane %v5035, %v5056
        %v5059 = vunpack.c.l.s4 1966171168
        %v5060 = vunpack.c.0.s8 %v5059
        %v5061 = vlaneseq
        %v5062 = vshrl.u32 %v5061, 7
        %v5063 = vsub.s32 %v5060, %v5062
        %v5064 = vrot.slane %v5036, %v5063
        %v5065 = vcombine.low %v5043, %v5050
        %v5066 = vcombine.low %v5057, %v5064
        %v5068 = vunpack.c.l.s4 1966171168
        %v5069 = vunpack.c.0.s8 %v5068
        %v5070 = vlaneseq
        %v5071 = vshrl.u32 %v5070, 7
        %v5072 = vsub.s32 %v5069, %v5071
        %v5073 = vrot.slane %v5065, %v5072
        %v5075 = vunpack.c.l.s4 1966171168
        %v5076 = vunpack.c.0.s8 %v5075
        %v5077 = vlaneseq
        %v5078 = vshrl.u32 %v5077, 7
        %v5079 = vsub.s32 %v5076, %v5078
        %v5080 = vrot.slane %v5066, %v5079
        %v5081 = vcombine.low %v5073, %v5080
        %v5083 = vunpack.c.l.s4 1966171168
        %v5084 = vunpack.c.0.s8 %v5083
        %v5085 = vlaneseq
        %v5086 = vshrl.u32 %v5085, 7
        %v5087 = vsub.s32 %v5084, %v5086
        %v5088 = vrot.slane %v4879, %v5087
        %v5090 = vunpack.c.l.s4 1966171168
        %v5091 = vunpack.c.0.s8 %v5090
        %v5092 = vlaneseq
        %v5093 = vshrl.u32 %v5092, 7
        %v5094 = vsub.s32 %v5091, %v5093
        %v5095 = vrot.slane %v5088, %v5094
        %v5096 = vcombine.low %v4880, %v4881
        %v5097 = vcombine.low %v4882, %v4883
        %v5098 = vcombine.low %v4884, %v4885
        %v5099 = vcombine.low %v4886, %v4887
        %v5101 = vunpack.c.l.s4 1966171168
        %v5102 = vunpack.c.0.s8 %v5101
        %v5103 = vlaneseq
        %v5104 = vshrl.u32 %v5103, 7
        %v5105 = vsub.s32 %v5102, %v5104
        %v5106 = vrot.slane %v5096, %v5105
        %v5108 = vunpack.c.l.s4 1966171168
        %v5109 = vunpack.c.0.s8 %v5108
        %v5110 = vlaneseq
        %v5111 = vshrl.u32 %v5110, 7
        %v5112 = vsub.s32 %v5109, %v5111
        %v5113 = vrot.slane %v5097, %v5112
        %v5115 = vunpack.c.l.s4 1966171168
        %v5116 = vunpack.c.0.s8 %v5115
        %v5117 = vlaneseq
        %v5118 = vshrl.u32 %v5117, 7
        %v5119 = vsub.s32 %v5116, %v5118
        %v5120 = vrot.slane %v5098, %v5119
        %v5122 = vunpack.c.l.s4 1966171168
        %v5123 = vunpack.c.0.s8 %v5122
        %v5124 = vlaneseq
        %v5125 = vshrl.u32 %v5124, 7
        %v5126 = vsub.s32 %v5123, %v5125
        %v5127 = vrot.slane %v5099, %v5126
        %v5128 = vcombine.low %v5106, %v5113
        %v5129 = vcombine.low %v5120, %v5127
        %v5131 = vunpack.c.l.s4 1966171168
        %v5132 = vunpack.c.0.s8 %v5131
        %v5133 = vlaneseq
        %v5134 = vshrl.u32 %v5133, 7
        %v5135 = vsub.s32 %v5132, %v5134
        %v5136 = vrot.slane %v5128, %v5135
        %v5138 = vunpack.c.l.s4 1966171168
        %v5139 = vunpack.c.0.s8 %v5138
        %v5140 = vlaneseq
        %v5141 = vshrl.u32 %v5140, 7
        %v5142 = vsub.s32 %v5139, %v5141
        %v5143 = vrot.slane %v5129, %v5142
        %v5144 = vcombine.low %v5136, %v5143
        %v5146 = vunpack.c.l.s4 1966171168
        %v5147 = vunpack.c.0.s8 %v5146
        %v5148 = vlaneseq
        %v5149 = vshrl.u32 %v5148, 7
        %v5150 = vsub.s32 %v5147, %v5149
        %v5151 = vrot.slane %v4888, %v5150
        %v5153 = vunpack.c.l.s4 1966171168
        %v5154 = vunpack.c.0.s8 %v5153
        %v5155 = vlaneseq
        %v5156 = vshrl.u32 %v5155, 7
        %v5157 = vsub.s32 %v5154, %v5156
        %v5158 = vrot.slane %v5151, %v5157
        %v5159 = vcombine.low %v4889, %v4890
        %v5160 = vcombine.low %v4891, %v4892
        %v5161 = vcombine.low %v4893, %v4894
        %v5162 = vcombine.low %v4895, %v4896
        %v5164 = vunpack.c.l.s4 1966171168
        %v5165 = vunpack.c.0.s8 %v5164
        %v5166 = vlaneseq
        %v5167 = vshrl.u32 %v5166, 7
        %v5168 = vsub.s32 %v5165, %v5167
        %v5169 = vrot.slane %v5159, %v5168
        %v5171 = vunpack.c.l.s4 1966171168
        %v5172 = vunpack.c.0.s8 %v5171
        %v5173 = vlaneseq
        %v5174 = vshrl.u32 %v5173, 7
        %v5175 = vsub.s32 %v5172, %v5174
        %v5176 = vrot.slane %v5160, %v5175
        %v5178 = vunpack.c.l.s4 1966171168
        %v5179 = vunpack.c.0.s8 %v5178
        %v5180 = vlaneseq
        %v5181 = vshrl.u32 %v5180, 7
        %v5182 = vsub.s32 %v5179, %v5181
        %v5183 = vrot.slane %v5161, %v5182
        %v5185 = vunpack.c.l.s4 1966171168
        %v5186 = vunpack.c.0.s8 %v5185
        %v5187 = vlaneseq
        %v5188 = vshrl.u32 %v5187, 7
        %v5189 = vsub.s32 %v5186, %v5188
        %v5190 = vrot.slane %v5162, %v5189
        %v5191 = vcombine.low %v5169, %v5176
        %v5192 = vcombine.low %v5183, %v5190
        %v5194 = vunpack.c.l.s4 1966171168
        %v5195 = vunpack.c.0.s8 %v5194
        %v5196 = vlaneseq
        %v5197 = vshrl.u32 %v5196, 7
        %v5198 = vsub.s32 %v5195, %v5197
        %v5199 = vrot.slane %v5191, %v5198
        %v5201 = vunpack.c.l.s4 1966171168
        %v5202 = vunpack.c.0.s8 %v5201
        %v5203 = vlaneseq
        %v5204 = vshrl.u32 %v5203, 7
        %v5205 = vsub.s32 %v5202, %v5204
        %v5206 = vrot.slane %v5192, %v5205
        %v5207 = vcombine.low %v5199, %v5206
        %v5209 = vunpack.c.l.s4 1966171168
        %v5210 = vunpack.c.0.s8 %v5209
        %v5211 = vlaneseq
        %v5212 = vshrl.u32 %v5211, 7
        %v5213 = vsub.s32 %v5210, %v5212
        %v5214 = vrot.slane %v4897, %v5213
        %v5216 = vunpack.c.l.s4 1966171168
        %v5217 = vunpack.c.0.s8 %v5216
        %v5218 = vlaneseq
        %v5219 = vshrl.u32 %v5218, 7
        %v5220 = vsub.s32 %v5217, %v5219
        %v5221 = vrot.slane %v5214, %v5220
        %v5222 = vcombine.low %v4898, %v4899
        %v5223 = vcombine.low %v4900, %v4901
        %v5224 = vcombine.low %v4902, %v4903
        %v5225 = vcombine.low %v4904, %v4905
        %v5227 = vunpack.c.l.s4 1966171168
        %v5228 = vunpack.c.0.s8 %v5227
        %v5229 = vlaneseq
        %v5230 = vshrl.u32 %v5229, 7
        %v5231 = vsub.s32 %v5228, %v5230
        %v5232 = vrot.slane %v5222, %v5231
        %v5234 = vunpack.c.l.s4 1966171168
        %v5235 = vunpack.c.0.s8 %v5234
        %v5236 = vlaneseq
        %v5237 = vshrl.u32 %v5236, 7
        %v5238 = vsub.s32 %v5235, %v5237
        %v5239 = vrot.slane %v5223, %v5238
        %v5241 = vunpack.c.l.s4 1966171168
        %v5242 = vunpack.c.0.s8 %v5241
        %v5243 = vlaneseq
        %v5244 = vshrl.u32 %v5243, 7
        %v5245 = vsub.s32 %v5242, %v5244
        %v5246 = vrot.slane %v5224, %v5245
        %v5248 = vunpack.c.l.s4 1966171168
        %v5249 = vunpack.c.0.s8 %v5248
        %v5250 = vlaneseq
        %v5251 = vshrl.u32 %v5250, 7
        %v5252 = vsub.s32 %v5249, %v5251
        %v5253 = vrot.slane %v5225, %v5252
        %v5254 = vcombine.low %v5232, %v5239
        %v5255 = vcombine.low %v5246, %v5253
        %v5257 = vunpack.c.l.s4 1966171168
        %v5258 = vunpack.c.0.s8 %v5257
        %v5259 = vlaneseq
        %v5260 = vshrl.u32 %v5259, 7
        %v5261 = vsub.s32 %v5258, %v5260
        %v5262 = vrot.slane %v5254, %v5261
        %v5264 = vunpack.c.l.s4 1966171168
        %v5265 = vunpack.c.0.s8 %v5264
        %v5266 = vlaneseq
        %v5267 = vshrl.u32 %v5266, 7
        %v5268 = vsub.s32 %v5265, %v5267
        %v5269 = vrot.slane %v5255, %v5268
        %v5270 = vcombine.low %v5262, %v5269
        %v5272 = vunpack.c.l.s4 1966171168
        %v5273 = vunpack.c.0.s8 %v5272
        %v5274 = vlaneseq
        %v5275 = vshrl.u32 %v5274, 7
        %v5276 = vsub.s32 %v5273, %v5275
        %v5277 = vrot.slane %v4906, %v5276
        %v5279 = vunpack.c.l.s4 1966171168
        %v5280 = vunpack.c.0.s8 %v5279
        %v5281 = vlaneseq
        %v5282 = vshrl.u32 %v5281, 7
        %v5283 = vsub.s32 %v5280, %v5282
        %v5284 = vrot.slane %v5277, %v5283
        %v5285 = vcombine.low %v4907, %v4908
        %v5286 = vcombine.low %v4909, %v4910
        %v5287 = vcombine.low %v4911, %v4912
        %v5288 = vcombine.low %v4913, %v4914
        %v5290 = vunpack.c.l.s4 1966171168
        %v5291 = vunpack.c.0.s8 %v5290
        %v5292 = vlaneseq
        %v5293 = vshrl.u32 %v5292, 7
        %v5294 = vsub.s32 %v5291, %v5293
        %v5295 = vrot.slane %v5285, %v5294
        %v5297 = vunpack.c.l.s4 1966171168
        %v5298 = vunpack.c.0.s8 %v5297
        %v5299 = vlaneseq
        %v5300 = vshrl.u32 %v5299, 7
        %v5301 = vsub.s32 %v5298, %v5300
        %v5302 = vrot.slane %v5286, %v5301
        %v5304 = vunpack.c.l.s4 1966171168
        %v5305 = vunpack.c.0.s8 %v5304
        %v5306 = vlaneseq
        %v5307 = vshrl.u32 %v5306, 7
        %v5308 = vsub.s32 %v5305, %v5307
        %v5309 = vrot.slane %v5287, %v5308
        %v5311 = vunpack.c.l.s4 1966171168
        %v5312 = vunpack.c.0.s8 %v5311
        %v5313 = vlaneseq
        %v5314 = vshrl.u32 %v5313, 7
        %v5315 = vsub.s32 %v5312, %v5314
        %v5316 = vrot.slane %v5288, %v5315
        %v5317 = vcombine.low %v5295, %v5302
        %v5318 = vcombine.low %v5309, %v5316
        %v5320 = vunpack.c.l.s4 1966171168
        %v5321 = vunpack.c.0.s8 %v5320
        %v5322 = vlaneseq
        %v5323 = vshrl.u32 %v5322, 7
        %v5324 = vsub.s32 %v5321, %v5323
        %v5325 = vrot.slane %v5317, %v5324
        %v5327 = vunpack.c.l.s4 1966171168
        %v5328 = vunpack.c.0.s8 %v5327
        %v5329 = vlaneseq
        %v5330 = vshrl.u32 %v5329, 7
        %v5331 = vsub.s32 %v5328, %v5330
        %v5332 = vrot.slane %v5318, %v5331
        %v5333 = vcombine.low %v5325, %v5332
        %v5335 = vunpack.c.l.s4 1966171168
        %v5336 = vunpack.c.0.s8 %v5335
        %v5337 = vlaneseq
        %v5338 = vshrl.u32 %v5337, 7
        %v5339 = vsub.s32 %v5336, %v5338
        %v5340 = vrot.slane %v4915, %v5339
        %v5342 = vunpack.c.l.s4 1966171168
        %v5343 = vunpack.c.0.s8 %v5342
        %v5344 = vlaneseq
        %v5345 = vshrl.u32 %v5344, 7
        %v5346 = vsub.s32 %v5343, %v5345
        %v5347 = vrot.slane %v5340, %v5346
        %v5348 = vcombine.low %v4916, %v4917
        %v5349 = vcombine.low %v4918, %v4919
        %v5350 = vcombine.low %v4920, %v4921
        %v5351 = vcombine.low %v4922, %v4923
        %v5353 = vunpack.c.l.s4 1966171168
        %v5354 = vunpack.c.0.s8 %v5353
        %v5355 = vlaneseq
        %v5356 = vshrl.u32 %v5355, 7
        %v5357 = vsub.s32 %v5354, %v5356
        %v5358 = vrot.slane %v5348, %v5357
        %v5360 = vunpack.c.l.s4 1966171168
        %v5361 = vunpack.c.0.s8 %v5360
        %v5362 = vlaneseq
        %v5363 = vshrl.u32 %v5362, 7
        %v5364 = vsub.s32 %v5361, %v5363
        %v5365 = vrot.slane %v5349, %v5364
        %v5367 = vunpack.c.l.s4 1966171168
        %v5368 = vunpack.c.0.s8 %v5367
        %v5369 = vlaneseq
        %v5370 = vshrl.u32 %v5369, 7
        %v5371 = vsub.s32 %v5368, %v5370
        %v5372 = vrot.slane %v5350, %v5371
        %v5374 = vunpack.c.l.s4 1966171168
        %v5375 = vunpack.c.0.s8 %v5374
        %v5376 = vlaneseq
        %v5377 = vshrl.u32 %v5376, 7
        %v5378 = vsub.s32 %v5375, %v5377
        %v5379 = vrot.slane %v5351, %v5378
        %v5380 = vcombine.low %v5358, %v5365
        %v5381 = vcombine.low %v5372, %v5379
        %v5383 = vunpack.c.l.s4 1966171168
        %v5384 = vunpack.c.0.s8 %v5383
        %v5385 = vlaneseq
        %v5386 = vshrl.u32 %v5385, 7
        %v5387 = vsub.s32 %v5384, %v5386
        %v5388 = vrot.slane %v5380, %v5387
        %v5390 = vunpack.c.l.s4 1966171168
        %v5391 = vunpack.c.0.s8 %v5390
        %v5392 = vlaneseq
        %v5393 = vshrl.u32 %v5392, 7
        %v5394 = vsub.s32 %v5391, %v5393
        %v5395 = vrot.slane %v5381, %v5394
        %v5396 = vcombine.low %v5388, %v5395
        %v5398 = vunpack.c.l.s4 1966171168
        %v5399 = vunpack.c.0.s8 %v5398
        %v5400 = vlaneseq
        %v5401 = vshrl.u32 %v5400, 7
        %v5402 = vsub.s32 %v5399, %v5401
        %v5403 = vrot.slane %v4924, %v5402
        %v5405 = vunpack.c.l.s4 1966171168
        %v5406 = vunpack.c.0.s8 %v5405
        %v5407 = vlaneseq
        %v5408 = vshrl.u32 %v5407, 7
        %v5409 = vsub.s32 %v5406, %v5408
        %v5410 = vrot.slane %v5403, %v5409
        %v5411 = vcombine.low %v4925, %v4926
        %v5412 = vcombine.low %v4927, %v4928
        %v5413 = vcombine.low %v4929, %v4930
        %v5414 = vcombine.low %v4931, %v4932
        %v5416 = vunpack.c.l.s4 1966171168
        %v5417 = vunpack.c.0.s8 %v5416
        %v5418 = vlaneseq
        %v5419 = vshrl.u32 %v5418, 7
        %v5420 = vsub.s32 %v5417, %v5419
        %v5421 = vrot.slane %v5411, %v5420
        %v5423 = vunpack.c.l.s4 1966171168
        %v5424 = vunpack.c.0.s8 %v5423
        %v5425 = vlaneseq
        %v5426 = vshrl.u32 %v5425, 7
        %v5427 = vsub.s32 %v5424, %v5426
        %v5428 = vrot.slane %v5412, %v5427
        %v5430 = vunpack.c.l.s4 1966171168
        %v5431 = vunpack.c.0.s8 %v5430
        %v5432 = vlaneseq
        %v5433 = vshrl.u32 %v5432, 7
        %v5434 = vsub.s32 %v5431, %v5433
        %v5435 = vrot.slane %v5413, %v5434
        %v5437 = vunpack.c.l.s4 1966171168
        %v5438 = vunpack.c.0.s8 %v5437
        %v5439 = vlaneseq
        %v5440 = vshrl.u32 %v5439, 7
        %v5441 = vsub.s32 %v5438, %v5440
        %v5442 = vrot.slane %v5414, %v5441
        %v5443 = vcombine.low %v5421, %v5428
        %v5444 = vcombine.low %v5435, %v5442
        %v5446 = vunpack.c.l.s4 1966171168
        %v5447 = vunpack.c.0.s8 %v5446
        %v5448 = vlaneseq
        %v5449 = vshrl.u32 %v5448, 7
        %v5450 = vsub.s32 %v5447, %v5449
        %v5451 = vrot.slane %v5443, %v5450
        %v5453 = vunpack.c.l.s4 1966171168
        %v5454 = vunpack.c.0.s8 %v5453
        %v5455 = vlaneseq
        %v5456 = vshrl.u32 %v5455, 7
        %v5457 = vsub.s32 %v5454, %v5456
        %v5458 = vrot.slane %v5444, %v5457
        %v5459 = vcombine.low %v5451, %v5458
        %v5461 = vunpack.c.l.s4 1966171168
        %v5462 = vunpack.c.0.s8 %v5461
        %v5463 = vlaneseq
        %v5464 = vshrl.u32 %v5463, 7
        %v5465 = vsub.s32 %v5462, %v5464
        %v5466 = vrot.slane %v4933, %v5465
        %v5468 = vunpack.c.l.s4 1966171168
        %v5469 = vunpack.c.0.s8 %v5468
        %v5470 = vlaneseq
        %v5471 = vshrl.u32 %v5470, 7
        %v5472 = vsub.s32 %v5469, %v5471
        %v5473 = vrot.slane %v5466, %v5472
        %v5474 = vcombine.low %v4934, %v4935
        %v5475 = vcombine.low %v4936, %v4937
        %v5476 = vcombine.low %v4938, %v4939
        %v5477 = vcombine.low %v4940, %v4941
        %v5479 = vunpack.c.l.s4 1966171168
        %v5480 = vunpack.c.0.s8 %v5479
        %v5481 = vlaneseq
        %v5482 = vshrl.u32 %v5481, 7
        %v5483 = vsub.s32 %v5480, %v5482
        %v5484 = vrot.slane %v5474, %v5483
        %v5486 = vunpack.c.l.s4 1966171168
        %v5487 = vunpack.c.0.s8 %v5486
        %v5488 = vlaneseq
        %v5489 = vshrl.u32 %v5488, 7
        %v5490 = vsub.s32 %v5487, %v5489
        %v5491 = vrot.slane %v5475, %v5490
        %v5493 = vunpack.c.l.s4 1966171168
        %v5494 = vunpack.c.0.s8 %v5493
        %v5495 = vlaneseq
        %v5496 = vshrl.u32 %v5495, 7
        %v5497 = vsub.s32 %v5494, %v5496
        %v5498 = vrot.slane %v5476, %v5497
        %v5500 = vunpack.c.l.s4 1966171168
        %v5501 = vunpack.c.0.s8 %v5500
        %v5502 = vlaneseq
        %v5503 = vshrl.u32 %v5502, 7
        %v5504 = vsub.s32 %v5501, %v5503
        %v5505 = vrot.slane %v5477, %v5504
        %v5506 = vcombine.low %v5484, %v5491
        %v5507 = vcombine.low %v5498, %v5505
        %v5509 = vunpack.c.l.s4 1966171168
        %v5510 = vunpack.c.0.s8 %v5509
        %v5511 = vlaneseq
        %v5512 = vshrl.u32 %v5511, 7
        %v5513 = vsub.s32 %v5510, %v5512
        %v5514 = vrot.slane %v5506, %v5513
        %v5516 = vunpack.c.l.s4 1966171168
        %v5517 = vunpack.c.0.s8 %v5516
        %v5518 = vlaneseq
        %v5519 = vshrl.u32 %v5518, 7
        %v5520 = vsub.s32 %v5517, %v5519
        %v5521 = vrot.slane %v5507, %v5520
        %v5522 = vcombine.low %v5514, %v5521
        %v5524 = vunpack.c.l.s4 1966171168
        %v5525 = vunpack.c.0.s8 %v5524
        %v5526 = vlaneseq
        %v5527 = vshrl.u32 %v5526, 7
        %v5528 = vsub.s32 %v5525, %v5527
        %v5529 = vrot.slane %v4942, %v5528
        %v5531 = vunpack.c.l.s4 1966171168
        %v5532 = vunpack.c.0.s8 %v5531
        %v5533 = vlaneseq
        %v5534 = vshrl.u32 %v5533, 7
        %v5535 = vsub.s32 %v5532, %v5534
        %v5536 = vrot.slane %v5529, %v5535
        %v5537 = vcombine.low %v4943, %v4944
        %v5538 = vcombine.low %v4945, %v4946
        %v5539 = vcombine.low %v4947, %v4948
        %v5540 = vcombine.low %v4949, %v4950
        %v5542 = vunpack.c.l.s4 1966171168
        %v5543 = vunpack.c.0.s8 %v5542
        %v5544 = vlaneseq
        %v5545 = vshrl.u32 %v5544, 7
        %v5546 = vsub.s32 %v5543, %v5545
        %v5547 = vrot.slane %v5537, %v5546
        %v5549 = vunpack.c.l.s4 1966171168
        %v5550 = vunpack.c.0.s8 %v5549
        %v5551 = vlaneseq
        %v5552 = vshrl.u32 %v5551, 7
        %v5553 = vsub.s32 %v5550, %v5552
        %v5554 = vrot.slane %v5538, %v5553
        %v5556 = vunpack.c.l.s4 1966171168
        %v5557 = vunpack.c.0.s8 %v5556
        %v5558 = vlaneseq
        %v5559 = vshrl.u32 %v5558, 7
        %v5560 = vsub.s32 %v5557, %v5559
        %v5561 = vrot.slane %v5539, %v5560
        %v5563 = vunpack.c.l.s4 1966171168
        %v5564 = vunpack.c.0.s8 %v5563
        %v5565 = vlaneseq
        %v5566 = vshrl.u32 %v5565, 7
        %v5567 = vsub.s32 %v5564, %v5566
        %v5568 = vrot.slane %v5540, %v5567
        %v5569 = vcombine.low %v5547, %v5554
        %v5570 = vcombine.low %v5561, %v5568
        %v5572 = vunpack.c.l.s4 1966171168
        %v5573 = vunpack.c.0.s8 %v5572
        %v5574 = vlaneseq
        %v5575 = vshrl.u32 %v5574, 7
        %v5576 = vsub.s32 %v5573, %v5575
        %v5577 = vrot.slane %v5569, %v5576
        %v5579 = vunpack.c.l.s4 1966171168
        %v5580 = vunpack.c.0.s8 %v5579
        %v5581 = vlaneseq
        %v5582 = vshrl.u32 %v5581, 7
        %v5583 = vsub.s32 %v5580, %v5582
        %v5584 = vrot.slane %v5570, %v5583
        %v5585 = vcombine.low %v5577, %v5584
        %v5587 = vunpack.c.l.s4 1966171168
        %v5588 = vunpack.c.0.s8 %v5587
        %v5589 = vlaneseq
        %v5590 = vshrl.u32 %v5589, 7
        %v5591 = vsub.s32 %v5588, %v5590
        %v5592 = vrot.slane %v4951, %v5591
        %v5594 = vunpack.c.l.s4 1966171168
        %v5595 = vunpack.c.0.s8 %v5594
        %v5596 = vlaneseq
        %v5597 = vshrl.u32 %v5596, 7
        %v5598 = vsub.s32 %v5595, %v5597
        %v5599 = vrot.slane %v5592, %v5598
        %v5618 = vsel %vm4853, %v5081, 0.0
        %v5619 = vsel %vm4854, %v5095, 0.0
        %v5620 = vsel %vm4855, %v5144, 0.0
        %v5621 = vsel %vm4856, %v5158, 0.0
        %v5622 = vsel %vm4857, %v5207, 0.0
        %v5623 = vsel %vm4858, %v5221, 0.0
        %v5624 = vsel %vm4859, %v5270, 0.0
        %v5625 = vsel %vm4860, %v5284, 0.0
        %v5626 = vsel %vm4861, %v5333, 0.0
        %v5627 = vsel %vm4862, %v5347, 0.0
        %v5628 = vsel %vm4863, %v5396, 0.0
        %v5629 = vsel %vm4864, %v5410, 0.0
        %v5630 = vsel %vm4865, %v5459, 0.0
        %v5631 = vsel %vm4866, %v5473, 0.0
        %v5632 = vsel %vm4867, %v5522, 0.0
        %v5633 = vsel %vm4868, %v5536, 0.0
        %v5634 = vsel %vm4869, %v5585, 0.0
        %v5635 = vsel %vm4870, %v5599, 0.0
        %v5636 = vpack.c.bf16 %v5619, %v5618
        %v5637 = vpack.c.bf16 %v5621, %v5620
        %v5638 = vpack.c.bf16 %v5623, %v5622
        %v5639 = vpack.c.bf16 %v5625, %v5624
        %v5640 = vpack.c.bf16 %v5627, %v5626
        %v5641 = vpack.c.bf16 %v5629, %v5628
        %v5642 = vpack.c.bf16 %v5631, %v5630
        %v5643 = vpack.c.bf16 %v5633, %v5632
        %v5644 = vpack.c.bf16 %v5635, %v5634
        %s5645 = scalar_lea.vmem %s6, 4
        %v5646 = vld [vmem:[%s5645] sm:$0xf]
        %v5655 = vunpack.c.l.b16 %v5636
        %v5656 = vunpack.c.l.b16 %v5637
        %v5657 = vunpack.c.l.b16 %v5638
        %v5658 = vunpack.c.l.b16 %v5639
        %v5659 = vunpack.c.l.b16 %v5640
        %v5660 = vunpack.c.l.b16 %v5641
        %v5661 = vunpack.c.l.b16 %v5642
        %v5662 = vunpack.c.l.b16 %v5643
        %v5663 = vpack.c.b16 %v5656, %v5655
        %v5664 = vpack.c.b16 %v5658, %v5657
        %v5665 = vpack.c.b16 %v5660, %v5659
        %v5666 = vpack.c.b16 %v5662, %v5661
        %v5668 = vsel %vm1307, %v5663, 0
        %v5671 = vsel %vm1307, %v5664, 0
        %v5674 = vsel %vm1307, %v5665, 0
        %v5677 = vsel %vm1307, %v5666, 0
        %v5680 = vsel %vm1326, %v5646, 0
        %5682 = vmatprep.subr.bf16.mxu0 0
        %5683 = vmatpush1.bf16.msra.mxu0 %v5680
        %5684 = vmatprep.subr.bf16.mxu0 0
        %5685 = vmatpush1.bf16.msra.mxu0 0
        %5686 = vmatprep.subr.bf16.mxu0 0
        %5687 = vmatpush1.bf16.msra.mxu0 0
        %5688 = vmatprep.subr.bf16.mxu0 0
        %5689 = vmatpush1.bf16.msra.mxu0 0
        %5690 = vmatprep.subr.bf16.mxu0 0
        %5691 = vmatpush1.bf16.msra.mxu0 0
        %5692 = vmatprep.subr.bf16.mxu0 0
        %5693 = vmatpush1.bf16.msra.mxu0 0
        %5694 = vmatprep.subr.bf16.mxu0 0
        %5695 = vmatpush1.bf16.msra.mxu0 0
        %5696 = vmatprep.subr.bf16.mxu0 0
        %5697 = vmatpush1.bf16.msra.mxu0 0
        %5698 = vmatprep.subr.bf16.mxu0 0
        %5699 = vmatpush1.bf16.msra.mxu0 0
        %5700 = vmatprep.subr.bf16.mxu0 0
        %5701 = vmatpush1.bf16.msra.mxu0 0
        %5702 = vmatprep.subr.bf16.mxu0 0
        %5703 = vmatpush1.bf16.msra.mxu0 0
        %5704 = vmatprep.subr.bf16.mxu0 0
        %5705 = vmatpush1.bf16.msra.mxu0 0
        %5706 = vmatprep.subr.bf16.mxu0 0
        %5707 = vmatpush1.bf16.msra.mxu0 0
        %5708 = vmatprep.subr.bf16.mxu0 0
        %5709 = vmatpush1.bf16.msra.mxu0 0
        %5710 = vmatprep.subr.bf16.mxu0 0
        %5711 = vmatpush1.bf16.msra.mxu0 0
        %5712 = vmatprep.subr.bf16.mxu0 0
        %5713 = vmatpush1.bf16.msra.mxu0 0
        %5714 = vmatprep.mubr.bf16.mxu0 0
        %5715 = vmatmul.mubr.bf16.gmra.mrb[0].mxu0 %v5668
        %v5716 = vpop.f32.mrb[0].mxu0
        %v5717 = vadd.f32 0.0, %v5716
        %v5718 = vpop.f32.mrb[0].mxu0
        %v5719 = vpop.f32.mrb[0].mxu0
        %v5720 = vadd.f32 0.0, %v5719
        %v5721 = vpop.f32.mrb[0].mxu0
        %5722 = vmatprep.mubr.bf16.mxu0 0
        %5723 = vmatmul.mubr.bf16.gmra.mrb[0].mxu0 %v5671
        %v5724 = vpop.f32.mrb[0].mxu0
        %v5725 = vadd.f32 0.0, %v5724
        %v5726 = vpop.f32.mrb[0].mxu0
        %v5727 = vpop.f32.mrb[0].mxu0
        %v5728 = vadd.f32 0.0, %v5727
        %v5729 = vpop.f32.mrb[0].mxu0
        %5730 = vmatprep.mubr.bf16.mxu0 0
        %5731 = vmatmul.mubr.bf16.gmra.mrb[0].mxu0 %v5674
        %v5732 = vpop.f32.mrb[0].mxu0
        %v5733 = vadd.f32 0.0, %v5732
        %v5734 = vpop.f32.mrb[0].mxu0
        %v5735 = vpop.f32.mrb[0].mxu0
        %v5736 = vadd.f32 0.0, %v5735
        %v5737 = vpop.f32.mrb[0].mxu0
        %5738 = vmatprep.mubr.bf16.mxu0 0
        %5739 = vmatmul.mubr.bf16.gmra.mrb[0].mxu0 %v5677
        %v5740 = vpop.f32.mrb[0].mxu0
        %v5741 = vadd.f32 0.0, %v5740
        %v5742 = vpop.f32.mrb[0].mxu0
        %v5743 = vpop.f32.mrb[0].mxu0
        %v5744 = vadd.f32 0.0, %v5743
        %v5745 = vpop.f32.mrb[0].mxu0
        %5746 = vdwg.mxu0
        %v5747 = vadd.f32 %v3408, %v5717
        %v5748 = vadd.f32 %v3409, %v5720
        %v5749 = vadd.f32 %v3410, %v5725
        %v5750 = vadd.f32 %v3411, %v5728
        %v5751 = vadd.f32 %v3412, %v5733
        %v5752 = vadd.f32 %v3413, %v5736
        %v5753 = vadd.f32 %v3414, %v5741
        %v5754 = vadd.f32 %v3415, %v5744
        %v5755 = vunpack.c.h.b16 %v5636
        %v5756 = vunpack.c.h.b16 %v5637
        %v5757 = vunpack.c.h.b16 %v5638
        %v5758 = vunpack.c.h.b16 %v5639
        %v5759 = vunpack.c.h.b16 %v5640
        %v5760 = vunpack.c.h.b16 %v5641
        %v5761 = vunpack.c.h.b16 %v5642
        %v5762 = vunpack.c.h.b16 %v5643
        %v5763 = vpack.c.b16 %v5655, %v5655
        %v5764 = vpack.c.b16 %v5755, %v5755
        %v5765 = vpack.c.b16 %v5656, %v5656
        %v5766 = vpack.c.b16 %v5756, %v5756
        %v5767 = vpack.c.b16 %v5657, %v5657
        %v5768 = vpack.c.b16 %v5757, %v5757
        %v5769 = vpack.c.b16 %v5658, %v5658
        %v5770 = vpack.c.b16 %v5758, %v5758
        %v5771 = vpack.c.b16 %v5659, %v5659
        %v5772 = vpack.c.b16 %v5759, %v5759
        %v5773 = vpack.c.b16 %v5660, %v5660
        %v5774 = vpack.c.b16 %v5760, %v5760
        %v5775 = vpack.c.b16 %v5661, %v5661
        %v5776 = vpack.c.b16 %v5761, %v5761
        %v5777 = vpack.c.b16 %v5662, %v5662
        %v5778 = vpack.c.b16 %v5762, %v5762
        %v5780 = vshrl.u32 %v5763, 16
        %v5782 = vrot.slane %v5780, 4
        %v5783 = vshll.u32 %v5763, 16
        %v5785 = vrot.slane %v5783, 5
        %v5786 = vor.u32 %v5782, %v5785
        %v5787 = vrot.slane %v5786, 4
        %v5789 = vshll.u32 %v5764, 16
        %v5791 = vrot.slane %v5789, 5
        %v5792 = vsel %vm2917, %v5787, %v5791
        %v5794 = vshrl.u32 %v5765, 16
        %v5796 = vrot.slane %v5794, 4
        %v5797 = vshll.u32 %v5765, 16
        %v5799 = vrot.slane %v5797, 5
        %v5800 = vor.u32 %v5796, %v5799
        %v5801 = vrot.slane %v5800, 4
        %v5803 = vshll.u32 %v5766, 16
        %v5805 = vrot.slane %v5803, 5
        %v5806 = vsel %vm2917, %v5801, %v5805
        %v5808 = vshrl.u32 %v5767, 16
        %v5810 = vrot.slane %v5808, 4
        %v5811 = vshll.u32 %v5767, 16
        %v5813 = vrot.slane %v5811, 5
        %v5814 = vor.u32 %v5810, %v5813
        %v5815 = vrot.slane %v5814, 4
        %v5817 = vshll.u32 %v5768, 16
        %v5819 = vrot.slane %v5817, 5
        %v5820 = vsel %vm2917, %v5815, %v5819
        %v5822 = vshrl.u32 %v5769, 16
        %v5824 = vrot.slane %v5822, 4
        %v5825 = vshll.u32 %v5769, 16
        %v5827 = vrot.slane %v5825, 5
        %v5828 = vor.u32 %v5824, %v5827
        %v5829 = vrot.slane %v5828, 4
        %v5831 = vshll.u32 %v5770, 16
        %v5833 = vrot.slane %v5831, 5
        %v5834 = vsel %vm2917, %v5829, %v5833
        %v5836 = vshrl.u32 %v5771, 16
        %v5838 = vrot.slane %v5836, 4
        %v5839 = vshll.u32 %v5771, 16
        %v5841 = vrot.slane %v5839, 5
        %v5842 = vor.u32 %v5838, %v5841
        %v5843 = vrot.slane %v5842, 4
        %v5845 = vshll.u32 %v5772, 16
        %v5847 = vrot.slane %v5845, 5
        %v5848 = vsel %vm2917, %v5843, %v5847
        %v5850 = vshrl.u32 %v5773, 16
        %v5852 = vrot.slane %v5850, 4
        %v5853 = vshll.u32 %v5773, 16
        %v5855 = vrot.slane %v5853, 5
        %v5856 = vor.u32 %v5852, %v5855
        %v5857 = vrot.slane %v5856, 4
        %v5859 = vshll.u32 %v5774, 16
        %v5861 = vrot.slane %v5859, 5
        %v5862 = vsel %vm2917, %v5857, %v5861
        %v5864 = vshrl.u32 %v5775, 16
        %v5866 = vrot.slane %v5864, 4
        %v5867 = vshll.u32 %v5775, 16
        %v5869 = vrot.slane %v5867, 5
        %v5870 = vor.u32 %v5866, %v5869
        %v5871 = vrot.slane %v5870, 4
        %v5873 = vshll.u32 %v5776, 16
        %v5875 = vrot.slane %v5873, 5
        %v5876 = vsel %vm2917, %v5871, %v5875
        %v5878 = vshrl.u32 %v5777, 16
        %v5880 = vrot.slane %v5878, 4
        %v5881 = vshll.u32 %v5777, 16
        %v5883 = vrot.slane %v5881, 5
        %v5884 = vor.u32 %v5880, %v5883
        %v5885 = vrot.slane %v5884, 4
        %v5887 = vshll.u32 %v5778, 16
        %v5889 = vrot.slane %v5887, 5
        %v5890 = vsel %vm2917, %v5885, %v5889
        %s5891 = scalar_lea.vmem %s6, 12
        %v5892 = vld [vmem:[%s5891] sm:$0xf]
        %v5893 = vunpack.c.l.b16 %v5792
        %v5894 = vunpack.c.l.b16 %v5806
        %v5895 = vunpack.c.l.b16 %v5820
        %v5896 = vunpack.c.l.b16 %v5834
        %v5897 = vunpack.c.l.b16 %v5848
        %v5898 = vunpack.c.l.b16 %v5862
        %v5899 = vunpack.c.l.b16 %v5876
        %v5900 = vunpack.c.l.b16 %v5890
        %v5901 = vpack.c.b16 %v5894, %v5893
        %v5902 = vpack.c.b16 %v5896, %v5895
        %v5903 = vpack.c.b16 %v5898, %v5897
        %v5904 = vpack.c.b16 %v5900, %v5899
        %v5906 = vsel %vm1307, %v5901, 0
        %v5909 = vsel %vm1307, %v5902, 0
        %v5912 = vsel %vm1307, %v5903, 0
        %v5915 = vsel %vm1307, %v5904, 0
        %v5918 = vsel %vm1326, %v5892, 0
        %5920 = vmatprep.subr.bf16.mxu0 0
        %5921 = vmatpush1.bf16.msra.mxu0 %v5918
        %5922 = vmatprep.subr.bf16.mxu0 0
        %5923 = vmatpush1.bf16.msra.mxu0 0
        %5924 = vmatprep.subr.bf16.mxu0 0
        %5925 = vmatpush1.bf16.msra.mxu0 0
        %5926 = vmatprep.subr.bf16.mxu0 0
        %5927 = vmatpush1.bf16.msra.mxu0 0
        %5928 = vmatprep.subr.bf16.mxu0 0
        %5929 = vmatpush1.bf16.msra.mxu0 0
        %5930 = vmatprep.subr.bf16.mxu0 0
        %5931 = vmatpush1.bf16.msra.mxu0 0
        %5932 = vmatprep.subr.bf16.mxu0 0
        %5933 = vmatpush1.bf16.msra.mxu0 0
        %5934 = vmatprep.subr.bf16.mxu0 0
        %5935 = vmatpush1.bf16.msra.mxu0 0
        %5936 = vmatprep.subr.bf16.mxu0 0
        %5937 = vmatpush1.bf16.msra.mxu0 0
        %5938 = vmatprep.subr.bf16.mxu0 0
        %5939 = vmatpush1.bf16.msra.mxu0 0
        %5940 = vmatprep.subr.bf16.mxu0 0
        %5941 = vmatpush1.bf16.msra.mxu0 0
        %5942 = vmatprep.subr.bf16.mxu0 0
        %5943 = vmatpush1.bf16.msra.mxu0 0
        %5944 = vmatprep.subr.bf16.mxu0 0
        %5945 = vmatpush1.bf16.msra.mxu0 0
        %5946 = vmatprep.subr.bf16.mxu0 0
        %5947 = vmatpush1.bf16.msra.mxu0 0
        %5948 = vmatprep.subr.bf16.mxu0 0
        %5949 = vmatpush1.bf16.msra.mxu0 0
        %5950 = vmatprep.subr.bf16.mxu0 0
        %5951 = vmatpush1.bf16.msra.mxu0 0
        %5952 = vmatprep.mubr.bf16.mxu0 0
        %5953 = vmatmul.mubr.bf16.gmra.mrb[0].mxu0 %v5906
        %v5954 = vpop.f32.mrb[0].mxu0
        %v5955 = vadd.f32 0.0, %v5954
        %v5956 = vpop.f32.mrb[0].mxu0
        %v5957 = vpop.f32.mrb[0].mxu0
        %v5958 = vadd.f32 0.0, %v5957
        %v5959 = vpop.f32.mrb[0].mxu0
        %5960 = vmatprep.mubr.bf16.mxu0 0
        %5961 = vmatmul.mubr.bf16.gmra.mrb[0].mxu0 %v5909
        %v5962 = vpop.f32.mrb[0].mxu0
        %v5963 = vadd.f32 0.0, %v5962
        %v5964 = vpop.f32.mrb[0].mxu0
        %v5965 = vpop.f32.mrb[0].mxu0
        %v5966 = vadd.f32 0.0, %v5965
        %v5967 = vpop.f32.mrb[0].mxu0
        %5968 = vmatprep.mubr.bf16.mxu0 0
        %5969 = vmatmul.mubr.bf16.gmra.mrb[0].mxu0 %v5912
        %v5970 = vpop.f32.mrb[0].mxu0
        %v5971 = vadd.f32 0.0, %v5970
        %v5972 = vpop.f32.mrb[0].mxu0
        %v5973 = vpop.f32.mrb[0].mxu0
        %v5974 = vadd.f32 0.0, %v5973
        %v5975 = vpop.f32.mrb[0].mxu0
        %5976 = vmatprep.mubr.bf16.mxu0 0
        %5977 = vmatmul.mubr.bf16.gmra.mrb[0].mxu0 %v5915
        %v5978 = vpop.f32.mrb[0].mxu0
        %v5979 = vadd.f32 0.0, %v5978
        %v5980 = vpop.f32.mrb[0].mxu0
        %v5981 = vpop.f32.mrb[0].mxu0
        %v5982 = vadd.f32 0.0, %v5981
        %v5983 = vpop.f32.mrb[0].mxu0
        %5984 = vdwg.mxu0
        %v5985 = vadd.f32 %v5747, %v5955
        %v5986 = vadd.f32 %v5748, %v5958
        %v5987 = vadd.f32 %v5749, %v5963
        %v5988 = vadd.f32 %v5750, %v5966
        %v5989 = vadd.f32 %v5751, %v5971
        %v5990 = vadd.f32 %v5752, %v5974
        %v5991 = vadd.f32 %v5753, %v5979
        %v5992 = vadd.f32 %v5754, %v5982
        %s5993 = scalar_lea.vmem %s6, 36
        %v5994 = vld [vmem:[%s5993] sm:$0xf]
        %v5996 = vunpack.c.l.b16 %v5644
        %v5997 = vpack.c.b16 %v5657, %v5656
        %v5998 = vpack.c.b16 %v5659, %v5658
        %v5999 = vpack.c.b16 %v5661, %v5660
        %v6000 = vpack.c.b16 %v5996, %v5662
        %v6002 = vsel %vm1307, %v5997, 0
        %v6005 = vsel %vm1307, %v5998, 0
        %v6008 = vsel %vm1307, %v5999, 0
        %v6011 = vsel %vm1307, %v6000, 0
        %v6014 = vsel %vm1326, %v5994, 0
        %6016 = vmatprep.subr.bf16.mxu0 0
        %6017 = vmatpush1.bf16.msra.mxu0 %v6014
        %6018 = vmatprep.subr.bf16.mxu0 0
        %6019 = vmatpush1.bf16.msra.mxu0 0
        %6020 = vmatprep.subr.bf16.mxu0 0
        %6021 = vmatpush1.bf16.msra.mxu0 0
        %6022 = vmatprep.subr.bf16.mxu0 0
        %6023 = vmatpush1.bf16.msra.mxu0 0
        %6024 = vmatprep.subr.bf16.mxu0 0
        %6025 = vmatpush1.bf16.msra.mxu0 0
        %6026 = vmatprep.subr.bf16.mxu0 0
        %6027 = vmatpush1.bf16.msra.mxu0 0
        %6028 = vmatprep.subr.bf16.mxu0 0
        %6029 = vmatpush1.bf16.msra.mxu0 0
        %6030 = vmatprep.subr.bf16.mxu0 0
        %6031 = vmatpush1.bf16.msra.mxu0 0
        %6032 = vmatprep.subr.bf16.mxu0 0
        %6033 = vmatpush1.bf16.msra.mxu0 0
        %6034 = vmatprep.subr.bf16.mxu0 0
        %6035 = vmatpush1.bf16.msra.mxu0 0
        %6036 = vmatprep.subr.bf16.mxu0 0
        %6037 = vmatpush1.bf16.msra.mxu0 0
        %6038 = vmatprep.subr.bf16.mxu0 0
        %6039 = vmatpush1.bf16.msra.mxu0 0
        %6040 = vmatprep.subr.bf16.mxu0 0
        %6041 = vmatpush1.bf16.msra.mxu0 0
        %6042 = vmatprep.subr.bf16.mxu0 0
        %6043 = vmatpush1.bf16.msra.mxu0 0
        %6044 = vmatprep.subr.bf16.mxu0 0
        %6045 = vmatpush1.bf16.msra.mxu0 0
        %6046 = vmatprep.subr.bf16.mxu0 0
        %6047 = vmatpush1.bf16.msra.mxu0 0
        %6048 = vmatprep.mubr.bf16.mxu0 0
        %6049 = vmatmul.mubr.bf16.gmra.mrb[0].mxu0 %v6002
        %v6050 = vpop.f32.mrb[0].mxu0
        %v6051 = vadd.f32 0.0, %v6050
        %v6052 = vpop.f32.mrb[0].mxu0
        %v6053 = vpop.f32.mrb[0].mxu0
        %v6054 = vadd.f32 0.0, %v6053
        %v6055 = vpop.f32.mrb[0].mxu0
        %6056 = vmatprep.mubr.bf16.mxu0 0
        %6057 = vmatmul.mubr.bf16.gmra.mrb[0].mxu0 %v6005
        %v6058 = vpop.f32.mrb[0].mxu0
        %v6059 = vadd.f32 0.0, %v6058
        %v6060 = vpop.f32.mrb[0].mxu0
        %v6061 = vpop.f32.mrb[0].mxu0
        %v6062 = vadd.f32 0.0, %v6061
        %v6063 = vpop.f32.mrb[0].mxu0
        %6064 = vmatprep.mubr.bf16.mxu0 0
        %6065 = vmatmul.mubr.bf16.gmra.mrb[0].mxu0 %v6008
        %v6066 = vpop.f32.mrb[0].mxu0
        %v6067 = vadd.f32 0.0, %v6066
        %v6068 = vpop.f32.mrb[0].mxu0
        %v6069 = vpop.f32.mrb[0].mxu0
        %v6070 = vadd.f32 0.0, %v6069
        %v6071 = vpop.f32.mrb[0].mxu0
        %6072 = vmatprep.mubr.bf16.mxu0 0
        %6073 = vmatmul.mubr.bf16.gmra.mrb[0].mxu0 %v6011
        %v6074 = vpop.f32.mrb[0].mxu0
        %v6075 = vadd.f32 0.0, %v6074
        %v6076 = vpop.f32.mrb[0].mxu0
        %v6077 = vpop.f32.mrb[0].mxu0
        %v6078 = vadd.f32 0.0, %v6077
        %v6079 = vpop.f32.mrb[0].mxu0
        %6080 = vdwg.mxu0
        %v6081 = vadd.f32 %v5985, %v6051
        %v6082 = vadd.f32 %v5986, %v6054
        %v6083 = vadd.f32 %v5987, %v6059
        %v6084 = vadd.f32 %v5988, %v6062
        %v6085 = vadd.f32 %v5989, %v6067
        %v6086 = vadd.f32 %v5990, %v6070
        %v6087 = vadd.f32 %v5991, %v6075
        %v6088 = vadd.f32 %v5992, %v6078
        %v6089 = vunpack.c.h.b16 %v5644
        %v6090 = vpack.c.b16 %v5996, %v5996
        %v6091 = vpack.c.b16 %v6089, %v6089
        %v6093 = vshrl.u32 %v6090, 16
        %v6095 = vrot.slane %v6093, 4
        %v6096 = vshll.u32 %v6090, 16
        %v6098 = vrot.slane %v6096, 5
        %v6099 = vor.u32 %v6095, %v6098
        %v6100 = vrot.slane %v6099, 4
        %v6102 = vshll.u32 %v6091, 16
        %v6104 = vrot.slane %v6102, 5
        %v6105 = vsel %vm2917, %v6100, %v6104
        %s6106 = scalar_lea.vmem %s6, 44
        %v6107 = vld [vmem:[%s6106] sm:$0xf]
        %v6108 = vunpack.c.l.b16 %v6105
        %v6109 = vpack.c.b16 %v5895, %v5894
        %v6110 = vpack.c.b16 %v5897, %v5896
        %v6111 = vpack.c.b16 %v5899, %v5898
        %v6112 = vpack.c.b16 %v6108, %v5900
        %v6114 = vsel %vm1307, %v6109, 0
        %v6117 = vsel %vm1307, %v6110, 0
        %v6120 = vsel %vm1307, %v6111, 0
        %v6123 = vsel %vm1307, %v6112, 0
        %v6126 = vsel %vm1326, %v6107, 0
        %6128 = vmatprep.subr.bf16.mxu0 0
        %6129 = vmatpush1.bf16.msra.mxu0 %v6126
        %6130 = vmatprep.subr.bf16.mxu0 0
        %6131 = vmatpush1.bf16.msra.mxu0 0
        %6132 = vmatprep.subr.bf16.mxu0 0
        %6133 = vmatpush1.bf16.msra.mxu0 0
        %6134 = vmatprep.subr.bf16.mxu0 0
        %6135 = vmatpush1.bf16.msra.mxu0 0
        %6136 = vmatprep.subr.bf16.mxu0 0
        %6137 = vmatpush1.bf16.msra.mxu0 0
        %6138 = vmatprep.subr.bf16.mxu0 0
        %6139 = vmatpush1.bf16.msra.mxu0 0
        %6140 = vmatprep.subr.bf16.mxu0 0
        %6141 = vmatpush1.bf16.msra.mxu0 0
        %6142 = vmatprep.subr.bf16.mxu0 0
        %6143 = vmatpush1.bf16.msra.mxu0 0
        %6144 = vmatprep.subr.bf16.mxu0 0
        %6145 = vmatpush1.bf16.msra.mxu0 0
        %6146 = vmatprep.subr.bf16.mxu0 0
        %6147 = vmatpush1.bf16.msra.mxu0 0
        %6148 = vmatprep.subr.bf16.mxu0 0
        %6149 = vmatpush1.bf16.msra.mxu0 0
        %6150 = vmatprep.subr.bf16.mxu0 0
        %6151 = vmatpush1.bf16.msra.mxu0 0
        %6152 = vmatprep.subr.bf16.mxu0 0
        %6153 = vmatpush1.bf16.msra.mxu0 0
        %6154 = vmatprep.subr.bf16.mxu0 0
        %6155 = vmatpush1.bf16.msra.mxu0 0
        %6156 = vmatprep.subr.bf16.mxu0 0
        %6157 = vmatpush1.bf16.msra.mxu0 0
        %6158 = vmatprep.subr.bf16.mxu0 0
        %6159 = vmatpush1.bf16.msra.mxu0 0
        %6160 = vmatprep.mubr.bf16.mxu0 0
        %6161 = vmatmul.mubr.bf16.gmra.mrb[0].mxu0 %v6114
        %v6162 = vpop.f32.mrb[0].mxu0
        %v6163 = vadd.f32 0.0, %v6162
        %v6164 = vpop.f32.mrb[0].mxu0
        %v6165 = vpop.f32.mrb[0].mxu0
        %v6166 = vadd.f32 0.0, %v6165
        %v6167 = vpop.f32.mrb[0].mxu0
        %6168 = vmatprep.mubr.bf16.mxu0 0
        %6169 = vmatmul.mubr.bf16.gmra.mrb[0].mxu0 %v6117
        %v6170 = vpop.f32.mrb[0].mxu0
        %v6171 = vadd.f32 0.0, %v6170
        %v6172 = vpop.f32.mrb[0].mxu0
        %v6173 = vpop.f32.mrb[0].mxu0
        %v6174 = vadd.f32 0.0, %v6173
        %v6175 = vpop.f32.mrb[0].mxu0
        %6176 = vmatprep.mubr.bf16.mxu0 0
        %6177 = vmatmul.mubr.bf16.gmra.mrb[0].mxu0 %v6120
        %v6178 = vpop.f32.mrb[0].mxu0
        %v6179 = vadd.f32 0.0, %v6178
        %v6180 = vpop.f32.mrb[0].mxu0
        %v6181 = vpop.f32.mrb[0].mxu0
        %v6182 = vadd.f32 0.0, %v6181
        %v6183 = vpop.f32.mrb[0].mxu0
        %6184 = vmatprep.mubr.bf16.mxu0 0
        %6185 = vmatmul.mubr.bf16.gmra.mrb[0].mxu0 %v6123
        %v6186 = vpop.f32.mrb[0].mxu0
        %v6187 = vadd.f32 0.0, %v6186
        %v6188 = vpop.f32.mrb[0].mxu0
        %v6189 = vpop.f32.mrb[0].mxu0
        %v6190 = vadd.f32 0.0, %v6189
        %v6191 = vpop.f32.mrb[0].mxu0
        %6192 = vdwg.mxu0
        %v6193 = vadd.f32 %v6081, %v6163
        %v6194 = vadd.f32 %v6082, %v6166
        %v6195 = vadd.f32 %v6083, %v6171
        %v6196 = vadd.f32 %v6084, %v6174
        %v6197 = vadd.f32 %v6085, %v6179
        %v6198 = vadd.f32 %v6086, %v6182
        %v6199 = vadd.f32 %v6087, %v6187
        %v6200 = vadd.f32 %v6088, %v6190
        %v6220 = vunpack.c.l.s4 1966171168
        %v6221 = vunpack.c.0.s8 %v6220
        %v6222 = vlaneseq
        %v6223 = vshrl.u32 %v6222, 7
        %v6224 = vsub.s32 %v6221, %v6223
        %v6225 = vrot.slane %v525, %v6224
        %v6226 = vcombine.high %v6225, %v6225
        %v6228 = vunpack.c.l.s4 1966171168
        %v6229 = vunpack.c.0.s8 %v6228
        %v6230 = vlaneseq
        %v6231 = vshrl.u32 %v6230, 7
        %v6232 = vsub.s32 %v6229, %v6231
        %v6233 = vrot.slane %v6225, %v6232
        %v6235 = vunpack.c.l.s4 1966171168
        %v6236 = vunpack.c.0.s8 %v6235
        %v6237 = vlaneseq
        %v6238 = vshrl.u32 %v6237, 7
        %v6239 = vsub.s32 %v6236, %v6238
        %v6240 = vrot.slane %v6226, %v6239
        %v6241 = vcombine.high %v6233, %v6233
        %v6242 = vcombine.high %v6240, %v6240
        %v6244 = vunpack.c.l.s4 1966171168
        %v6245 = vunpack.c.0.s8 %v6244
        %v6246 = vlaneseq
        %v6247 = vshrl.u32 %v6246, 7
        %v6248 = vsub.s32 %v6245, %v6247
        %v6249 = vrot.slane %v526, %v6248
        %v6251 = vunpack.c.l.s4 1966171168
        %v6252 = vunpack.c.0.s8 %v6251
        %v6253 = vlaneseq
        %v6254 = vshrl.u32 %v6253, 7
        %v6255 = vsub.s32 %v6252, %v6254
        %v6256 = vrot.slane %v6249, %v6255
        %v6258 = vunpack.c.l.s4 1966171168
        %v6259 = vunpack.c.0.s8 %v6258
        %v6260 = vlaneseq
        %v6261 = vshrl.u32 %v6260, 7
        %v6262 = vsub.s32 %v6259, %v6261
        %v6263 = vrot.slane %v527, %v6262
        %v6264 = vcombine.high %v6263, %v6263
        %v6266 = vunpack.c.l.s4 1966171168
        %v6267 = vunpack.c.0.s8 %v6266
        %v6268 = vlaneseq
        %v6269 = vshrl.u32 %v6268, 7
        %v6270 = vsub.s32 %v6267, %v6269
        %v6271 = vrot.slane %v6263, %v6270
        %v6273 = vunpack.c.l.s4 1966171168
        %v6274 = vunpack.c.0.s8 %v6273
        %v6275 = vlaneseq
        %v6276 = vshrl.u32 %v6275, 7
        %v6277 = vsub.s32 %v6274, %v6276
        %v6278 = vrot.slane %v6264, %v6277
        %v6279 = vcombine.high %v6271, %v6271
        %v6280 = vcombine.high %v6278, %v6278
        %v6282 = vunpack.c.l.s4 1966171168
        %v6283 = vunpack.c.0.s8 %v6282
        %v6284 = vlaneseq
        %v6285 = vshrl.u32 %v6284, 7
        %v6286 = vsub.s32 %v6283, %v6285
        %v6287 = vrot.slane %v528, %v6286
        %v6289 = vunpack.c.l.s4 1966171168
        %v6290 = vunpack.c.0.s8 %v6289
        %v6291 = vlaneseq
        %v6292 = vshrl.u32 %v6291, 7
        %v6293 = vsub.s32 %v6290, %v6292
        %v6294 = vrot.slane %v6287, %v6293
        %v6296 = vunpack.c.l.s4 1966171168
        %v6297 = vunpack.c.0.s8 %v6296
        %v6298 = vlaneseq
        %v6299 = vshrl.u32 %v6298, 7
        %v6300 = vsub.s32 %v6297, %v6299
        %v6301 = vrot.slane %v529, %v6300
        %v6302 = vcombine.high %v6301, %v6301
        %v6304 = vunpack.c.l.s4 1966171168
        %v6305 = vunpack.c.0.s8 %v6304
        %v6306 = vlaneseq
        %v6307 = vshrl.u32 %v6306, 7
        %v6308 = vsub.s32 %v6305, %v6307
        %v6309 = vrot.slane %v6301, %v6308
        %v6311 = vunpack.c.l.s4 1966171168
        %v6312 = vunpack.c.0.s8 %v6311
        %v6313 = vlaneseq
        %v6314 = vshrl.u32 %v6313, 7
        %v6315 = vsub.s32 %v6312, %v6314
        %v6316 = vrot.slane %v6302, %v6315
        %v6317 = vcombine.high %v6309, %v6309
        %v6318 = vcombine.high %v6316, %v6316
        %v6320 = vunpack.c.l.s4 1966171168
        %v6321 = vunpack.c.0.s8 %v6320
        %v6322 = vlaneseq
        %v6323 = vshrl.u32 %v6322, 7
        %v6324 = vsub.s32 %v6321, %v6323
        %v6325 = vrot.slane %v530, %v6324
        %v6327 = vunpack.c.l.s4 1966171168
        %v6328 = vunpack.c.0.s8 %v6327
        %v6329 = vlaneseq
        %v6330 = vshrl.u32 %v6329, 7
        %v6331 = vsub.s32 %v6328, %v6330
        %v6332 = vrot.slane %v6325, %v6331
        %v6334 = vunpack.c.l.s4 1966171168
        %v6335 = vunpack.c.0.s8 %v6334
        %v6336 = vlaneseq
        %v6337 = vshrl.u32 %v6336, 7
        %v6338 = vsub.s32 %v6335, %v6337
        %v6339 = vrot.slane %v531, %v6338
        %v6340 = vcombine.high %v6339, %v6339
        %v6342 = vunpack.c.l.s4 1966171168
        %v6343 = vunpack.c.0.s8 %v6342
        %v6344 = vlaneseq
        %v6345 = vshrl.u32 %v6344, 7
        %v6346 = vsub.s32 %v6343, %v6345
        %v6347 = vrot.slane %v6339, %v6346
        %v6349 = vunpack.c.l.s4 1966171168
        %v6350 = vunpack.c.0.s8 %v6349
        %v6351 = vlaneseq
        %v6352 = vshrl.u32 %v6351, 7
        %v6353 = vsub.s32 %v6350, %v6352
        %v6354 = vrot.slane %v6340, %v6353
        %v6355 = vcombine.high %v6347, %v6347
        %v6356 = vcombine.high %v6354, %v6354
        %v6358 = vunpack.c.l.s4 1966171168
        %v6359 = vunpack.c.0.s8 %v6358
        %v6360 = vlaneseq
        %v6361 = vshrl.u32 %v6360, 7
        %v6362 = vsub.s32 %v6359, %v6361
        %v6363 = vrot.slane %v532, %v6362
        %v6365 = vunpack.c.l.s4 1966171168
        %v6366 = vunpack.c.0.s8 %v6365
        %v6367 = vlaneseq
        %v6368 = vshrl.u32 %v6367, 7
        %v6369 = vsub.s32 %v6366, %v6368
        %v6370 = vrot.slane %v6363, %v6369
        %v6372 = vunpack.c.l.s4 1966171168
        %v6373 = vunpack.c.0.s8 %v6372
        %v6374 = vlaneseq
        %v6375 = vshrl.u32 %v6374, 7
        %v6376 = vsub.s32 %v6373, %v6375
        %v6377 = vrot.slane %v533, %v6376
        %v6378 = vcombine.high %v6377, %v6377
        %v6380 = vunpack.c.l.s4 1966171168
        %v6381 = vunpack.c.0.s8 %v6380
        %v6382 = vlaneseq
        %v6383 = vshrl.u32 %v6382, 7
        %v6384 = vsub.s32 %v6381, %v6383
        %v6385 = vrot.slane %v6377, %v6384
        %v6387 = vunpack.c.l.s4 1966171168
        %v6388 = vunpack.c.0.s8 %v6387
        %v6389 = vlaneseq
        %v6390 = vshrl.u32 %v6389, 7
        %v6391 = vsub.s32 %v6388, %v6390
        %v6392 = vrot.slane %v6378, %v6391
        %v6393 = vcombine.high %v6385, %v6385
        %v6394 = vcombine.high %v6392, %v6392
        %v6396 = vunpack.c.l.s4 1966171168
        %v6397 = vunpack.c.0.s8 %v6396
        %v6398 = vlaneseq
        %v6399 = vshrl.u32 %v6398, 7
        %v6400 = vsub.s32 %v6397, %v6399
        %v6401 = vrot.slane %v534, %v6400
        %v6403 = vunpack.c.l.s4 1966171168
        %v6404 = vunpack.c.0.s8 %v6403
        %v6405 = vlaneseq
        %v6406 = vshrl.u32 %v6405, 7
        %v6407 = vsub.s32 %v6404, %v6406
        %v6408 = vrot.slane %v6401, %v6407
        %v6410 = vunpack.c.l.s4 1966171168
        %v6411 = vunpack.c.0.s8 %v6410
        %v6412 = vlaneseq
        %v6413 = vshrl.u32 %v6412, 7
        %v6414 = vsub.s32 %v6411, %v6413
        %v6415 = vrot.slane %v535, %v6414
        %v6416 = vcombine.high %v6415, %v6415
        %v6418 = vunpack.c.l.s4 1966171168
        %v6419 = vunpack.c.0.s8 %v6418
        %v6420 = vlaneseq
        %v6421 = vshrl.u32 %v6420, 7
        %v6422 = vsub.s32 %v6419, %v6421
        %v6423 = vrot.slane %v6415, %v6422
        %v6425 = vunpack.c.l.s4 1966171168
        %v6426 = vunpack.c.0.s8 %v6425
        %v6427 = vlaneseq
        %v6428 = vshrl.u32 %v6427, 7
        %v6429 = vsub.s32 %v6426, %v6428
        %v6430 = vrot.slane %v6416, %v6429
        %v6431 = vcombine.high %v6423, %v6423
        %v6432 = vcombine.high %v6430, %v6430
        %v6434 = vunpack.c.l.s4 1966171168
        %v6435 = vunpack.c.0.s8 %v6434
        %v6436 = vlaneseq
        %v6437 = vshrl.u32 %v6436, 7
        %v6438 = vsub.s32 %v6435, %v6437
        %v6439 = vrot.slane %v536, %v6438
        %v6441 = vunpack.c.l.s4 1966171168
        %v6442 = vunpack.c.0.s8 %v6441
        %v6443 = vlaneseq
        %v6444 = vshrl.u32 %v6443, 7
        %v6445 = vsub.s32 %v6442, %v6444
        %v6446 = vrot.slane %v6439, %v6445
        %v6448 = vunpack.c.l.s4 1966171168
        %v6449 = vunpack.c.0.s8 %v6448
        %v6450 = vlaneseq
        %v6451 = vshrl.u32 %v6450, 7
        %v6452 = vsub.s32 %v6449, %v6451
        %v6453 = vrot.slane %v537, %v6452
        %v6454 = vcombine.high %v6453, %v6453
        %v6456 = vunpack.c.l.s4 1966171168
        %v6457 = vunpack.c.0.s8 %v6456
        %v6458 = vlaneseq
        %v6459 = vshrl.u32 %v6458, 7
        %v6460 = vsub.s32 %v6457, %v6459
        %v6461 = vrot.slane %v6453, %v6460
        %v6463 = vunpack.c.l.s4 1966171168
        %v6464 = vunpack.c.0.s8 %v6463
        %v6465 = vlaneseq
        %v6466 = vshrl.u32 %v6465, 7
        %v6467 = vsub.s32 %v6464, %v6466
        %v6468 = vrot.slane %v6454, %v6467
        %v6469 = vcombine.high %v6461, %v6461
        %v6470 = vcombine.high %v6468, %v6468
        %v6472 = vunpack.c.l.s4 1966171168
        %v6473 = vunpack.c.0.s8 %v6472
        %v6474 = vlaneseq
        %v6475 = vshrl.u32 %v6474, 7
        %v6476 = vsub.s32 %v6473, %v6475
        %v6477 = vrot.slane %v538, %v6476
        %v6479 = vunpack.c.l.s4 1966171168
        %v6480 = vunpack.c.0.s8 %v6479
        %v6481 = vlaneseq
        %v6482 = vshrl.u32 %v6481, 7
        %v6483 = vsub.s32 %v6480, %v6482
        %v6484 = vrot.slane %v6477, %v6483
        %v6486 = vunpack.c.l.s4 1966171168
        %v6487 = vunpack.c.0.s8 %v6486
        %v6488 = vlaneseq
        %v6489 = vshrl.u32 %v6488, 7
        %v6490 = vsub.s32 %v6487, %v6489
        %v6491 = vrot.slane %v539, %v6490
        %v6492 = vcombine.high %v6491, %v6491
        %v6494 = vunpack.c.l.s4 1966171168
        %v6495 = vunpack.c.0.s8 %v6494
        %v6496 = vlaneseq
        %v6497 = vshrl.u32 %v6496, 7
        %v6498 = vsub.s32 %v6495, %v6497
        %v6499 = vrot.slane %v6491, %v6498
        %v6501 = vunpack.c.l.s4 1966171168
        %v6502 = vunpack.c.0.s8 %v6501
        %v6503 = vlaneseq
        %v6504 = vshrl.u32 %v6503, 7
        %v6505 = vsub.s32 %v6502, %v6504
        %v6506 = vrot.slane %v6492, %v6505
        %v6507 = vcombine.high %v6499, %v6499
        %v6508 = vcombine.high %v6506, %v6506
        %v6510 = vunpack.c.l.s4 1966171168
        %v6511 = vunpack.c.0.s8 %v6510
        %v6512 = vlaneseq
        %v6513 = vshrl.u32 %v6512, 7
        %v6514 = vsub.s32 %v6511, %v6513
        %v6515 = vrot.slane %v540, %v6514
        %v6517 = vunpack.c.l.s4 1966171168
        %v6518 = vunpack.c.0.s8 %v6517
        %v6519 = vlaneseq
        %v6520 = vshrl.u32 %v6519, 7
        %v6521 = vsub.s32 %v6518, %v6520
        %v6522 = vrot.slane %v6515, %v6521
        %v6524 = vunpack.c.l.s4 1966171168
        %v6525 = vunpack.c.0.s8 %v6524
        %v6526 = vlaneseq
        %v6527 = vshrl.u32 %v6526, 7
        %v6528 = vsub.s32 %v6525, %v6527
        %v6529 = vrot.slane %v541, %v6528
        %v6530 = vcombine.high %v6529, %v6529
        %v6532 = vunpack.c.l.s4 1966171168
        %v6533 = vunpack.c.0.s8 %v6532
        %v6534 = vlaneseq
        %v6535 = vshrl.u32 %v6534, 7
        %v6536 = vsub.s32 %v6533, %v6535
        %v6537 = vrot.slane %v6529, %v6536
        %v6539 = vunpack.c.l.s4 1966171168
        %v6540 = vunpack.c.0.s8 %v6539
        %v6541 = vlaneseq
        %v6542 = vshrl.u32 %v6541, 7
        %v6543 = vsub.s32 %v6540, %v6542
        %v6544 = vrot.slane %v6530, %v6543
        %v6545 = vcombine.high %v6537, %v6537
        %v6546 = vcombine.high %v6544, %v6544
        %v6548 = vunpack.c.l.s4 1966171168
        %v6549 = vunpack.c.0.s8 %v6548
        %v6550 = vlaneseq
        %v6551 = vshrl.u32 %v6550, 7
        %v6552 = vsub.s32 %v6549, %v6551
        %v6553 = vrot.slane %v542, %v6552
        %v6555 = vunpack.c.l.s4 1966171168
        %v6556 = vunpack.c.0.s8 %v6555
        %v6557 = vlaneseq
        %v6558 = vshrl.u32 %v6557, 7
        %v6559 = vsub.s32 %v6556, %v6558
        %v6560 = vrot.slane %v6553, %v6559
        %v6561 = vunpack.i.l.s16 %v6233
        %v6562 = vunpack.i.h.s16 %v6233
        %v6563 = vunpack.i.l.s16 %v6240
        %v6564 = vunpack.i.h.s16 %v6240
        %v6565 = vunpack.i.l.s16 %v6241
        %v6566 = vunpack.i.h.s16 %v6241
        %v6567 = vunpack.i.l.s16 %v6242
        %v6568 = vunpack.i.h.s16 %v6242
        %v6569 = vunpack.i.l.s16 %v6256
        %v6570 = vunpack.i.l.s16 %v6271
        %v6571 = vunpack.i.h.s16 %v6271
        %v6572 = vunpack.i.l.s16 %v6278
        %v6573 = vunpack.i.h.s16 %v6278
        %v6574 = vunpack.i.l.s16 %v6279
        %v6575 = vunpack.i.h.s16 %v6279
        %v6576 = vunpack.i.l.s16 %v6280
        %v6577 = vunpack.i.h.s16 %v6280
        %v6578 = vunpack.i.l.s16 %v6294
        %v6579 = vunpack.i.l.s16 %v6309
        %v6580 = vunpack.i.h.s16 %v6309
        %v6581 = vunpack.i.l.s16 %v6316
        %v6582 = vunpack.i.h.s16 %v6316
        %v6583 = vunpack.i.l.s16 %v6317
        %v6584 = vunpack.i.h.s16 %v6317
        %v6585 = vunpack.i.l.s16 %v6318
        %v6586 = vunpack.i.h.s16 %v6318
        %v6587 = vunpack.i.l.s16 %v6332
        %v6588 = vunpack.i.l.s16 %v6347
        %v6589 = vunpack.i.h.s16 %v6347
        %v6590 = vunpack.i.l.s16 %v6354
        %v6591 = vunpack.i.h.s16 %v6354
        %v6592 = vunpack.i.l.s16 %v6355
        %v6593 = vunpack.i.h.s16 %v6355
        %v6594 = vunpack.i.l.s16 %v6356
        %v6595 = vunpack.i.h.s16 %v6356
        %v6596 = vunpack.i.l.s16 %v6370
        %v6597 = vunpack.i.l.s16 %v6385
        %v6598 = vunpack.i.h.s16 %v6385
        %v6599 = vunpack.i.l.s16 %v6392
        %v6600 = vunpack.i.h.s16 %v6392
        %v6601 = vunpack.i.l.s16 %v6393
        %v6602 = vunpack.i.h.s16 %v6393
        %v6603 = vunpack.i.l.s16 %v6394
        %v6604 = vunpack.i.h.s16 %v6394
        %v6605 = vunpack.i.l.s16 %v6408
        %v6606 = vunpack.i.l.s16 %v6423
        %v6607 = vunpack.i.h.s16 %v6423
        %v6608 = vunpack.i.l.s16 %v6430
        %v6609 = vunpack.i.h.s16 %v6430
        %v6610 = vunpack.i.l.s16 %v6431
        %v6611 = vunpack.i.h.s16 %v6431
        %v6612 = vunpack.i.l.s16 %v6432
        %v6613 = vunpack.i.h.s16 %v6432
        %v6614 = vunpack.i.l.s16 %v6446
        %v6615 = vunpack.i.l.s16 %v6461
        %v6616 = vunpack.i.h.s16 %v6461
        %v6617 = vunpack.i.l.s16 %v6468
        %v6618 = vunpack.i.h.s16 %v6468
        %v6619 = vunpack.i.l.s16 %v6469
        %v6620 = vunpack.i.h.s16 %v6469
        %v6621 = vunpack.i.l.s16 %v6470
        %v6622 = vunpack.i.h.s16 %v6470
        %v6623 = vunpack.i.l.s16 %v6484
        %v6624 = vunpack.i.l.s16 %v6499
        %v6625 = vunpack.i.h.s16 %v6499
        %v6626 = vunpack.i.l.s16 %v6506
        %v6627 = vunpack.i.h.s16 %v6506
        %v6628 = vunpack.i.l.s16 %v6507
        %v6629 = vunpack.i.h.s16 %v6507
        %v6630 = vunpack.i.l.s16 %v6508
        %v6631 = vunpack.i.h.s16 %v6508
        %v6632 = vunpack.i.l.s16 %v6522
        %v6633 = vunpack.i.l.s16 %v6537
        %v6634 = vunpack.i.h.s16 %v6537
        %v6635 = vunpack.i.l.s16 %v6544
        %v6636 = vunpack.i.h.s16 %v6544
        %v6637 = vunpack.i.l.s16 %v6545
        %v6638 = vunpack.i.h.s16 %v6545
        %v6639 = vunpack.i.l.s16 %v6546
        %v6640 = vunpack.i.h.s16 %v6546
        %v6641 = vunpack.i.l.s16 %v6560
        %v6642 = vpack.i.b16 %v6562, %v6561
        %v6643 = vpack.i.b16 %v6564, %v6563
        %v6644 = vpack.i.b16 %v6566, %v6565
        %v6645 = vpack.i.b16 %v6568, %v6567
        %v6646 = vpack.i.b16 %v6570, %v6569
        %v6647 = vpack.i.b16 %v6572, %v6571
        %v6648 = vpack.i.b16 %v6574, %v6573
        %v6649 = vpack.i.b16 %v6576, %v6575
        %v6650 = vpack.i.b16 %v6578, %v6577
        %v6651 = vpack.i.b16 %v6580, %v6579
        %v6652 = vpack.i.b16 %v6582, %v6581
        %v6653 = vpack.i.b16 %v6584, %v6583
        %v6654 = vpack.i.b16 %v6586, %v6585
        %v6655 = vpack.i.b16 %v6588, %v6587
        %v6656 = vpack.i.b16 %v6590, %v6589
        %v6657 = vpack.i.b16 %v6592, %v6591
        %v6658 = vpack.i.b16 %v6594, %v6593
        %v6659 = vpack.i.b16 %v6596, %v6595
        %v6660 = vpack.i.b16 %v6598, %v6597
        %v6661 = vpack.i.b16 %v6600, %v6599
        %v6662 = vpack.i.b16 %v6602, %v6601
        %v6663 = vpack.i.b16 %v6604, %v6603
        %v6664 = vpack.i.b16 %v6606, %v6605
        %v6665 = vpack.i.b16 %v6608, %v6607
        %v6666 = vpack.i.b16 %v6610, %v6609
        %v6667 = vpack.i.b16 %v6612, %v6611
        %v6668 = vpack.i.b16 %v6614, %v6613
        %v6669 = vpack.i.b16 %v6616, %v6615
        %v6670 = vpack.i.b16 %v6618, %v6617
        %v6671 = vpack.i.b16 %v6620, %v6619
        %v6672 = vpack.i.b16 %v6622, %v6621
        %v6673 = vpack.i.b16 %v6624, %v6623
        %v6674 = vpack.i.b16 %v6626, %v6625
        %v6675 = vpack.i.b16 %v6628, %v6627
        %v6676 = vpack.i.b16 %v6630, %v6629
        %v6677 = vpack.i.b16 %v6632, %v6631
        %v6678 = vpack.i.b16 %v6634, %v6633
        %v6679 = vpack.i.b16 %v6636, %v6635
        %v6680 = vpack.i.b16 %v6638, %v6637
        %v6681 = vpack.i.b16 %v6640, %v6639
        %v6683 = vcombine.low %v6642, %v6643
        %v6684 = vcombine.low %v6644, %v6645
        %v6685 = vcombine.low %v6646, %v6647
        %v6686 = vcombine.low %v6648, %v6649
        %v6688 = vunpack.c.l.s4 1966171168
        %v6689 = vunpack.c.0.s8 %v6688
        %v6690 = vlaneseq
        %v6691 = vshrl.u32 %v6690, 7
        %v6692 = vsub.s32 %v6689, %v6691
        %v6693 = vrot.slane %v6683, %v6692
        %v6695 = vunpack.c.l.s4 1966171168
        %v6696 = vunpack.c.0.s8 %v6695
        %v6697 = vlaneseq
        %v6698 = vshrl.u32 %v6697, 7
        %v6699 = vsub.s32 %v6696, %v6698
        %v6700 = vrot.slane %v6684, %v6699
        %v6702 = vunpack.c.l.s4 1966171168
        %v6703 = vunpack.c.0.s8 %v6702
        %v6704 = vlaneseq
        %v6705 = vshrl.u32 %v6704, 7
        %v6706 = vsub.s32 %v6703, %v6705
        %v6707 = vrot.slane %v6685, %v6706
        %v6709 = vunpack.c.l.s4 1966171168
        %v6710 = vunpack.c.0.s8 %v6709
        %v6711 = vlaneseq
        %v6712 = vshrl.u32 %v6711, 7
        %v6713 = vsub.s32 %v6710, %v6712
        %v6714 = vrot.slane %v6686, %v6713
        %v6715 = vcombine.low %v6693, %v6700
        %v6716 = vcombine.low %v6707, %v6714
        %v6718 = vunpack.c.l.s4 1966171168
        %v6719 = vunpack.c.0.s8 %v6718
        %v6720 = vlaneseq
        %v6721 = vshrl.u32 %v6720, 7
        %v6722 = vsub.s32 %v6719, %v6721
        %v6723 = vrot.slane %v6715, %v6722
        %v6725 = vunpack.c.l.s4 1966171168
        %v6726 = vunpack.c.0.s8 %v6725
        %v6727 = vlaneseq
        %v6728 = vshrl.u32 %v6727, 7
        %v6729 = vsub.s32 %v6726, %v6728
        %v6730 = vrot.slane %v6716, %v6729
        %v6731 = vcombine.low %v6723, %v6730
        %v6732 = vcombine.low %v6650, %v6651
        %v6733 = vcombine.low %v6652, %v6653
        %v6734 = vcombine.low %v6654, %v6655
        %v6735 = vcombine.low %v6656, %v6657
        %v6737 = vunpack.c.l.s4 1966171168
        %v6738 = vunpack.c.0.s8 %v6737
        %v6739 = vlaneseq
        %v6740 = vshrl.u32 %v6739, 7
        %v6741 = vsub.s32 %v6738, %v6740
        %v6742 = vrot.slane %v6732, %v6741
        %v6744 = vunpack.c.l.s4 1966171168
        %v6745 = vunpack.c.0.s8 %v6744
        %v6746 = vlaneseq
        %v6747 = vshrl.u32 %v6746, 7
        %v6748 = vsub.s32 %v6745, %v6747
        %v6749 = vrot.slane %v6733, %v6748
        %v6751 = vunpack.c.l.s4 1966171168
        %v6752 = vunpack.c.0.s8 %v6751
        %v6753 = vlaneseq
        %v6754 = vshrl.u32 %v6753, 7
        %v6755 = vsub.s32 %v6752, %v6754
        %v6756 = vrot.slane %v6734, %v6755
        %v6758 = vunpack.c.l.s4 1966171168
        %v6759 = vunpack.c.0.s8 %v6758
        %v6760 = vlaneseq
        %v6761 = vshrl.u32 %v6760, 7
        %v6762 = vsub.s32 %v6759, %v6761
        %v6763 = vrot.slane %v6735, %v6762
        %v6764 = vcombine.low %v6742, %v6749
        %v6765 = vcombine.low %v6756, %v6763
        %v6767 = vunpack.c.l.s4 1966171168
        %v6768 = vunpack.c.0.s8 %v6767
        %v6769 = vlaneseq
        %v6770 = vshrl.u32 %v6769, 7
        %v6771 = vsub.s32 %v6768, %v6770
        %v6772 = vrot.slane %v6764, %v6771
        %v6774 = vunpack.c.l.s4 1966171168
        %v6775 = vunpack.c.0.s8 %v6774
        %v6776 = vlaneseq
        %v6777 = vshrl.u32 %v6776, 7
        %v6778 = vsub.s32 %v6775, %v6777
        %v6779 = vrot.slane %v6765, %v6778
        %v6780 = vcombine.low %v6772, %v6779
        %v6781 = vcombine.low %v6658, %v6659
        %v6782 = vcombine.low %v6660, %v6661
        %v6783 = vcombine.low %v6662, %v6663
        %v6784 = vcombine.low %v6664, %v6665
        %v6786 = vunpack.c.l.s4 1966171168
        %v6787 = vunpack.c.0.s8 %v6786
        %v6788 = vlaneseq
        %v6789 = vshrl.u32 %v6788, 7
        %v6790 = vsub.s32 %v6787, %v6789
        %v6791 = vrot.slane %v6781, %v6790
        %v6793 = vunpack.c.l.s4 1966171168
        %v6794 = vunpack.c.0.s8 %v6793
        %v6795 = vlaneseq
        %v6796 = vshrl.u32 %v6795, 7
        %v6797 = vsub.s32 %v6794, %v6796
        %v6798 = vrot.slane %v6782, %v6797
        %v6800 = vunpack.c.l.s4 1966171168
        %v6801 = vunpack.c.0.s8 %v6800
        %v6802 = vlaneseq
        %v6803 = vshrl.u32 %v6802, 7
        %v6804 = vsub.s32 %v6801, %v6803
        %v6805 = vrot.slane %v6783, %v6804
        %v6807 = vunpack.c.l.s4 1966171168
        %v6808 = vunpack.c.0.s8 %v6807
        %v6809 = vlaneseq
        %v6810 = vshrl.u32 %v6809, 7
        %v6811 = vsub.s32 %v6808, %v6810
        %v6812 = vrot.slane %v6784, %v6811
        %v6813 = vcombine.low %v6791, %v6798
        %v6814 = vcombine.low %v6805, %v6812
        %v6816 = vunpack.c.l.s4 1966171168
        %v6817 = vunpack.c.0.s8 %v6816
        %v6818 = vlaneseq
        %v6819 = vshrl.u32 %v6818, 7
        %v6820 = vsub.s32 %v6817, %v6819
        %v6821 = vrot.slane %v6813, %v6820
        %v6823 = vunpack.c.l.s4 1966171168
        %v6824 = vunpack.c.0.s8 %v6823
        %v6825 = vlaneseq
        %v6826 = vshrl.u32 %v6825, 7
        %v6827 = vsub.s32 %v6824, %v6826
        %v6828 = vrot.slane %v6814, %v6827
        %v6829 = vcombine.low %v6821, %v6828
        %v6830 = vcombine.low %v6666, %v6667
        %v6831 = vcombine.low %v6668, %v6669
        %v6832 = vcombine.low %v6670, %v6671
        %v6833 = vcombine.low %v6672, %v6673
        %v6835 = vunpack.c.l.s4 1966171168
        %v6836 = vunpack.c.0.s8 %v6835
        %v6837 = vlaneseq
        %v6838 = vshrl.u32 %v6837, 7
        %v6839 = vsub.s32 %v6836, %v6838
        %v6840 = vrot.slane %v6830, %v6839
        %v6842 = vunpack.c.l.s4 1966171168
        %v6843 = vunpack.c.0.s8 %v6842
        %v6844 = vlaneseq
        %v6845 = vshrl.u32 %v6844, 7
        %v6846 = vsub.s32 %v6843, %v6845
        %v6847 = vrot.slane %v6831, %v6846
        %v6849 = vunpack.c.l.s4 1966171168
        %v6850 = vunpack.c.0.s8 %v6849
        %v6851 = vlaneseq
        %v6852 = vshrl.u32 %v6851, 7
        %v6853 = vsub.s32 %v6850, %v6852
        %v6854 = vrot.slane %v6832, %v6853
        %v6856 = vunpack.c.l.s4 1966171168
        %v6857 = vunpack.c.0.s8 %v6856
        %v6858 = vlaneseq
        %v6859 = vshrl.u32 %v6858, 7
        %v6860 = vsub.s32 %v6857, %v6859
        %v6861 = vrot.slane %v6833, %v6860
        %v6862 = vcombine.low %v6840, %v6847
        %v6863 = vcombine.low %v6854, %v6861
        %v6865 = vunpack.c.l.s4 1966171168
        %v6866 = vunpack.c.0.s8 %v6865
        %v6867 = vlaneseq
        %v6868 = vshrl.u32 %v6867, 7
        %v6869 = vsub.s32 %v6866, %v6868
        %v6870 = vrot.slane %v6862, %v6869
        %v6872 = vunpack.c.l.s4 1966171168
        %v6873 = vunpack.c.0.s8 %v6872
        %v6874 = vlaneseq
        %v6875 = vshrl.u32 %v6874, 7
        %v6876 = vsub.s32 %v6873, %v6875
        %v6877 = vrot.slane %v6863, %v6876
        %v6878 = vcombine.low %v6870, %v6877
        %v6879 = vcombine.low %v6674, %v6675
        %v6880 = vcombine.low %v6676, %v6677
        %v6881 = vcombine.low %v6678, %v6679
        %v6882 = vcombine.low %v6680, %v6681
        %v6884 = vunpack.c.l.s4 1966171168
        %v6885 = vunpack.c.0.s8 %v6884
        %v6886 = vlaneseq
        %v6887 = vshrl.u32 %v6886, 7
        %v6888 = vsub.s32 %v6885, %v6887
        %v6889 = vrot.slane %v6879, %v6888
        %v6891 = vunpack.c.l.s4 1966171168
        %v6892 = vunpack.c.0.s8 %v6891
        %v6893 = vlaneseq
        %v6894 = vshrl.u32 %v6893, 7
        %v6895 = vsub.s32 %v6892, %v6894
        %v6896 = vrot.slane %v6880, %v6895
        %v6898 = vunpack.c.l.s4 1966171168
        %v6899 = vunpack.c.0.s8 %v6898
        %v6900 = vlaneseq
        %v6901 = vshrl.u32 %v6900, 7
        %v6902 = vsub.s32 %v6899, %v6901
        %v6903 = vrot.slane %v6881, %v6902
        %v6905 = vunpack.c.l.s4 1966171168
        %v6906 = vunpack.c.0.s8 %v6905
        %v6907 = vlaneseq
        %v6908 = vshrl.u32 %v6907, 7
        %v6909 = vsub.s32 %v6906, %v6908
        %v6910 = vrot.slane %v6882, %v6909
        %v6911 = vcombine.low %v6889, %v6896
        %v6912 = vcombine.low %v6903, %v6910
        %v6914 = vunpack.c.l.s4 1966171168
        %v6915 = vunpack.c.0.s8 %v6914
        %v6916 = vlaneseq
        %v6917 = vshrl.u32 %v6916, 7
        %v6918 = vsub.s32 %v6915, %v6917
        %v6919 = vrot.slane %v6911, %v6918
        %v6921 = vunpack.c.l.s4 1966171168
        %v6922 = vunpack.c.0.s8 %v6921
        %v6923 = vlaneseq
        %v6924 = vshrl.u32 %v6923, 7
        %v6925 = vsub.s32 %v6922, %v6924
        %v6926 = vrot.slane %v6912, %v6925
        %v6927 = vcombine.low %v6919, %v6926
        %v6929 = vunpack.c.l.s4 1966171168
        %v6930 = vunpack.c.0.s8 %v6929
        %v6931 = vlaneseq
        %v6932 = vshrl.u32 %v6931, 7
        %v6933 = vsub.s32 %v6930, %v6932
        %v6934 = vrot.slane %v6641, %v6933
        %v6936 = vunpack.c.l.s4 1966171168
        %v6937 = vunpack.c.0.s8 %v6936
        %v6938 = vlaneseq
        %v6939 = vshrl.u32 %v6938, 7
        %v6940 = vsub.s32 %v6937, %v6939
        %v6941 = vrot.slane %v6934, %v6940
        %v6943 = vsel %vm1307, %v6731, 0
        %v6946 = vsel %vm1307, %v6780, 0
        %v6949 = vsel %vm1307, %v6829, 0
        %v6952 = vsel %vm1307, %v6878, 0
        %v6955 = vsel %vm1307, %v6927, 0
        %v6958 = vsel %vm1307, %v6941, 0
        %6960 = vmatprep.subr.bf16.mxu0 0
        %6961 = vmatpush1.bf16.msra.mxu0 %v1328
        %6962 = vmatprep.subr.bf16.mxu0 0
        %6963 = vmatpush1.bf16.msra.mxu0 0
        %6964 = vmatprep.subr.bf16.mxu0 0
        %6965 = vmatpush1.bf16.msra.mxu0 0
        %6966 = vmatprep.subr.bf16.mxu0 0
        %6967 = vmatpush1.bf16.msra.mxu0 0
        %6968 = vmatprep.subr.bf16.mxu0 0
        %6969 = vmatpush1.bf16.msra.mxu0 0
        %6970 = vmatprep.subr.bf16.mxu0 0
        %6971 = vmatpush1.bf16.msra.mxu0 0
        %6972 = vmatprep.subr.bf16.mxu0 0
        %6973 = vmatpush1.bf16.msra.mxu0 0
        %6974 = vmatprep.subr.bf16.mxu0 0
        %6975 = vmatpush1.bf16.msra.mxu0 0
        %6976 = vmatprep.subr.bf16.mxu0 0
        %6977 = vmatpush1.bf16.msra.mxu0 0
        %6978 = vmatprep.subr.bf16.mxu0 0
        %6979 = vmatpush1.bf16.msra.mxu0 0
        %6980 = vmatprep.subr.bf16.mxu0 0
        %6981 = vmatpush1.bf16.msra.mxu0 0
        %6982 = vmatprep.subr.bf16.mxu0 0
        %6983 = vmatpush1.bf16.msra.mxu0 0
        %6984 = vmatprep.subr.bf16.mxu0 0
        %6985 = vmatpush1.bf16.msra.mxu0 0
        %6986 = vmatprep.subr.bf16.mxu0 0
        %6987 = vmatpush1.bf16.msra.mxu0 0
        %6988 = vmatprep.subr.bf16.mxu0 0
        %6989 = vmatpush1.bf16.msra.mxu0 0
        %6990 = vmatprep.subr.bf16.mxu0 0
        %6991 = vmatpush1.bf16.msra.mxu0 0
        %6992 = vmatprep.mubr.bf16.mxu0 0
        %6993 = vmatmul.mubr.bf16.gmra.mrb[0].mxu0 %v6943
        %v6994 = vpop.f32.mrb[0].mxu0
        %v6995 = vadd.f32 0.0, %v6994
        %v6996 = vpop.f32.mrb[0].mxu0
        %v6997 = vpop.f32.mrb[0].mxu0
        %v6998 = vadd.f32 0.0, %v6997
        %v6999 = vpop.f32.mrb[0].mxu0
        %7000 = vmatprep.mubr.bf16.mxu0 0
        %7001 = vmatmul.mubr.bf16.gmra.mrb[0].mxu0 %v6946
        %v7002 = vpop.f32.mrb[0].mxu0
        %v7003 = vadd.f32 0.0, %v7002
        %v7004 = vpop.f32.mrb[0].mxu0
        %v7005 = vpop.f32.mrb[0].mxu0
        %v7006 = vadd.f32 0.0, %v7005
        %v7007 = vpop.f32.mrb[0].mxu0
        %7008 = vmatprep.mubr.bf16.mxu0 0
        %7009 = vmatmul.mubr.bf16.gmra.mrb[0].mxu0 %v6949
        %v7010 = vpop.f32.mrb[0].mxu0
        %v7011 = vadd.f32 0.0, %v7010
        %v7012 = vpop.f32.mrb[0].mxu0
        %v7013 = vpop.f32.mrb[0].mxu0
        %v7014 = vadd.f32 0.0, %v7013
        %v7015 = vpop.f32.mrb[0].mxu0
        %7016 = vmatprep.mubr.bf16.mxu0 0
        %7017 = vmatmul.mubr.bf16.gmra.mrb[0].mxu0 %v6952
        %v7018 = vpop.f32.mrb[0].mxu0
        %v7019 = vadd.f32 0.0, %v7018
        %v7020 = vpop.f32.mrb[0].mxu0
        %v7021 = vpop.f32.mrb[0].mxu0
        %v7022 = vadd.f32 0.0, %v7021
        %v7023 = vpop.f32.mrb[0].mxu0
        %7024 = vmatprep.mubr.bf16.mxu0 0
        %7025 = vmatmul.mubr.bf16.gmra.mrb[0].mxu0 %v6955
        %v7026 = vpop.f32.mrb[0].mxu0
        %v7027 = vadd.f32 0.0, %v7026
        %v7028 = vpop.f32.mrb[0].mxu0
        %v7029 = vpop.f32.mrb[0].mxu0
        %v7030 = vadd.f32 0.0, %v7029
        %v7031 = vpop.f32.mrb[0].mxu0
        %7032 = vmatprep.mubr.bf16.mxu0 0
        %7033 = vmatmul.mubr.bf16.gmra.mrb[0].mxu0 %v6958
        %v7034 = vpop.f32.mrb[0].mxu0
        %v7035 = vadd.f32 0.0, %v7034
        %v7036 = vpop.f32.mrb[0].mxu0
        %v7037 = vpop.f32.mrb[0].mxu0
        %v7038 = vpop.f32.mrb[0].mxu0
        %7039 = vdwg.mxu0
        %v7051 = vcombine.high %v6995, %v6995
        %v7053 = vunpack.c.l.s4 1966171168
        %v7054 = vunpack.c.0.s8 %v7053
        %v7055 = vlaneseq
        %v7056 = vshrl.u32 %v7055, 7
        %v7057 = vsub.s32 %v7054, %v7056
        %v7058 = vrot.slane %v6995, %v7057
        %v7060 = vunpack.c.l.s4 1966171168
        %v7061 = vunpack.c.0.s8 %v7060
        %v7062 = vlaneseq
        %v7063 = vshrl.u32 %v7062, 7
        %v7064 = vsub.s32 %v7061, %v7063
        %v7065 = vrot.slane %v7051, %v7064
        %v7066 = vcombine.high %v7058, %v7058
        %v7067 = vcombine.high %v7065, %v7065
        %v7069 = vunpack.c.l.s4 1966171168
        %v7070 = vunpack.c.0.s8 %v7069
        %v7071 = vlaneseq
        %v7072 = vshrl.u32 %v7071, 7
        %v7073 = vsub.s32 %v7070, %v7072
        %v7074 = vrot.slane %v7058, %v7073
        %v7076 = vunpack.c.l.s4 1966171168
        %v7077 = vunpack.c.0.s8 %v7076
        %v7078 = vlaneseq
        %v7079 = vshrl.u32 %v7078, 7
        %v7080 = vsub.s32 %v7077, %v7079
        %v7081 = vrot.slane %v7065, %v7080
        %v7083 = vunpack.c.l.s4 1966171168
        %v7084 = vunpack.c.0.s8 %v7083
        %v7085 = vlaneseq
        %v7086 = vshrl.u32 %v7085, 7
        %v7087 = vsub.s32 %v7084, %v7086
        %v7088 = vrot.slane %v7066, %v7087
        %v7090 = vunpack.c.l.s4 1966171168
        %v7091 = vunpack.c.0.s8 %v7090
        %v7092 = vlaneseq
        %v7093 = vshrl.u32 %v7092, 7
        %v7094 = vsub.s32 %v7091, %v7093
        %v7095 = vrot.slane %v7067, %v7094
        %v7096 = vcombine.high %v7074, %v7074
        %v7097 = vcombine.high %v7081, %v7081
        %v7098 = vcombine.high %v7088, %v7088
        %v7099 = vcombine.high %v7095, %v7095
        %v7100 = vcombine.high %v6998, %v6998
        %v7102 = vunpack.c.l.s4 1966171168
        %v7103 = vunpack.c.0.s8 %v7102
        %v7104 = vlaneseq
        %v7105 = vshrl.u32 %v7104, 7
        %v7106 = vsub.s32 %v7103, %v7105
        %v7107 = vrot.slane %v6998, %v7106
        %v7109 = vunpack.c.l.s4 1966171168
        %v7110 = vunpack.c.0.s8 %v7109
        %v7111 = vlaneseq
        %v7112 = vshrl.u32 %v7111, 7
        %v7113 = vsub.s32 %v7110, %v7112
        %v7114 = vrot.slane %v7100, %v7113
        %v7115 = vcombine.high %v7107, %v7107
        %v7116 = vcombine.high %v7114, %v7114
        %v7118 = vunpack.c.l.s4 1966171168
        %v7119 = vunpack.c.0.s8 %v7118
        %v7120 = vlaneseq
        %v7121 = vshrl.u32 %v7120, 7
        %v7122 = vsub.s32 %v7119, %v7121
        %v7123 = vrot.slane %v7107, %v7122
        %v7125 = vunpack.c.l.s4 1966171168
        %v7126 = vunpack.c.0.s8 %v7125
        %v7127 = vlaneseq
        %v7128 = vshrl.u32 %v7127, 7
        %v7129 = vsub.s32 %v7126, %v7128
        %v7130 = vrot.slane %v7114, %v7129
        %v7132 = vunpack.c.l.s4 1966171168
        %v7133 = vunpack.c.0.s8 %v7132
        %v7134 = vlaneseq
        %v7135 = vshrl.u32 %v7134, 7
        %v7136 = vsub.s32 %v7133, %v7135
        %v7137 = vrot.slane %v7115, %v7136
        %v7139 = vunpack.c.l.s4 1966171168
        %v7140 = vunpack.c.0.s8 %v7139
        %v7141 = vlaneseq
        %v7142 = vshrl.u32 %v7141, 7
        %v7143 = vsub.s32 %v7140, %v7142
        %v7144 = vrot.slane %v7116, %v7143
        %v7145 = vcombine.high %v7123, %v7123
        %v7146 = vcombine.high %v7130, %v7130
        %v7147 = vcombine.high %v7137, %v7137
        %v7148 = vcombine.high %v7144, %v7144
        %v7149 = vcombine.high %v7003, %v7003
        %v7151 = vunpack.c.l.s4 1966171168
        %v7152 = vunpack.c.0.s8 %v7151
        %v7153 = vlaneseq
        %v7154 = vshrl.u32 %v7153, 7
        %v7155 = vsub.s32 %v7152, %v7154
        %v7156 = vrot.slane %v7003, %v7155
        %v7158 = vunpack.c.l.s4 1966171168
        %v7159 = vunpack.c.0.s8 %v7158
        %v7160 = vlaneseq
        %v7161 = vshrl.u32 %v7160, 7
        %v7162 = vsub.s32 %v7159, %v7161
        %v7163 = vrot.slane %v7149, %v7162
        %v7164 = vcombine.high %v7156, %v7156
        %v7165 = vcombine.high %v7163, %v7163
        %v7167 = vunpack.c.l.s4 1966171168
        %v7168 = vunpack.c.0.s8 %v7167
        %v7169 = vlaneseq
        %v7170 = vshrl.u32 %v7169, 7
        %v7171 = vsub.s32 %v7168, %v7170
        %v7172 = vrot.slane %v7156, %v7171
        %v7174 = vunpack.c.l.s4 1966171168
        %v7175 = vunpack.c.0.s8 %v7174
        %v7176 = vlaneseq
        %v7177 = vshrl.u32 %v7176, 7
        %v7178 = vsub.s32 %v7175, %v7177
        %v7179 = vrot.slane %v7163, %v7178
        %v7181 = vunpack.c.l.s4 1966171168
        %v7182 = vunpack.c.0.s8 %v7181
        %v7183 = vlaneseq
        %v7184 = vshrl.u32 %v7183, 7
        %v7185 = vsub.s32 %v7182, %v7184
        %v7186 = vrot.slane %v7164, %v7185
        %v7188 = vunpack.c.l.s4 1966171168
        %v7189 = vunpack.c.0.s8 %v7188
        %v7190 = vlaneseq
        %v7191 = vshrl.u32 %v7190, 7
        %v7192 = vsub.s32 %v7189, %v7191
        %v7193 = vrot.slane %v7165, %v7192
        %v7194 = vcombine.high %v7172, %v7172
        %v7195 = vcombine.high %v7179, %v7179
        %v7196 = vcombine.high %v7186, %v7186
        %v7197 = vcombine.high %v7193, %v7193
        %v7198 = vcombine.high %v7006, %v7006
        %v7200 = vunpack.c.l.s4 1966171168
        %v7201 = vunpack.c.0.s8 %v7200
        %v7202 = vlaneseq
        %v7203 = vshrl.u32 %v7202, 7
        %v7204 = vsub.s32 %v7201, %v7203
        %v7205 = vrot.slane %v7006, %v7204
        %v7207 = vunpack.c.l.s4 1966171168
        %v7208 = vunpack.c.0.s8 %v7207
        %v7209 = vlaneseq
        %v7210 = vshrl.u32 %v7209, 7
        %v7211 = vsub.s32 %v7208, %v7210
        %v7212 = vrot.slane %v7198, %v7211
        %v7213 = vcombine.high %v7205, %v7205
        %v7214 = vcombine.high %v7212, %v7212
        %v7216 = vunpack.c.l.s4 1966171168
        %v7217 = vunpack.c.0.s8 %v7216
        %v7218 = vlaneseq
        %v7219 = vshrl.u32 %v7218, 7
        %v7220 = vsub.s32 %v7217, %v7219
        %v7221 = vrot.slane %v7205, %v7220
        %v7223 = vunpack.c.l.s4 1966171168
        %v7224 = vunpack.c.0.s8 %v7223
        %v7225 = vlaneseq
        %v7226 = vshrl.u32 %v7225, 7
        %v7227 = vsub.s32 %v7224, %v7226
        %v7228 = vrot.slane %v7212, %v7227
        %v7230 = vunpack.c.l.s4 1966171168
        %v7231 = vunpack.c.0.s8 %v7230
        %v7232 = vlaneseq
        %v7233 = vshrl.u32 %v7232, 7
        %v7234 = vsub.s32 %v7231, %v7233
        %v7235 = vrot.slane %v7213, %v7234
        %v7237 = vunpack.c.l.s4 1966171168
        %v7238 = vunpack.c.0.s8 %v7237
        %v7239 = vlaneseq
        %v7240 = vshrl.u32 %v7239, 7
        %v7241 = vsub.s32 %v7238, %v7240
        %v7242 = vrot.slane %v7214, %v7241
        %v7243 = vcombine.high %v7221, %v7221
        %v7244 = vcombine.high %v7228, %v7228
        %v7245 = vcombine.high %v7235, %v7235
        %v7246 = vcombine.high %v7242, %v7242
        %v7247 = vcombine.high %v7011, %v7011
        %v7249 = vunpack.c.l.s4 1966171168
        %v7250 = vunpack.c.0.s8 %v7249
        %v7251 = vlaneseq
        %v7252 = vshrl.u32 %v7251, 7
        %v7253 = vsub.s32 %v7250, %v7252
        %v7254 = vrot.slane %v7011, %v7253
        %v7256 = vunpack.c.l.s4 1966171168
        %v7257 = vunpack.c.0.s8 %v7256
        %v7258 = vlaneseq
        %v7259 = vshrl.u32 %v7258, 7
        %v7260 = vsub.s32 %v7257, %v7259
        %v7261 = vrot.slane %v7247, %v7260
        %v7262 = vcombine.high %v7254, %v7254
        %v7263 = vcombine.high %v7261, %v7261
        %v7265 = vunpack.c.l.s4 1966171168
        %v7266 = vunpack.c.0.s8 %v7265
        %v7267 = vlaneseq
        %v7268 = vshrl.u32 %v7267, 7
        %v7269 = vsub.s32 %v7266, %v7268
        %v7270 = vrot.slane %v7254, %v7269
        %v7272 = vunpack.c.l.s4 1966171168
        %v7273 = vunpack.c.0.s8 %v7272
        %v7274 = vlaneseq
        %v7275 = vshrl.u32 %v7274, 7
        %v7276 = vsub.s32 %v7273, %v7275
        %v7277 = vrot.slane %v7261, %v7276
        %v7279 = vunpack.c.l.s4 1966171168
        %v7280 = vunpack.c.0.s8 %v7279
        %v7281 = vlaneseq
        %v7282 = vshrl.u32 %v7281, 7
        %v7283 = vsub.s32 %v7280, %v7282
        %v7284 = vrot.slane %v7262, %v7283
        %v7286 = vunpack.c.l.s4 1966171168
        %v7287 = vunpack.c.0.s8 %v7286
        %v7288 = vlaneseq
        %v7289 = vshrl.u32 %v7288, 7
        %v7290 = vsub.s32 %v7287, %v7289
        %v7291 = vrot.slane %v7263, %v7290
        %v7292 = vcombine.high %v7270, %v7270
        %v7293 = vcombine.high %v7277, %v7277
        %v7294 = vcombine.high %v7284, %v7284
        %v7295 = vcombine.high %v7291, %v7291
        %v7296 = vcombine.high %v7014, %v7014
        %v7298 = vunpack.c.l.s4 1966171168
        %v7299 = vunpack.c.0.s8 %v7298
        %v7300 = vlaneseq
        %v7301 = vshrl.u32 %v7300, 7
        %v7302 = vsub.s32 %v7299, %v7301
        %v7303 = vrot.slane %v7014, %v7302
        %v7305 = vunpack.c.l.s4 1966171168
        %v7306 = vunpack.c.0.s8 %v7305
        %v7307 = vlaneseq
        %v7308 = vshrl.u32 %v7307, 7
        %v7309 = vsub.s32 %v7306, %v7308
        %v7310 = vrot.slane %v7296, %v7309
        %v7311 = vcombine.high %v7303, %v7303
        %v7312 = vcombine.high %v7310, %v7310
        %v7314 = vunpack.c.l.s4 1966171168
        %v7315 = vunpack.c.0.s8 %v7314
        %v7316 = vlaneseq
        %v7317 = vshrl.u32 %v7316, 7
        %v7318 = vsub.s32 %v7315, %v7317
        %v7319 = vrot.slane %v7303, %v7318
        %v7321 = vunpack.c.l.s4 1966171168
        %v7322 = vunpack.c.0.s8 %v7321
        %v7323 = vlaneseq
        %v7324 = vshrl.u32 %v7323, 7
        %v7325 = vsub.s32 %v7322, %v7324
        %v7326 = vrot.slane %v7310, %v7325
        %v7328 = vunpack.c.l.s4 1966171168
        %v7329 = vunpack.c.0.s8 %v7328
        %v7330 = vlaneseq
        %v7331 = vshrl.u32 %v7330, 7
        %v7332 = vsub.s32 %v7329, %v7331
        %v7333 = vrot.slane %v7311, %v7332
        %v7335 = vunpack.c.l.s4 1966171168
        %v7336 = vunpack.c.0.s8 %v7335
        %v7337 = vlaneseq
        %v7338 = vshrl.u32 %v7337, 7
        %v7339 = vsub.s32 %v7336, %v7338
        %v7340 = vrot.slane %v7312, %v7339
        %v7341 = vcombine.high %v7319, %v7319
        %v7342 = vcombine.high %v7326, %v7326
        %v7343 = vcombine.high %v7333, %v7333
        %v7344 = vcombine.high %v7340, %v7340
        %v7345 = vcombine.high %v7019, %v7019
        %v7347 = vunpack.c.l.s4 1966171168
        %v7348 = vunpack.c.0.s8 %v7347
        %v7349 = vlaneseq
        %v7350 = vshrl.u32 %v7349, 7
        %v7351 = vsub.s32 %v7348, %v7350
        %v7352 = vrot.slane %v7019, %v7351
        %v7354 = vunpack.c.l.s4 1966171168
        %v7355 = vunpack.c.0.s8 %v7354
        %v7356 = vlaneseq
        %v7357 = vshrl.u32 %v7356, 7
        %v7358 = vsub.s32 %v7355, %v7357
        %v7359 = vrot.slane %v7345, %v7358
        %v7360 = vcombine.high %v7352, %v7352
        %v7361 = vcombine.high %v7359, %v7359
        %v7363 = vunpack.c.l.s4 1966171168
        %v7364 = vunpack.c.0.s8 %v7363
        %v7365 = vlaneseq
        %v7366 = vshrl.u32 %v7365, 7
        %v7367 = vsub.s32 %v7364, %v7366
        %v7368 = vrot.slane %v7352, %v7367
        %v7370 = vunpack.c.l.s4 1966171168
        %v7371 = vunpack.c.0.s8 %v7370
        %v7372 = vlaneseq
        %v7373 = vshrl.u32 %v7372, 7
        %v7374 = vsub.s32 %v7371, %v7373
        %v7375 = vrot.slane %v7359, %v7374
        %v7377 = vunpack.c.l.s4 1966171168
        %v7378 = vunpack.c.0.s8 %v7377
        %v7379 = vlaneseq
        %v7380 = vshrl.u32 %v7379, 7
        %v7381 = vsub.s32 %v7378, %v7380
        %v7382 = vrot.slane %v7360, %v7381
        %v7384 = vunpack.c.l.s4 1966171168
        %v7385 = vunpack.c.0.s8 %v7384
        %v7386 = vlaneseq
        %v7387 = vshrl.u32 %v7386, 7
        %v7388 = vsub.s32 %v7385, %v7387
        %v7389 = vrot.slane %v7361, %v7388
        %v7390 = vcombine.high %v7368, %v7368
        %v7391 = vcombine.high %v7375, %v7375
        %v7392 = vcombine.high %v7382, %v7382
        %v7393 = vcombine.high %v7389, %v7389
        %v7394 = vcombine.high %v7022, %v7022
        %v7396 = vunpack.c.l.s4 1966171168
        %v7397 = vunpack.c.0.s8 %v7396
        %v7398 = vlaneseq
        %v7399 = vshrl.u32 %v7398, 7
        %v7400 = vsub.s32 %v7397, %v7399
        %v7401 = vrot.slane %v7022, %v7400
        %v7403 = vunpack.c.l.s4 1966171168
        %v7404 = vunpack.c.0.s8 %v7403
        %v7405 = vlaneseq
        %v7406 = vshrl.u32 %v7405, 7
        %v7407 = vsub.s32 %v7404, %v7406
        %v7408 = vrot.slane %v7394, %v7407
        %v7409 = vcombine.high %v7401, %v7401
        %v7410 = vcombine.high %v7408, %v7408
        %v7412 = vunpack.c.l.s4 1966171168
        %v7413 = vunpack.c.0.s8 %v7412
        %v7414 = vlaneseq
        %v7415 = vshrl.u32 %v7414, 7
        %v7416 = vsub.s32 %v7413, %v7415
        %v7417 = vrot.slane %v7401, %v7416
        %v7419 = vunpack.c.l.s4 1966171168
        %v7420 = vunpack.c.0.s8 %v7419
        %v7421 = vlaneseq
        %v7422 = vshrl.u32 %v7421, 7
        %v7423 = vsub.s32 %v7420, %v7422
        %v7424 = vrot.slane %v7408, %v7423
        %v7426 = vunpack.c.l.s4 1966171168
        %v7427 = vunpack.c.0.s8 %v7426
        %v7428 = vlaneseq
        %v7429 = vshrl.u32 %v7428, 7
        %v7430 = vsub.s32 %v7427, %v7429
        %v7431 = vrot.slane %v7409, %v7430
        %v7433 = vunpack.c.l.s4 1966171168
        %v7434 = vunpack.c.0.s8 %v7433
        %v7435 = vlaneseq
        %v7436 = vshrl.u32 %v7435, 7
        %v7437 = vsub.s32 %v7434, %v7436
        %v7438 = vrot.slane %v7410, %v7437
        %v7439 = vcombine.high %v7417, %v7417
        %v7440 = vcombine.high %v7424, %v7424
        %v7441 = vcombine.high %v7431, %v7431
        %v7442 = vcombine.high %v7438, %v7438
        %v7443 = vcombine.high %v7027, %v7027
        %v7445 = vunpack.c.l.s4 1966171168
        %v7446 = vunpack.c.0.s8 %v7445
        %v7447 = vlaneseq
        %v7448 = vshrl.u32 %v7447, 7
        %v7449 = vsub.s32 %v7446, %v7448
        %v7450 = vrot.slane %v7027, %v7449
        %v7452 = vunpack.c.l.s4 1966171168
        %v7453 = vunpack.c.0.s8 %v7452
        %v7454 = vlaneseq
        %v7455 = vshrl.u32 %v7454, 7
        %v7456 = vsub.s32 %v7453, %v7455
        %v7457 = vrot.slane %v7443, %v7456
        %v7458 = vcombine.high %v7450, %v7450
        %v7459 = vcombine.high %v7457, %v7457
        %v7461 = vunpack.c.l.s4 1966171168
        %v7462 = vunpack.c.0.s8 %v7461
        %v7463 = vlaneseq
        %v7464 = vshrl.u32 %v7463, 7
        %v7465 = vsub.s32 %v7462, %v7464
        %v7466 = vrot.slane %v7450, %v7465
        %v7468 = vunpack.c.l.s4 1966171168
        %v7469 = vunpack.c.0.s8 %v7468
        %v7470 = vlaneseq
        %v7471 = vshrl.u32 %v7470, 7
        %v7472 = vsub.s32 %v7469, %v7471
        %v7473 = vrot.slane %v7457, %v7472
        %v7475 = vunpack.c.l.s4 1966171168
        %v7476 = vunpack.c.0.s8 %v7475
        %v7477 = vlaneseq
        %v7478 = vshrl.u32 %v7477, 7
        %v7479 = vsub.s32 %v7476, %v7478
        %v7480 = vrot.slane %v7458, %v7479
        %v7482 = vunpack.c.l.s4 1966171168
        %v7483 = vunpack.c.0.s8 %v7482
        %v7484 = vlaneseq
        %v7485 = vshrl.u32 %v7484, 7
        %v7486 = vsub.s32 %v7483, %v7485
        %v7487 = vrot.slane %v7459, %v7486
        %v7488 = vcombine.high %v7466, %v7466
        %v7489 = vcombine.high %v7473, %v7473
        %v7490 = vcombine.high %v7480, %v7480
        %v7491 = vcombine.high %v7487, %v7487
        %v7492 = vcombine.high %v7030, %v7030
        %v7494 = vunpack.c.l.s4 1966171168
        %v7495 = vunpack.c.0.s8 %v7494
        %v7496 = vlaneseq
        %v7497 = vshrl.u32 %v7496, 7
        %v7498 = vsub.s32 %v7495, %v7497
        %v7499 = vrot.slane %v7030, %v7498
        %v7501 = vunpack.c.l.s4 1966171168
        %v7502 = vunpack.c.0.s8 %v7501
        %v7503 = vlaneseq
        %v7504 = vshrl.u32 %v7503, 7
        %v7505 = vsub.s32 %v7502, %v7504
        %v7506 = vrot.slane %v7492, %v7505
        %v7507 = vcombine.high %v7499, %v7499
        %v7508 = vcombine.high %v7506, %v7506
        %v7510 = vunpack.c.l.s4 1966171168
        %v7511 = vunpack.c.0.s8 %v7510
        %v7512 = vlaneseq
        %v7513 = vshrl.u32 %v7512, 7
        %v7514 = vsub.s32 %v7511, %v7513
        %v7515 = vrot.slane %v7499, %v7514
        %v7517 = vunpack.c.l.s4 1966171168
        %v7518 = vunpack.c.0.s8 %v7517
        %v7519 = vlaneseq
        %v7520 = vshrl.u32 %v7519, 7
        %v7521 = vsub.s32 %v7518, %v7520
        %v7522 = vrot.slane %v7506, %v7521
        %v7524 = vunpack.c.l.s4 1966171168
        %v7525 = vunpack.c.0.s8 %v7524
        %v7526 = vlaneseq
        %v7527 = vshrl.u32 %v7526, 7
        %v7528 = vsub.s32 %v7525, %v7527
        %v7529 = vrot.slane %v7507, %v7528
        %v7531 = vunpack.c.l.s4 1966171168
        %v7532 = vunpack.c.0.s8 %v7531
        %v7533 = vlaneseq
        %v7534 = vshrl.u32 %v7533, 7
        %v7535 = vsub.s32 %v7532, %v7534
        %v7536 = vrot.slane %v7508, %v7535
        %v7537 = vcombine.high %v7515, %v7515
        %v7538 = vcombine.high %v7522, %v7522
        %v7539 = vcombine.high %v7529, %v7529
        %v7540 = vcombine.high %v7536, %v7536
        %v7542 = vunpack.c.l.s4 1966171168
        %v7543 = vunpack.c.0.s8 %v7542
        %v7544 = vlaneseq
        %v7545 = vshrl.u32 %v7544, 7
        %v7546 = vsub.s32 %v7543, %v7545
        %v7547 = vrot.slane %v7035, %v7546
        %v7549 = vunpack.c.l.s4 1966171168
        %v7550 = vunpack.c.0.s8 %v7549
        %v7551 = vlaneseq
        %v7552 = vshrl.u32 %v7551, 7
        %v7553 = vsub.s32 %v7550, %v7552
        %v7554 = vrot.slane %v7547, %v7553
        %s7636 = scalar_select %p2006, 8, 4294967295
        %v7637 = vstv %s7636
        %vm7638 = vcmp.ne.s32.totalorder %v7637, 0
        %vm7639 = vcmp.ne.s32.totalorder %v7637, 1
        %vm7640 = vcmp.ne.s32.totalorder %v7637, 2
        %vm7641 = vcmp.ne.s32.totalorder %v7637, 3
        %vm7642 = vcmp.ne.s32.totalorder %v7637, 4
        %vm7643 = vcmp.ne.s32.totalorder %v7637, 5
        %vm7644 = vcmp.ne.s32.totalorder %v7637, 6
        %vm7645 = vcmp.ne.s32.totalorder %v7637, 7
        %vm7646 = vcmp.ne.s32.totalorder %v7637, 8
        %vm7647 = vmand %vm7638, %vm2018
        %vm7648 = vmand %vm7638, %vm2019
        %vm7649 = vmand %vm7639, %vm2018
        %vm7650 = vmand %vm7639, %vm2019
        %vm7651 = vmand %vm7640, %vm2018
        %vm7652 = vmand %vm7640, %vm2019
        %vm7653 = vmand %vm7641, %vm2018
        %vm7654 = vmand %vm7641, %vm2019
        %vm7655 = vmand %vm7642, %vm2018
        %vm7656 = vmand %vm7642, %vm2019
        %vm7657 = vmand %vm7643, %vm2018
        %vm7658 = vmand %vm7643, %vm2019
        %vm7659 = vmand %vm7644, %vm2018
        %vm7660 = vmand %vm7644, %vm2019
        %vm7661 = vmand %vm7645, %vm2018
        %vm7662 = vmand %vm7645, %vm2019
        %vm7663 = vmand %vm7646, %vm2018
        %vm7664 = vmand %vm7646, %vm2019
        %v7665 = vadd.f32 %v7074, %v2066
        %v7666 = vadd.f32 %v7088, %v2080
        %v7667 = vadd.f32 %v7096, %v2088
        %v7668 = vadd.f32 %v7098, %v2090
        %v7669 = vadd.f32 %v7081, %v2073
        %v7670 = vadd.f32 %v7095, %v2087
        %v7671 = vadd.f32 %v7097, %v2089
        %v7672 = vadd.f32 %v7099, %v2091
        %v7673 = vadd.f32 %v7123, %v2066
        %v7674 = vadd.f32 %v7137, %v2066
        %v7675 = vadd.f32 %v7145, %v2080
        %v7676 = vadd.f32 %v7147, %v2088
        %v7677 = vadd.f32 %v7130, %v2090
        %v7678 = vadd.f32 %v7144, %v2073
        %v7679 = vadd.f32 %v7146, %v2087
        %v7680 = vadd.f32 %v7148, %v2089
        %v7681 = vadd.f32 %v7172, %v2091
        %v7682 = vadd.f32 %v7186, %v2066
        %v7683 = vadd.f32 %v7194, %v2066
        %v7684 = vadd.f32 %v7196, %v2080
        %v7685 = vadd.f32 %v7179, %v2088
        %v7686 = vadd.f32 %v7193, %v2090
        %v7687 = vadd.f32 %v7195, %v2073
        %v7688 = vadd.f32 %v7197, %v2087
        %v7689 = vadd.f32 %v7221, %v2089
        %v7690 = vadd.f32 %v7235, %v2091
        %v7691 = vadd.f32 %v7243, %v2066
        %v7692 = vadd.f32 %v7245, %v2066
        %v7693 = vadd.f32 %v7228, %v2080
        %v7694 = vadd.f32 %v7242, %v2088
        %v7695 = vadd.f32 %v7244, %v2090
        %v7696 = vadd.f32 %v7246, %v2073
        %v7697 = vadd.f32 %v7270, %v2087
        %v7698 = vadd.f32 %v7284, %v2089
        %v7699 = vadd.f32 %v7292, %v2091
        %v7700 = vadd.f32 %v7294, %v2066
        %v7701 = vadd.f32 %v7277, %v2066
        %v7702 = vadd.f32 %v7291, %v2080
        %v7703 = vadd.f32 %v7293, %v2088
        %v7704 = vadd.f32 %v7295, %v2090
        %v7705 = vadd.f32 %v7319, %v2073
        %v7706 = vadd.f32 %v7333, %v2087
        %v7707 = vadd.f32 %v7341, %v2089
        %v7708 = vadd.f32 %v7343, %v2091
        %v7709 = vadd.f32 %v7326, %v2066
        %v7710 = vadd.f32 %v7340, %v2066
        %v7711 = vadd.f32 %v7342, %v2080
        %v7712 = vadd.f32 %v7344, %v2088
        %v7713 = vadd.f32 %v7368, %v2090
        %v7714 = vadd.f32 %v7382, %v2073
        %v7715 = vadd.f32 %v7390, %v2087
        %v7716 = vadd.f32 %v7392, %v2089
        %v7717 = vadd.f32 %v7375, %v2091
        %v7718 = vadd.f32 %v7389, %v2066
        %v7719 = vadd.f32 %v7391, %v2066
        %v7720 = vadd.f32 %v7393, %v2080
        %v7721 = vadd.f32 %v7417, %v2088
        %v7722 = vadd.f32 %v7431, %v2090
        %v7723 = vadd.f32 %v7439, %v2073
        %v7724 = vadd.f32 %v7441, %v2087
        %v7725 = vadd.f32 %v7424, %v2089
        %v7726 = vadd.f32 %v7438, %v2091
        %v7727 = vadd.f32 %v7440, %v2066
        %v7728 = vadd.f32 %v7442, %v2066
        %v7729 = vadd.f32 %v7466, %v2080
        %v7730 = vadd.f32 %v7480, %v2088
        %v7731 = vadd.f32 %v7488, %v2090
        %v7732 = vadd.f32 %v7490, %v2073
        %v7733 = vadd.f32 %v7473, %v2087
        %v7734 = vadd.f32 %v7487, %v2089
        %v7735 = vadd.f32 %v7489, %v2091
        %v7736 = vadd.f32 %v7491, %v2066
        %v7737 = vadd.f32 %v7515, %v2066
        %v7738 = vadd.f32 %v7529, %v2080
        %v7739 = vadd.f32 %v7537, %v2088
        %v7740 = vadd.f32 %v7539, %v2090
        %v7741 = vadd.f32 %v7522, %v2073
        %v7742 = vadd.f32 %v7536, %v2087
        %v7743 = vadd.f32 %v7538, %v2089
        %v7744 = vadd.f32 %v7540, %v2091
        %v7745 = vadd.f32 %v7554, %v2066
        %v7827 = vcombine.low %v7665, %v7666
        %v7828 = vcombine.low %v7667, %v7668
        %v7829 = vcombine.low %v7669, %v7670
        %v7830 = vcombine.low %v7671, %v7672
        %v7832 = vunpack.c.l.s4 1966171168
        %v7833 = vunpack.c.0.s8 %v7832
        %v7834 = vlaneseq
        %v7835 = vshrl.u32 %v7834, 7
        %v7836 = vsub.s32 %v7833, %v7835
        %v7837 = vrot.slane %v7827, %v7836
        %v7839 = vunpack.c.l.s4 1966171168
        %v7840 = vunpack.c.0.s8 %v7839
        %v7841 = vlaneseq
        %v7842 = vshrl.u32 %v7841, 7
        %v7843 = vsub.s32 %v7840, %v7842
        %v7844 = vrot.slane %v7828, %v7843
        %v7846 = vunpack.c.l.s4 1966171168
        %v7847 = vunpack.c.0.s8 %v7846
        %v7848 = vlaneseq
        %v7849 = vshrl.u32 %v7848, 7
        %v7850 = vsub.s32 %v7847, %v7849
        %v7851 = vrot.slane %v7829, %v7850
        %v7853 = vunpack.c.l.s4 1966171168
        %v7854 = vunpack.c.0.s8 %v7853
        %v7855 = vlaneseq
        %v7856 = vshrl.u32 %v7855, 7
        %v7857 = vsub.s32 %v7854, %v7856
        %v7858 = vrot.slane %v7830, %v7857
        %v7859 = vcombine.low %v7837, %v7844
        %v7860 = vcombine.low %v7851, %v7858
        %v7862 = vunpack.c.l.s4 1966171168
        %v7863 = vunpack.c.0.s8 %v7862
        %v7864 = vlaneseq
        %v7865 = vshrl.u32 %v7864, 7
        %v7866 = vsub.s32 %v7863, %v7865
        %v7867 = vrot.slane %v7859, %v7866
        %v7869 = vunpack.c.l.s4 1966171168
        %v7870 = vunpack.c.0.s8 %v7869
        %v7871 = vlaneseq
        %v7872 = vshrl.u32 %v7871, 7
        %v7873 = vsub.s32 %v7870, %v7872
        %v7874 = vrot.slane %v7860, %v7873
        %v7875 = vcombine.low %v7867, %v7874
        %v7877 = vunpack.c.l.s4 1966171168
        %v7878 = vunpack.c.0.s8 %v7877
        %v7879 = vlaneseq
        %v7880 = vshrl.u32 %v7879, 7
        %v7881 = vsub.s32 %v7878, %v7880
        %v7882 = vrot.slane %v7673, %v7881
        %v7884 = vunpack.c.l.s4 1966171168
        %v7885 = vunpack.c.0.s8 %v7884
        %v7886 = vlaneseq
        %v7887 = vshrl.u32 %v7886, 7
        %v7888 = vsub.s32 %v7885, %v7887
        %v7889 = vrot.slane %v7882, %v7888
        %v7890 = vcombine.low %v7674, %v7675
        %v7891 = vcombine.low %v7676, %v7677
        %v7892 = vcombine.low %v7678, %v7679
        %v7893 = vcombine.low %v7680, %v7681
        %v7895 = vunpack.c.l.s4 1966171168
        %v7896 = vunpack.c.0.s8 %v7895
        %v7897 = vlaneseq
        %v7898 = vshrl.u32 %v7897, 7
        %v7899 = vsub.s32 %v7896, %v7898
        %v7900 = vrot.slane %v7890, %v7899
        %v7902 = vunpack.c.l.s4 1966171168
        %v7903 = vunpack.c.0.s8 %v7902
        %v7904 = vlaneseq
        %v7905 = vshrl.u32 %v7904, 7
        %v7906 = vsub.s32 %v7903, %v7905
        %v7907 = vrot.slane %v7891, %v7906
        %v7909 = vunpack.c.l.s4 1966171168
        %v7910 = vunpack.c.0.s8 %v7909
        %v7911 = vlaneseq
        %v7912 = vshrl.u32 %v7911, 7
        %v7913 = vsub.s32 %v7910, %v7912
        %v7914 = vrot.slane %v7892, %v7913
        %v7916 = vunpack.c.l.s4 1966171168
        %v7917 = vunpack.c.0.s8 %v7916
        %v7918 = vlaneseq
        %v7919 = vshrl.u32 %v7918, 7
        %v7920 = vsub.s32 %v7917, %v7919
        %v7921 = vrot.slane %v7893, %v7920
        %v7922 = vcombine.low %v7900, %v7907
        %v7923 = vcombine.low %v7914, %v7921
        %v7925 = vunpack.c.l.s4 1966171168
        %v7926 = vunpack.c.0.s8 %v7925
        %v7927 = vlaneseq
        %v7928 = vshrl.u32 %v7927, 7
        %v7929 = vsub.s32 %v7926, %v7928
        %v7930 = vrot.slane %v7922, %v7929
        %v7932 = vunpack.c.l.s4 1966171168
        %v7933 = vunpack.c.0.s8 %v7932
        %v7934 = vlaneseq
        %v7935 = vshrl.u32 %v7934, 7
        %v7936 = vsub.s32 %v7933, %v7935
        %v7937 = vrot.slane %v7923, %v7936
        %v7938 = vcombine.low %v7930, %v7937
        %v7940 = vunpack.c.l.s4 1966171168
        %v7941 = vunpack.c.0.s8 %v7940
        %v7942 = vlaneseq
        %v7943 = vshrl.u32 %v7942, 7
        %v7944 = vsub.s32 %v7941, %v7943
        %v7945 = vrot.slane %v7682, %v7944
        %v7947 = vunpack.c.l.s4 1966171168
        %v7948 = vunpack.c.0.s8 %v7947
        %v7949 = vlaneseq
        %v7950 = vshrl.u32 %v7949, 7
        %v7951 = vsub.s32 %v7948, %v7950
        %v7952 = vrot.slane %v7945, %v7951
        %v7953 = vcombine.low %v7683, %v7684
        %v7954 = vcombine.low %v7685, %v7686
        %v7955 = vcombine.low %v7687, %v7688
        %v7956 = vcombine.low %v7689, %v7690
        %v7958 = vunpack.c.l.s4 1966171168
        %v7959 = vunpack.c.0.s8 %v7958
        %v7960 = vlaneseq
        %v7961 = vshrl.u32 %v7960, 7
        %v7962 = vsub.s32 %v7959, %v7961
        %v7963 = vrot.slane %v7953, %v7962
        %v7965 = vunpack.c.l.s4 1966171168
        %v7966 = vunpack.c.0.s8 %v7965
        %v7967 = vlaneseq
        %v7968 = vshrl.u32 %v7967, 7
        %v7969 = vsub.s32 %v7966, %v7968
        %v7970 = vrot.slane %v7954, %v7969
        %v7972 = vunpack.c.l.s4 1966171168
        %v7973 = vunpack.c.0.s8 %v7972
        %v7974 = vlaneseq
        %v7975 = vshrl.u32 %v7974, 7
        %v7976 = vsub.s32 %v7973, %v7975
        %v7977 = vrot.slane %v7955, %v7976
        %v7979 = vunpack.c.l.s4 1966171168
        %v7980 = vunpack.c.0.s8 %v7979
        %v7981 = vlaneseq
        %v7982 = vshrl.u32 %v7981, 7
        %v7983 = vsub.s32 %v7980, %v7982
        %v7984 = vrot.slane %v7956, %v7983
        %v7985 = vcombine.low %v7963, %v7970
        %v7986 = vcombine.low %v7977, %v7984
        %v7988 = vunpack.c.l.s4 1966171168
        %v7989 = vunpack.c.0.s8 %v7988
        %v7990 = vlaneseq
        %v7991 = vshrl.u32 %v7990, 7
        %v7992 = vsub.s32 %v7989, %v7991
        %v7993 = vrot.slane %v7985, %v7992
        %v7995 = vunpack.c.l.s4 1966171168
        %v7996 = vunpack.c.0.s8 %v7995
        %v7997 = vlaneseq
        %v7998 = vshrl.u32 %v7997, 7
        %v7999 = vsub.s32 %v7996, %v7998
        %v8000 = vrot.slane %v7986, %v7999
        %v8001 = vcombine.low %v7993, %v8000
        %v8003 = vunpack.c.l.s4 1966171168
        %v8004 = vunpack.c.0.s8 %v8003
        %v8005 = vlaneseq
        %v8006 = vshrl.u32 %v8005, 7
        %v8007 = vsub.s32 %v8004, %v8006
        %v8008 = vrot.slane %v7691, %v8007
        %v8010 = vunpack.c.l.s4 1966171168
        %v8011 = vunpack.c.0.s8 %v8010
        %v8012 = vlaneseq
        %v8013 = vshrl.u32 %v8012, 7
        %v8014 = vsub.s32 %v8011, %v8013
        %v8015 = vrot.slane %v8008, %v8014
        %v8016 = vcombine.low %v7692, %v7693
        %v8017 = vcombine.low %v7694, %v7695
        %v8018 = vcombine.low %v7696, %v7697
        %v8019 = vcombine.low %v7698, %v7699
        %v8021 = vunpack.c.l.s4 1966171168
        %v8022 = vunpack.c.0.s8 %v8021
        %v8023 = vlaneseq
        %v8024 = vshrl.u32 %v8023, 7
        %v8025 = vsub.s32 %v8022, %v8024
        %v8026 = vrot.slane %v8016, %v8025
        %v8028 = vunpack.c.l.s4 1966171168
        %v8029 = vunpack.c.0.s8 %v8028
        %v8030 = vlaneseq
        %v8031 = vshrl.u32 %v8030, 7
        %v8032 = vsub.s32 %v8029, %v8031
        %v8033 = vrot.slane %v8017, %v8032
        %v8035 = vunpack.c.l.s4 1966171168
        %v8036 = vunpack.c.0.s8 %v8035
        %v8037 = vlaneseq
        %v8038 = vshrl.u32 %v8037, 7
        %v8039 = vsub.s32 %v8036, %v8038
        %v8040 = vrot.slane %v8018, %v8039
        %v8042 = vunpack.c.l.s4 1966171168
        %v8043 = vunpack.c.0.s8 %v8042
        %v8044 = vlaneseq
        %v8045 = vshrl.u32 %v8044, 7
        %v8046 = vsub.s32 %v8043, %v8045
        %v8047 = vrot.slane %v8019, %v8046
        %v8048 = vcombine.low %v8026, %v8033
        %v8049 = vcombine.low %v8040, %v8047
        %v8051 = vunpack.c.l.s4 1966171168
        %v8052 = vunpack.c.0.s8 %v8051
        %v8053 = vlaneseq
        %v8054 = vshrl.u32 %v8053, 7
        %v8055 = vsub.s32 %v8052, %v8054
        %v8056 = vrot.slane %v8048, %v8055
        %v8058 = vunpack.c.l.s4 1966171168
        %v8059 = vunpack.c.0.s8 %v8058
        %v8060 = vlaneseq
        %v8061 = vshrl.u32 %v8060, 7
        %v8062 = vsub.s32 %v8059, %v8061
        %v8063 = vrot.slane %v8049, %v8062
        %v8064 = vcombine.low %v8056, %v8063
        %v8066 = vunpack.c.l.s4 1966171168
        %v8067 = vunpack.c.0.s8 %v8066
        %v8068 = vlaneseq
        %v8069 = vshrl.u32 %v8068, 7
        %v8070 = vsub.s32 %v8067, %v8069
        %v8071 = vrot.slane %v7700, %v8070
        %v8073 = vunpack.c.l.s4 1966171168
        %v8074 = vunpack.c.0.s8 %v8073
        %v8075 = vlaneseq
        %v8076 = vshrl.u32 %v8075, 7
        %v8077 = vsub.s32 %v8074, %v8076
        %v8078 = vrot.slane %v8071, %v8077
        %v8079 = vcombine.low %v7701, %v7702
        %v8080 = vcombine.low %v7703, %v7704
        %v8081 = vcombine.low %v7705, %v7706
        %v8082 = vcombine.low %v7707, %v7708
        %v8084 = vunpack.c.l.s4 1966171168
        %v8085 = vunpack.c.0.s8 %v8084
        %v8086 = vlaneseq
        %v8087 = vshrl.u32 %v8086, 7
        %v8088 = vsub.s32 %v8085, %v8087
        %v8089 = vrot.slane %v8079, %v8088
        %v8091 = vunpack.c.l.s4 1966171168
        %v8092 = vunpack.c.0.s8 %v8091
        %v8093 = vlaneseq
        %v8094 = vshrl.u32 %v8093, 7
        %v8095 = vsub.s32 %v8092, %v8094
        %v8096 = vrot.slane %v8080, %v8095
        %v8098 = vunpack.c.l.s4 1966171168
        %v8099 = vunpack.c.0.s8 %v8098
        %v8100 = vlaneseq
        %v8101 = vshrl.u32 %v8100, 7
        %v8102 = vsub.s32 %v8099, %v8101
        %v8103 = vrot.slane %v8081, %v8102
        %v8105 = vunpack.c.l.s4 1966171168
        %v8106 = vunpack.c.0.s8 %v8105
        %v8107 = vlaneseq
        %v8108 = vshrl.u32 %v8107, 7
        %v8109 = vsub.s32 %v8106, %v8108
        %v8110 = vrot.slane %v8082, %v8109
        %v8111 = vcombine.low %v8089, %v8096
        %v8112 = vcombine.low %v8103, %v8110
        %v8114 = vunpack.c.l.s4 1966171168
        %v8115 = vunpack.c.0.s8 %v8114
        %v8116 = vlaneseq
        %v8117 = vshrl.u32 %v8116, 7
        %v8118 = vsub.s32 %v8115, %v8117
        %v8119 = vrot.slane %v8111, %v8118
        %v8121 = vunpack.c.l.s4 1966171168
        %v8122 = vunpack.c.0.s8 %v8121
        %v8123 = vlaneseq
        %v8124 = vshrl.u32 %v8123, 7
        %v8125 = vsub.s32 %v8122, %v8124
        %v8126 = vrot.slane %v8112, %v8125
        %v8127 = vcombine.low %v8119, %v8126
        %v8129 = vunpack.c.l.s4 1966171168
        %v8130 = vunpack.c.0.s8 %v8129
        %v8131 = vlaneseq
        %v8132 = vshrl.u32 %v8131, 7
        %v8133 = vsub.s32 %v8130, %v8132
        %v8134 = vrot.slane %v7709, %v8133
        %v8136 = vunpack.c.l.s4 1966171168
        %v8137 = vunpack.c.0.s8 %v8136
        %v8138 = vlaneseq
        %v8139 = vshrl.u32 %v8138, 7
        %v8140 = vsub.s32 %v8137, %v8139
        %v8141 = vrot.slane %v8134, %v8140
        %v8142 = vcombine.low %v7710, %v7711
        %v8143 = vcombine.low %v7712, %v7713
        %v8144 = vcombine.low %v7714, %v7715
        %v8145 = vcombine.low %v7716, %v7717
        %v8147 = vunpack.c.l.s4 1966171168
        %v8148 = vunpack.c.0.s8 %v8147
        %v8149 = vlaneseq
        %v8150 = vshrl.u32 %v8149, 7
        %v8151 = vsub.s32 %v8148, %v8150
        %v8152 = vrot.slane %v8142, %v8151
        %v8154 = vunpack.c.l.s4 1966171168
        %v8155 = vunpack.c.0.s8 %v8154
        %v8156 = vlaneseq
        %v8157 = vshrl.u32 %v8156, 7
        %v8158 = vsub.s32 %v8155, %v8157
        %v8159 = vrot.slane %v8143, %v8158
        %v8161 = vunpack.c.l.s4 1966171168
        %v8162 = vunpack.c.0.s8 %v8161
        %v8163 = vlaneseq
        %v8164 = vshrl.u32 %v8163, 7
        %v8165 = vsub.s32 %v8162, %v8164
        %v8166 = vrot.slane %v8144, %v8165
        %v8168 = vunpack.c.l.s4 1966171168
        %v8169 = vunpack.c.0.s8 %v8168
        %v8170 = vlaneseq
        %v8171 = vshrl.u32 %v8170, 7
        %v8172 = vsub.s32 %v8169, %v8171
        %v8173 = vrot.slane %v8145, %v8172
        %v8174 = vcombine.low %v8152, %v8159
        %v8175 = vcombine.low %v8166, %v8173
        %v8177 = vunpack.c.l.s4 1966171168
        %v8178 = vunpack.c.0.s8 %v8177
        %v8179 = vlaneseq
        %v8180 = vshrl.u32 %v8179, 7
        %v8181 = vsub.s32 %v8178, %v8180
        %v8182 = vrot.slane %v8174, %v8181
        %v8184 = vunpack.c.l.s4 1966171168
        %v8185 = vunpack.c.0.s8 %v8184
        %v8186 = vlaneseq
        %v8187 = vshrl.u32 %v8186, 7
        %v8188 = vsub.s32 %v8185, %v8187
        %v8189 = vrot.slane %v8175, %v8188
        %v8190 = vcombine.low %v8182, %v8189
        %v8192 = vunpack.c.l.s4 1966171168
        %v8193 = vunpack.c.0.s8 %v8192
        %v8194 = vlaneseq
        %v8195 = vshrl.u32 %v8194, 7
        %v8196 = vsub.s32 %v8193, %v8195
        %v8197 = vrot.slane %v7718, %v8196
        %v8199 = vunpack.c.l.s4 1966171168
        %v8200 = vunpack.c.0.s8 %v8199
        %v8201 = vlaneseq
        %v8202 = vshrl.u32 %v8201, 7
        %v8203 = vsub.s32 %v8200, %v8202
        %v8204 = vrot.slane %v8197, %v8203
        %v8205 = vcombine.low %v7719, %v7720
        %v8206 = vcombine.low %v7721, %v7722
        %v8207 = vcombine.low %v7723, %v7724
        %v8208 = vcombine.low %v7725, %v7726
        %v8210 = vunpack.c.l.s4 1966171168
        %v8211 = vunpack.c.0.s8 %v8210
        %v8212 = vlaneseq
        %v8213 = vshrl.u32 %v8212, 7
        %v8214 = vsub.s32 %v8211, %v8213
        %v8215 = vrot.slane %v8205, %v8214
        %v8217 = vunpack.c.l.s4 1966171168
        %v8218 = vunpack.c.0.s8 %v8217
        %v8219 = vlaneseq
        %v8220 = vshrl.u32 %v8219, 7
        %v8221 = vsub.s32 %v8218, %v8220
        %v8222 = vrot.slane %v8206, %v8221
        %v8224 = vunpack.c.l.s4 1966171168
        %v8225 = vunpack.c.0.s8 %v8224
        %v8226 = vlaneseq
        %v8227 = vshrl.u32 %v8226, 7
        %v8228 = vsub.s32 %v8225, %v8227
        %v8229 = vrot.slane %v8207, %v8228
        %v8231 = vunpack.c.l.s4 1966171168
        %v8232 = vunpack.c.0.s8 %v8231
        %v8233 = vlaneseq
        %v8234 = vshrl.u32 %v8233, 7
        %v8235 = vsub.s32 %v8232, %v8234
        %v8236 = vrot.slane %v8208, %v8235
        %v8237 = vcombine.low %v8215, %v8222
        %v8238 = vcombine.low %v8229, %v8236
        %v8240 = vunpack.c.l.s4 1966171168
        %v8241 = vunpack.c.0.s8 %v8240
        %v8242 = vlaneseq
        %v8243 = vshrl.u32 %v8242, 7
        %v8244 = vsub.s32 %v8241, %v8243
        %v8245 = vrot.slane %v8237, %v8244
        %v8247 = vunpack.c.l.s4 1966171168
        %v8248 = vunpack.c.0.s8 %v8247
        %v8249 = vlaneseq
        %v8250 = vshrl.u32 %v8249, 7
        %v8251 = vsub.s32 %v8248, %v8250
        %v8252 = vrot.slane %v8238, %v8251
        %v8253 = vcombine.low %v8245, %v8252
        %v8255 = vunpack.c.l.s4 1966171168
        %v8256 = vunpack.c.0.s8 %v8255
        %v8257 = vlaneseq
        %v8258 = vshrl.u32 %v8257, 7
        %v8259 = vsub.s32 %v8256, %v8258
        %v8260 = vrot.slane %v7727, %v8259
        %v8262 = vunpack.c.l.s4 1966171168
        %v8263 = vunpack.c.0.s8 %v8262
        %v8264 = vlaneseq
        %v8265 = vshrl.u32 %v8264, 7
        %v8266 = vsub.s32 %v8263, %v8265
        %v8267 = vrot.slane %v8260, %v8266
        %v8268 = vcombine.low %v7728, %v7729
        %v8269 = vcombine.low %v7730, %v7731
        %v8270 = vcombine.low %v7732, %v7733
        %v8271 = vcombine.low %v7734, %v7735
        %v8273 = vunpack.c.l.s4 1966171168
        %v8274 = vunpack.c.0.s8 %v8273
        %v8275 = vlaneseq
        %v8276 = vshrl.u32 %v8275, 7
        %v8277 = vsub.s32 %v8274, %v8276
        %v8278 = vrot.slane %v8268, %v8277
        %v8280 = vunpack.c.l.s4 1966171168
        %v8281 = vunpack.c.0.s8 %v8280
        %v8282 = vlaneseq
        %v8283 = vshrl.u32 %v8282, 7
        %v8284 = vsub.s32 %v8281, %v8283
        %v8285 = vrot.slane %v8269, %v8284
        %v8287 = vunpack.c.l.s4 1966171168
        %v8288 = vunpack.c.0.s8 %v8287
        %v8289 = vlaneseq
        %v8290 = vshrl.u32 %v8289, 7
        %v8291 = vsub.s32 %v8288, %v8290
        %v8292 = vrot.slane %v8270, %v8291
        %v8294 = vunpack.c.l.s4 1966171168
        %v8295 = vunpack.c.0.s8 %v8294
        %v8296 = vlaneseq
        %v8297 = vshrl.u32 %v8296, 7
        %v8298 = vsub.s32 %v8295, %v8297
        %v8299 = vrot.slane %v8271, %v8298
        %v8300 = vcombine.low %v8278, %v8285
        %v8301 = vcombine.low %v8292, %v8299
        %v8303 = vunpack.c.l.s4 1966171168
        %v8304 = vunpack.c.0.s8 %v8303
        %v8305 = vlaneseq
        %v8306 = vshrl.u32 %v8305, 7
        %v8307 = vsub.s32 %v8304, %v8306
        %v8308 = vrot.slane %v8300, %v8307
        %v8310 = vunpack.c.l.s4 1966171168
        %v8311 = vunpack.c.0.s8 %v8310
        %v8312 = vlaneseq
        %v8313 = vshrl.u32 %v8312, 7
        %v8314 = vsub.s32 %v8311, %v8313
        %v8315 = vrot.slane %v8301, %v8314
        %v8316 = vcombine.low %v8308, %v8315
        %v8318 = vunpack.c.l.s4 1966171168
        %v8319 = vunpack.c.0.s8 %v8318
        %v8320 = vlaneseq
        %v8321 = vshrl.u32 %v8320, 7
        %v8322 = vsub.s32 %v8319, %v8321
        %v8323 = vrot.slane %v7736, %v8322
        %v8325 = vunpack.c.l.s4 1966171168
        %v8326 = vunpack.c.0.s8 %v8325
        %v8327 = vlaneseq
        %v8328 = vshrl.u32 %v8327, 7
        %v8329 = vsub.s32 %v8326, %v8328
        %v8330 = vrot.slane %v8323, %v8329
        %v8331 = vcombine.low %v7737, %v7738
        %v8332 = vcombine.low %v7739, %v7740
        %v8333 = vcombine.low %v7741, %v7742
        %v8334 = vcombine.low %v7743, %v7744
        %v8336 = vunpack.c.l.s4 1966171168
        %v8337 = vunpack.c.0.s8 %v8336
        %v8338 = vlaneseq
        %v8339 = vshrl.u32 %v8338, 7
        %v8340 = vsub.s32 %v8337, %v8339
        %v8341 = vrot.slane %v8331, %v8340
        %v8343 = vunpack.c.l.s4 1966171168
        %v8344 = vunpack.c.0.s8 %v8343
        %v8345 = vlaneseq
        %v8346 = vshrl.u32 %v8345, 7
        %v8347 = vsub.s32 %v8344, %v8346
        %v8348 = vrot.slane %v8332, %v8347
        %v8350 = vunpack.c.l.s4 1966171168
        %v8351 = vunpack.c.0.s8 %v8350
        %v8352 = vlaneseq
        %v8353 = vshrl.u32 %v8352, 7
        %v8354 = vsub.s32 %v8351, %v8353
        %v8355 = vrot.slane %v8333, %v8354
        %v8357 = vunpack.c.l.s4 1966171168
        %v8358 = vunpack.c.0.s8 %v8357
        %v8359 = vlaneseq
        %v8360 = vshrl.u32 %v8359, 7
        %v8361 = vsub.s32 %v8358, %v8360
        %v8362 = vrot.slane %v8334, %v8361
        %v8363 = vcombine.low %v8341, %v8348
        %v8364 = vcombine.low %v8355, %v8362
        %v8366 = vunpack.c.l.s4 1966171168
        %v8367 = vunpack.c.0.s8 %v8366
        %v8368 = vlaneseq
        %v8369 = vshrl.u32 %v8368, 7
        %v8370 = vsub.s32 %v8367, %v8369
        %v8371 = vrot.slane %v8363, %v8370
        %v8373 = vunpack.c.l.s4 1966171168
        %v8374 = vunpack.c.0.s8 %v8373
        %v8375 = vlaneseq
        %v8376 = vshrl.u32 %v8375, 7
        %v8377 = vsub.s32 %v8374, %v8376
        %v8378 = vrot.slane %v8364, %v8377
        %v8379 = vcombine.low %v8371, %v8378
        %v8381 = vunpack.c.l.s4 1966171168
        %v8382 = vunpack.c.0.s8 %v8381
        %v8383 = vlaneseq
        %v8384 = vshrl.u32 %v8383, 7
        %v8385 = vsub.s32 %v8382, %v8384
        %v8386 = vrot.slane %v7745, %v8385
        %v8388 = vunpack.c.l.s4 1966171168
        %v8389 = vunpack.c.0.s8 %v8388
        %v8390 = vlaneseq
        %v8391 = vshrl.u32 %v8390, 7
        %v8392 = vsub.s32 %v8389, %v8391
        %v8393 = vrot.slane %v8386, %v8392
        %v8412 = vsel %vm7647, %v7875, 0.0
        %v8413 = vsel %vm7648, %v7889, 0.0
        %v8414 = vsel %vm7649, %v7938, 0.0
        %v8415 = vsel %vm7650, %v7952, 0.0
        %v8416 = vsel %vm7651, %v8001, 0.0
        %v8417 = vsel %vm7652, %v8015, 0.0
        %v8418 = vsel %vm7653, %v8064, 0.0
        %v8419 = vsel %vm7654, %v8078, 0.0
        %v8420 = vsel %vm7655, %v8127, 0.0
        %v8421 = vsel %vm7656, %v8141, 0.0
        %v8422 = vsel %vm7657, %v8190, 0.0
        %v8423 = vsel %vm7658, %v8204, 0.0
        %v8424 = vsel %vm7659, %v8253, 0.0
        %v8425 = vsel %vm7660, %v8267, 0.0
        %v8426 = vsel %vm7661, %v8316, 0.0
        %v8427 = vsel %vm7662, %v8330, 0.0
        %v8428 = vsel %vm7663, %v8379, 0.0
        %v8429 = vsel %vm7664, %v8393, 0.0
        %v8430 = vpack.c.bf16 %v8413, %v8412
        %v8431 = vpack.c.bf16 %v8415, %v8414
        %v8432 = vpack.c.bf16 %v8417, %v8416
        %v8433 = vpack.c.bf16 %v8419, %v8418
        %v8434 = vpack.c.bf16 %v8421, %v8420
        %v8435 = vpack.c.bf16 %v8423, %v8422
        %v8436 = vpack.c.bf16 %v8425, %v8424
        %v8437 = vpack.c.bf16 %v8427, %v8426
        %v8438 = vpack.c.bf16 %v8429, %v8428
        %s8439 = scalar_lea.vmem %s6, 16
        %v8440 = vld [vmem:[%s8439] sm:$0xf]
        %v8449 = vunpack.c.l.b16 %v8430
        %v8450 = vunpack.c.l.b16 %v8431
        %v8451 = vunpack.c.l.b16 %v8432
        %v8452 = vunpack.c.l.b16 %v8433
        %v8453 = vunpack.c.l.b16 %v8434
        %v8454 = vunpack.c.l.b16 %v8435
        %v8455 = vunpack.c.l.b16 %v8436
        %v8456 = vunpack.c.l.b16 %v8437
        %v8457 = vpack.c.b16 %v8450, %v8449
        %v8458 = vpack.c.b16 %v8452, %v8451
        %v8459 = vpack.c.b16 %v8454, %v8453
        %v8460 = vpack.c.b16 %v8456, %v8455
        %v8462 = vsel %vm1307, %v8457, 0
        %v8465 = vsel %vm1307, %v8458, 0
        %v8468 = vsel %vm1307, %v8459, 0
        %v8471 = vsel %vm1307, %v8460, 0
        %v8474 = vsel %vm1326, %v8440, 0
        %8476 = vmatprep.subr.bf16.mxu0 0
        %8477 = vmatpush1.bf16.msra.mxu0 %v8474
        %8478 = vmatprep.subr.bf16.mxu0 0
        %8479 = vmatpush1.bf16.msra.mxu0 0
        %8480 = vmatprep.subr.bf16.mxu0 0
        %8481 = vmatpush1.bf16.msra.mxu0 0
        %8482 = vmatprep.subr.bf16.mxu0 0
        %8483 = vmatpush1.bf16.msra.mxu0 0
        %8484 = vmatprep.subr.bf16.mxu0 0
        %8485 = vmatpush1.bf16.msra.mxu0 0
        %8486 = vmatprep.subr.bf16.mxu0 0
        %8487 = vmatpush1.bf16.msra.mxu0 0
        %8488 = vmatprep.subr.bf16.mxu0 0
        %8489 = vmatpush1.bf16.msra.mxu0 0
        %8490 = vmatprep.subr.bf16.mxu0 0
        %8491 = vmatpush1.bf16.msra.mxu0 0
        %8492 = vmatprep.subr.bf16.mxu0 0
        %8493 = vmatpush1.bf16.msra.mxu0 0
        %8494 = vmatprep.subr.bf16.mxu0 0
        %8495 = vmatpush1.bf16.msra.mxu0 0
        %8496 = vmatprep.subr.bf16.mxu0 0
        %8497 = vmatpush1.bf16.msra.mxu0 0
        %8498 = vmatprep.subr.bf16.mxu0 0
        %8499 = vmatpush1.bf16.msra.mxu0 0
        %8500 = vmatprep.subr.bf16.mxu0 0
        %8501 = vmatpush1.bf16.msra.mxu0 0
        %8502 = vmatprep.subr.bf16.mxu0 0
        %8503 = vmatpush1.bf16.msra.mxu0 0
        %8504 = vmatprep.subr.bf16.mxu0 0
        %8505 = vmatpush1.bf16.msra.mxu0 0
        %8506 = vmatprep.subr.bf16.mxu0 0
        %8507 = vmatpush1.bf16.msra.mxu0 0
        %8508 = vmatprep.mubr.bf16.mxu0 0
        %8509 = vmatmul.mubr.bf16.gmra.mrb[0].mxu0 %v8462
        %v8510 = vpop.f32.mrb[0].mxu0
        %v8511 = vadd.f32 0.0, %v8510
        %v8512 = vpop.f32.mrb[0].mxu0
        %v8513 = vpop.f32.mrb[0].mxu0
        %v8514 = vadd.f32 0.0, %v8513
        %v8515 = vpop.f32.mrb[0].mxu0
        %8516 = vmatprep.mubr.bf16.mxu0 0
        %8517 = vmatmul.mubr.bf16.gmra.mrb[0].mxu0 %v8465
        %v8518 = vpop.f32.mrb[0].mxu0
        %v8519 = vadd.f32 0.0, %v8518
        %v8520 = vpop.f32.mrb[0].mxu0
        %v8521 = vpop.f32.mrb[0].mxu0
        %v8522 = vadd.f32 0.0, %v8521
        %v8523 = vpop.f32.mrb[0].mxu0
        %8524 = vmatprep.mubr.bf16.mxu0 0
        %8525 = vmatmul.mubr.bf16.gmra.mrb[0].mxu0 %v8468
        %v8526 = vpop.f32.mrb[0].mxu0
        %v8527 = vadd.f32 0.0, %v8526
        %v8528 = vpop.f32.mrb[0].mxu0
        %v8529 = vpop.f32.mrb[0].mxu0
        %v8530 = vadd.f32 0.0, %v8529
        %v8531 = vpop.f32.mrb[0].mxu0
        %8532 = vmatprep.mubr.bf16.mxu0 0
        %8533 = vmatmul.mubr.bf16.gmra.mrb[0].mxu0 %v8471
        %v8534 = vpop.f32.mrb[0].mxu0
        %v8535 = vadd.f32 0.0, %v8534
        %v8536 = vpop.f32.mrb[0].mxu0
        %v8537 = vpop.f32.mrb[0].mxu0
        %v8538 = vadd.f32 0.0, %v8537
        %v8539 = vpop.f32.mrb[0].mxu0
        %8540 = vdwg.mxu0
        %v8541 = vadd.f32 %v6193, %v8511
        %v8542 = vadd.f32 %v6194, %v8514
        %v8543 = vadd.f32 %v6195, %v8519
        %v8544 = vadd.f32 %v6196, %v8522
        %v8545 = vadd.f32 %v6197, %v8527
        %v8546 = vadd.f32 %v6198, %v8530
        %v8547 = vadd.f32 %v6199, %v8535
        %v8548 = vadd.f32 %v6200, %v8538
        %v8549 = vunpack.c.h.b16 %v8430
        %v8550 = vunpack.c.h.b16 %v8431
        %v8551 = vunpack.c.h.b16 %v8432
        %v8552 = vunpack.c.h.b16 %v8433
        %v8553 = vunpack.c.h.b16 %v8434
        %v8554 = vunpack.c.h.b16 %v8435
        %v8555 = vunpack.c.h.b16 %v8436
        %v8556 = vunpack.c.h.b16 %v8437
        %v8557 = vpack.c.b16 %v8449, %v8449
        %v8558 = vpack.c.b16 %v8549, %v8549
        %v8559 = vpack.c.b16 %v8450, %v8450
        %v8560 = vpack.c.b16 %v8550, %v8550
        %v8561 = vpack.c.b16 %v8451, %v8451
        %v8562 = vpack.c.b16 %v8551, %v8551
        %v8563 = vpack.c.b16 %v8452, %v8452
        %v8564 = vpack.c.b16 %v8552, %v8552
        %v8565 = vpack.c.b16 %v8453, %v8453
        %v8566 = vpack.c.b16 %v8553, %v8553
        %v8567 = vpack.c.b16 %v8454, %v8454
        %v8568 = vpack.c.b16 %v8554, %v8554
        %v8569 = vpack.c.b16 %v8455, %v8455
        %v8570 = vpack.c.b16 %v8555, %v8555
        %v8571 = vpack.c.b16 %v8456, %v8456
        %v8572 = vpack.c.b16 %v8556, %v8556
        %v8574 = vshrl.u32 %v8557, 16
        %v8576 = vrot.slane %v8574, 4
        %v8577 = vshll.u32 %v8557, 16
        %v8579 = vrot.slane %v8577, 5
        %v8580 = vor.u32 %v8576, %v8579
        %v8581 = vrot.slane %v8580, 4
        %v8583 = vshll.u32 %v8558, 16
        %v8585 = vrot.slane %v8583, 5
        %v8586 = vsel %vm2917, %v8581, %v8585
        %v8588 = vshrl.u32 %v8559, 16
        %v8590 = vrot.slane %v8588, 4
        %v8591 = vshll.u32 %v8559, 16
        %v8593 = vrot.slane %v8591, 5
        %v8594 = vor.u32 %v8590, %v8593
        %v8595 = vrot.slane %v8594, 4
        %v8597 = vshll.u32 %v8560, 16
        %v8599 = vrot.slane %v8597, 5
        %v8600 = vsel %vm2917, %v8595, %v8599
        %v8602 = vshrl.u32 %v8561, 16
        %v8604 = vrot.slane %v8602, 4
        %v8605 = vshll.u32 %v8561, 16
        %v8607 = vrot.slane %v8605, 5
        %v8608 = vor.u32 %v8604, %v8607
        %v8609 = vrot.slane %v8608, 4
        %v8611 = vshll.u32 %v8562, 16
        %v8613 = vrot.slane %v8611, 5
        %v8614 = vsel %vm2917, %v8609, %v8613
        %v8616 = vshrl.u32 %v8563, 16
        %v8618 = vrot.slane %v8616, 4
        %v8619 = vshll.u32 %v8563, 16
        %v8621 = vrot.slane %v8619, 5
        %v8622 = vor.u32 %v8618, %v8621
        %v8623 = vrot.slane %v8622, 4
        %v8625 = vshll.u32 %v8564, 16
        %v8627 = vrot.slane %v8625, 5
        %v8628 = vsel %vm2917, %v8623, %v8627
        %v8630 = vshrl.u32 %v8565, 16
        %v8632 = vrot.slane %v8630, 4
        %v8633 = vshll.u32 %v8565, 16
        %v8635 = vrot.slane %v8633, 5
        %v8636 = vor.u32 %v8632, %v8635
        %v8637 = vrot.slane %v8636, 4
        %v8639 = vshll.u32 %v8566, 16
        %v8641 = vrot.slane %v8639, 5
        %v8642 = vsel %vm2917, %v8637, %v8641
        %v8644 = vshrl.u32 %v8567, 16
        %v8646 = vrot.slane %v8644, 4
        %v8647 = vshll.u32 %v8567, 16
        %v8649 = vrot.slane %v8647, 5
        %v8650 = vor.u32 %v8646, %v8649
        %v8651 = vrot.slane %v8650, 4
        %v8653 = vshll.u32 %v8568, 16
        %v8655 = vrot.slane %v8653, 5
        %v8656 = vsel %vm2917, %v8651, %v8655
        %v8658 = vshrl.u32 %v8569, 16
        %v8660 = vrot.slane %v8658, 4
        %v8661 = vshll.u32 %v8569, 16
        %v8663 = vrot.slane %v8661, 5
        %v8664 = vor.u32 %v8660, %v8663
        %v8665 = vrot.slane %v8664, 4
        %v8667 = vshll.u32 %v8570, 16
        %v8669 = vrot.slane %v8667, 5
        %v8670 = vsel %vm2917, %v8665, %v8669
        %v8672 = vshrl.u32 %v8571, 16
        %v8674 = vrot.slane %v8672, 4
        %v8675 = vshll.u32 %v8571, 16
        %v8677 = vrot.slane %v8675, 5
        %v8678 = vor.u32 %v8674, %v8677
        %v8679 = vrot.slane %v8678, 4
        %v8681 = vshll.u32 %v8572, 16
        %v8683 = vrot.slane %v8681, 5
        %v8684 = vsel %vm2917, %v8679, %v8683
        %s8685 = scalar_lea.vmem %s6, 24
        %v8686 = vld [vmem:[%s8685] sm:$0xf]
        %v8687 = vunpack.c.l.b16 %v8586
        %v8688 = vunpack.c.l.b16 %v8600
        %v8689 = vunpack.c.l.b16 %v8614
        %v8690 = vunpack.c.l.b16 %v8628
        %v8691 = vunpack.c.l.b16 %v8642
        %v8692 = vunpack.c.l.b16 %v8656
        %v8693 = vunpack.c.l.b16 %v8670
        %v8694 = vunpack.c.l.b16 %v8684
        %v8695 = vpack.c.b16 %v8688, %v8687
        %v8696 = vpack.c.b16 %v8690, %v8689
        %v8697 = vpack.c.b16 %v8692, %v8691
        %v8698 = vpack.c.b16 %v8694, %v8693
        %v8700 = vsel %vm1307, %v8695, 0
        %v8703 = vsel %vm1307, %v8696, 0
        %v8706 = vsel %vm1307, %v8697, 0
        %v8709 = vsel %vm1307, %v8698, 0
        %v8712 = vsel %vm1326, %v8686, 0
        %8714 = vmatprep.subr.bf16.mxu0 0
        %8715 = vmatpush1.bf16.msra.mxu0 %v8712
        %8716 = vmatprep.subr.bf16.mxu0 0
        %8717 = vmatpush1.bf16.msra.mxu0 0
        %8718 = vmatprep.subr.bf16.mxu0 0
        %8719 = vmatpush1.bf16.msra.mxu0 0
        %8720 = vmatprep.subr.bf16.mxu0 0
        %8721 = vmatpush1.bf16.msra.mxu0 0
        %8722 = vmatprep.subr.bf16.mxu0 0
        %8723 = vmatpush1.bf16.msra.mxu0 0
        %8724 = vmatprep.subr.bf16.mxu0 0
        %8725 = vmatpush1.bf16.msra.mxu0 0
        %8726 = vmatprep.subr.bf16.mxu0 0
        %8727 = vmatpush1.bf16.msra.mxu0 0
        %8728 = vmatprep.subr.bf16.mxu0 0
        %8729 = vmatpush1.bf16.msra.mxu0 0
        %8730 = vmatprep.subr.bf16.mxu0 0
        %8731 = vmatpush1.bf16.msra.mxu0 0
        %8732 = vmatprep.subr.bf16.mxu0 0
        %8733 = vmatpush1.bf16.msra.mxu0 0
        %8734 = vmatprep.subr.bf16.mxu0 0
        %8735 = vmatpush1.bf16.msra.mxu0 0
        %8736 = vmatprep.subr.bf16.mxu0 0
        %8737 = vmatpush1.bf16.msra.mxu0 0
        %8738 = vmatprep.subr.bf16.mxu0 0
        %8739 = vmatpush1.bf16.msra.mxu0 0
        %8740 = vmatprep.subr.bf16.mxu0 0
        %8741 = vmatpush1.bf16.msra.mxu0 0
        %8742 = vmatprep.subr.bf16.mxu0 0
        %8743 = vmatpush1.bf16.msra.mxu0 0
        %8744 = vmatprep.subr.bf16.mxu0 0
        %8745 = vmatpush1.bf16.msra.mxu0 0
        %8746 = vmatprep.mubr.bf16.mxu0 0
        %8747 = vmatmul.mubr.bf16.gmra.mrb[0].mxu0 %v8700
        %v8748 = vpop.f32.mrb[0].mxu0
        %v8749 = vadd.f32 0.0, %v8748
        %v8750 = vpop.f32.mrb[0].mxu0
        %v8751 = vpop.f32.mrb[0].mxu0
        %v8752 = vadd.f32 0.0, %v8751
        %v8753 = vpop.f32.mrb[0].mxu0
        %8754 = vmatprep.mubr.bf16.mxu0 0
        %8755 = vmatmul.mubr.bf16.gmra.mrb[0].mxu0 %v8703
        %v8756 = vpop.f32.mrb[0].mxu0
        %v8757 = vadd.f32 0.0, %v8756
        %v8758 = vpop.f32.mrb[0].mxu0
        %v8759 = vpop.f32.mrb[0].mxu0
        %v8760 = vadd.f32 0.0, %v8759
        %v8761 = vpop.f32.mrb[0].mxu0
        %8762 = vmatprep.mubr.bf16.mxu0 0
        %8763 = vmatmul.mubr.bf16.gmra.mrb[0].mxu0 %v8706
        %v8764 = vpop.f32.mrb[0].mxu0
        %v8765 = vadd.f32 0.0, %v8764
        %v8766 = vpop.f32.mrb[0].mxu0
        %v8767 = vpop.f32.mrb[0].mxu0
        %v8768 = vadd.f32 0.0, %v8767
        %v8769 = vpop.f32.mrb[0].mxu0
        %8770 = vmatprep.mubr.bf16.mxu0 0
        %8771 = vmatmul.mubr.bf16.gmra.mrb[0].mxu0 %v8709
        %v8772 = vpop.f32.mrb[0].mxu0
        %v8773 = vadd.f32 0.0, %v8772
        %v8774 = vpop.f32.mrb[0].mxu0
        %v8775 = vpop.f32.mrb[0].mxu0
        %v8776 = vadd.f32 0.0, %v8775
        %v8777 = vpop.f32.mrb[0].mxu0
        %8778 = vdwg.mxu0
        %v8779 = vadd.f32 %v8541, %v8749
        %v8780 = vadd.f32 %v8542, %v8752
        %v8781 = vadd.f32 %v8543, %v8757
        %v8782 = vadd.f32 %v8544, %v8760
        %v8783 = vadd.f32 %v8545, %v8765
        %v8784 = vadd.f32 %v8546, %v8768
        %v8785 = vadd.f32 %v8547, %v8773
        %v8786 = vadd.f32 %v8548, %v8776
        %s8787 = scalar_lea.vmem %s6, 48
        %v8788 = vld [vmem:[%s8787] sm:$0xf]
        %v8790 = vunpack.c.l.b16 %v8438
        %v8791 = vpack.c.b16 %v8451, %v8450
        %v8792 = vpack.c.b16 %v8453, %v8452
        %v8793 = vpack.c.b16 %v8455, %v8454
        %v8794 = vpack.c.b16 %v8790, %v8456
        %v8796 = vsel %vm1307, %v8791, 0
        %v8799 = vsel %vm1307, %v8792, 0
        %v8802 = vsel %vm1307, %v8793, 0
        %v8805 = vsel %vm1307, %v8794, 0
        %v8808 = vsel %vm1326, %v8788, 0
        %8810 = vmatprep.subr.bf16.mxu0 0
        %8811 = vmatpush1.bf16.msra.mxu0 %v8808
        %8812 = vmatprep.subr.bf16.mxu0 0
        %8813 = vmatpush1.bf16.msra.mxu0 0
        %8814 = vmatprep.subr.bf16.mxu0 0
        %8815 = vmatpush1.bf16.msra.mxu0 0
        %8816 = vmatprep.subr.bf16.mxu0 0
        %8817 = vmatpush1.bf16.msra.mxu0 0
        %8818 = vmatprep.subr.bf16.mxu0 0
        %8819 = vmatpush1.bf16.msra.mxu0 0
        %8820 = vmatprep.subr.bf16.mxu0 0
        %8821 = vmatpush1.bf16.msra.mxu0 0
        %8822 = vmatprep.subr.bf16.mxu0 0
        %8823 = vmatpush1.bf16.msra.mxu0 0
        %8824 = vmatprep.subr.bf16.mxu0 0
        %8825 = vmatpush1.bf16.msra.mxu0 0
        %8826 = vmatprep.subr.bf16.mxu0 0
        %8827 = vmatpush1.bf16.msra.mxu0 0
        %8828 = vmatprep.subr.bf16.mxu0 0
        %8829 = vmatpush1.bf16.msra.mxu0 0
        %8830 = vmatprep.subr.bf16.mxu0 0
        %8831 = vmatpush1.bf16.msra.mxu0 0
        %8832 = vmatprep.subr.bf16.mxu0 0
        %8833 = vmatpush1.bf16.msra.mxu0 0
        %8834 = vmatprep.subr.bf16.mxu0 0
        %8835 = vmatpush1.bf16.msra.mxu0 0
        %8836 = vmatprep.subr.bf16.mxu0 0
        %8837 = vmatpush1.bf16.msra.mxu0 0
        %8838 = vmatprep.subr.bf16.mxu0 0
        %8839 = vmatpush1.bf16.msra.mxu0 0
        %8840 = vmatprep.subr.bf16.mxu0 0
        %8841 = vmatpush1.bf16.msra.mxu0 0
        %8842 = vmatprep.mubr.bf16.mxu0 0
        %8843 = vmatmul.mubr.bf16.gmra.mrb[0].mxu0 %v8796
        %v8844 = vpop.f32.mrb[0].mxu0
        %v8845 = vadd.f32 0.0, %v8844
        %v8846 = vpop.f32.mrb[0].mxu0
        %v8847 = vpop.f32.mrb[0].mxu0
        %v8848 = vadd.f32 0.0, %v8847
        %v8849 = vpop.f32.mrb[0].mxu0
        %8850 = vmatprep.mubr.bf16.mxu0 0
        %8851 = vmatmul.mubr.bf16.gmra.mrb[0].mxu0 %v8799
        %v8852 = vpop.f32.mrb[0].mxu0
        %v8853 = vadd.f32 0.0, %v8852
        %v8854 = vpop.f32.mrb[0].mxu0
        %v8855 = vpop.f32.mrb[0].mxu0
        %v8856 = vadd.f32 0.0, %v8855
        %v8857 = vpop.f32.mrb[0].mxu0
        %8858 = vmatprep.mubr.bf16.mxu0 0
        %8859 = vmatmul.mubr.bf16.gmra.mrb[0].mxu0 %v8802
        %v8860 = vpop.f32.mrb[0].mxu0
        %v8861 = vadd.f32 0.0, %v8860
        %v8862 = vpop.f32.mrb[0].mxu0
        %v8863 = vpop.f32.mrb[0].mxu0
        %v8864 = vadd.f32 0.0, %v8863
        %v8865 = vpop.f32.mrb[0].mxu0
        %8866 = vmatprep.mubr.bf16.mxu0 0
        %8867 = vmatmul.mubr.bf16.gmra.mrb[0].mxu0 %v8805
        %v8868 = vpop.f32.mrb[0].mxu0
        %v8869 = vadd.f32 0.0, %v8868
        %v8870 = vpop.f32.mrb[0].mxu0
        %v8871 = vpop.f32.mrb[0].mxu0
        %v8872 = vadd.f32 0.0, %v8871
        %v8873 = vpop.f32.mrb[0].mxu0
        %8874 = vdwg.mxu0
        %v8875 = vadd.f32 %v8779, %v8845
        %v8876 = vadd.f32 %v8780, %v8848
        %v8877 = vadd.f32 %v8781, %v8853
        %v8878 = vadd.f32 %v8782, %v8856
        %v8879 = vadd.f32 %v8783, %v8861
        %v8880 = vadd.f32 %v8784, %v8864
        %v8881 = vadd.f32 %v8785, %v8869
        %v8882 = vadd.f32 %v8786, %v8872
        %v8883 = vunpack.c.h.b16 %v8438
        %v8884 = vpack.c.b16 %v8790, %v8790
        %v8885 = vpack.c.b16 %v8883, %v8883
        %v8887 = vshrl.u32 %v8884, 16
        %v8889 = vrot.slane %v8887, 4
        %v8890 = vshll.u32 %v8884, 16
        %v8892 = vrot.slane %v8890, 5
        %v8893 = vor.u32 %v8889, %v8892
        %v8894 = vrot.slane %v8893, 4
        %v8896 = vshll.u32 %v8885, 16
        %v8898 = vrot.slane %v8896, 5
        %v8899 = vsel %vm2917, %v8894, %v8898
        %s8900 = scalar_lea.vmem %s6, 56
        %v8901 = vld [vmem:[%s8900] sm:$0xf]
        %v8902 = vunpack.c.l.b16 %v8899
        %v8903 = vpack.c.b16 %v8689, %v8688
        %v8904 = vpack.c.b16 %v8691, %v8690
        %v8905 = vpack.c.b16 %v8693, %v8692
        %v8906 = vpack.c.b16 %v8902, %v8694
        %v8908 = vsel %vm1307, %v8903, 0
        %v8911 = vsel %vm1307, %v8904, 0
        %v8914 = vsel %vm1307, %v8905, 0
        %v8917 = vsel %vm1307, %v8906, 0
        %v8920 = vsel %vm1326, %v8901, 0
        %8922 = vmatprep.subr.bf16.mxu0 0
        %8923 = vmatpush1.bf16.msra.mxu0 %v8920
        %8924 = vmatprep.subr.bf16.mxu0 0
        %8925 = vmatpush1.bf16.msra.mxu0 0
        %8926 = vmatprep.subr.bf16.mxu0 0
        %8927 = vmatpush1.bf16.msra.mxu0 0
        %8928 = vmatprep.subr.bf16.mxu0 0
        %8929 = vmatpush1.bf16.msra.mxu0 0
        %8930 = vmatprep.subr.bf16.mxu0 0
        %8931 = vmatpush1.bf16.msra.mxu0 0
        %8932 = vmatprep.subr.bf16.mxu0 0
        %8933 = vmatpush1.bf16.msra.mxu0 0
        %8934 = vmatprep.subr.bf16.mxu0 0
        %8935 = vmatpush1.bf16.msra.mxu0 0
        %8936 = vmatprep.subr.bf16.mxu0 0
        %8937 = vmatpush1.bf16.msra.mxu0 0
        %8938 = vmatprep.subr.bf16.mxu0 0
        %8939 = vmatpush1.bf16.msra.mxu0 0
        %8940 = vmatprep.subr.bf16.mxu0 0
        %8941 = vmatpush1.bf16.msra.mxu0 0
        %8942 = vmatprep.subr.bf16.mxu0 0
        %8943 = vmatpush1.bf16.msra.mxu0 0
        %8944 = vmatprep.subr.bf16.mxu0 0
        %8945 = vmatpush1.bf16.msra.mxu0 0
        %8946 = vmatprep.subr.bf16.mxu0 0
        %8947 = vmatpush1.bf16.msra.mxu0 0
        %8948 = vmatprep.subr.bf16.mxu0 0
        %8949 = vmatpush1.bf16.msra.mxu0 0
        %8950 = vmatprep.subr.bf16.mxu0 0
        %8951 = vmatpush1.bf16.msra.mxu0 0
        %8952 = vmatprep.subr.bf16.mxu0 0
        %8953 = vmatpush1.bf16.msra.mxu0 0
        %8954 = vmatprep.mubr.bf16.mxu0 0
        %8955 = vmatmul.mubr.bf16.gmra.mrb[0].mxu0 %v8908
        %v8956 = vpop.f32.mrb[0].mxu0
        %v8957 = vadd.f32 0.0, %v8956
        %v8958 = vpop.f32.mrb[0].mxu0
        %v8959 = vpop.f32.mrb[0].mxu0
        %v8960 = vadd.f32 0.0, %v8959
        %v8961 = vpop.f32.mrb[0].mxu0
        %8962 = vmatprep.mubr.bf16.mxu0 0
        %8963 = vmatmul.mubr.bf16.gmra.mrb[0].mxu0 %v8911
        %v8964 = vpop.f32.mrb[0].mxu0
        %v8965 = vadd.f32 0.0, %v8964
        %v8966 = vpop.f32.mrb[0].mxu0
        %v8967 = vpop.f32.mrb[0].mxu0
        %v8968 = vadd.f32 0.0, %v8967
        %v8969 = vpop.f32.mrb[0].mxu0
        %8970 = vmatprep.mubr.bf16.mxu0 0
        %8971 = vmatmul.mubr.bf16.gmra.mrb[0].mxu0 %v8914
        %v8972 = vpop.f32.mrb[0].mxu0
        %v8973 = vadd.f32 0.0, %v8972
        %v8974 = vpop.f32.mrb[0].mxu0
        %v8975 = vpop.f32.mrb[0].mxu0
        %v8976 = vadd.f32 0.0, %v8975
        %v8977 = vpop.f32.mrb[0].mxu0
        %8978 = vmatprep.mubr.bf16.mxu0 0
        %8979 = vmatmul.mubr.bf16.gmra.mrb[0].mxu0 %v8917
        %v8980 = vpop.f32.mrb[0].mxu0
        %v8981 = vadd.f32 0.0, %v8980
        %v8982 = vpop.f32.mrb[0].mxu0
        %v8983 = vpop.f32.mrb[0].mxu0
        %v8984 = vadd.f32 0.0, %v8983
        %v8985 = vpop.f32.mrb[0].mxu0
        %8986 = vdwg.mxu0
        %v8987 = vadd.f32 %v8875, %v8957
        %v8988 = vadd.f32 %v8876, %v8960
        %v8989 = vadd.f32 %v8877, %v8965
        %v8990 = vadd.f32 %v8878, %v8968
        %v8991 = vadd.f32 %v8879, %v8973
        %v8992 = vadd.f32 %v8880, %v8976
        %v8993 = vadd.f32 %v8881, %v8981
        %v8994 = vadd.f32 %v8882, %v8984
        %v9014 = vunpack.c.l.s4 1966171168
        %v9015 = vunpack.c.0.s8 %v9014
        %v9016 = vlaneseq
        %v9017 = vshrl.u32 %v9016, 7
        %v9018 = vsub.s32 %v9015, %v9017
        %v9019 = vrot.slane %v543, %v9018
        %v9020 = vcombine.high %v9019, %v9019
        %v9022 = vunpack.c.l.s4 1966171168
        %v9023 = vunpack.c.0.s8 %v9022
        %v9024 = vlaneseq
        %v9025 = vshrl.u32 %v9024, 7
        %v9026 = vsub.s32 %v9023, %v9025
        %v9027 = vrot.slane %v9019, %v9026
        %v9029 = vunpack.c.l.s4 1966171168
        %v9030 = vunpack.c.0.s8 %v9029
        %v9031 = vlaneseq
        %v9032 = vshrl.u32 %v9031, 7
        %v9033 = vsub.s32 %v9030, %v9032
        %v9034 = vrot.slane %v9020, %v9033
        %v9035 = vcombine.high %v9027, %v9027
        %v9036 = vcombine.high %v9034, %v9034
        %v9038 = vunpack.c.l.s4 1966171168
        %v9039 = vunpack.c.0.s8 %v9038
        %v9040 = vlaneseq
        %v9041 = vshrl.u32 %v9040, 7
        %v9042 = vsub.s32 %v9039, %v9041
        %v9043 = vrot.slane %v544, %v9042
        %v9045 = vunpack.c.l.s4 1966171168
        %v9046 = vunpack.c.0.s8 %v9045
        %v9047 = vlaneseq
        %v9048 = vshrl.u32 %v9047, 7
        %v9049 = vsub.s32 %v9046, %v9048
        %v9050 = vrot.slane %v9043, %v9049
        %v9052 = vunpack.c.l.s4 1966171168
        %v9053 = vunpack.c.0.s8 %v9052
        %v9054 = vlaneseq
        %v9055 = vshrl.u32 %v9054, 7
        %v9056 = vsub.s32 %v9053, %v9055
        %v9057 = vrot.slane %v545, %v9056
        %v9058 = vcombine.high %v9057, %v9057
        %v9060 = vunpack.c.l.s4 1966171168
        %v9061 = vunpack.c.0.s8 %v9060
        %v9062 = vlaneseq
        %v9063 = vshrl.u32 %v9062, 7
        %v9064 = vsub.s32 %v9061, %v9063
        %v9065 = vrot.slane %v9057, %v9064
        %v9067 = vunpack.c.l.s4 1966171168
        %v9068 = vunpack.c.0.s8 %v9067
        %v9069 = vlaneseq
        %v9070 = vshrl.u32 %v9069, 7
        %v9071 = vsub.s32 %v9068, %v9070
        %v9072 = vrot.slane %v9058, %v9071
        %v9073 = vcombine.high %v9065, %v9065
        %v9074 = vcombine.high %v9072, %v9072
        %v9076 = vunpack.c.l.s4 1966171168
        %v9077 = vunpack.c.0.s8 %v9076
        %v9078 = vlaneseq
        %v9079 = vshrl.u32 %v9078, 7
        %v9080 = vsub.s32 %v9077, %v9079
        %v9081 = vrot.slane %v546, %v9080
        %v9083 = vunpack.c.l.s4 1966171168
        %v9084 = vunpack.c.0.s8 %v9083
        %v9085 = vlaneseq
        %v9086 = vshrl.u32 %v9085, 7
        %v9087 = vsub.s32 %v9084, %v9086
        %v9088 = vrot.slane %v9081, %v9087
        %v9090 = vunpack.c.l.s4 1966171168
        %v9091 = vunpack.c.0.s8 %v9090
        %v9092 = vlaneseq
        %v9093 = vshrl.u32 %v9092, 7
        %v9094 = vsub.s32 %v9091, %v9093
        %v9095 = vrot.slane %v547, %v9094
        %v9096 = vcombine.high %v9095, %v9095
        %v9098 = vunpack.c.l.s4 1966171168
        %v9099 = vunpack.c.0.s8 %v9098
        %v9100 = vlaneseq
        %v9101 = vshrl.u32 %v9100, 7
        %v9102 = vsub.s32 %v9099, %v9101
        %v9103 = vrot.slane %v9095, %v9102
        %v9105 = vunpack.c.l.s4 1966171168
        %v9106 = vunpack.c.0.s8 %v9105
        %v9107 = vlaneseq
        %v9108 = vshrl.u32 %v9107, 7
        %v9109 = vsub.s32 %v9106, %v9108
        %v9110 = vrot.slane %v9096, %v9109
        %v9111 = vcombine.high %v9103, %v9103
        %v9112 = vcombine.high %v9110, %v9110
        %v9114 = vunpack.c.l.s4 1966171168
        %v9115 = vunpack.c.0.s8 %v9114
        %v9116 = vlaneseq
        %v9117 = vshrl.u32 %v9116, 7
        %v9118 = vsub.s32 %v9115, %v9117
        %v9119 = vrot.slane %v548, %v9118
        %v9121 = vunpack.c.l.s4 1966171168
        %v9122 = vunpack.c.0.s8 %v9121
        %v9123 = vlaneseq
        %v9124 = vshrl.u32 %v9123, 7
        %v9125 = vsub.s32 %v9122, %v9124
        %v9126 = vrot.slane %v9119, %v9125
        %v9128 = vunpack.c.l.s4 1966171168
        %v9129 = vunpack.c.0.s8 %v9128
        %v9130 = vlaneseq
        %v9131 = vshrl.u32 %v9130, 7
        %v9132 = vsub.s32 %v9129, %v9131
        %v9133 = vrot.slane %v549, %v9132
        %v9134 = vcombine.high %v9133, %v9133
        %v9136 = vunpack.c.l.s4 1966171168
        %v9137 = vunpack.c.0.s8 %v9136
        %v9138 = vlaneseq
        %v9139 = vshrl.u32 %v9138, 7
        %v9140 = vsub.s32 %v9137, %v9139
        %v9141 = vrot.slane %v9133, %v9140
        %v9143 = vunpack.c.l.s4 1966171168
        %v9144 = vunpack.c.0.s8 %v9143
        %v9145 = vlaneseq
        %v9146 = vshrl.u32 %v9145, 7
        %v9147 = vsub.s32 %v9144, %v9146
        %v9148 = vrot.slane %v9134, %v9147
        %v9149 = vcombine.high %v9141, %v9141
        %v9150 = vcombine.high %v9148, %v9148
        %v9152 = vunpack.c.l.s4 1966171168
        %v9153 = vunpack.c.0.s8 %v9152
        %v9154 = vlaneseq
        %v9155 = vshrl.u32 %v9154, 7
        %v9156 = vsub.s32 %v9153, %v9155
        %v9157 = vrot.slane %v550, %v9156
        %v9159 = vunpack.c.l.s4 1966171168
        %v9160 = vunpack.c.0.s8 %v9159
        %v9161 = vlaneseq
        %v9162 = vshrl.u32 %v9161, 7
        %v9163 = vsub.s32 %v9160, %v9162
        %v9164 = vrot.slane %v9157, %v9163
        %v9166 = vunpack.c.l.s4 1966171168
        %v9167 = vunpack.c.0.s8 %v9166
        %v9168 = vlaneseq
        %v9169 = vshrl.u32 %v9168, 7
        %v9170 = vsub.s32 %v9167, %v9169
        %v9171 = vrot.slane %v551, %v9170
        %v9172 = vcombine.high %v9171, %v9171
        %v9174 = vunpack.c.l.s4 1966171168
        %v9175 = vunpack.c.0.s8 %v9174
        %v9176 = vlaneseq
        %v9177 = vshrl.u32 %v9176, 7
        %v9178 = vsub.s32 %v9175, %v9177
        %v9179 = vrot.slane %v9171, %v9178
        %v9181 = vunpack.c.l.s4 1966171168
        %v9182 = vunpack.c.0.s8 %v9181
        %v9183 = vlaneseq
        %v9184 = vshrl.u32 %v9183, 7
        %v9185 = vsub.s32 %v9182, %v9184
        %v9186 = vrot.slane %v9172, %v9185
        %v9187 = vcombine.high %v9179, %v9179
        %v9188 = vcombine.high %v9186, %v9186
        %v9190 = vunpack.c.l.s4 1966171168
        %v9191 = vunpack.c.0.s8 %v9190
        %v9192 = vlaneseq
        %v9193 = vshrl.u32 %v9192, 7
        %v9194 = vsub.s32 %v9191, %v9193
        %v9195 = vrot.slane %v552, %v9194
        %v9197 = vunpack.c.l.s4 1966171168
        %v9198 = vunpack.c.0.s8 %v9197
        %v9199 = vlaneseq
        %v9200 = vshrl.u32 %v9199, 7
        %v9201 = vsub.s32 %v9198, %v9200
        %v9202 = vrot.slane %v9195, %v9201
        %v9204 = vunpack.c.l.s4 1966171168
        %v9205 = vunpack.c.0.s8 %v9204
        %v9206 = vlaneseq
        %v9207 = vshrl.u32 %v9206, 7
        %v9208 = vsub.s32 %v9205, %v9207
        %v9209 = vrot.slane %v553, %v9208
        %v9210 = vcombine.high %v9209, %v9209
        %v9212 = vunpack.c.l.s4 1966171168
        %v9213 = vunpack.c.0.s8 %v9212
        %v9214 = vlaneseq
        %v9215 = vshrl.u32 %v9214, 7
        %v9216 = vsub.s32 %v9213, %v9215
        %v9217 = vrot.slane %v9209, %v9216
        %v9219 = vunpack.c.l.s4 1966171168
        %v9220 = vunpack.c.0.s8 %v9219
        %v9221 = vlaneseq
        %v9222 = vshrl.u32 %v9221, 7
        %v9223 = vsub.s32 %v9220, %v9222
        %v9224 = vrot.slane %v9210, %v9223
        %v9225 = vcombine.high %v9217, %v9217
        %v9226 = vcombine.high %v9224, %v9224
        %v9228 = vunpack.c.l.s4 1966171168
        %v9229 = vunpack.c.0.s8 %v9228
        %v9230 = vlaneseq
        %v9231 = vshrl.u32 %v9230, 7
        %v9232 = vsub.s32 %v9229, %v9231
        %v9233 = vrot.slane %v554, %v9232
        %v9235 = vunpack.c.l.s4 1966171168
        %v9236 = vunpack.c.0.s8 %v9235
        %v9237 = vlaneseq
        %v9238 = vshrl.u32 %v9237, 7
        %v9239 = vsub.s32 %v9236, %v9238
        %v9240 = vrot.slane %v9233, %v9239
        %v9242 = vunpack.c.l.s4 1966171168
        %v9243 = vunpack.c.0.s8 %v9242
        %v9244 = vlaneseq
        %v9245 = vshrl.u32 %v9244, 7
        %v9246 = vsub.s32 %v9243, %v9245
        %v9247 = vrot.slane %v555, %v9246
        %v9248 = vcombine.high %v9247, %v9247
        %v9250 = vunpack.c.l.s4 1966171168
        %v9251 = vunpack.c.0.s8 %v9250
        %v9252 = vlaneseq
        %v9253 = vshrl.u32 %v9252, 7
        %v9254 = vsub.s32 %v9251, %v9253
        %v9255 = vrot.slane %v9247, %v9254
        %v9257 = vunpack.c.l.s4 1966171168
        %v9258 = vunpack.c.0.s8 %v9257
        %v9259 = vlaneseq
        %v9260 = vshrl.u32 %v9259, 7
        %v9261 = vsub.s32 %v9258, %v9260
        %v9262 = vrot.slane %v9248, %v9261
        %v9263 = vcombine.high %v9255, %v9255
        %v9264 = vcombine.high %v9262, %v9262
        %v9266 = vunpack.c.l.s4 1966171168
        %v9267 = vunpack.c.0.s8 %v9266
        %v9268 = vlaneseq
        %v9269 = vshrl.u32 %v9268, 7
        %v9270 = vsub.s32 %v9267, %v9269
        %v9271 = vrot.slane %v556, %v9270
        %v9273 = vunpack.c.l.s4 1966171168
        %v9274 = vunpack.c.0.s8 %v9273
        %v9275 = vlaneseq
        %v9276 = vshrl.u32 %v9275, 7
        %v9277 = vsub.s32 %v9274, %v9276
        %v9278 = vrot.slane %v9271, %v9277
        %v9280 = vunpack.c.l.s4 1966171168
        %v9281 = vunpack.c.0.s8 %v9280
        %v9282 = vlaneseq
        %v9283 = vshrl.u32 %v9282, 7
        %v9284 = vsub.s32 %v9281, %v9283
        %v9285 = vrot.slane %v557, %v9284
        %v9286 = vcombine.high %v9285, %v9285
        %v9288 = vunpack.c.l.s4 1966171168
        %v9289 = vunpack.c.0.s8 %v9288
        %v9290 = vlaneseq
        %v9291 = vshrl.u32 %v9290, 7
        %v9292 = vsub.s32 %v9289, %v9291
        %v9293 = vrot.slane %v9285, %v9292
        %v9295 = vunpack.c.l.s4 1966171168
        %v9296 = vunpack.c.0.s8 %v9295
        %v9297 = vlaneseq
        %v9298 = vshrl.u32 %v9297, 7
        %v9299 = vsub.s32 %v9296, %v9298
        %v9300 = vrot.slane %v9286, %v9299
        %v9301 = vcombine.high %v9293, %v9293
        %v9302 = vcombine.high %v9300, %v9300
        %v9304 = vunpack.c.l.s4 1966171168
        %v9305 = vunpack.c.0.s8 %v9304
        %v9306 = vlaneseq
        %v9307 = vshrl.u32 %v9306, 7
        %v9308 = vsub.s32 %v9305, %v9307
        %v9309 = vrot.slane %v558, %v9308
        %v9311 = vunpack.c.l.s4 1966171168
        %v9312 = vunpack.c.0.s8 %v9311
        %v9313 = vlaneseq
        %v9314 = vshrl.u32 %v9313, 7
        %v9315 = vsub.s32 %v9312, %v9314
        %v9316 = vrot.slane %v9309, %v9315
        %v9318 = vunpack.c.l.s4 1966171168
        %v9319 = vunpack.c.0.s8 %v9318
        %v9320 = vlaneseq
        %v9321 = vshrl.u32 %v9320, 7
        %v9322 = vsub.s32 %v9319, %v9321
        %v9323 = vrot.slane %v559, %v9322
        %v9324 = vcombine.high %v9323, %v9323
        %v9326 = vunpack.c.l.s4 1966171168
        %v9327 = vunpack.c.0.s8 %v9326
        %v9328 = vlaneseq
        %v9329 = vshrl.u32 %v9328, 7
        %v9330 = vsub.s32 %v9327, %v9329
        %v9331 = vrot.slane %v9323, %v9330
        %v9333 = vunpack.c.l.s4 1966171168
        %v9334 = vunpack.c.0.s8 %v9333
        %v9335 = vlaneseq
        %v9336 = vshrl.u32 %v9335, 7
        %v9337 = vsub.s32 %v9334, %v9336
        %v9338 = vrot.slane %v9324, %v9337
        %v9339 = vcombine.high %v9331, %v9331
        %v9340 = vcombine.high %v9338, %v9338
        %v9342 = vunpack.c.l.s4 1966171168
        %v9343 = vunpack.c.0.s8 %v9342
        %v9344 = vlaneseq
        %v9345 = vshrl.u32 %v9344, 7
        %v9346 = vsub.s32 %v9343, %v9345
        %v9347 = vrot.slane %v560, %v9346
        %v9349 = vunpack.c.l.s4 1966171168
        %v9350 = vunpack.c.0.s8 %v9349
        %v9351 = vlaneseq
        %v9352 = vshrl.u32 %v9351, 7
        %v9353 = vsub.s32 %v9350, %v9352
        %v9354 = vrot.slane %v9347, %v9353
        %v9355 = vunpack.i.l.s16 %v9027
        %v9356 = vunpack.i.h.s16 %v9027
        %v9357 = vunpack.i.l.s16 %v9034
        %v9358 = vunpack.i.h.s16 %v9034
        %v9359 = vunpack.i.l.s16 %v9035
        %v9360 = vunpack.i.h.s16 %v9035
        %v9361 = vunpack.i.l.s16 %v9036
        %v9362 = vunpack.i.h.s16 %v9036
        %v9363 = vunpack.i.l.s16 %v9050
        %v9364 = vunpack.i.l.s16 %v9065
        %v9365 = vunpack.i.h.s16 %v9065
        %v9366 = vunpack.i.l.s16 %v9072
        %v9367 = vunpack.i.h.s16 %v9072
        %v9368 = vunpack.i.l.s16 %v9073
        %v9369 = vunpack.i.h.s16 %v9073
        %v9370 = vunpack.i.l.s16 %v9074
        %v9371 = vunpack.i.h.s16 %v9074
        %v9372 = vunpack.i.l.s16 %v9088
        %v9373 = vunpack.i.l.s16 %v9103
        %v9374 = vunpack.i.h.s16 %v9103
        %v9375 = vunpack.i.l.s16 %v9110
        %v9376 = vunpack.i.h.s16 %v9110
        %v9377 = vunpack.i.l.s16 %v9111
        %v9378 = vunpack.i.h.s16 %v9111
        %v9379 = vunpack.i.l.s16 %v9112
        %v9380 = vunpack.i.h.s16 %v9112
        %v9381 = vunpack.i.l.s16 %v9126
        %v9382 = vunpack.i.l.s16 %v9141
        %v9383 = vunpack.i.h.s16 %v9141
        %v9384 = vunpack.i.l.s16 %v9148
        %v9385 = vunpack.i.h.s16 %v9148
        %v9386 = vunpack.i.l.s16 %v9149
        %v9387 = vunpack.i.h.s16 %v9149
        %v9388 = vunpack.i.l.s16 %v9150
        %v9389 = vunpack.i.h.s16 %v9150
        %v9390 = vunpack.i.l.s16 %v9164
        %v9391 = vunpack.i.l.s16 %v9179
        %v9392 = vunpack.i.h.s16 %v9179
        %v9393 = vunpack.i.l.s16 %v9186
        %v9394 = vunpack.i.h.s16 %v9186
        %v9395 = vunpack.i.l.s16 %v9187
        %v9396 = vunpack.i.h.s16 %v9187
        %v9397 = vunpack.i.l.s16 %v9188
        %v9398 = vunpack.i.h.s16 %v9188
        %v9399 = vunpack.i.l.s16 %v9202
        %v9400 = vunpack.i.l.s16 %v9217
        %v9401 = vunpack.i.h.s16 %v9217
        %v9402 = vunpack.i.l.s16 %v9224
        %v9403 = vunpack.i.h.s16 %v9224
        %v9404 = vunpack.i.l.s16 %v9225
        %v9405 = vunpack.i.h.s16 %v9225
        %v9406 = vunpack.i.l.s16 %v9226
        %v9407 = vunpack.i.h.s16 %v9226
        %v9408 = vunpack.i.l.s16 %v9240
        %v9409 = vunpack.i.l.s16 %v9255
        %v9410 = vunpack.i.h.s16 %v9255
        %v9411 = vunpack.i.l.s16 %v9262
        %v9412 = vunpack.i.h.s16 %v9262
        %v9413 = vunpack.i.l.s16 %v9263
        %v9414 = vunpack.i.h.s16 %v9263
        %v9415 = vunpack.i.l.s16 %v9264
        %v9416 = vunpack.i.h.s16 %v9264
        %v9417 = vunpack.i.l.s16 %v9278
        %v9418 = vunpack.i.l.s16 %v9293
        %v9419 = vunpack.i.h.s16 %v9293
        %v9420 = vunpack.i.l.s16 %v9300
        %v9421 = vunpack.i.h.s16 %v9300
        %v9422 = vunpack.i.l.s16 %v9301
        %v9423 = vunpack.i.h.s16 %v9301
        %v9424 = vunpack.i.l.s16 %v9302
        %v9425 = vunpack.i.h.s16 %v9302
        %v9426 = vunpack.i.l.s16 %v9316
        %v9427 = vunpack.i.l.s16 %v9331
        %v9428 = vunpack.i.h.s16 %v9331
        %v9429 = vunpack.i.l.s16 %v9338
        %v9430 = vunpack.i.h.s16 %v9338
        %v9431 = vunpack.i.l.s16 %v9339
        %v9432 = vunpack.i.h.s16 %v9339
        %v9433 = vunpack.i.l.s16 %v9340
        %v9434 = vunpack.i.h.s16 %v9340
        %v9435 = vunpack.i.l.s16 %v9354
        %v9436 = vpack.i.b16 %v9356, %v9355
        %v9437 = vpack.i.b16 %v9358, %v9357
        %v9438 = vpack.i.b16 %v9360, %v9359
        %v9439 = vpack.i.b16 %v9362, %v9361
        %v9440 = vpack.i.b16 %v9364, %v9363
        %v9441 = vpack.i.b16 %v9366, %v9365
        %v9442 = vpack.i.b16 %v9368, %v9367
        %v9443 = vpack.i.b16 %v9370, %v9369
        %v9444 = vpack.i.b16 %v9372, %v9371
        %v9445 = vpack.i.b16 %v9374, %v9373
        %v9446 = vpack.i.b16 %v9376, %v9375
        %v9447 = vpack.i.b16 %v9378, %v9377
        %v9448 = vpack.i.b16 %v9380, %v9379
        %v9449 = vpack.i.b16 %v9382, %v9381
        %v9450 = vpack.i.b16 %v9384, %v9383
        %v9451 = vpack.i.b16 %v9386, %v9385
        %v9452 = vpack.i.b16 %v9388, %v9387
        %v9453 = vpack.i.b16 %v9390, %v9389
        %v9454 = vpack.i.b16 %v9392, %v9391
        %v9455 = vpack.i.b16 %v9394, %v9393
        %v9456 = vpack.i.b16 %v9396, %v9395
        %v9457 = vpack.i.b16 %v9398, %v9397
        %v9458 = vpack.i.b16 %v9400, %v9399
        %v9459 = vpack.i.b16 %v9402, %v9401
        %v9460 = vpack.i.b16 %v9404, %v9403
        %v9461 = vpack.i.b16 %v9406, %v9405
        %v9462 = vpack.i.b16 %v9408, %v9407
        %v9463 = vpack.i.b16 %v9410, %v9409
        %v9464 = vpack.i.b16 %v9412, %v9411
        %v9465 = vpack.i.b16 %v9414, %v9413
        %v9466 = vpack.i.b16 %v9416, %v9415
        %v9467 = vpack.i.b16 %v9418, %v9417
        %v9468 = vpack.i.b16 %v9420, %v9419
        %v9469 = vpack.i.b16 %v9422, %v9421
        %v9470 = vpack.i.b16 %v9424, %v9423
        %v9471 = vpack.i.b16 %v9426, %v9425
        %v9472 = vpack.i.b16 %v9428, %v9427
        %v9473 = vpack.i.b16 %v9430, %v9429
        %v9474 = vpack.i.b16 %v9432, %v9431
        %v9475 = vpack.i.b16 %v9434, %v9433
        %v9477 = vcombine.low %v9436, %v9437
        %v9478 = vcombine.low %v9438, %v9439
        %v9479 = vcombine.low %v9440, %v9441
        %v9480 = vcombine.low %v9442, %v9443
        %v9482 = vunpack.c.l.s4 1966171168
        %v9483 = vunpack.c.0.s8 %v9482
        %v9484 = vlaneseq
        %v9485 = vshrl.u32 %v9484, 7
        %v9486 = vsub.s32 %v9483, %v9485
        %v9487 = vrot.slane %v9477, %v9486
        %v9489 = vunpack.c.l.s4 1966171168
        %v9490 = vunpack.c.0.s8 %v9489
        %v9491 = vlaneseq
        %v9492 = vshrl.u32 %v9491, 7
        %v9493 = vsub.s32 %v9490, %v9492
        %v9494 = vrot.slane %v9478, %v9493
        %v9496 = vunpack.c.l.s4 1966171168
        %v9497 = vunpack.c.0.s8 %v9496
        %v9498 = vlaneseq
        %v9499 = vshrl.u32 %v9498, 7
        %v9500 = vsub.s32 %v9497, %v9499
        %v9501 = vrot.slane %v9479, %v9500
        %v9503 = vunpack.c.l.s4 1966171168
        %v9504 = vunpack.c.0.s8 %v9503
        %v9505 = vlaneseq
        %v9506 = vshrl.u32 %v9505, 7
        %v9507 = vsub.s32 %v9504, %v9506
        %v9508 = vrot.slane %v9480, %v9507
        %v9509 = vcombine.low %v9487, %v9494
        %v9510 = vcombine.low %v9501, %v9508
        %v9512 = vunpack.c.l.s4 1966171168
        %v9513 = vunpack.c.0.s8 %v9512
        %v9514 = vlaneseq
        %v9515 = vshrl.u32 %v9514, 7
        %v9516 = vsub.s32 %v9513, %v9515
        %v9517 = vrot.slane %v9509, %v9516
        %v9519 = vunpack.c.l.s4 1966171168
        %v9520 = vunpack.c.0.s8 %v9519
        %v9521 = vlaneseq
        %v9522 = vshrl.u32 %v9521, 7
        %v9523 = vsub.s32 %v9520, %v9522
        %v9524 = vrot.slane %v9510, %v9523
        %v9525 = vcombine.low %v9517, %v9524
        %v9526 = vcombine.low %v9444, %v9445
        %v9527 = vcombine.low %v9446, %v9447
        %v9528 = vcombine.low %v9448, %v9449
        %v9529 = vcombine.low %v9450, %v9451
        %v9531 = vunpack.c.l.s4 1966171168
        %v9532 = vunpack.c.0.s8 %v9531
        %v9533 = vlaneseq
        %v9534 = vshrl.u32 %v9533, 7
        %v9535 = vsub.s32 %v9532, %v9534
        %v9536 = vrot.slane %v9526, %v9535
        %v9538 = vunpack.c.l.s4 1966171168
        %v9539 = vunpack.c.0.s8 %v9538
        %v9540 = vlaneseq
        %v9541 = vshrl.u32 %v9540, 7
        %v9542 = vsub.s32 %v9539, %v9541
        %v9543 = vrot.slane %v9527, %v9542
        %v9545 = vunpack.c.l.s4 1966171168
        %v9546 = vunpack.c.0.s8 %v9545
        %v9547 = vlaneseq
        %v9548 = vshrl.u32 %v9547, 7
        %v9549 = vsub.s32 %v9546, %v9548
        %v9550 = vrot.slane %v9528, %v9549
        %v9552 = vunpack.c.l.s4 1966171168
        %v9553 = vunpack.c.0.s8 %v9552
        %v9554 = vlaneseq
        %v9555 = vshrl.u32 %v9554, 7
        %v9556 = vsub.s32 %v9553, %v9555
        %v9557 = vrot.slane %v9529, %v9556
        %v9558 = vcombine.low %v9536, %v9543
        %v9559 = vcombine.low %v9550, %v9557
        %v9561 = vunpack.c.l.s4 1966171168
        %v9562 = vunpack.c.0.s8 %v9561
        %v9563 = vlaneseq
        %v9564 = vshrl.u32 %v9563, 7
        %v9565 = vsub.s32 %v9562, %v9564
        %v9566 = vrot.slane %v9558, %v9565
        %v9568 = vunpack.c.l.s4 1966171168
        %v9569 = vunpack.c.0.s8 %v9568
        %v9570 = vlaneseq
        %v9571 = vshrl.u32 %v9570, 7
        %v9572 = vsub.s32 %v9569, %v9571
        %v9573 = vrot.slane %v9559, %v9572
        %v9574 = vcombine.low %v9566, %v9573
        %v9575 = vcombine.low %v9452, %v9453
        %v9576 = vcombine.low %v9454, %v9455
        %v9577 = vcombine.low %v9456, %v9457
        %v9578 = vcombine.low %v9458, %v9459
        %v9580 = vunpack.c.l.s4 1966171168
        %v9581 = vunpack.c.0.s8 %v9580
        %v9582 = vlaneseq
        %v9583 = vshrl.u32 %v9582, 7
        %v9584 = vsub.s32 %v9581, %v9583
        %v9585 = vrot.slane %v9575, %v9584
        %v9587 = vunpack.c.l.s4 1966171168
        %v9588 = vunpack.c.0.s8 %v9587
        %v9589 = vlaneseq
        %v9590 = vshrl.u32 %v9589, 7
        %v9591 = vsub.s32 %v9588, %v9590
        %v9592 = vrot.slane %v9576, %v9591
        %v9594 = vunpack.c.l.s4 1966171168
        %v9595 = vunpack.c.0.s8 %v9594
        %v9596 = vlaneseq
        %v9597 = vshrl.u32 %v9596, 7
        %v9598 = vsub.s32 %v9595, %v9597
        %v9599 = vrot.slane %v9577, %v9598
        %v9601 = vunpack.c.l.s4 1966171168
        %v9602 = vunpack.c.0.s8 %v9601
        %v9603 = vlaneseq
        %v9604 = vshrl.u32 %v9603, 7
        %v9605 = vsub.s32 %v9602, %v9604
        %v9606 = vrot.slane %v9578, %v9605
        %v9607 = vcombine.low %v9585, %v9592
        %v9608 = vcombine.low %v9599, %v9606
        %v9610 = vunpack.c.l.s4 1966171168
        %v9611 = vunpack.c.0.s8 %v9610
        %v9612 = vlaneseq
        %v9613 = vshrl.u32 %v9612, 7
        %v9614 = vsub.s32 %v9611, %v9613
        %v9615 = vrot.slane %v9607, %v9614
        %v9617 = vunpack.c.l.s4 1966171168
        %v9618 = vunpack.c.0.s8 %v9617
        %v9619 = vlaneseq
        %v9620 = vshrl.u32 %v9619, 7
        %v9621 = vsub.s32 %v9618, %v9620
        %v9622 = vrot.slane %v9608, %v9621
        %v9623 = vcombine.low %v9615, %v9622
        %v9624 = vcombine.low %v9460, %v9461
        %v9625 = vcombine.low %v9462, %v9463
        %v9626 = vcombine.low %v9464, %v9465
        %v9627 = vcombine.low %v9466, %v9467
        %v9629 = vunpack.c.l.s4 1966171168
        %v9630 = vunpack.c.0.s8 %v9629
        %v9631 = vlaneseq
        %v9632 = vshrl.u32 %v9631, 7
        %v9633 = vsub.s32 %v9630, %v9632
        %v9634 = vrot.slane %v9624, %v9633
        %v9636 = vunpack.c.l.s4 1966171168
        %v9637 = vunpack.c.0.s8 %v9636
        %v9638 = vlaneseq
        %v9639 = vshrl.u32 %v9638, 7
        %v9640 = vsub.s32 %v9637, %v9639
        %v9641 = vrot.slane %v9625, %v9640
        %v9643 = vunpack.c.l.s4 1966171168
        %v9644 = vunpack.c.0.s8 %v9643
        %v9645 = vlaneseq
        %v9646 = vshrl.u32 %v9645, 7
        %v9647 = vsub.s32 %v9644, %v9646
        %v9648 = vrot.slane %v9626, %v9647
        %v9650 = vunpack.c.l.s4 1966171168
        %v9651 = vunpack.c.0.s8 %v9650
        %v9652 = vlaneseq
        %v9653 = vshrl.u32 %v9652, 7
        %v9654 = vsub.s32 %v9651, %v9653
        %v9655 = vrot.slane %v9627, %v9654
        %v9656 = vcombine.low %v9634, %v9641
        %v9657 = vcombine.low %v9648, %v9655
        %v9659 = vunpack.c.l.s4 1966171168
        %v9660 = vunpack.c.0.s8 %v9659
        %v9661 = vlaneseq
        %v9662 = vshrl.u32 %v9661, 7
        %v9663 = vsub.s32 %v9660, %v9662
        %v9664 = vrot.slane %v9656, %v9663
        %v9666 = vunpack.c.l.s4 1966171168
        %v9667 = vunpack.c.0.s8 %v9666
        %v9668 = vlaneseq
        %v9669 = vshrl.u32 %v9668, 7
        %v9670 = vsub.s32 %v9667, %v9669
        %v9671 = vrot.slane %v9657, %v9670
        %v9672 = vcombine.low %v9664, %v9671
        %v9673 = vcombine.low %v9468, %v9469
        %v9674 = vcombine.low %v9470, %v9471
        %v9675 = vcombine.low %v9472, %v9473
        %v9676 = vcombine.low %v9474, %v9475
        %v9678 = vunpack.c.l.s4 1966171168
        %v9679 = vunpack.c.0.s8 %v9678
        %v9680 = vlaneseq
        %v9681 = vshrl.u32 %v9680, 7
        %v9682 = vsub.s32 %v9679, %v9681
        %v9683 = vrot.slane %v9673, %v9682
        %v9685 = vunpack.c.l.s4 1966171168
        %v9686 = vunpack.c.0.s8 %v9685
        %v9687 = vlaneseq
        %v9688 = vshrl.u32 %v9687, 7
        %v9689 = vsub.s32 %v9686, %v9688
        %v9690 = vrot.slane %v9674, %v9689
        %v9692 = vunpack.c.l.s4 1966171168
        %v9693 = vunpack.c.0.s8 %v9692
        %v9694 = vlaneseq
        %v9695 = vshrl.u32 %v9694, 7
        %v9696 = vsub.s32 %v9693, %v9695
        %v9697 = vrot.slane %v9675, %v9696
        %v9699 = vunpack.c.l.s4 1966171168
        %v9700 = vunpack.c.0.s8 %v9699
        %v9701 = vlaneseq
        %v9702 = vshrl.u32 %v9701, 7
        %v9703 = vsub.s32 %v9700, %v9702
        %v9704 = vrot.slane %v9676, %v9703
        %v9705 = vcombine.low %v9683, %v9690
        %v9706 = vcombine.low %v9697, %v9704
        %v9708 = vunpack.c.l.s4 1966171168
        %v9709 = vunpack.c.0.s8 %v9708
        %v9710 = vlaneseq
        %v9711 = vshrl.u32 %v9710, 7
        %v9712 = vsub.s32 %v9709, %v9711
        %v9713 = vrot.slane %v9705, %v9712
        %v9715 = vunpack.c.l.s4 1966171168
        %v9716 = vunpack.c.0.s8 %v9715
        %v9717 = vlaneseq
        %v9718 = vshrl.u32 %v9717, 7
        %v9719 = vsub.s32 %v9716, %v9718
        %v9720 = vrot.slane %v9706, %v9719
        %v9721 = vcombine.low %v9713, %v9720
        %v9723 = vunpack.c.l.s4 1966171168
        %v9724 = vunpack.c.0.s8 %v9723
        %v9725 = vlaneseq
        %v9726 = vshrl.u32 %v9725, 7
        %v9727 = vsub.s32 %v9724, %v9726
        %v9728 = vrot.slane %v9435, %v9727
        %v9730 = vunpack.c.l.s4 1966171168
        %v9731 = vunpack.c.0.s8 %v9730
        %v9732 = vlaneseq
        %v9733 = vshrl.u32 %v9732, 7
        %v9734 = vsub.s32 %v9731, %v9733
        %v9735 = vrot.slane %v9728, %v9734
        %v9737 = vsel %vm1307, %v9525, 0
        %v9740 = vsel %vm1307, %v9574, 0
        %v9743 = vsel %vm1307, %v9623, 0
        %v9746 = vsel %vm1307, %v9672, 0
        %v9749 = vsel %vm1307, %v9721, 0
        %v9752 = vsel %vm1307, %v9735, 0
        %9754 = vmatprep.subr.bf16.mxu0 0
        %9755 = vmatpush1.bf16.msra.mxu0 %v1328
        %9756 = vmatprep.subr.bf16.mxu0 0
        %9757 = vmatpush1.bf16.msra.mxu0 0
        %9758 = vmatprep.subr.bf16.mxu0 0
        %9759 = vmatpush1.bf16.msra.mxu0 0
        %9760 = vmatprep.subr.bf16.mxu0 0
        %9761 = vmatpush1.bf16.msra.mxu0 0
        %9762 = vmatprep.subr.bf16.mxu0 0
        %9763 = vmatpush1.bf16.msra.mxu0 0
        %9764 = vmatprep.subr.bf16.mxu0 0
        %9765 = vmatpush1.bf16.msra.mxu0 0
        %9766 = vmatprep.subr.bf16.mxu0 0
        %9767 = vmatpush1.bf16.msra.mxu0 0
        %9768 = vmatprep.subr.bf16.mxu0 0
        %9769 = vmatpush1.bf16.msra.mxu0 0
        %9770 = vmatprep.subr.bf16.mxu0 0
        %9771 = vmatpush1.bf16.msra.mxu0 0
        %9772 = vmatprep.subr.bf16.mxu0 0
        %9773 = vmatpush1.bf16.msra.mxu0 0
        %9774 = vmatprep.subr.bf16.mxu0 0
        %9775 = vmatpush1.bf16.msra.mxu0 0
        %9776 = vmatprep.subr.bf16.mxu0 0
        %9777 = vmatpush1.bf16.msra.mxu0 0
        %9778 = vmatprep.subr.bf16.mxu0 0
        %9779 = vmatpush1.bf16.msra.mxu0 0
        %9780 = vmatprep.subr.bf16.mxu0 0
        %9781 = vmatpush1.bf16.msra.mxu0 0
        %9782 = vmatprep.subr.bf16.mxu0 0
        %9783 = vmatpush1.bf16.msra.mxu0 0
        %9784 = vmatprep.subr.bf16.mxu0 0
        %9785 = vmatpush1.bf16.msra.mxu0 0
        %9786 = vmatprep.mubr.bf16.mxu0 0
        %9787 = vmatmul.mubr.bf16.gmra.mrb[0].mxu0 %v9737
        %v9788 = vpop.f32.mrb[0].mxu0
        %v9789 = vadd.f32 0.0, %v9788
        %v9790 = vpop.f32.mrb[0].mxu0
        %v9791 = vpop.f32.mrb[0].mxu0
        %v9792 = vadd.f32 0.0, %v9791
        %v9793 = vpop.f32.mrb[0].mxu0
        %9794 = vmatprep.mubr.bf16.mxu0 0
        %9795 = vmatmul.mubr.bf16.gmra.mrb[0].mxu0 %v9740
        %v9796 = vpop.f32.mrb[0].mxu0
        %v9797 = vadd.f32 0.0, %v9796
        %v9798 = vpop.f32.mrb[0].mxu0
        %v9799 = vpop.f32.mrb[0].mxu0
        %v9800 = vadd.f32 0.0, %v9799
        %v9801 = vpop.f32.mrb[0].mxu0
        %9802 = vmatprep.mubr.bf16.mxu0 0
        %9803 = vmatmul.mubr.bf16.gmra.mrb[0].mxu0 %v9743
        %v9804 = vpop.f32.mrb[0].mxu0
        %v9805 = vadd.f32 0.0, %v9804
        %v9806 = vpop.f32.mrb[0].mxu0
        %v9807 = vpop.f32.mrb[0].mxu0
        %v9808 = vadd.f32 0.0, %v9807
        %v9809 = vpop.f32.mrb[0].mxu0
        %9810 = vmatprep.mubr.bf16.mxu0 0
        %9811 = vmatmul.mubr.bf16.gmra.mrb[0].mxu0 %v9746
        %v9812 = vpop.f32.mrb[0].mxu0
        %v9813 = vadd.f32 0.0, %v9812
        %v9814 = vpop.f32.mrb[0].mxu0
        %v9815 = vpop.f32.mrb[0].mxu0
        %v9816 = vadd.f32 0.0, %v9815
        %v9817 = vpop.f32.mrb[0].mxu0
        %9818 = vmatprep.mubr.bf16.mxu0 0
        %9819 = vmatmul.mubr.bf16.gmra.mrb[0].mxu0 %v9749
        %v9820 = vpop.f32.mrb[0].mxu0
        %v9821 = vadd.f32 0.0, %v9820
        %v9822 = vpop.f32.mrb[0].mxu0
        %v9823 = vpop.f32.mrb[0].mxu0
        %v9824 = vadd.f32 0.0, %v9823
        %v9825 = vpop.f32.mrb[0].mxu0
        %9826 = vmatprep.mubr.bf16.mxu0 0
        %9827 = vmatmul.mubr.bf16.gmra.mrb[0].mxu0 %v9752
        %v9828 = vpop.f32.mrb[0].mxu0
        %v9829 = vadd.f32 0.0, %v9828
        %v9830 = vpop.f32.mrb[0].mxu0
        %v9831 = vpop.f32.mrb[0].mxu0
        %v9832 = vpop.f32.mrb[0].mxu0
        %9833 = vdwg.mxu0
        %v9845 = vcombine.high %v9789, %v9789
        %v9847 = vunpack.c.l.s4 1966171168
        %v9848 = vunpack.c.0.s8 %v9847
        %v9849 = vlaneseq
        %v9850 = vshrl.u32 %v9849, 7
        %v9851 = vsub.s32 %v9848, %v9850
        %v9852 = vrot.slane %v9789, %v9851
        %v9854 = vunpack.c.l.s4 1966171168
        %v9855 = vunpack.c.0.s8 %v9854
        %v9856 = vlaneseq
        %v9857 = vshrl.u32 %v9856, 7
        %v9858 = vsub.s32 %v9855, %v9857
        %v9859 = vrot.slane %v9845, %v9858
        %v9860 = vcombine.high %v9852, %v9852
        %v9861 = vcombine.high %v9859, %v9859
        %v9863 = vunpack.c.l.s4 1966171168
        %v9864 = vunpack.c.0.s8 %v9863
        %v9865 = vlaneseq
        %v9866 = vshrl.u32 %v9865, 7
        %v9867 = vsub.s32 %v9864, %v9866
        %v9868 = vrot.slane %v9852, %v9867
        %v9870 = vunpack.c.l.s4 1966171168
        %v9871 = vunpack.c.0.s8 %v9870
        %v9872 = vlaneseq
        %v9873 = vshrl.u32 %v9872, 7
        %v9874 = vsub.s32 %v9871, %v9873
        %v9875 = vrot.slane %v9859, %v9874
        %v9877 = vunpack.c.l.s4 1966171168
        %v9878 = vunpack.c.0.s8 %v9877
        %v9879 = vlaneseq
        %v9880 = vshrl.u32 %v9879, 7
        %v9881 = vsub.s32 %v9878, %v9880
        %v9882 = vrot.slane %v9860, %v9881
        %v9884 = vunpack.c.l.s4 1966171168
        %v9885 = vunpack.c.0.s8 %v9884
        %v9886 = vlaneseq
        %v9887 = vshrl.u32 %v9886, 7
        %v9888 = vsub.s32 %v9885, %v9887
        %v9889 = vrot.slane %v9861, %v9888
        %v9890 = vcombine.high %v9868, %v9868
        %v9891 = vcombine.high %v9875, %v9875
        %v9892 = vcombine.high %v9882, %v9882
        %v9893 = vcombine.high %v9889, %v9889
        %v9894 = vcombine.high %v9792, %v9792
        %v9896 = vunpack.c.l.s4 1966171168
        %v9897 = vunpack.c.0.s8 %v9896
        %v9898 = vlaneseq
        %v9899 = vshrl.u32 %v9898, 7
        %v9900 = vsub.s32 %v9897, %v9899
        %v9901 = vrot.slane %v9792, %v9900
        %v9903 = vunpack.c.l.s4 1966171168
        %v9904 = vunpack.c.0.s8 %v9903
        %v9905 = vlaneseq
        %v9906 = vshrl.u32 %v9905, 7
        %v9907 = vsub.s32 %v9904, %v9906
        %v9908 = vrot.slane %v9894, %v9907
        %v9909 = vcombine.high %v9901, %v9901
        %v9910 = vcombine.high %v9908, %v9908
        %v9912 = vunpack.c.l.s4 1966171168
        %v9913 = vunpack.c.0.s8 %v9912
        %v9914 = vlaneseq
        %v9915 = vshrl.u32 %v9914, 7
        %v9916 = vsub.s32 %v9913, %v9915
        %v9917 = vrot.slane %v9901, %v9916
        %v9919 = vunpack.c.l.s4 1966171168
        %v9920 = vunpack.c.0.s8 %v9919
        %v9921 = vlaneseq
        %v9922 = vshrl.u32 %v9921, 7
        %v9923 = vsub.s32 %v9920, %v9922
        %v9924 = vrot.slane %v9908, %v9923
        %v9926 = vunpack.c.l.s4 1966171168
        %v9927 = vunpack.c.0.s8 %v9926
        %v9928 = vlaneseq
        %v9929 = vshrl.u32 %v9928, 7
        %v9930 = vsub.s32 %v9927, %v9929
        %v9931 = vrot.slane %v9909, %v9930
        %v9933 = vunpack.c.l.s4 1966171168
        %v9934 = vunpack.c.0.s8 %v9933
        %v9935 = vlaneseq
        %v9936 = vshrl.u32 %v9935, 7
        %v9937 = vsub.s32 %v9934, %v9936
        %v9938 = vrot.slane %v9910, %v9937
        %v9939 = vcombine.high %v9917, %v9917
        %v9940 = vcombine.high %v9924, %v9924
        %v9941 = vcombine.high %v9931, %v9931
        %v9942 = vcombine.high %v9938, %v9938
        %v9943 = vcombine.high %v9797, %v9797
        %v9945 = vunpack.c.l.s4 1966171168
        %v9946 = vunpack.c.0.s8 %v9945
        %v9947 = vlaneseq
        %v9948 = vshrl.u32 %v9947, 7
        %v9949 = vsub.s32 %v9946, %v9948
        %v9950 = vrot.slane %v9797, %v9949
        %v9952 = vunpack.c.l.s4 1966171168
        %v9953 = vunpack.c.0.s8 %v9952
        %v9954 = vlaneseq
        %v9955 = vshrl.u32 %v9954, 7
        %v9956 = vsub.s32 %v9953, %v9955
        %v9957 = vrot.slane %v9943, %v9956
        %v9958 = vcombine.high %v9950, %v9950
        %v9959 = vcombine.high %v9957, %v9957
        %v9961 = vunpack.c.l.s4 1966171168
        %v9962 = vunpack.c.0.s8 %v9961
        %v9963 = vlaneseq
        %v9964 = vshrl.u32 %v9963, 7
        %v9965 = vsub.s32 %v9962, %v9964
        %v9966 = vrot.slane %v9950, %v9965
        %v9968 = vunpack.c.l.s4 1966171168
        %v9969 = vunpack.c.0.s8 %v9968
        %v9970 = vlaneseq
        %v9971 = vshrl.u32 %v9970, 7
        %v9972 = vsub.s32 %v9969, %v9971
        %v9973 = vrot.slane %v9957, %v9972
        %v9975 = vunpack.c.l.s4 1966171168
        %v9976 = vunpack.c.0.s8 %v9975
        %v9977 = vlaneseq
        %v9978 = vshrl.u32 %v9977, 7
        %v9979 = vsub.s32 %v9976, %v9978
        %v9980 = vrot.slane %v9958, %v9979
        %v9982 = vunpack.c.l.s4 1966171168
        %v9983 = vunpack.c.0.s8 %v9982
        %v9984 = vlaneseq
        %v9985 = vshrl.u32 %v9984, 7
        %v9986 = vsub.s32 %v9983, %v9985
        %v9987 = vrot.slane %v9959, %v9986
        %v9988 = vcombine.high %v9966, %v9966
        %v9989 = vcombine.high %v9973, %v9973
        %v9990 = vcombine.high %v9980, %v9980
        %v9991 = vcombine.high %v9987, %v9987
        %v9992 = vcombine.high %v9800, %v9800
        %v9994 = vunpack.c.l.s4 1966171168
        %v9995 = vunpack.c.0.s8 %v9994
        %v9996 = vlaneseq
        %v9997 = vshrl.u32 %v9996, 7
        %v9998 = vsub.s32 %v9995, %v9997
        %v9999 = vrot.slane %v9800, %v9998
        %v10001 = vunpack.c.l.s4 1966171168
        %v10002 = vunpack.c.0.s8 %v10001
        %v10003 = vlaneseq
        %v10004 = vshrl.u32 %v10003, 7
        %v10005 = vsub.s32 %v10002, %v10004
        %v10006 = vrot.slane %v9992, %v10005
        %v10007 = vcombine.high %v9999, %v9999
        %v10008 = vcombine.high %v10006, %v10006
        %v10010 = vunpack.c.l.s4 1966171168
        %v10011 = vunpack.c.0.s8 %v10010
        %v10012 = vlaneseq
        %v10013 = vshrl.u32 %v10012, 7
        %v10014 = vsub.s32 %v10011, %v10013
        %v10015 = vrot.slane %v9999, %v10014
        %v10017 = vunpack.c.l.s4 1966171168
        %v10018 = vunpack.c.0.s8 %v10017
        %v10019 = vlaneseq
        %v10020 = vshrl.u32 %v10019, 7
        %v10021 = vsub.s32 %v10018, %v10020
        %v10022 = vrot.slane %v10006, %v10021
        %v10024 = vunpack.c.l.s4 1966171168
        %v10025 = vunpack.c.0.s8 %v10024
        %v10026 = vlaneseq
        %v10027 = vshrl.u32 %v10026, 7
        %v10028 = vsub.s32 %v10025, %v10027
        %v10029 = vrot.slane %v10007, %v10028
        %v10031 = vunpack.c.l.s4 1966171168
        %v10032 = vunpack.c.0.s8 %v10031
        %v10033 = vlaneseq
        %v10034 = vshrl.u32 %v10033, 7
        %v10035 = vsub.s32 %v10032, %v10034
        %v10036 = vrot.slane %v10008, %v10035
        %v10037 = vcombine.high %v10015, %v10015
        %v10038 = vcombine.high %v10022, %v10022
        %v10039 = vcombine.high %v10029, %v10029
        %v10040 = vcombine.high %v10036, %v10036
        %v10041 = vcombine.high %v9805, %v9805
        %v10043 = vunpack.c.l.s4 1966171168
        %v10044 = vunpack.c.0.s8 %v10043
        %v10045 = vlaneseq
        %v10046 = vshrl.u32 %v10045, 7
        %v10047 = vsub.s32 %v10044, %v10046
        %v10048 = vrot.slane %v9805, %v10047
        %v10050 = vunpack.c.l.s4 1966171168
        %v10051 = vunpack.c.0.s8 %v10050
        %v10052 = vlaneseq
        %v10053 = vshrl.u32 %v10052, 7
        %v10054 = vsub.s32 %v10051, %v10053
        %v10055 = vrot.slane %v10041, %v10054
        %v10056 = vcombine.high %v10048, %v10048
        %v10057 = vcombine.high %v10055, %v10055
        %v10059 = vunpack.c.l.s4 1966171168
        %v10060 = vunpack.c.0.s8 %v10059
        %v10061 = vlaneseq
        %v10062 = vshrl.u32 %v10061, 7
        %v10063 = vsub.s32 %v10060, %v10062
        %v10064 = vrot.slane %v10048, %v10063
        %v10066 = vunpack.c.l.s4 1966171168
        %v10067 = vunpack.c.0.s8 %v10066
        %v10068 = vlaneseq
        %v10069 = vshrl.u32 %v10068, 7
        %v10070 = vsub.s32 %v10067, %v10069
        %v10071 = vrot.slane %v10055, %v10070
        %v10073 = vunpack.c.l.s4 1966171168
        %v10074 = vunpack.c.0.s8 %v10073
        %v10075 = vlaneseq
        %v10076 = vshrl.u32 %v10075, 7
        %v10077 = vsub.s32 %v10074, %v10076
        %v10078 = vrot.slane %v10056, %v10077
        %v10080 = vunpack.c.l.s4 1966171168
        %v10081 = vunpack.c.0.s8 %v10080
        %v10082 = vlaneseq
        %v10083 = vshrl.u32 %v10082, 7
        %v10084 = vsub.s32 %v10081, %v10083
        %v10085 = vrot.slane %v10057, %v10084
        %v10086 = vcombine.high %v10064, %v10064
        %v10087 = vcombine.high %v10071, %v10071
        %v10088 = vcombine.high %v10078, %v10078
        %v10089 = vcombine.high %v10085, %v10085
        %v10090 = vcombine.high %v9808, %v9808
        %v10092 = vunpack.c.l.s4 1966171168
        %v10093 = vunpack.c.0.s8 %v10092
        %v10094 = vlaneseq
        %v10095 = vshrl.u32 %v10094, 7
        %v10096 = vsub.s32 %v10093, %v10095
        %v10097 = vrot.slane %v9808, %v10096
        %v10099 = vunpack.c.l.s4 1966171168
        %v10100 = vunpack.c.0.s8 %v10099
        %v10101 = vlaneseq
        %v10102 = vshrl.u32 %v10101, 7
        %v10103 = vsub.s32 %v10100, %v10102
        %v10104 = vrot.slane %v10090, %v10103
        %v10105 = vcombine.high %v10097, %v10097
        %v10106 = vcombine.high %v10104, %v10104
        %v10108 = vunpack.c.l.s4 1966171168
        %v10109 = vunpack.c.0.s8 %v10108
        %v10110 = vlaneseq
        %v10111 = vshrl.u32 %v10110, 7
        %v10112 = vsub.s32 %v10109, %v10111
        %v10113 = vrot.slane %v10097, %v10112
        %v10115 = vunpack.c.l.s4 1966171168
        %v10116 = vunpack.c.0.s8 %v10115
        %v10117 = vlaneseq
        %v10118 = vshrl.u32 %v10117, 7
        %v10119 = vsub.s32 %v10116, %v10118
        %v10120 = vrot.slane %v10104, %v10119
        %v10122 = vunpack.c.l.s4 1966171168
        %v10123 = vunpack.c.0.s8 %v10122
        %v10124 = vlaneseq
        %v10125 = vshrl.u32 %v10124, 7
        %v10126 = vsub.s32 %v10123, %v10125
        %v10127 = vrot.slane %v10105, %v10126
        %v10129 = vunpack.c.l.s4 1966171168
        %v10130 = vunpack.c.0.s8 %v10129
        %v10131 = vlaneseq
        %v10132 = vshrl.u32 %v10131, 7
        %v10133 = vsub.s32 %v10130, %v10132
        %v10134 = vrot.slane %v10106, %v10133
        %v10135 = vcombine.high %v10113, %v10113
        %v10136 = vcombine.high %v10120, %v10120
        %v10137 = vcombine.high %v10127, %v10127
        %v10138 = vcombine.high %v10134, %v10134
        %v10139 = vcombine.high %v9813, %v9813
        %v10141 = vunpack.c.l.s4 1966171168
        %v10142 = vunpack.c.0.s8 %v10141
        %v10143 = vlaneseq
        %v10144 = vshrl.u32 %v10143, 7
        %v10145 = vsub.s32 %v10142, %v10144
        %v10146 = vrot.slane %v9813, %v10145
        %v10148 = vunpack.c.l.s4 1966171168
        %v10149 = vunpack.c.0.s8 %v10148
        %v10150 = vlaneseq
        %v10151 = vshrl.u32 %v10150, 7
        %v10152 = vsub.s32 %v10149, %v10151
        %v10153 = vrot.slane %v10139, %v10152
        %v10154 = vcombine.high %v10146, %v10146
        %v10155 = vcombine.high %v10153, %v10153
        %v10157 = vunpack.c.l.s4 1966171168
        %v10158 = vunpack.c.0.s8 %v10157
        %v10159 = vlaneseq
        %v10160 = vshrl.u32 %v10159, 7
        %v10161 = vsub.s32 %v10158, %v10160
        %v10162 = vrot.slane %v10146, %v10161
        %v10164 = vunpack.c.l.s4 1966171168
        %v10165 = vunpack.c.0.s8 %v10164
        %v10166 = vlaneseq
        %v10167 = vshrl.u32 %v10166, 7
        %v10168 = vsub.s32 %v10165, %v10167
        %v10169 = vrot.slane %v10153, %v10168
        %v10171 = vunpack.c.l.s4 1966171168
        %v10172 = vunpack.c.0.s8 %v10171
        %v10173 = vlaneseq
        %v10174 = vshrl.u32 %v10173, 7
        %v10175 = vsub.s32 %v10172, %v10174
        %v10176 = vrot.slane %v10154, %v10175
        %v10178 = vunpack.c.l.s4 1966171168
        %v10179 = vunpack.c.0.s8 %v10178
        %v10180 = vlaneseq
        %v10181 = vshrl.u32 %v10180, 7
        %v10182 = vsub.s32 %v10179, %v10181
        %v10183 = vrot.slane %v10155, %v10182
        %v10184 = vcombine.high %v10162, %v10162
        %v10185 = vcombine.high %v10169, %v10169
        %v10186 = vcombine.high %v10176, %v10176
        %v10187 = vcombine.high %v10183, %v10183
        %v10188 = vcombine.high %v9816, %v9816
        %v10190 = vunpack.c.l.s4 1966171168
        %v10191 = vunpack.c.0.s8 %v10190
        %v10192 = vlaneseq
        %v10193 = vshrl.u32 %v10192, 7
        %v10194 = vsub.s32 %v10191, %v10193
        %v10195 = vrot.slane %v9816, %v10194
        %v10197 = vunpack.c.l.s4 1966171168
        %v10198 = vunpack.c.0.s8 %v10197
        %v10199 = vlaneseq
        %v10200 = vshrl.u32 %v10199, 7
        %v10201 = vsub.s32 %v10198, %v10200
        %v10202 = vrot.slane %v10188, %v10201
        %v10203 = vcombine.high %v10195, %v10195
        %v10204 = vcombine.high %v10202, %v10202
        %v10206 = vunpack.c.l.s4 1966171168
        %v10207 = vunpack.c.0.s8 %v10206
        %v10208 = vlaneseq
        %v10209 = vshrl.u32 %v10208, 7
        %v10210 = vsub.s32 %v10207, %v10209
        %v10211 = vrot.slane %v10195, %v10210
        %v10213 = vunpack.c.l.s4 1966171168
        %v10214 = vunpack.c.0.s8 %v10213
        %v10215 = vlaneseq
        %v10216 = vshrl.u32 %v10215, 7
        %v10217 = vsub.s32 %v10214, %v10216
        %v10218 = vrot.slane %v10202, %v10217
        %v10220 = vunpack.c.l.s4 1966171168
        %v10221 = vunpack.c.0.s8 %v10220
        %v10222 = vlaneseq
        %v10223 = vshrl.u32 %v10222, 7
        %v10224 = vsub.s32 %v10221, %v10223
        %v10225 = vrot.slane %v10203, %v10224
        %v10227 = vunpack.c.l.s4 1966171168
        %v10228 = vunpack.c.0.s8 %v10227
        %v10229 = vlaneseq
        %v10230 = vshrl.u32 %v10229, 7
        %v10231 = vsub.s32 %v10228, %v10230
        %v10232 = vrot.slane %v10204, %v10231
        %v10233 = vcombine.high %v10211, %v10211
        %v10234 = vcombine.high %v10218, %v10218
        %v10235 = vcombine.high %v10225, %v10225
        %v10236 = vcombine.high %v10232, %v10232
        %v10237 = vcombine.high %v9821, %v9821
        %v10239 = vunpack.c.l.s4 1966171168
        %v10240 = vunpack.c.0.s8 %v10239
        %v10241 = vlaneseq
        %v10242 = vshrl.u32 %v10241, 7
        %v10243 = vsub.s32 %v10240, %v10242
        %v10244 = vrot.slane %v9821, %v10243
        %v10246 = vunpack.c.l.s4 1966171168
        %v10247 = vunpack.c.0.s8 %v10246
        %v10248 = vlaneseq
        %v10249 = vshrl.u32 %v10248, 7
        %v10250 = vsub.s32 %v10247, %v10249
        %v10251 = vrot.slane %v10237, %v10250
        %v10252 = vcombine.high %v10244, %v10244
        %v10253 = vcombine.high %v10251, %v10251
        %v10255 = vunpack.c.l.s4 1966171168
        %v10256 = vunpack.c.0.s8 %v10255
        %v10257 = vlaneseq
        %v10258 = vshrl.u32 %v10257, 7
        %v10259 = vsub.s32 %v10256, %v10258
        %v10260 = vrot.slane %v10244, %v10259
        %v10262 = vunpack.c.l.s4 1966171168
        %v10263 = vunpack.c.0.s8 %v10262
        %v10264 = vlaneseq
        %v10265 = vshrl.u32 %v10264, 7
        %v10266 = vsub.s32 %v10263, %v10265
        %v10267 = vrot.slane %v10251, %v10266
        %v10269 = vunpack.c.l.s4 1966171168
        %v10270 = vunpack.c.0.s8 %v10269
        %v10271 = vlaneseq
        %v10272 = vshrl.u32 %v10271, 7
        %v10273 = vsub.s32 %v10270, %v10272
        %v10274 = vrot.slane %v10252, %v10273
        %v10276 = vunpack.c.l.s4 1966171168
        %v10277 = vunpack.c.0.s8 %v10276
        %v10278 = vlaneseq
        %v10279 = vshrl.u32 %v10278, 7
        %v10280 = vsub.s32 %v10277, %v10279
        %v10281 = vrot.slane %v10253, %v10280
        %v10282 = vcombine.high %v10260, %v10260
        %v10283 = vcombine.high %v10267, %v10267
        %v10284 = vcombine.high %v10274, %v10274
        %v10285 = vcombine.high %v10281, %v10281
        %v10286 = vcombine.high %v9824, %v9824
        %v10288 = vunpack.c.l.s4 1966171168
        %v10289 = vunpack.c.0.s8 %v10288
        %v10290 = vlaneseq
        %v10291 = vshrl.u32 %v10290, 7
        %v10292 = vsub.s32 %v10289, %v10291
        %v10293 = vrot.slane %v9824, %v10292
        %v10295 = vunpack.c.l.s4 1966171168
        %v10296 = vunpack.c.0.s8 %v10295
        %v10297 = vlaneseq
        %v10298 = vshrl.u32 %v10297, 7
        %v10299 = vsub.s32 %v10296, %v10298
        %v10300 = vrot.slane %v10286, %v10299
        %v10301 = vcombine.high %v10293, %v10293
        %v10302 = vcombine.high %v10300, %v10300
        %v10304 = vunpack.c.l.s4 1966171168
        %v10305 = vunpack.c.0.s8 %v10304
        %v10306 = vlaneseq
        %v10307 = vshrl.u32 %v10306, 7
        %v10308 = vsub.s32 %v10305, %v10307
        %v10309 = vrot.slane %v10293, %v10308
        %v10311 = vunpack.c.l.s4 1966171168
        %v10312 = vunpack.c.0.s8 %v10311
        %v10313 = vlaneseq
        %v10314 = vshrl.u32 %v10313, 7
        %v10315 = vsub.s32 %v10312, %v10314
        %v10316 = vrot.slane %v10300, %v10315
        %v10318 = vunpack.c.l.s4 1966171168
        %v10319 = vunpack.c.0.s8 %v10318
        %v10320 = vlaneseq
        %v10321 = vshrl.u32 %v10320, 7
        %v10322 = vsub.s32 %v10319, %v10321
        %v10323 = vrot.slane %v10301, %v10322
        %v10325 = vunpack.c.l.s4 1966171168
        %v10326 = vunpack.c.0.s8 %v10325
        %v10327 = vlaneseq
        %v10328 = vshrl.u32 %v10327, 7
        %v10329 = vsub.s32 %v10326, %v10328
        %v10330 = vrot.slane %v10302, %v10329
        %v10331 = vcombine.high %v10309, %v10309
        %v10332 = vcombine.high %v10316, %v10316
        %v10333 = vcombine.high %v10323, %v10323
        %v10334 = vcombine.high %v10330, %v10330
        %v10336 = vunpack.c.l.s4 1966171168
        %v10337 = vunpack.c.0.s8 %v10336
        %v10338 = vlaneseq
        %v10339 = vshrl.u32 %v10338, 7
        %v10340 = vsub.s32 %v10337, %v10339
        %v10341 = vrot.slane %v9829, %v10340
        %v10343 = vunpack.c.l.s4 1966171168
        %v10344 = vunpack.c.0.s8 %v10343
        %v10345 = vlaneseq
        %v10346 = vshrl.u32 %v10345, 7
        %v10347 = vsub.s32 %v10344, %v10346
        %v10348 = vrot.slane %v10341, %v10347
        %vm10430 = vmand %vm7638, %vm4851
        %vm10431 = vmand %vm7638, %vm4852
        %vm10432 = vmand %vm7639, %vm4851
        %vm10433 = vmand %vm7639, %vm4852
        %vm10434 = vmand %vm7640, %vm4851
        %vm10435 = vmand %vm7640, %vm4852
        %vm10436 = vmand %vm7641, %vm4851
        %vm10437 = vmand %vm7641, %vm4852
        %vm10438 = vmand %vm7642, %vm4851
        %vm10439 = vmand %vm7642, %vm4852
        %vm10440 = vmand %vm7643, %vm4851
        %vm10441 = vmand %vm7643, %vm4852
        %vm10442 = vmand %vm7644, %vm4851
        %vm10443 = vmand %vm7644, %vm4852
        %vm10444 = vmand %vm7645, %vm4851
        %vm10445 = vmand %vm7645, %vm4852
        %vm10446 = vmand %vm7646, %vm4851
        %vm10447 = vmand %vm7646, %vm4852
        %v10448 = vadd.f32 %v9868, %v2066
        %v10449 = vadd.f32 %v9882, %v2080
        %v10450 = vadd.f32 %v9890, %v2088
        %v10451 = vadd.f32 %v9892, %v2090
        %v10452 = vadd.f32 %v9875, %v2073
        %v10453 = vadd.f32 %v9889, %v2087
        %v10454 = vadd.f32 %v9891, %v2089
        %v10455 = vadd.f32 %v9893, %v2091
        %v10456 = vadd.f32 %v9917, %v2066
        %v10457 = vadd.f32 %v9931, %v2066
        %v10458 = vadd.f32 %v9939, %v2080
        %v10459 = vadd.f32 %v9941, %v2088
        %v10460 = vadd.f32 %v9924, %v2090
        %v10461 = vadd.f32 %v9938, %v2073
        %v10462 = vadd.f32 %v9940, %v2087
        %v10463 = vadd.f32 %v9942, %v2089
        %v10464 = vadd.f32 %v9966, %v2091
        %v10465 = vadd.f32 %v9980, %v2066
        %v10466 = vadd.f32 %v9988, %v2066
        %v10467 = vadd.f32 %v9990, %v2080
        %v10468 = vadd.f32 %v9973, %v2088
        %v10469 = vadd.f32 %v9987, %v2090
        %v10470 = vadd.f32 %v9989, %v2073
        %v10471 = vadd.f32 %v9991, %v2087
        %v10472 = vadd.f32 %v10015, %v2089
        %v10473 = vadd.f32 %v10029, %v2091
        %v10474 = vadd.f32 %v10037, %v2066
        %v10475 = vadd.f32 %v10039, %v2066
        %v10476 = vadd.f32 %v10022, %v2080
        %v10477 = vadd.f32 %v10036, %v2088
        %v10478 = vadd.f32 %v10038, %v2090
        %v10479 = vadd.f32 %v10040, %v2073
        %v10480 = vadd.f32 %v10064, %v2087
        %v10481 = vadd.f32 %v10078, %v2089
        %v10482 = vadd.f32 %v10086, %v2091
        %v10483 = vadd.f32 %v10088, %v2066
        %v10484 = vadd.f32 %v10071, %v2066
        %v10485 = vadd.f32 %v10085, %v2080
        %v10486 = vadd.f32 %v10087, %v2088
        %v10487 = vadd.f32 %v10089, %v2090
        %v10488 = vadd.f32 %v10113, %v2073
        %v10489 = vadd.f32 %v10127, %v2087
        %v10490 = vadd.f32 %v10135, %v2089
        %v10491 = vadd.f32 %v10137, %v2091
        %v10492 = vadd.f32 %v10120, %v2066
        %v10493 = vadd.f32 %v10134, %v2066
        %v10494 = vadd.f32 %v10136, %v2080
        %v10495 = vadd.f32 %v10138, %v2088
        %v10496 = vadd.f32 %v10162, %v2090
        %v10497 = vadd.f32 %v10176, %v2073
        %v10498 = vadd.f32 %v10184, %v2087
        %v10499 = vadd.f32 %v10186, %v2089
        %v10500 = vadd.f32 %v10169, %v2091
        %v10501 = vadd.f32 %v10183, %v2066
        %v10502 = vadd.f32 %v10185, %v2066
        %v10503 = vadd.f32 %v10187, %v2080
        %v10504 = vadd.f32 %v10211, %v2088
        %v10505 = vadd.f32 %v10225, %v2090
        %v10506 = vadd.f32 %v10233, %v2073
        %v10507 = vadd.f32 %v10235, %v2087
        %v10508 = vadd.f32 %v10218, %v2089
        %v10509 = vadd.f32 %v10232, %v2091
        %v10510 = vadd.f32 %v10234, %v2066
        %v10511 = vadd.f32 %v10236, %v2066
        %v10512 = vadd.f32 %v10260, %v2080
        %v10513 = vadd.f32 %v10274, %v2088
        %v10514 = vadd.f32 %v10282, %v2090
        %v10515 = vadd.f32 %v10284, %v2073
        %v10516 = vadd.f32 %v10267, %v2087
        %v10517 = vadd.f32 %v10281, %v2089
        %v10518 = vadd.f32 %v10283, %v2091
        %v10519 = vadd.f32 %v10285, %v2066
        %v10520 = vadd.f32 %v10309, %v2066
        %v10521 = vadd.f32 %v10323, %v2080
        %v10522 = vadd.f32 %v10331, %v2088
        %v10523 = vadd.f32 %v10333, %v2090
        %v10524 = vadd.f32 %v10316, %v2073
        %v10525 = vadd.f32 %v10330, %v2087
        %v10526 = vadd.f32 %v10332, %v2089
        %v10527 = vadd.f32 %v10334, %v2091
        %v10528 = vadd.f32 %v10348, %v2066
        %v10610 = vcombine.low %v10448, %v10449
        %v10611 = vcombine.low %v10450, %v10451
        %v10612 = vcombine.low %v10452, %v10453
        %v10613 = vcombine.low %v10454, %v10455
        %v10615 = vunpack.c.l.s4 1966171168
        %v10616 = vunpack.c.0.s8 %v10615
        %v10617 = vlaneseq
        %v10618 = vshrl.u32 %v10617, 7
        %v10619 = vsub.s32 %v10616, %v10618
        %v10620 = vrot.slane %v10610, %v10619
        %v10622 = vunpack.c.l.s4 1966171168
        %v10623 = vunpack.c.0.s8 %v10622
        %v10624 = vlaneseq
        %v10625 = vshrl.u32 %v10624, 7
        %v10626 = vsub.s32 %v10623, %v10625
        %v10627 = vrot.slane %v10611, %v10626
        %v10629 = vunpack.c.l.s4 1966171168
        %v10630 = vunpack.c.0.s8 %v10629
        %v10631 = vlaneseq
        %v10632 = vshrl.u32 %v10631, 7
        %v10633 = vsub.s32 %v10630, %v10632
        %v10634 = vrot.slane %v10612, %v10633
        %v10636 = vunpack.c.l.s4 1966171168
        %v10637 = vunpack.c.0.s8 %v10636
        %v10638 = vlaneseq
        %v10639 = vshrl.u32 %v10638, 7
        %v10640 = vsub.s32 %v10637, %v10639
        %v10641 = vrot.slane %v10613, %v10640
        %v10642 = vcombine.low %v10620, %v10627
        %v10643 = vcombine.low %v10634, %v10641
        %v10645 = vunpack.c.l.s4 1966171168
        %v10646 = vunpack.c.0.s8 %v10645
        %v10647 = vlaneseq
        %v10648 = vshrl.u32 %v10647, 7
        %v10649 = vsub.s32 %v10646, %v10648
        %v10650 = vrot.slane %v10642, %v10649
        %v10652 = vunpack.c.l.s4 1966171168
        %v10653 = vunpack.c.0.s8 %v10652
        %v10654 = vlaneseq
        %v10655 = vshrl.u32 %v10654, 7
        %v10656 = vsub.s32 %v10653, %v10655
        %v10657 = vrot.slane %v10643, %v10656
        %v10658 = vcombine.low %v10650, %v10657
        %v10660 = vunpack.c.l.s4 1966171168
        %v10661 = vunpack.c.0.s8 %v10660
        %v10662 = vlaneseq
        %v10663 = vshrl.u32 %v10662, 7
        %v10664 = vsub.s32 %v10661, %v10663
        %v10665 = vrot.slane %v10456, %v10664
        %v10667 = vunpack.c.l.s4 1966171168
        %v10668 = vunpack.c.0.s8 %v10667
        %v10669 = vlaneseq
        %v10670 = vshrl.u32 %v10669, 7
        %v10671 = vsub.s32 %v10668, %v10670
        %v10672 = vrot.slane %v10665, %v10671
        %v10673 = vcombine.low %v10457, %v10458
        %v10674 = vcombine.low %v10459, %v10460
        %v10675 = vcombine.low %v10461, %v10462
        %v10676 = vcombine.low %v10463, %v10464
        %v10678 = vunpack.c.l.s4 1966171168
        %v10679 = vunpack.c.0.s8 %v10678
        %v10680 = vlaneseq
        %v10681 = vshrl.u32 %v10680, 7
        %v10682 = vsub.s32 %v10679, %v10681
        %v10683 = vrot.slane %v10673, %v10682
        %v10685 = vunpack.c.l.s4 1966171168
        %v10686 = vunpack.c.0.s8 %v10685
        %v10687 = vlaneseq
        %v10688 = vshrl.u32 %v10687, 7
        %v10689 = vsub.s32 %v10686, %v10688
        %v10690 = vrot.slane %v10674, %v10689
        %v10692 = vunpack.c.l.s4 1966171168
        %v10693 = vunpack.c.0.s8 %v10692
        %v10694 = vlaneseq
        %v10695 = vshrl.u32 %v10694, 7
        %v10696 = vsub.s32 %v10693, %v10695
        %v10697 = vrot.slane %v10675, %v10696
        %v10699 = vunpack.c.l.s4 1966171168
        %v10700 = vunpack.c.0.s8 %v10699
        %v10701 = vlaneseq
        %v10702 = vshrl.u32 %v10701, 7
        %v10703 = vsub.s32 %v10700, %v10702
        %v10704 = vrot.slane %v10676, %v10703
        %v10705 = vcombine.low %v10683, %v10690
        %v10706 = vcombine.low %v10697, %v10704
        %v10708 = vunpack.c.l.s4 1966171168
        %v10709 = vunpack.c.0.s8 %v10708
        %v10710 = vlaneseq
        %v10711 = vshrl.u32 %v10710, 7
        %v10712 = vsub.s32 %v10709, %v10711
        %v10713 = vrot.slane %v10705, %v10712
        %v10715 = vunpack.c.l.s4 1966171168
        %v10716 = vunpack.c.0.s8 %v10715
        %v10717 = vlaneseq
        %v10718 = vshrl.u32 %v10717, 7
        %v10719 = vsub.s32 %v10716, %v10718
        %v10720 = vrot.slane %v10706, %v10719
        %v10721 = vcombine.low %v10713, %v10720
        %v10723 = vunpack.c.l.s4 1966171168
        %v10724 = vunpack.c.0.s8 %v10723
        %v10725 = vlaneseq
        %v10726 = vshrl.u32 %v10725, 7
        %v10727 = vsub.s32 %v10724, %v10726
        %v10728 = vrot.slane %v10465, %v10727
        %v10730 = vunpack.c.l.s4 1966171168
        %v10731 = vunpack.c.0.s8 %v10730
        %v10732 = vlaneseq
        %v10733 = vshrl.u32 %v10732, 7
        %v10734 = vsub.s32 %v10731, %v10733
        %v10735 = vrot.slane %v10728, %v10734
        %v10736 = vcombine.low %v10466, %v10467
        %v10737 = vcombine.low %v10468, %v10469
        %v10738 = vcombine.low %v10470, %v10471
        %v10739 = vcombine.low %v10472, %v10473
        %v10741 = vunpack.c.l.s4 1966171168
        %v10742 = vunpack.c.0.s8 %v10741
        %v10743 = vlaneseq
        %v10744 = vshrl.u32 %v10743, 7
        %v10745 = vsub.s32 %v10742, %v10744
        %v10746 = vrot.slane %v10736, %v10745
        %v10748 = vunpack.c.l.s4 1966171168
        %v10749 = vunpack.c.0.s8 %v10748
        %v10750 = vlaneseq
        %v10751 = vshrl.u32 %v10750, 7
        %v10752 = vsub.s32 %v10749, %v10751
        %v10753 = vrot.slane %v10737, %v10752
        %v10755 = vunpack.c.l.s4 1966171168
        %v10756 = vunpack.c.0.s8 %v10755
        %v10757 = vlaneseq
        %v10758 = vshrl.u32 %v10757, 7
        %v10759 = vsub.s32 %v10756, %v10758
        %v10760 = vrot.slane %v10738, %v10759
        %v10762 = vunpack.c.l.s4 1966171168
        %v10763 = vunpack.c.0.s8 %v10762
        %v10764 = vlaneseq
        %v10765 = vshrl.u32 %v10764, 7
        %v10766 = vsub.s32 %v10763, %v10765
        %v10767 = vrot.slane %v10739, %v10766
        %v10768 = vcombine.low %v10746, %v10753
        %v10769 = vcombine.low %v10760, %v10767
        %v10771 = vunpack.c.l.s4 1966171168
        %v10772 = vunpack.c.0.s8 %v10771
        %v10773 = vlaneseq
        %v10774 = vshrl.u32 %v10773, 7
        %v10775 = vsub.s32 %v10772, %v10774
        %v10776 = vrot.slane %v10768, %v10775
        %v10778 = vunpack.c.l.s4 1966171168
        %v10779 = vunpack.c.0.s8 %v10778
        %v10780 = vlaneseq
        %v10781 = vshrl.u32 %v10780, 7
        %v10782 = vsub.s32 %v10779, %v10781
        %v10783 = vrot.slane %v10769, %v10782
        %v10784 = vcombine.low %v10776, %v10783
        %v10786 = vunpack.c.l.s4 1966171168
        %v10787 = vunpack.c.0.s8 %v10786
        %v10788 = vlaneseq
        %v10789 = vshrl.u32 %v10788, 7
        %v10790 = vsub.s32 %v10787, %v10789
        %v10791 = vrot.slane %v10474, %v10790
        %v10793 = vunpack.c.l.s4 1966171168
        %v10794 = vunpack.c.0.s8 %v10793
        %v10795 = vlaneseq
        %v10796 = vshrl.u32 %v10795, 7
        %v10797 = vsub.s32 %v10794, %v10796
        %v10798 = vrot.slane %v10791, %v10797
        %v10799 = vcombine.low %v10475, %v10476
        %v10800 = vcombine.low %v10477, %v10478
        %v10801 = vcombine.low %v10479, %v10480
        %v10802 = vcombine.low %v10481, %v10482
        %v10804 = vunpack.c.l.s4 1966171168
        %v10805 = vunpack.c.0.s8 %v10804
        %v10806 = vlaneseq
        %v10807 = vshrl.u32 %v10806, 7
        %v10808 = vsub.s32 %v10805, %v10807
        %v10809 = vrot.slane %v10799, %v10808
        %v10811 = vunpack.c.l.s4 1966171168
        %v10812 = vunpack.c.0.s8 %v10811
        %v10813 = vlaneseq
        %v10814 = vshrl.u32 %v10813, 7
        %v10815 = vsub.s32 %v10812, %v10814
        %v10816 = vrot.slane %v10800, %v10815
        %v10818 = vunpack.c.l.s4 1966171168
        %v10819 = vunpack.c.0.s8 %v10818
        %v10820 = vlaneseq
        %v10821 = vshrl.u32 %v10820, 7
        %v10822 = vsub.s32 %v10819, %v10821
        %v10823 = vrot.slane %v10801, %v10822
        %v10825 = vunpack.c.l.s4 1966171168
        %v10826 = vunpack.c.0.s8 %v10825
        %v10827 = vlaneseq
        %v10828 = vshrl.u32 %v10827, 7
        %v10829 = vsub.s32 %v10826, %v10828
        %v10830 = vrot.slane %v10802, %v10829
        %v10831 = vcombine.low %v10809, %v10816
        %v10832 = vcombine.low %v10823, %v10830
        %v10834 = vunpack.c.l.s4 1966171168
        %v10835 = vunpack.c.0.s8 %v10834
        %v10836 = vlaneseq
        %v10837 = vshrl.u32 %v10836, 7
        %v10838 = vsub.s32 %v10835, %v10837
        %v10839 = vrot.slane %v10831, %v10838
        %v10841 = vunpack.c.l.s4 1966171168
        %v10842 = vunpack.c.0.s8 %v10841
        %v10843 = vlaneseq
        %v10844 = vshrl.u32 %v10843, 7
        %v10845 = vsub.s32 %v10842, %v10844
        %v10846 = vrot.slane %v10832, %v10845
        %v10847 = vcombine.low %v10839, %v10846
        %v10849 = vunpack.c.l.s4 1966171168
        %v10850 = vunpack.c.0.s8 %v10849
        %v10851 = vlaneseq
        %v10852 = vshrl.u32 %v10851, 7
        %v10853 = vsub.s32 %v10850, %v10852
        %v10854 = vrot.slane %v10483, %v10853
        %v10856 = vunpack.c.l.s4 1966171168
        %v10857 = vunpack.c.0.s8 %v10856
        %v10858 = vlaneseq
        %v10859 = vshrl.u32 %v10858, 7
        %v10860 = vsub.s32 %v10857, %v10859
        %v10861 = vrot.slane %v10854, %v10860
        %v10862 = vcombine.low %v10484, %v10485
        %v10863 = vcombine.low %v10486, %v10487
        %v10864 = vcombine.low %v10488, %v10489
        %v10865 = vcombine.low %v10490, %v10491
        %v10867 = vunpack.c.l.s4 1966171168
        %v10868 = vunpack.c.0.s8 %v10867
        %v10869 = vlaneseq
        %v10870 = vshrl.u32 %v10869, 7
        %v10871 = vsub.s32 %v10868, %v10870
        %v10872 = vrot.slane %v10862, %v10871
        %v10874 = vunpack.c.l.s4 1966171168
        %v10875 = vunpack.c.0.s8 %v10874
        %v10876 = vlaneseq
        %v10877 = vshrl.u32 %v10876, 7
        %v10878 = vsub.s32 %v10875, %v10877
        %v10879 = vrot.slane %v10863, %v10878
        %v10881 = vunpack.c.l.s4 1966171168
        %v10882 = vunpack.c.0.s8 %v10881
        %v10883 = vlaneseq
        %v10884 = vshrl.u32 %v10883, 7
        %v10885 = vsub.s32 %v10882, %v10884
        %v10886 = vrot.slane %v10864, %v10885
        %v10888 = vunpack.c.l.s4 1966171168
        %v10889 = vunpack.c.0.s8 %v10888
        %v10890 = vlaneseq
        %v10891 = vshrl.u32 %v10890, 7
        %v10892 = vsub.s32 %v10889, %v10891
        %v10893 = vrot.slane %v10865, %v10892
        %v10894 = vcombine.low %v10872, %v10879
        %v10895 = vcombine.low %v10886, %v10893
        %v10897 = vunpack.c.l.s4 1966171168
        %v10898 = vunpack.c.0.s8 %v10897
        %v10899 = vlaneseq
        %v10900 = vshrl.u32 %v10899, 7
        %v10901 = vsub.s32 %v10898, %v10900
        %v10902 = vrot.slane %v10894, %v10901
        %v10904 = vunpack.c.l.s4 1966171168
        %v10905 = vunpack.c.0.s8 %v10904
        %v10906 = vlaneseq
        %v10907 = vshrl.u32 %v10906, 7
        %v10908 = vsub.s32 %v10905, %v10907
        %v10909 = vrot.slane %v10895, %v10908
        %v10910 = vcombine.low %v10902, %v10909
        %v10912 = vunpack.c.l.s4 1966171168
        %v10913 = vunpack.c.0.s8 %v10912
        %v10914 = vlaneseq
        %v10915 = vshrl.u32 %v10914, 7
        %v10916 = vsub.s32 %v10913, %v10915
        %v10917 = vrot.slane %v10492, %v10916
        %v10919 = vunpack.c.l.s4 1966171168
        %v10920 = vunpack.c.0.s8 %v10919
        %v10921 = vlaneseq
        %v10922 = vshrl.u32 %v10921, 7
        %v10923 = vsub.s32 %v10920, %v10922
        %v10924 = vrot.slane %v10917, %v10923
        %v10925 = vcombine.low %v10493, %v10494
        %v10926 = vcombine.low %v10495, %v10496
        %v10927 = vcombine.low %v10497, %v10498
        %v10928 = vcombine.low %v10499, %v10500
        %v10930 = vunpack.c.l.s4 1966171168
        %v10931 = vunpack.c.0.s8 %v10930
        %v10932 = vlaneseq
        %v10933 = vshrl.u32 %v10932, 7
        %v10934 = vsub.s32 %v10931, %v10933
        %v10935 = vrot.slane %v10925, %v10934
        %v10937 = vunpack.c.l.s4 1966171168
        %v10938 = vunpack.c.0.s8 %v10937
        %v10939 = vlaneseq
        %v10940 = vshrl.u32 %v10939, 7
        %v10941 = vsub.s32 %v10938, %v10940
        %v10942 = vrot.slane %v10926, %v10941
        %v10944 = vunpack.c.l.s4 1966171168
        %v10945 = vunpack.c.0.s8 %v10944
        %v10946 = vlaneseq
        %v10947 = vshrl.u32 %v10946, 7
        %v10948 = vsub.s32 %v10945, %v10947
        %v10949 = vrot.slane %v10927, %v10948
        %v10951 = vunpack.c.l.s4 1966171168
        %v10952 = vunpack.c.0.s8 %v10951
        %v10953 = vlaneseq
        %v10954 = vshrl.u32 %v10953, 7
        %v10955 = vsub.s32 %v10952, %v10954
        %v10956 = vrot.slane %v10928, %v10955
        %v10957 = vcombine.low %v10935, %v10942
        %v10958 = vcombine.low %v10949, %v10956
        %v10960 = vunpack.c.l.s4 1966171168
        %v10961 = vunpack.c.0.s8 %v10960
        %v10962 = vlaneseq
        %v10963 = vshrl.u32 %v10962, 7
        %v10964 = vsub.s32 %v10961, %v10963
        %v10965 = vrot.slane %v10957, %v10964
        %v10967 = vunpack.c.l.s4 1966171168
        %v10968 = vunpack.c.0.s8 %v10967
        %v10969 = vlaneseq
        %v10970 = vshrl.u32 %v10969, 7
        %v10971 = vsub.s32 %v10968, %v10970
        %v10972 = vrot.slane %v10958, %v10971
        %v10973 = vcombine.low %v10965, %v10972
        %v10975 = vunpack.c.l.s4 1966171168
        %v10976 = vunpack.c.0.s8 %v10975
        %v10977 = vlaneseq
        %v10978 = vshrl.u32 %v10977, 7
        %v10979 = vsub.s32 %v10976, %v10978
        %v10980 = vrot.slane %v10501, %v10979
        %v10982 = vunpack.c.l.s4 1966171168
        %v10983 = vunpack.c.0.s8 %v10982
        %v10984 = vlaneseq
        %v10985 = vshrl.u32 %v10984, 7
        %v10986 = vsub.s32 %v10983, %v10985
        %v10987 = vrot.slane %v10980, %v10986
        %v10988 = vcombine.low %v10502, %v10503
        %v10989 = vcombine.low %v10504, %v10505
        %v10990 = vcombine.low %v10506, %v10507
        %v10991 = vcombine.low %v10508, %v10509
        %v10993 = vunpack.c.l.s4 1966171168
        %v10994 = vunpack.c.0.s8 %v10993
        %v10995 = vlaneseq
        %v10996 = vshrl.u32 %v10995, 7
        %v10997 = vsub.s32 %v10994, %v10996
        %v10998 = vrot.slane %v10988, %v10997
        %v11000 = vunpack.c.l.s4 1966171168
        %v11001 = vunpack.c.0.s8 %v11000
        %v11002 = vlaneseq
        %v11003 = vshrl.u32 %v11002, 7
        %v11004 = vsub.s32 %v11001, %v11003
        %v11005 = vrot.slane %v10989, %v11004
        %v11007 = vunpack.c.l.s4 1966171168
        %v11008 = vunpack.c.0.s8 %v11007
        %v11009 = vlaneseq
        %v11010 = vshrl.u32 %v11009, 7
        %v11011 = vsub.s32 %v11008, %v11010
        %v11012 = vrot.slane %v10990, %v11011
        %v11014 = vunpack.c.l.s4 1966171168
        %v11015 = vunpack.c.0.s8 %v11014
        %v11016 = vlaneseq
        %v11017 = vshrl.u32 %v11016, 7
        %v11018 = vsub.s32 %v11015, %v11017
        %v11019 = vrot.slane %v10991, %v11018
        %v11020 = vcombine.low %v10998, %v11005
        %v11021 = vcombine.low %v11012, %v11019
        %v11023 = vunpack.c.l.s4 1966171168
        %v11024 = vunpack.c.0.s8 %v11023
        %v11025 = vlaneseq
        %v11026 = vshrl.u32 %v11025, 7
        %v11027 = vsub.s32 %v11024, %v11026
        %v11028 = vrot.slane %v11020, %v11027
        %v11030 = vunpack.c.l.s4 1966171168
        %v11031 = vunpack.c.0.s8 %v11030
        %v11032 = vlaneseq
        %v11033 = vshrl.u32 %v11032, 7
        %v11034 = vsub.s32 %v11031, %v11033
        %v11035 = vrot.slane %v11021, %v11034
        %v11036 = vcombine.low %v11028, %v11035
        %v11038 = vunpack.c.l.s4 1966171168
        %v11039 = vunpack.c.0.s8 %v11038
        %v11040 = vlaneseq
        %v11041 = vshrl.u32 %v11040, 7
        %v11042 = vsub.s32 %v11039, %v11041
        %v11043 = vrot.slane %v10510, %v11042
        %v11045 = vunpack.c.l.s4 1966171168
        %v11046 = vunpack.c.0.s8 %v11045
        %v11047 = vlaneseq
        %v11048 = vshrl.u32 %v11047, 7
        %v11049 = vsub.s32 %v11046, %v11048
        %v11050 = vrot.slane %v11043, %v11049
        %v11051 = vcombine.low %v10511, %v10512
        %v11052 = vcombine.low %v10513, %v10514
        %v11053 = vcombine.low %v10515, %v10516
        %v11054 = vcombine.low %v10517, %v10518
        %v11056 = vunpack.c.l.s4 1966171168
        %v11057 = vunpack.c.0.s8 %v11056
        %v11058 = vlaneseq
        %v11059 = vshrl.u32 %v11058, 7
        %v11060 = vsub.s32 %v11057, %v11059
        %v11061 = vrot.slane %v11051, %v11060
        %v11063 = vunpack.c.l.s4 1966171168
        %v11064 = vunpack.c.0.s8 %v11063
        %v11065 = vlaneseq
        %v11066 = vshrl.u32 %v11065, 7
        %v11067 = vsub.s32 %v11064, %v11066
        %v11068 = vrot.slane %v11052, %v11067
        %v11070 = vunpack.c.l.s4 1966171168
        %v11071 = vunpack.c.0.s8 %v11070
        %v11072 = vlaneseq
        %v11073 = vshrl.u32 %v11072, 7
        %v11074 = vsub.s32 %v11071, %v11073
        %v11075 = vrot.slane %v11053, %v11074
        %v11077 = vunpack.c.l.s4 1966171168
        %v11078 = vunpack.c.0.s8 %v11077
        %v11079 = vlaneseq
        %v11080 = vshrl.u32 %v11079, 7
        %v11081 = vsub.s32 %v11078, %v11080
        %v11082 = vrot.slane %v11054, %v11081
        %v11083 = vcombine.low %v11061, %v11068
        %v11084 = vcombine.low %v11075, %v11082
        %v11086 = vunpack.c.l.s4 1966171168
        %v11087 = vunpack.c.0.s8 %v11086
        %v11088 = vlaneseq
        %v11089 = vshrl.u32 %v11088, 7
        %v11090 = vsub.s32 %v11087, %v11089
        %v11091 = vrot.slane %v11083, %v11090
        %v11093 = vunpack.c.l.s4 1966171168
        %v11094 = vunpack.c.0.s8 %v11093
        %v11095 = vlaneseq
        %v11096 = vshrl.u32 %v11095, 7
        %v11097 = vsub.s32 %v11094, %v11096
        %v11098 = vrot.slane %v11084, %v11097
        %v11099 = vcombine.low %v11091, %v11098
        %v11101 = vunpack.c.l.s4 1966171168
        %v11102 = vunpack.c.0.s8 %v11101
        %v11103 = vlaneseq
        %v11104 = vshrl.u32 %v11103, 7
        %v11105 = vsub.s32 %v11102, %v11104
        %v11106 = vrot.slane %v10519, %v11105
        %v11108 = vunpack.c.l.s4 1966171168
        %v11109 = vunpack.c.0.s8 %v11108
        %v11110 = vlaneseq
        %v11111 = vshrl.u32 %v11110, 7
        %v11112 = vsub.s32 %v11109, %v11111
        %v11113 = vrot.slane %v11106, %v11112
        %v11114 = vcombine.low %v10520, %v10521
        %v11115 = vcombine.low %v10522, %v10523
        %v11116 = vcombine.low %v10524, %v10525
        %v11117 = vcombine.low %v10526, %v10527
        %v11119 = vunpack.c.l.s4 1966171168
        %v11120 = vunpack.c.0.s8 %v11119
        %v11121 = vlaneseq
        %v11122 = vshrl.u32 %v11121, 7
        %v11123 = vsub.s32 %v11120, %v11122
        %v11124 = vrot.slane %v11114, %v11123
        %v11126 = vunpack.c.l.s4 1966171168
        %v11127 = vunpack.c.0.s8 %v11126
        %v11128 = vlaneseq
        %v11129 = vshrl.u32 %v11128, 7
        %v11130 = vsub.s32 %v11127, %v11129
        %v11131 = vrot.slane %v11115, %v11130
        %v11133 = vunpack.c.l.s4 1966171168
        %v11134 = vunpack.c.0.s8 %v11133
        %v11135 = vlaneseq
        %v11136 = vshrl.u32 %v11135, 7
        %v11137 = vsub.s32 %v11134, %v11136
        %v11138 = vrot.slane %v11116, %v11137
        %v11140 = vunpack.c.l.s4 1966171168
        %v11141 = vunpack.c.0.s8 %v11140
        %v11142 = vlaneseq
        %v11143 = vshrl.u32 %v11142, 7
        %v11144 = vsub.s32 %v11141, %v11143
        %v11145 = vrot.slane %v11117, %v11144
        %v11146 = vcombine.low %v11124, %v11131
        %v11147 = vcombine.low %v11138, %v11145
        %v11149 = vunpack.c.l.s4 1966171168
        %v11150 = vunpack.c.0.s8 %v11149
        %v11151 = vlaneseq
        %v11152 = vshrl.u32 %v11151, 7
        %v11153 = vsub.s32 %v11150, %v11152
        %v11154 = vrot.slane %v11146, %v11153
        %v11156 = vunpack.c.l.s4 1966171168
        %v11157 = vunpack.c.0.s8 %v11156
        %v11158 = vlaneseq
        %v11159 = vshrl.u32 %v11158, 7
        %v11160 = vsub.s32 %v11157, %v11159
        %v11161 = vrot.slane %v11147, %v11160
        %v11162 = vcombine.low %v11154, %v11161
        %v11164 = vunpack.c.l.s4 1966171168
        %v11165 = vunpack.c.0.s8 %v11164
        %v11166 = vlaneseq
        %v11167 = vshrl.u32 %v11166, 7
        %v11168 = vsub.s32 %v11165, %v11167
        %v11169 = vrot.slane %v10528, %v11168
        %v11171 = vunpack.c.l.s4 1966171168
        %v11172 = vunpack.c.0.s8 %v11171
        %v11173 = vlaneseq
        %v11174 = vshrl.u32 %v11173, 7
        %v11175 = vsub.s32 %v11172, %v11174
        %v11176 = vrot.slane %v11169, %v11175
        %v11195 = vsel %vm10430, %v10658, 0.0
        %v11196 = vsel %vm10431, %v10672, 0.0
        %v11197 = vsel %vm10432, %v10721, 0.0
        %v11198 = vsel %vm10433, %v10735, 0.0
        %v11199 = vsel %vm10434, %v10784, 0.0
        %v11200 = vsel %vm10435, %v10798, 0.0
        %v11201 = vsel %vm10436, %v10847, 0.0
        %v11202 = vsel %vm10437, %v10861, 0.0
        %v11203 = vsel %vm10438, %v10910, 0.0
        %v11204 = vsel %vm10439, %v10924, 0.0
        %v11205 = vsel %vm10440, %v10973, 0.0
        %v11206 = vsel %vm10441, %v10987, 0.0
        %v11207 = vsel %vm10442, %v11036, 0.0
        %v11208 = vsel %vm10443, %v11050, 0.0
        %v11209 = vsel %vm10444, %v11099, 0.0
        %v11210 = vsel %vm10445, %v11113, 0.0
        %v11211 = vsel %vm10446, %v11162, 0.0
        %v11212 = vsel %vm10447, %v11176, 0.0
        %v11213 = vpack.c.bf16 %v11196, %v11195
        %v11214 = vpack.c.bf16 %v11198, %v11197
        %v11215 = vpack.c.bf16 %v11200, %v11199
        %v11216 = vpack.c.bf16 %v11202, %v11201
        %v11217 = vpack.c.bf16 %v11204, %v11203
        %v11218 = vpack.c.bf16 %v11206, %v11205
        %v11219 = vpack.c.bf16 %v11208, %v11207
        %v11220 = vpack.c.bf16 %v11210, %v11209
        %v11221 = vpack.c.bf16 %v11212, %v11211
        %s11222 = scalar_lea.vmem %s6, 20
        %v11223 = vld [vmem:[%s11222] sm:$0xf]
        %v11232 = vunpack.c.l.b16 %v11213
        %v11233 = vunpack.c.l.b16 %v11214
        %v11234 = vunpack.c.l.b16 %v11215
        %v11235 = vunpack.c.l.b16 %v11216
        %v11236 = vunpack.c.l.b16 %v11217
        %v11237 = vunpack.c.l.b16 %v11218
        %v11238 = vunpack.c.l.b16 %v11219
        %v11239 = vunpack.c.l.b16 %v11220
        %v11240 = vpack.c.b16 %v11233, %v11232
        %v11241 = vpack.c.b16 %v11235, %v11234
        %v11242 = vpack.c.b16 %v11237, %v11236
        %v11243 = vpack.c.b16 %v11239, %v11238
        %v11245 = vsel %vm1307, %v11240, 0
        %v11248 = vsel %vm1307, %v11241, 0
        %v11251 = vsel %vm1307, %v11242, 0
        %v11254 = vsel %vm1307, %v11243, 0
        %v11257 = vsel %vm1326, %v11223, 0
        %11259 = vmatprep.subr.bf16.mxu0 0
        %11260 = vmatpush1.bf16.msra.mxu0 %v11257
        %11261 = vmatprep.subr.bf16.mxu0 0
        %11262 = vmatpush1.bf16.msra.mxu0 0
        %11263 = vmatprep.subr.bf16.mxu0 0
        %11264 = vmatpush1.bf16.msra.mxu0 0
        %11265 = vmatprep.subr.bf16.mxu0 0
        %11266 = vmatpush1.bf16.msra.mxu0 0
        %11267 = vmatprep.subr.bf16.mxu0 0
        %11268 = vmatpush1.bf16.msra.mxu0 0
        %11269 = vmatprep.subr.bf16.mxu0 0
        %11270 = vmatpush1.bf16.msra.mxu0 0
        %11271 = vmatprep.subr.bf16.mxu0 0
        %11272 = vmatpush1.bf16.msra.mxu0 0
        %11273 = vmatprep.subr.bf16.mxu0 0
        %11274 = vmatpush1.bf16.msra.mxu0 0
        %11275 = vmatprep.subr.bf16.mxu0 0
        %11276 = vmatpush1.bf16.msra.mxu0 0
        %11277 = vmatprep.subr.bf16.mxu0 0
        %11278 = vmatpush1.bf16.msra.mxu0 0
        %11279 = vmatprep.subr.bf16.mxu0 0
        %11280 = vmatpush1.bf16.msra.mxu0 0
        %11281 = vmatprep.subr.bf16.mxu0 0
        %11282 = vmatpush1.bf16.msra.mxu0 0
        %11283 = vmatprep.subr.bf16.mxu0 0
        %11284 = vmatpush1.bf16.msra.mxu0 0
        %11285 = vmatprep.subr.bf16.mxu0 0
        %11286 = vmatpush1.bf16.msra.mxu0 0
        %11287 = vmatprep.subr.bf16.mxu0 0
        %11288 = vmatpush1.bf16.msra.mxu0 0
        %11289 = vmatprep.subr.bf16.mxu0 0
        %11290 = vmatpush1.bf16.msra.mxu0 0
        %11291 = vmatprep.mubr.bf16.mxu0 0
        %11292 = vmatmul.mubr.bf16.gmra.mrb[0].mxu0 %v11245
        %v11293 = vpop.f32.mrb[0].mxu0
        %v11294 = vadd.f32 0.0, %v11293
        %v11295 = vpop.f32.mrb[0].mxu0
        %v11296 = vpop.f32.mrb[0].mxu0
        %v11297 = vadd.f32 0.0, %v11296
        %v11298 = vpop.f32.mrb[0].mxu0
        %11299 = vmatprep.mubr.bf16.mxu0 0
        %11300 = vmatmul.mubr.bf16.gmra.mrb[0].mxu0 %v11248
        %v11301 = vpop.f32.mrb[0].mxu0
        %v11302 = vadd.f32 0.0, %v11301
        %v11303 = vpop.f32.mrb[0].mxu0
        %v11304 = vpop.f32.mrb[0].mxu0
        %v11305 = vadd.f32 0.0, %v11304
        %v11306 = vpop.f32.mrb[0].mxu0
        %11307 = vmatprep.mubr.bf16.mxu0 0
        %11308 = vmatmul.mubr.bf16.gmra.mrb[0].mxu0 %v11251
        %v11309 = vpop.f32.mrb[0].mxu0
        %v11310 = vadd.f32 0.0, %v11309
        %v11311 = vpop.f32.mrb[0].mxu0
        %v11312 = vpop.f32.mrb[0].mxu0
        %v11313 = vadd.f32 0.0, %v11312
        %v11314 = vpop.f32.mrb[0].mxu0
        %11315 = vmatprep.mubr.bf16.mxu0 0
        %11316 = vmatmul.mubr.bf16.gmra.mrb[0].mxu0 %v11254
        %v11317 = vpop.f32.mrb[0].mxu0
        %v11318 = vadd.f32 0.0, %v11317
        %v11319 = vpop.f32.mrb[0].mxu0
        %v11320 = vpop.f32.mrb[0].mxu0
        %v11321 = vadd.f32 0.0, %v11320
        %v11322 = vpop.f32.mrb[0].mxu0
        %11323 = vdwg.mxu0
        %v11324 = vadd.f32 %v8987, %v11294
        %v11325 = vadd.f32 %v8988, %v11297
        %v11326 = vadd.f32 %v8989, %v11302
        %v11327 = vadd.f32 %v8990, %v11305
        %v11328 = vadd.f32 %v8991, %v11310
        %v11329 = vadd.f32 %v8992, %v11313
        %v11330 = vadd.f32 %v8993, %v11318
        %v11331 = vadd.f32 %v8994, %v11321
        %v11332 = vunpack.c.h.b16 %v11213
        %v11333 = vunpack.c.h.b16 %v11214
        %v11334 = vunpack.c.h.b16 %v11215
        %v11335 = vunpack.c.h.b16 %v11216
        %v11336 = vunpack.c.h.b16 %v11217
        %v11337 = vunpack.c.h.b16 %v11218
        %v11338 = vunpack.c.h.b16 %v11219
        %v11339 = vunpack.c.h.b16 %v11220
        %v11340 = vpack.c.b16 %v11232, %v11232
        %v11341 = vpack.c.b16 %v11332, %v11332
        %v11342 = vpack.c.b16 %v11233, %v11233
        %v11343 = vpack.c.b16 %v11333, %v11333
        %v11344 = vpack.c.b16 %v11234, %v11234
        %v11345 = vpack.c.b16 %v11334, %v11334
        %v11346 = vpack.c.b16 %v11235, %v11235
        %v11347 = vpack.c.b16 %v11335, %v11335
        %v11348 = vpack.c.b16 %v11236, %v11236
        %v11349 = vpack.c.b16 %v11336, %v11336
        %v11350 = vpack.c.b16 %v11237, %v11237
        %v11351 = vpack.c.b16 %v11337, %v11337
        %v11352 = vpack.c.b16 %v11238, %v11238
        %v11353 = vpack.c.b16 %v11338, %v11338
        %v11354 = vpack.c.b16 %v11239, %v11239
        %v11355 = vpack.c.b16 %v11339, %v11339
        %v11357 = vshrl.u32 %v11340, 16
        %v11359 = vrot.slane %v11357, 4
        %v11360 = vshll.u32 %v11340, 16
        %v11362 = vrot.slane %v11360, 5
        %v11363 = vor.u32 %v11359, %v11362
        %v11364 = vrot.slane %v11363, 4
        %v11366 = vshll.u32 %v11341, 16
        %v11368 = vrot.slane %v11366, 5
        %v11369 = vsel %vm2917, %v11364, %v11368
        %v11371 = vshrl.u32 %v11342, 16
        %v11373 = vrot.slane %v11371, 4
        %v11374 = vshll.u32 %v11342, 16
        %v11376 = vrot.slane %v11374, 5
        %v11377 = vor.u32 %v11373, %v11376
        %v11378 = vrot.slane %v11377, 4
        %v11380 = vshll.u32 %v11343, 16
        %v11382 = vrot.slane %v11380, 5
        %v11383 = vsel %vm2917, %v11378, %v11382
        %v11385 = vshrl.u32 %v11344, 16
        %v11387 = vrot.slane %v11385, 4
        %v11388 = vshll.u32 %v11344, 16
        %v11390 = vrot.slane %v11388, 5
        %v11391 = vor.u32 %v11387, %v11390
        %v11392 = vrot.slane %v11391, 4
        %v11394 = vshll.u32 %v11345, 16
        %v11396 = vrot.slane %v11394, 5
        %v11397 = vsel %vm2917, %v11392, %v11396
        %v11399 = vshrl.u32 %v11346, 16
        %v11401 = vrot.slane %v11399, 4
        %v11402 = vshll.u32 %v11346, 16
        %v11404 = vrot.slane %v11402, 5
        %v11405 = vor.u32 %v11401, %v11404
        %v11406 = vrot.slane %v11405, 4
        %v11408 = vshll.u32 %v11347, 16
        %v11410 = vrot.slane %v11408, 5
        %v11411 = vsel %vm2917, %v11406, %v11410
        %v11413 = vshrl.u32 %v11348, 16
        %v11415 = vrot.slane %v11413, 4
        %v11416 = vshll.u32 %v11348, 16
        %v11418 = vrot.slane %v11416, 5
        %v11419 = vor.u32 %v11415, %v11418
        %v11420 = vrot.slane %v11419, 4
        %v11422 = vshll.u32 %v11349, 16
        %v11424 = vrot.slane %v11422, 5
        %v11425 = vsel %vm2917, %v11420, %v11424
        %v11427 = vshrl.u32 %v11350, 16
        %v11429 = vrot.slane %v11427, 4
        %v11430 = vshll.u32 %v11350, 16
        %v11432 = vrot.slane %v11430, 5
        %v11433 = vor.u32 %v11429, %v11432
        %v11434 = vrot.slane %v11433, 4
        %v11436 = vshll.u32 %v11351, 16
        %v11438 = vrot.slane %v11436, 5
        %v11439 = vsel %vm2917, %v11434, %v11438
        %v11441 = vshrl.u32 %v11352, 16
        %v11443 = vrot.slane %v11441, 4
        %v11444 = vshll.u32 %v11352, 16
        %v11446 = vrot.slane %v11444, 5
        %v11447 = vor.u32 %v11443, %v11446
        %v11448 = vrot.slane %v11447, 4
        %v11450 = vshll.u32 %v11353, 16
        %v11452 = vrot.slane %v11450, 5
        %v11453 = vsel %vm2917, %v11448, %v11452
        %v11455 = vshrl.u32 %v11354, 16
        %v11457 = vrot.slane %v11455, 4
        %v11458 = vshll.u32 %v11354, 16
        %v11460 = vrot.slane %v11458, 5
        %v11461 = vor.u32 %v11457, %v11460
        %v11462 = vrot.slane %v11461, 4
        %v11464 = vshll.u32 %v11355, 16
        %v11466 = vrot.slane %v11464, 5
        %v11467 = vsel %vm2917, %v11462, %v11466
        %s11468 = scalar_lea.vmem %s6, 28
        %v11469 = vld [vmem:[%s11468] sm:$0xf]
        %v11470 = vunpack.c.l.b16 %v11369
        %v11471 = vunpack.c.l.b16 %v11383
        %v11472 = vunpack.c.l.b16 %v11397
        %v11473 = vunpack.c.l.b16 %v11411
        %v11474 = vunpack.c.l.b16 %v11425
        %v11475 = vunpack.c.l.b16 %v11439
        %v11476 = vunpack.c.l.b16 %v11453
        %v11477 = vunpack.c.l.b16 %v11467
        %v11478 = vpack.c.b16 %v11471, %v11470
        %v11479 = vpack.c.b16 %v11473, %v11472
        %v11480 = vpack.c.b16 %v11475, %v11474
        %v11481 = vpack.c.b16 %v11477, %v11476
        %v11483 = vsel %vm1307, %v11478, 0
        %v11486 = vsel %vm1307, %v11479, 0
        %v11489 = vsel %vm1307, %v11480, 0
        %v11492 = vsel %vm1307, %v11481, 0
        %v11495 = vsel %vm1326, %v11469, 0
        %11497 = vmatprep.subr.bf16.mxu0 0
        %11498 = vmatpush1.bf16.msra.mxu0 %v11495
        %11499 = vmatprep.subr.bf16.mxu0 0
        %11500 = vmatpush1.bf16.msra.mxu0 0
        %11501 = vmatprep.subr.bf16.mxu0 0
        %11502 = vmatpush1.bf16.msra.mxu0 0
        %11503 = vmatprep.subr.bf16.mxu0 0
        %11504 = vmatpush1.bf16.msra.mxu0 0
        %11505 = vmatprep.subr.bf16.mxu0 0
        %11506 = vmatpush1.bf16.msra.mxu0 0
        %11507 = vmatprep.subr.bf16.mxu0 0
        %11508 = vmatpush1.bf16.msra.mxu0 0
        %11509 = vmatprep.subr.bf16.mxu0 0
        %11510 = vmatpush1.bf16.msra.mxu0 0
        %11511 = vmatprep.subr.bf16.mxu0 0
        %11512 = vmatpush1.bf16.msra.mxu0 0
        %11513 = vmatprep.subr.bf16.mxu0 0
        %11514 = vmatpush1.bf16.msra.mxu0 0
        %11515 = vmatprep.subr.bf16.mxu0 0
        %11516 = vmatpush1.bf16.msra.mxu0 0
        %11517 = vmatprep.subr.bf16.mxu0 0
        %11518 = vmatpush1.bf16.msra.mxu0 0
        %11519 = vmatprep.subr.bf16.mxu0 0
        %11520 = vmatpush1.bf16.msra.mxu0 0
        %11521 = vmatprep.subr.bf16.mxu0 0
        %11522 = vmatpush1.bf16.msra.mxu0 0
        %11523 = vmatprep.subr.bf16.mxu0 0
        %11524 = vmatpush1.bf16.msra.mxu0 0
        %11525 = vmatprep.subr.bf16.mxu0 0
        %11526 = vmatpush1.bf16.msra.mxu0 0
        %11527 = vmatprep.subr.bf16.mxu0 0
        %11528 = vmatpush1.bf16.msra.mxu0 0
        %11529 = vmatprep.mubr.bf16.mxu0 0
        %11530 = vmatmul.mubr.bf16.gmra.mrb[0].mxu0 %v11483
        %v11531 = vpop.f32.mrb[0].mxu0
        %v11532 = vadd.f32 0.0, %v11531
        %v11533 = vpop.f32.mrb[0].mxu0
        %v11534 = vpop.f32.mrb[0].mxu0
        %v11535 = vadd.f32 0.0, %v11534
        %v11536 = vpop.f32.mrb[0].mxu0
        %11537 = vmatprep.mubr.bf16.mxu0 0
        %11538 = vmatmul.mubr.bf16.gmra.mrb[0].mxu0 %v11486
        %v11539 = vpop.f32.mrb[0].mxu0
        %v11540 = vadd.f32 0.0, %v11539
        %v11541 = vpop.f32.mrb[0].mxu0
        %v11542 = vpop.f32.mrb[0].mxu0
        %v11543 = vadd.f32 0.0, %v11542
        %v11544 = vpop.f32.mrb[0].mxu0
        %11545 = vmatprep.mubr.bf16.mxu0 0
        %11546 = vmatmul.mubr.bf16.gmra.mrb[0].mxu0 %v11489
        %v11547 = vpop.f32.mrb[0].mxu0
        %v11548 = vadd.f32 0.0, %v11547
        %v11549 = vpop.f32.mrb[0].mxu0
        %v11550 = vpop.f32.mrb[0].mxu0
        %v11551 = vadd.f32 0.0, %v11550
        %v11552 = vpop.f32.mrb[0].mxu0
        %11553 = vmatprep.mubr.bf16.mxu0 0
        %11554 = vmatmul.mubr.bf16.gmra.mrb[0].mxu0 %v11492
        %v11555 = vpop.f32.mrb[0].mxu0
        %v11556 = vadd.f32 0.0, %v11555
        %v11557 = vpop.f32.mrb[0].mxu0
        %v11558 = vpop.f32.mrb[0].mxu0
        %v11559 = vadd.f32 0.0, %v11558
        %v11560 = vpop.f32.mrb[0].mxu0
        %11561 = vdwg.mxu0
        %v11562 = vadd.f32 %v11324, %v11532
        %v11563 = vadd.f32 %v11325, %v11535
        %v11564 = vadd.f32 %v11326, %v11540
        %v11565 = vadd.f32 %v11327, %v11543
        %v11566 = vadd.f32 %v11328, %v11548
        %v11567 = vadd.f32 %v11329, %v11551
        %v11568 = vadd.f32 %v11330, %v11556
        %v11569 = vadd.f32 %v11331, %v11559
        %s11570 = scalar_lea.vmem %s6, 52
        %v11571 = vld [vmem:[%s11570] sm:$0xf]
        %v11573 = vunpack.c.l.b16 %v11221
        %v11574 = vpack.c.b16 %v11234, %v11233
        %v11575 = vpack.c.b16 %v11236, %v11235
        %v11576 = vpack.c.b16 %v11238, %v11237
        %v11577 = vpack.c.b16 %v11573, %v11239
        %v11579 = vsel %vm1307, %v11574, 0
        %v11582 = vsel %vm1307, %v11575, 0
        %v11585 = vsel %vm1307, %v11576, 0
        %v11588 = vsel %vm1307, %v11577, 0
        %v11591 = vsel %vm1326, %v11571, 0
        %11593 = vmatprep.subr.bf16.mxu0 0
        %11594 = vmatpush1.bf16.msra.mxu0 %v11591
        %11595 = vmatprep.subr.bf16.mxu0 0
        %11596 = vmatpush1.bf16.msra.mxu0 0
        %11597 = vmatprep.subr.bf16.mxu0 0
        %11598 = vmatpush1.bf16.msra.mxu0 0
        %11599 = vmatprep.subr.bf16.mxu0 0
        %11600 = vmatpush1.bf16.msra.mxu0 0
        %11601 = vmatprep.subr.bf16.mxu0 0
        %11602 = vmatpush1.bf16.msra.mxu0 0
        %11603 = vmatprep.subr.bf16.mxu0 0
        %11604 = vmatpush1.bf16.msra.mxu0 0
        %11605 = vmatprep.subr.bf16.mxu0 0
        %11606 = vmatpush1.bf16.msra.mxu0 0
        %11607 = vmatprep.subr.bf16.mxu0 0
        %11608 = vmatpush1.bf16.msra.mxu0 0
        %11609 = vmatprep.subr.bf16.mxu0 0
        %11610 = vmatpush1.bf16.msra.mxu0 0
        %11611 = vmatprep.subr.bf16.mxu0 0
        %11612 = vmatpush1.bf16.msra.mxu0 0
        %11613 = vmatprep.subr.bf16.mxu0 0
        %11614 = vmatpush1.bf16.msra.mxu0 0
        %11615 = vmatprep.subr.bf16.mxu0 0
        %11616 = vmatpush1.bf16.msra.mxu0 0
        %11617 = vmatprep.subr.bf16.mxu0 0
        %11618 = vmatpush1.bf16.msra.mxu0 0
        %11619 = vmatprep.subr.bf16.mxu0 0
        %11620 = vmatpush1.bf16.msra.mxu0 0
        %11621 = vmatprep.subr.bf16.mxu0 0
        %11622 = vmatpush1.bf16.msra.mxu0 0
        %11623 = vmatprep.subr.bf16.mxu0 0
        %11624 = vmatpush1.bf16.msra.mxu0 0
        %11625 = vmatprep.mubr.bf16.mxu0 0
        %11626 = vmatmul.mubr.bf16.gmra.mrb[0].mxu0 %v11579
        %v11627 = vpop.f32.mrb[0].mxu0
        %v11628 = vadd.f32 0.0, %v11627
        %v11629 = vpop.f32.mrb[0].mxu0
        %v11630 = vpop.f32.mrb[0].mxu0
        %v11631 = vadd.f32 0.0, %v11630
        %v11632 = vpop.f32.mrb[0].mxu0
        %11633 = vmatprep.mubr.bf16.mxu0 0
        %11634 = vmatmul.mubr.bf16.gmra.mrb[0].mxu0 %v11582
        %v11635 = vpop.f32.mrb[0].mxu0
        %v11636 = vadd.f32 0.0, %v11635
        %v11637 = vpop.f32.mrb[0].mxu0
        %v11638 = vpop.f32.mrb[0].mxu0
        %v11639 = vadd.f32 0.0, %v11638
        %v11640 = vpop.f32.mrb[0].mxu0
        %11641 = vmatprep.mubr.bf16.mxu0 0
        %11642 = vmatmul.mubr.bf16.gmra.mrb[0].mxu0 %v11585
        %v11643 = vpop.f32.mrb[0].mxu0
        %v11644 = vadd.f32 0.0, %v11643
        %v11645 = vpop.f32.mrb[0].mxu0
        %v11646 = vpop.f32.mrb[0].mxu0
        %v11647 = vadd.f32 0.0, %v11646
        %v11648 = vpop.f32.mrb[0].mxu0
        %11649 = vmatprep.mubr.bf16.mxu0 0
        %11650 = vmatmul.mubr.bf16.gmra.mrb[0].mxu0 %v11588
        %v11651 = vpop.f32.mrb[0].mxu0
        %v11652 = vadd.f32 0.0, %v11651
        %v11653 = vpop.f32.mrb[0].mxu0
        %v11654 = vpop.f32.mrb[0].mxu0
        %v11655 = vadd.f32 0.0, %v11654
        %v11656 = vpop.f32.mrb[0].mxu0
        %11657 = vdwg.mxu0
        %v11658 = vadd.f32 %v11562, %v11628
        %v11659 = vadd.f32 %v11563, %v11631
        %v11660 = vadd.f32 %v11564, %v11636
        %v11661 = vadd.f32 %v11565, %v11639
        %v11662 = vadd.f32 %v11566, %v11644
        %v11663 = vadd.f32 %v11567, %v11647
        %v11664 = vadd.f32 %v11568, %v11652
        %v11665 = vadd.f32 %v11569, %v11655
        %v11666 = vunpack.c.h.b16 %v11221
        %v11667 = vpack.c.b16 %v11573, %v11573
        %v11668 = vpack.c.b16 %v11666, %v11666
        %v11670 = vshrl.u32 %v11667, 16
        %v11672 = vrot.slane %v11670, 4
        %v11673 = vshll.u32 %v11667, 16
        %v11675 = vrot.slane %v11673, 5
        %v11676 = vor.u32 %v11672, %v11675
        %v11677 = vrot.slane %v11676, 4
        %v11679 = vshll.u32 %v11668, 16
        %v11681 = vrot.slane %v11679, 5
        %v11682 = vsel %vm2917, %v11677, %v11681
        %s11683 = scalar_lea.vmem %s6, 60
        %v11684 = vld [vmem:[%s11683] sm:$0xf]
        %v11685 = vunpack.c.l.b16 %v11682
        %v11686 = vpack.c.b16 %v11472, %v11471
        %v11687 = vpack.c.b16 %v11474, %v11473
        %v11688 = vpack.c.b16 %v11476, %v11475
        %v11689 = vpack.c.b16 %v11685, %v11477
        %v11691 = vsel %vm1307, %v11686, 0
        %v11694 = vsel %vm1307, %v11687, 0
        %v11697 = vsel %vm1307, %v11688, 0
        %v11700 = vsel %vm1307, %v11689, 0
        %v11703 = vsel %vm1326, %v11684, 0
        %11705 = vmatprep.subr.bf16.mxu0 0
        %11706 = vmatpush1.bf16.msra.mxu0 %v11703
        %11707 = vmatprep.subr.bf16.mxu0 0
        %11708 = vmatpush1.bf16.msra.mxu0 0
        %11709 = vmatprep.subr.bf16.mxu0 0
        %11710 = vmatpush1.bf16.msra.mxu0 0
        %11711 = vmatprep.subr.bf16.mxu0 0
        %11712 = vmatpush1.bf16.msra.mxu0 0
        %11713 = vmatprep.subr.bf16.mxu0 0
        %11714 = vmatpush1.bf16.msra.mxu0 0
        %11715 = vmatprep.subr.bf16.mxu0 0
        %11716 = vmatpush1.bf16.msra.mxu0 0
        %11717 = vmatprep.subr.bf16.mxu0 0
        %11718 = vmatpush1.bf16.msra.mxu0 0
        %11719 = vmatprep.subr.bf16.mxu0 0
        %11720 = vmatpush1.bf16.msra.mxu0 0
        %11721 = vmatprep.subr.bf16.mxu0 0
        %11722 = vmatpush1.bf16.msra.mxu0 0
        %11723 = vmatprep.subr.bf16.mxu0 0
        %11724 = vmatpush1.bf16.msra.mxu0 0
        %11725 = vmatprep.subr.bf16.mxu0 0
        %11726 = vmatpush1.bf16.msra.mxu0 0
        %11727 = vmatprep.subr.bf16.mxu0 0
        %11728 = vmatpush1.bf16.msra.mxu0 0
        %11729 = vmatprep.subr.bf16.mxu0 0
        %11730 = vmatpush1.bf16.msra.mxu0 0
        %11731 = vmatprep.subr.bf16.mxu0 0
        %11732 = vmatpush1.bf16.msra.mxu0 0
        %11733 = vmatprep.subr.bf16.mxu0 0
        %11734 = vmatpush1.bf16.msra.mxu0 0
        %11735 = vmatprep.subr.bf16.mxu0 0
        %11736 = vmatpush1.bf16.msra.mxu0 0
        %11737 = vmatprep.mubr.bf16.mxu0 0
        %11738 = vmatmul.mubr.bf16.gmra.mrb[0].mxu0 %v11691
        %v11739 = vpop.f32.mrb[0].mxu0
        %v11740 = vadd.f32 0.0, %v11739
        %v11741 = vpop.f32.mrb[0].mxu0
        %v11742 = vpop.f32.mrb[0].mxu0
        %v11743 = vadd.f32 0.0, %v11742
        %v11744 = vpop.f32.mrb[0].mxu0
        %11745 = vmatprep.mubr.bf16.mxu0 0
        %11746 = vmatmul.mubr.bf16.gmra.mrb[0].mxu0 %v11694
        %v11747 = vpop.f32.mrb[0].mxu0
        %v11748 = vadd.f32 0.0, %v11747
        %v11749 = vpop.f32.mrb[0].mxu0
        %v11750 = vpop.f32.mrb[0].mxu0
        %v11751 = vadd.f32 0.0, %v11750
        %v11752 = vpop.f32.mrb[0].mxu0
        %11753 = vmatprep.mubr.bf16.mxu0 0
        %11754 = vmatmul.mubr.bf16.gmra.mrb[0].mxu0 %v11697
        %v11755 = vpop.f32.mrb[0].mxu0
        %v11756 = vadd.f32 0.0, %v11755
        %v11757 = vpop.f32.mrb[0].mxu0
        %v11758 = vpop.f32.mrb[0].mxu0
        %v11759 = vadd.f32 0.0, %v11758
        %v11760 = vpop.f32.mrb[0].mxu0
        %11761 = vmatprep.mubr.bf16.mxu0 0
        %11762 = vmatmul.mubr.bf16.gmra.mrb[0].mxu0 %v11700
        %v11763 = vpop.f32.mrb[0].mxu0
        %v11764 = vadd.f32 0.0, %v11763
        %v11765 = vpop.f32.mrb[0].mxu0
        %v11766 = vpop.f32.mrb[0].mxu0
        %v11767 = vadd.f32 0.0, %v11766
        %v11768 = vpop.f32.mrb[0].mxu0
        %11769 = vdwg.mxu0
        %v11770 = vadd.f32 %v11658, %v11740
        %v11771 = vadd.f32 %v11659, %v11743
        %v11772 = vadd.f32 %v11660, %v11748
        %v11773 = vadd.f32 %v11661, %v11751
        %v11774 = vadd.f32 %v11662, %v11756
        %v11775 = vadd.f32 %v11663, %v11759
        %v11776 = vadd.f32 %v11664, %v11764
        %v11777 = vadd.f32 %v11665, %v11767
        %v11778 = vld [vmem:[%s7] sm:$0x1]
        %v11780 = vlaneseq
        %v11781 = vshrl.u32 %v11780, 7
        %v11782 = vsub.s32 0, %v11781
        %v11783 = vrot.slane %v11778, %v11782
        %v11785 = vadd.f32 %v11770, %v11783
        %v11786 = vadd.f32 %v11771, %v11783
        %v11787 = vadd.f32 %v11772, %v11783
        %v11788 = vadd.f32 %v11773, %v11783
        %v11789 = vadd.f32 %v11774, %v11783
        %v11790 = vadd.f32 %v11775, %v11783
        %v11791 = vadd.f32 %v11776, %v11783
        %v11792 = vadd.f32 %v11777, %v11783
        %v11794 = vshrl.u32 %v525, 16
        %v11796 = vrot.slane %v11794, 4
        %v11797 = vshll.u32 %v525, 16
        %v11799 = vrot.slane %v11797, 5
        %v11800 = vor.u32 %v11796, %v11799
        %v11801 = vrot.slane %v11800, 4
        %v11803 = vshll.u32 %v526, 16
        %v11805 = vrot.slane %v11803, 5
        %v11806 = vsel %vm2917, %v11801, %v11805
        %v11808 = vshrl.u32 %v527, 16
        %v11810 = vrot.slane %v11808, 4
        %v11811 = vshll.u32 %v527, 16
        %v11813 = vrot.slane %v11811, 5
        %v11814 = vor.u32 %v11810, %v11813
        %v11815 = vrot.slane %v11814, 4
        %v11817 = vshll.u32 %v528, 16
        %v11819 = vrot.slane %v11817, 5
        %v11820 = vsel %vm2917, %v11815, %v11819
        %v11822 = vshrl.u32 %v529, 16
        %v11824 = vrot.slane %v11822, 4
        %v11825 = vshll.u32 %v529, 16
        %v11827 = vrot.slane %v11825, 5
        %v11828 = vor.u32 %v11824, %v11827
        %v11829 = vrot.slane %v11828, 4
        %v11831 = vshll.u32 %v530, 16
        %v11833 = vrot.slane %v11831, 5
        %v11834 = vsel %vm2917, %v11829, %v11833
        %v11836 = vshrl.u32 %v531, 16
        %v11838 = vrot.slane %v11836, 4
        %v11839 = vshll.u32 %v531, 16
        %v11841 = vrot.slane %v11839, 5
        %v11842 = vor.u32 %v11838, %v11841
        %v11843 = vrot.slane %v11842, 4
        %v11845 = vshll.u32 %v532, 16
        %v11847 = vrot.slane %v11845, 5
        %v11848 = vsel %vm2917, %v11843, %v11847
        %v11850 = vshrl.u32 %v533, 16
        %v11852 = vrot.slane %v11850, 4
        %v11853 = vshll.u32 %v533, 16
        %v11855 = vrot.slane %v11853, 5
        %v11856 = vor.u32 %v11852, %v11855
        %v11857 = vrot.slane %v11856, 4
        %v11859 = vshll.u32 %v534, 16
        %v11861 = vrot.slane %v11859, 5
        %v11862 = vsel %vm2917, %v11857, %v11861
        %v11864 = vshrl.u32 %v535, 16
        %v11866 = vrot.slane %v11864, 4
        %v11867 = vshll.u32 %v535, 16
        %v11869 = vrot.slane %v11867, 5
        %v11870 = vor.u32 %v11866, %v11869
        %v11871 = vrot.slane %v11870, 4
        %v11873 = vshll.u32 %v536, 16
        %v11875 = vrot.slane %v11873, 5
        %v11876 = vsel %vm2917, %v11871, %v11875
        %v11878 = vshrl.u32 %v537, 16
        %v11880 = vrot.slane %v11878, 4
        %v11881 = vshll.u32 %v537, 16
        %v11883 = vrot.slane %v11881, 5
        %v11884 = vor.u32 %v11880, %v11883
        %v11885 = vrot.slane %v11884, 4
        %v11887 = vshll.u32 %v538, 16
        %v11889 = vrot.slane %v11887, 5
        %v11890 = vsel %vm2917, %v11885, %v11889
        %v11892 = vshrl.u32 %v539, 16
        %v11894 = vrot.slane %v11892, 4
        %v11895 = vshll.u32 %v539, 16
        %v11897 = vrot.slane %v11895, 5
        %v11898 = vor.u32 %v11894, %v11897
        %v11899 = vrot.slane %v11898, 4
        %v11901 = vshll.u32 %v540, 16
        %v11903 = vrot.slane %v11901, 5
        %v11904 = vsel %vm2917, %v11899, %v11903
        %v11913 = vmax.bf16 %v543, %v11806
        %v11914 = vmax.bf16 %v545, %v11820
        %v11915 = vmax.bf16 %v547, %v11834
        %v11916 = vmax.bf16 %v549, %v11848
        %v11917 = vmax.bf16 %v551, %v11862
        %v11918 = vmax.bf16 %v553, %v11876
        %v11919 = vmax.bf16 %v555, %v11890
        %v11920 = vmax.bf16 %v557, %v11904
        %v11922 = vshrl.u32 %v491, 16
        %v11924 = vrot.slane %v11922, 4
        %v11925 = vshll.u32 %v491, 16
        %v11927 = vrot.slane %v11925, 5
        %v11928 = vor.u32 %v11924, %v11927
        %v11929 = vrot.slane %v11928, 4
        %v11931 = vshll.u32 %v492, 16
        %v11933 = vrot.slane %v11931, 5
        %v11934 = vsel %vm2917, %v11929, %v11933
        %v11936 = vshrl.u32 %v493, 16
        %v11938 = vrot.slane %v11936, 4
        %v11939 = vshll.u32 %v493, 16
        %v11941 = vrot.slane %v11939, 5
        %v11942 = vor.u32 %v11938, %v11941
        %v11943 = vrot.slane %v11942, 4
        %v11945 = vshll.u32 %v494, 16
        %v11947 = vrot.slane %v11945, 5
        %v11948 = vsel %vm2917, %v11943, %v11947
        %v11950 = vshrl.u32 %v495, 16
        %v11952 = vrot.slane %v11950, 4
        %v11953 = vshll.u32 %v495, 16
        %v11955 = vrot.slane %v11953, 5
        %v11956 = vor.u32 %v11952, %v11955
        %v11957 = vrot.slane %v11956, 4
        %v11959 = vshll.u32 %v496, 16
        %v11961 = vrot.slane %v11959, 5
        %v11962 = vsel %vm2917, %v11957, %v11961
        %v11964 = vshrl.u32 %v497, 16
        %v11966 = vrot.slane %v11964, 4
        %v11967 = vshll.u32 %v497, 16
        %v11969 = vrot.slane %v11967, 5
        %v11970 = vor.u32 %v11966, %v11969
        %v11971 = vrot.slane %v11970, 4
        %v11973 = vshll.u32 %v498, 16
        %v11975 = vrot.slane %v11973, 5
        %v11976 = vsel %vm2917, %v11971, %v11975
        %v11978 = vshrl.u32 %v499, 16
        %v11980 = vrot.slane %v11978, 4
        %v11981 = vshll.u32 %v499, 16
        %v11983 = vrot.slane %v11981, 5
        %v11984 = vor.u32 %v11980, %v11983
        %v11985 = vrot.slane %v11984, 4
        %v11987 = vshll.u32 %v500, 16
        %v11989 = vrot.slane %v11987, 5
        %v11990 = vsel %vm2917, %v11985, %v11989
        %v11992 = vshrl.u32 %v501, 16
        %v11994 = vrot.slane %v11992, 4
        %v11995 = vshll.u32 %v501, 16
        %v11997 = vrot.slane %v11995, 5
        %v11998 = vor.u32 %v11994, %v11997
        %v11999 = vrot.slane %v11998, 4
        %v12001 = vshll.u32 %v502, 16
        %v12003 = vrot.slane %v12001, 5
        %v12004 = vsel %vm2917, %v11999, %v12003
        %v12006 = vshrl.u32 %v503, 16
        %v12008 = vrot.slane %v12006, 4
        %v12009 = vshll.u32 %v503, 16
        %v12011 = vrot.slane %v12009, 5
        %v12012 = vor.u32 %v12008, %v12011
        %v12013 = vrot.slane %v12012, 4
        %v12015 = vshll.u32 %v504, 16
        %v12017 = vrot.slane %v12015, 5
        %v12018 = vsel %vm2917, %v12013, %v12017
        %v12020 = vshrl.u32 %v505, 16
        %v12022 = vrot.slane %v12020, 4
        %v12023 = vshll.u32 %v505, 16
        %v12025 = vrot.slane %v12023, 5
        %v12026 = vor.u32 %v12022, %v12025
        %v12027 = vrot.slane %v12026, 4
        %v12029 = vshll.u32 %v506, 16
        %v12031 = vrot.slane %v12029, 5
        %v12032 = vsel %vm2917, %v12027, %v12031
        %v12041 = vmax.bf16 %v509, %v11934
        %v12042 = vmax.bf16 %v511, %v11948
        %v12043 = vmax.bf16 %v513, %v11962
        %v12044 = vmax.bf16 %v515, %v11976
        %v12045 = vmax.bf16 %v517, %v11990
        %v12046 = vmax.bf16 %v519, %v12004
        %v12047 = vmax.bf16 %v521, %v12018
        %v12048 = vmax.bf16 %v523, %v12032
        %v12049 = vmax.bf16 %v11913, %v12041
        %v12050 = vmax.bf16 %v11914, %v12042
        %v12051 = vmax.bf16 %v11915, %v12043
        %v12052 = vmax.bf16 %v11916, %v12044
        %v12053 = vmax.bf16 %v11917, %v12045
        %v12054 = vmax.bf16 %v11918, %v12046
        %v12055 = vmax.bf16 %v11919, %v12047
        %v12056 = vmax.bf16 %v11920, %v12048
        %v12057 = vld [vmem:[%s8] sm:$0xf]
        %v12058 = vld [vmem:[%s9] sm:$0x1]
        %v12060 = vlaneseq
        %v12061 = vshrl.u32 %v12060, 7
        %v12062 = vsub.s32 0, %v12061
        %v12063 = vrot.slane %v12058, %v12062
        %v12073 = vunpack.c.l.b16 %v12049
        %v12074 = vunpack.c.l.b16 %v12050
        %v12075 = vunpack.c.l.b16 %v12051
        %v12076 = vunpack.c.l.b16 %v12052
        %v12077 = vunpack.c.l.b16 %v12053
        %v12078 = vunpack.c.l.b16 %v12054
        %v12079 = vunpack.c.l.b16 %v12055
        %v12080 = vunpack.c.l.b16 %v12056
        %v12081 = vpack.c.b16 %v12074, %v12073
        %v12082 = vpack.c.b16 %v12076, %v12075
        %v12083 = vpack.c.b16 %v12078, %v12077
        %v12084 = vpack.c.b16 %v12080, %v12079
        %v12086 = vsel %vm1307, %v12081, 0
        %v12089 = vsel %vm1307, %v12082, 0
        %v12092 = vsel %vm1307, %v12083, 0
        %v12095 = vsel %vm1307, %v12084, 0
        %v12098 = vsel %vm1326, %v12057, 0
        %12100 = vmatprep.subr.bf16.mxu0 0
        %12101 = vmatpush1.bf16.msra.mxu0 %v12098
        %12102 = vmatprep.subr.bf16.mxu0 0
        %12103 = vmatpush1.bf16.msra.mxu0 0
        %12104 = vmatprep.subr.bf16.mxu0 0
        %12105 = vmatpush1.bf16.msra.mxu0 0
        %12106 = vmatprep.subr.bf16.mxu0 0
        %12107 = vmatpush1.bf16.msra.mxu0 0
        %12108 = vmatprep.subr.bf16.mxu0 0
        %12109 = vmatpush1.bf16.msra.mxu0 0
        %12110 = vmatprep.subr.bf16.mxu0 0
        %12111 = vmatpush1.bf16.msra.mxu0 0
        %12112 = vmatprep.subr.bf16.mxu0 0
        %12113 = vmatpush1.bf16.msra.mxu0 0
        %12114 = vmatprep.subr.bf16.mxu0 0
        %12115 = vmatpush1.bf16.msra.mxu0 0
        %12116 = vmatprep.subr.bf16.mxu0 0
        %12117 = vmatpush1.bf16.msra.mxu0 0
        %12118 = vmatprep.subr.bf16.mxu0 0
        %12119 = vmatpush1.bf16.msra.mxu0 0
        %12120 = vmatprep.subr.bf16.mxu0 0
        %12121 = vmatpush1.bf16.msra.mxu0 0
        %12122 = vmatprep.subr.bf16.mxu0 0
        %12123 = vmatpush1.bf16.msra.mxu0 0
        %12124 = vmatprep.subr.bf16.mxu0 0
        %12125 = vmatpush1.bf16.msra.mxu0 0
        %12126 = vmatprep.subr.bf16.mxu0 0
        %12127 = vmatpush1.bf16.msra.mxu0 0
        %12128 = vmatprep.subr.bf16.mxu0 0
        %12129 = vmatpush1.bf16.msra.mxu0 0
        %12130 = vmatprep.subr.bf16.mxu0 0
        %12131 = vmatpush1.bf16.msra.mxu0 0
        %12132 = vmatprep.mubr.bf16.mxu0 0
        %12133 = vmatmul.mubr.bf16.gmra.mrb[0].mxu0 %v12086
        %v12134 = vpop.f32.mrb[0].mxu0
        %v12135 = vadd.f32 %v12063, %v12134
        %v12136 = vpop.f32.mrb[0].mxu0
        %v12137 = vpop.f32.mrb[0].mxu0
        %v12138 = vadd.f32 %v12063, %v12137
        %v12139 = vpop.f32.mrb[0].mxu0
        %12140 = vmatprep.mubr.bf16.mxu0 0
        %12141 = vmatmul.mubr.bf16.gmra.mrb[0].mxu0 %v12089
        %v12142 = vpop.f32.mrb[0].mxu0
        %v12143 = vadd.f32 %v12063, %v12142
        %v12144 = vpop.f32.mrb[0].mxu0
        %v12145 = vpop.f32.mrb[0].mxu0
        %v12146 = vadd.f32 %v12063, %v12145
        %v12147 = vpop.f32.mrb[0].mxu0
        %12148 = vmatprep.mubr.bf16.mxu0 0
        %12149 = vmatmul.mubr.bf16.gmra.mrb[0].mxu0 %v12092
        %v12150 = vpop.f32.mrb[0].mxu0
        %v12151 = vadd.f32 %v12063, %v12150
        %v12152 = vpop.f32.mrb[0].mxu0
        %v12153 = vpop.f32.mrb[0].mxu0
        %v12154 = vadd.f32 %v12063, %v12153
        %v12155 = vpop.f32.mrb[0].mxu0
        %12156 = vmatprep.mubr.bf16.mxu0 0
        %12157 = vmatmul.mubr.bf16.gmra.mrb[0].mxu0 %v12095
        %v12158 = vpop.f32.mrb[0].mxu0
        %v12159 = vadd.f32 %v12063, %v12158
        %v12160 = vpop.f32.mrb[0].mxu0
        %v12161 = vpop.f32.mrb[0].mxu0
        %v12162 = vadd.f32 %v12063, %v12161
        %v12163 = vpop.f32.mrb[0].mxu0
        %12164 = vdwg.mxu0
        %12173 = vrot.lane.b32.xlu0 %v12135, 8
        %v12174 = vpop.permute.xlu0 %12173
        %12175 = vrot.lane.b32.xlu0 %v12138, 8
        %v12176 = vpop.permute.xlu0 %12175
        %12177 = vrot.lane.b32.xlu0 %v12143, 8
        %v12178 = vpop.permute.xlu0 %12177
        %12179 = vrot.lane.b32.xlu0 %v12146, 8
        %v12180 = vpop.permute.xlu0 %12179
        %12181 = vrot.lane.b32.xlu0 %v12151, 8
        %v12182 = vpop.permute.xlu0 %12181
        %12183 = vrot.lane.b32.xlu0 %v12154, 8
        %v12184 = vpop.permute.xlu0 %12183
        %12185 = vrot.lane.b32.xlu0 %v12159, 8
        %v12186 = vpop.permute.xlu0 %12185
        %12187 = vrot.lane.b32.xlu0 %v12162, 8
        %v12188 = vpop.permute.xlu0 %12187
        %v12197 = vsel %vm1307, %v11785, %v12174
        %v12198 = vsel %vm1307, %v11786, %v12176
        %v12199 = vsel %vm1307, %v11787, %v12178
        %v12200 = vsel %vm1307, %v11788, %v12180
        %v12201 = vsel %vm1307, %v11789, %v12182
        %v12202 = vsel %vm1307, %v11790, %v12184
        %v12203 = vsel %vm1307, %v11791, %v12186
        %v12204 = vsel %vm1307, %v11792, %v12188
        %vm12205 = vcmask 130048
        %12206 = vst.msk [vmem:[%s451] sm:$0xff] %vm12205, %v12197
        %12207 = vst.msk [vmem:[%s451 + $0x8] sm:$0xff] %vm12205, %v12198
        %12208 = vst.msk [vmem:[%s451 + $0x10] sm:$0xff] %vm12205, %v12199
        %12209 = vst.msk [vmem:[%s451 + $0x18] sm:$0xff] %vm12205, %v12200
        %12210 = vst.msk [vmem:[%s451 + $0x20] sm:$0xff] %vm12205, %v12201
        %12211 = vst.msk [vmem:[%s451 + $0x28] sm:$0xff] %vm12205, %v12202
        %12212 = vst.msk [vmem:[%s451 + $0x30] sm:$0xff] %vm12205, %v12203
        %12213 = vst.msk [vmem:[%s451 + $0x38] sm:$0xff] %vm12205, %v12204
        %s12214 = sand.u32 %s284, 1
        %s12215 = scalar_lea.sflag [#allocation3], %s12214
        %s12216 = sand.u32 %s284, 1
        %s12217 = smul.addr %s12216, 64
        %s12218 = scalar_lea.vmem [#allocation2], %s12217
        // Predicated region
        $region61: #{downsample_forward.1} parent=59 // pred_check
          %p12219 = pneg %p294
        $region62: #{downsample_forward.1} parent=59 // pred_check_branch
          %12221 = sbr.rel (%p12219) target = $region64
        $region63: #{downsample_forward.1} parent=59 // pred_region
          %s12223 = ssub.s32 1024, 1024
          %12224 = vsyncadd %s12215, %s12223
          %s12225 = smul.addr %s29, 8
          %s12226 = smul.addr %s28, 8
          %s12227 = sadd.s32 %s12225, %s12226
          %s12228 = smul.addr %s12227, 128
          %s12229 = scalar_lea.hbm %s10, %s12228
          %s12230 = sshll.u32 %s12218, 4
          %s12231 = int_to_ptr.vmem [resolvable:$true] %s12230
          %12236 = dma.vmem_to_hbm [thread:$0]  %s12231, 1024, %s12229, %s12215, 128, 128, 8
        $region64: #{downsample_forward.1} parent=59 // pred_fallthru
          _
      $region60: #{downsample_forward.1} parent=5 // pred_fallthru
        _
      %p12237 = scmp.le.s32.totalorder 2, %s19
      // Predicated region
      $region65: #{downsample_forward.1} parent=5 // pred_check
        %p12238 = pneg %p12237
      $region66: #{downsample_forward.1} parent=5 // pred_check_branch
        %12240 = sbr.rel (%p12238) target = $region68
      $region67: #{downsample_forward.1} parent=5 // pred_region
        %s12241 = ssub.s32 %s19, 2
        // Predicated region
        $region69: #{downsample_forward.1} parent=67 // pred_check
          %p12242 = pneg %p300
        $region70: #{downsample_forward.1} parent=67 // pred_check_branch
          %12244 = sbr.rel (%p12242) target = $region72
        $region71: #{downsample_forward.1} parent=67 // pred_region
          %s12245 = sand.u32 %s285, 1
          %s12246 = scalar_lea.sflag [#allocation3], %s12245
          %s12247 = sand.u32 %s285, 1
          %s12248 = smul.addr %s12247, 64
          %s12249 = scalar_lea.vmem [#allocation2], %s12248
          %12250 = dma.done %s12246, 1024
        $region72: #{downsample_forward.1} parent=67 // pred_fallthru
          _
      $region68: #{downsample_forward.1} parent=5 // pred_fallthru
        _
    $region6: #{downsample_forward.1} parent=1 // loop_footer
      %s23 = sadd.s32 1, %s19
    $region7: #{downsample_forward.1} parent=1 // loop_footer_branch
      %18 = sbr.rel target = $region3
    $region8: #{downsample_forward.1} parent=1 // loop_exit
      _
    %12251 = vsyncpa [#allocation3], 1
    %s12252 = scalar_lea.sflag [#allocation3], 1
    %12253 = vsyncpa %s12252, 1

</llo_original>
